<compile_context>
chip_gen: v7x
topology: tpu7x:2x2x1
jax: 0.10.0
libtpu: 0.0.40
codegen_flags: <defaults>
</compile_context>

<pallas_src>
import functools

import jax
import jax.numpy as jnp
from jax.experimental import pallas as pl
from jax.experimental.pallas import tpu as pltpu


def _round_up(x, m):
    return ((x + m - 1) // m) * m


# --------------------------------------------------------------------------
# Kernel 1: dual 3x3 conv + ReLU + fused 2x2 avg pool (branch-parallel, grid=(2,))
# --------------------------------------------------------------------------
def _dual_conv_pool_kernel(x_ref, w_ref, b_ref, pool_ref, o_ref, *, Hh, Ww):
    # x_ref: (1, B, Hh+2, Ww+2, Cin_p)  w_ref: (1, Kp, Cp)  b_ref: (1, 1, Cp)
    # pool_ref: (B*N, M) constant 0/0.25 pooling matrix   o_ref: (1, B, N, Cp)
    x = x_ref[0]
    B = x.shape[0]
    Cin_p = x.shape[3]
    Kp = w_ref.shape[1]
    Cp = w_ref.shape[2]
    M = B * Hh * Ww

    # im2col in VMEM: 9 shifted slices concatenated along the lane axis, zero-padded
    # to Kp=128 -> ONE lane-dense (M, 128) x (128, Cp) matmul instead of nine K=8 pushes.
    cols = []
    for dy in range(3):
        for dx in range(3):
            cols.append(x[:, dy:dy + Hh, dx:dx + Ww, :].reshape(M, Cin_p))
    k_used = 9 * Cin_p
    if k_used < Kp:
        cols.append(jnp.zeros((M, Kp - k_used), jnp.float32))
    patch = jnp.concatenate(cols, axis=-1)                       # (M, Kp)

    y = jnp.maximum(
        jnp.dot(patch, w_ref[0], preferred_element_type=jnp.float32) + b_ref[0],
        0.0)                                                     # (M, Cp)

    # fused 2x2 average pool as a second matmul (linear op, exact).
    pooled = jnp.dot(pool_ref[...], y, preferred_element_type=jnp.float32)  # (B*N, Cp)
    o_ref[0] = pooled.reshape(B, -1, Cp)


def dual_conv_pool(x_pad, w, b, pool):
    nb, B, Hp2, Wp2, Cin_p = x_pad.shape
    Hh, Ww = Hp2 - 2, Wp2 - 2
    N = (Hh // 2) * (Ww // 2)
    M = B * Hh * Ww
    Kp, Cp = w.shape[1], w.shape[2]
    BN = pool.shape[0]
    return pl.pallas_call(
        functools.partial(_dual_conv_pool_kernel, Hh=Hh, Ww=Ww),
        out_shape=jax.ShapeDtypeStruct((nb, B, N, Cp), jnp.float32),
        grid=(nb,),
        in_specs=[pl.BlockSpec((1, B, Hp2, Wp2, Cin_p), lambda d: (d, 0, 0, 0, 0)),
                  pl.BlockSpec((1, Kp, Cp), lambda d: (d, 0, 0)),
                  pl.BlockSpec((1, 1, Cp), lambda d: (d, 0, 0)),
                  pl.BlockSpec((BN, M), lambda d: (0, 0))],
        out_specs=pl.BlockSpec((1, B, N, Cp), lambda d: (d, 0, 0, 0)),
        compiler_params=pltpu.CompilerParams(dimension_semantics=("parallel",)),
    )(x_pad, w, b, pool)


# --------------------------------------------------------------------------
# Kernel 2: dual cross-attention + initial-hidden projections (fused, grid=(1,))
# --------------------------------------------------------------------------
def _attn_init_kernel(feat_ref, wq_ref, wk_ref, wvh_ref, wvp_ref,
                      wh0_ref, bh0_ref, ctx_ref, h0_ref, *, scale):
    fp = feat_ref[0]                          # (B, N, Cp)   pme features
    fh = feat_ref[1]                          # (B, N, Cp)   hme features
    B, N, Cp = fp.shape
    fp2 = fp.reshape(B * N, Cp)
    fh2 = fh.reshape(B * N, Cp)

    q = jnp.dot(fp2, wq_ref[...], preferred_element_type=jnp.float32).reshape(B, N, -1)
    k = jnp.dot(fh2, wk_ref[...], preferred_element_type=jnp.float32).reshape(B, N, -1)
    scores = jnp.einsum('bna,bma->bnm', q, k,
                        preferred_element_type=jnp.float32) * scale      # (B, Np, Nh)

    def softmax_last(x):
        m = jnp.max(x, axis=-1, keepdims=True)
        e = jnp.exp(x - m)
        return e * pl.reciprocal(jnp.sum(e, axis=-1, keepdims=True), approx=True)

    # mean_q(attn @ (F @ Wv)) == ((mean_q(attn) @ F) @ Wv)  -> project AFTER the mean.
    a_ph = softmax_last(scores)
    abar_ph = jnp.mean(a_ph, axis=1, keepdims=True)                      # (B, 1, Nh)
    pooled_h = jnp.einsum('bnm,bmc->bnc', abar_ph, fh,
                          preferred_element_type=jnp.float32)[:, 0, :]   # (B, Cp)
    ctx_ref[0] = jnp.dot(pooled_h, wvh_ref[...], preferred_element_type=jnp.float32)

    a_hp = softmax_last(jnp.swapaxes(scores, 1, 2))
    abar_hp = jnp.mean(a_hp, axis=1, keepdims=True)                      # (B, 1, Np)
    pooled_p = jnp.einsum('bnm,bmc->bnc', abar_hp, fp,
                          preferred_element_type=jnp.float32)[:, 0, :]   # (B, Cp)
    ctx_ref[1] = jnp.dot(pooled_p, wvp_ref[...], preferred_element_type=jnp.float32)

    # initial decoder hidden = Linear(enc -> H)(spatial mean of features)
    mean_p = jnp.mean(fp, axis=1)
    mean_h = jnp.mean(fh, axis=1)
    h0_ref[0] = jnp.dot(mean_p, wh0_ref[0],
                        preferred_element_type=jnp.float32) + bh0_ref[0]
    h0_ref[1] = jnp.dot(mean_h, wh0_ref[1],
                        preferred_element_type=jnp.float32) + bh0_ref[1]


def cross_attention_and_init(feat, params, dims):
    # TODO(synk): DualCrossAttention reference not provided; implemented as scaled-dot
    # bidirectional cross-attention with mean-pooled contexts (B, attn_dim).
    nb, B, N, Cp = feat.shape
    Ap, Hp = dims['Ap'], dims['Hp']
    scale = 1.0 / float(dims['A']) ** 0.5
    return pl.pallas_call(
        functools.partial(_attn_init_kernel, scale=scale),
        out_shape=(jax.ShapeDtypeStruct((2, B, Ap), jnp.float32),
                   jax.ShapeDtypeStruct((2, B, Hp), jnp.float32)),
        grid=(1,),
        in_specs=[pl.BlockSpec((nb, B, N, Cp), lambda i: (0, 0, 0, 0)),
                  pl.BlockSpec((Cp, Ap), lambda i: (0, 0)),
                  pl.BlockSpec((Cp, Ap), lambda i: (0, 0)),
                  pl.BlockSpec((Cp, Ap), lambda i: (0, 0)),
                  pl.BlockSpec((Cp, Ap), lambda i: (0, 0)),
                  pl.BlockSpec((2, Cp, Hp), lambda i: (0, 0, 0)),
                  pl.BlockSpec((2, 1, Hp), lambda i: (0, 0, 0))],
        out_specs=(pl.BlockSpec((2, B, Ap), lambda i: (0, 0, 0)),
                   pl.BlockSpec((2, B, Hp), lambda i: (0, 0, 0))),
    )(feat, params['wq'], params['wk'], params['wvh'], params['wvp'],
      params['w_h0'], params['b_h0'])


# --------------------------------------------------------------------------
# Kernel 3: fused dual GRU decode, grid = (branch,), whole T-1 loop in-kernel
# --------------------------------------------------------------------------
def _dual_gru_decode_kernel(tf_ref, tok_ref,                 # scalar-prefetch (SMEM)
                            h0_ref, ctx_ref, emb_ref, wih_ref, bih_ref,
                            whh_ref, bhh_ref, wout_ref, bout_ref,
                            logits_ref, *, Hp, Tm1):
    d = pl.program_id(0)
    B = h0_ref.shape[1]
    Vp = emb_ref.shape[1]

    lane1 = jax.lax.broadcasted_iota(jnp.int32, (1, Vp), 1)
    lane_b = jax.lax.broadcasted_iota(jnp.int32, (B, Vp), 1)

    def token_one_hot(t_idx):
        # (B, Vp) one-hot built in-kernel from int tokens in SMEM (no HBM one-hots).
        rows = [(lane1 == tok_ref[d, t_idx * B + b]).astype(jnp.float32)
                for b in range(B)]
        return jnp.concatenate(rows, axis=0)

    emb_w = emb_ref[0]
    w_ih = wih_ref[0]
    b_ih = bih_ref[0]
    w_hh = whh_ref[0]
    b_hh = bhh_ref[0]
    w_out = wout_ref[0]
    b_out = bout_ref[0]
    ctx = ctx_ref[0]                                  # (B, Ap)

    h = h0_ref[0]                                     # (B, Hp)
    prev_oh = token_one_hot(0)                        # one-hot of <sos>/first token

    # TODO(synk): Decoder reference not provided; stand-in = embedding + context
    # concat -> GRU cell -> linear-to-vocab.  The whole T-1 recurrence is fully
    # unrolled in-kernel (T is static) — no per-step grid launches or DMAs.
    for t in range(Tm1):
        emb = jnp.dot(prev_oh, emb_w, preferred_element_type=jnp.float32)      # (B, Ep)
        x_in = jnp.concatenate([emb, ctx], axis=-1)                            # (B, Ep+Ap)
        gi = jnp.dot(x_in, w_ih, preferred_element_type=jnp.float32) + b_ih    # (B, 3*Hp)
        gh = jnp.dot(h, w_hh, preferred_element_type=jnp.float32) + b_hh
        r = jax.nn.sigmoid(gi[:, 0:Hp] + gh[:, 0:Hp])          # 128-aligned lane slices
        z = jax.nn.sigmoid(gi[:, Hp:2 * Hp] + gh[:, Hp:2 * Hp])
        n = jnp.tanh(gi[:, 2 * Hp:3 * Hp] + r * gh[:, 2 * Hp:3 * Hp])
        h = (1.0 - z) * n + z * h

        logits = jnp.dot(h, w_out, preferred_element_type=jnp.float32) + b_out  # (B, Vp)
        logits_ref[0, :, t, :] = logits

        if t + 1 < Tm1:
            # next prev token: teacher forcing (device-side coin in SMEM) vs greedy argmax
            amax = jnp.max(logits, axis=-1, keepdims=True)
            first = jnp.min(jnp.where(logits >= amax, lane_b, Vp),
                            axis=-1, keepdims=True)
            greedy_oh = (lane_b == first).astype(jnp.float32)
            teach_oh = token_one_hot(t + 1)
            use_tf = (tf_ref[d, t] > 0).astype(jnp.float32)
            prev_oh = use_tf * teach_oh + (1.0 - use_tf) * greedy_oh


def dual_gru_decode(params, dims, tf_mask, tokens_flat, h0, ctx, Tm1):
    Hp, Vp, Ap, Ep, EA = dims['Hp'], dims['Vp'], dims['Ap'], dims['Ep'], dims['EA']
    nb, B = h0.shape[0], h0.shape[1]
    grid_spec = pltpu.PrefetchScalarGridSpec(
        num_scalar_prefetch=2,              # tf coins (2, T-1) + tokens (2, T*B), int32
        grid=(nb,),
        in_specs=[
            pl.BlockSpec((1, B, Hp), lambda d, tf, tok: (d, 0, 0)),          # h0
            pl.BlockSpec((1, B, Ap), lambda d, tf, tok: (d, 0, 0)),          # context
            pl.BlockSpec((1, Vp, Ep), lambda d, tf, tok: (d, 0, 0)),         # embedding
            pl.BlockSpec((1, EA, 3 * Hp), lambda d, tf, tok: (d, 0, 0)),     # fused w_ih
            pl.BlockSpec((1, 1, 3 * Hp), lambda d, tf, tok: (d, 0, 0)),      # b_ih
            pl.BlockSpec((1, Hp, 3 * Hp), lambda d, tf, tok: (d, 0, 0)),     # w_hh
            pl.BlockSpec((1, 1, 3 * Hp), lambda d, tf, tok: (d, 0, 0)),      # b_hh
            pl.BlockSpec((1, Hp, Vp), lambda d, tf, tok: (d, 0, 0)),         # w_out
            pl.BlockSpec((1, 1, Vp), lambda d, tf, tok: (d, 0, 0)),          # b_out
        ],
        out_specs=pl.BlockSpec((1, B, Tm1, Vp), lambda d, tf, tok: (d, 0, 0, 0)),
    )
    return pl.pallas_call(
        functools.partial(_dual_gru_decode_kernel, Hp=Hp, Tm1=Tm1),
        out_shape=jax.ShapeDtypeStruct((nb, B, Tm1, Vp), jnp.float32),
        grid_spec=grid_spec,
        compiler_params=pltpu.CompilerParams(dimension_semantics=("parallel",)),
    )(tf_mask, tokens_flat, h0, ctx,
      params['dec_emb'], params['dec_w_ih'], params['dec_b_ih'],
      params['dec_w_hh'], params['dec_b_hh'], params['dec_w_out'], params['dec_b_out'])


# ------------------------------ model glue ------------------------------

def dla_forward(params, images_pme, images_hme, tgt_seq_pme, tgt_seq_hme, *,
                dims, teacher_forcing_ratio=0.5, tf_key=None):
    B, Cin, Hi, Wi = images_pme.shape
    Cin_p = dims['Cin_p']

    # ---- encoders: both branches in one branch-parallel conv+pool kernel ----
    # TODO(synk): DenseNetEncoder reference not provided; stand-in = 3x3 conv + ReLU
    # + 2x2 average pool (all fused into Pallas kernel 1).
    x = jnp.stack([images_pme, images_hme])                     # (2, B, Cin, H, W)
    x = jnp.transpose(x, (0, 1, 3, 4, 2))                       # NCHW -> NHWC
    x = jnp.pad(x, ((0, 0), (0, 0), (1, 1), (1, 1), (0, Cin_p - Cin)))

    # constant 0/0.25 pooling matrix (B*N, M): pooled = Pool @ relu(conv)
    N = (Hi // 2) * (Wi // 2)
    M = B * Hi * Wi
    mp = jnp.arange(B * N)
    pb, prem = mp // N, mp % N
    ph2, pw2 = prem // (Wi // 2), prem % (Wi // 2)
    mm = jnp.arange(M)
    mb, mrem = mm // (Hi * Wi), mm % (Hi * Wi)
    mh, mw = mrem // Wi, mrem % Wi
    match = ((mb[None, :] == pb[:, None])
             & ((mh[None, :] // 2) == ph2[:, None])
             & ((mw[None, :] // 2) == pw2[:, None]))
    pool = jnp.where(match, 0.25, 0.0).astype(jnp.float32)

    feat = dual_conv_pool(x, params['conv_w'], params['conv_b'], pool)   # (2, B, N, Cp)

    # ---- cross attention + initial decoder hidden (one fused kernel) ----
    ctx, h0 = cross_attention_and_init(feat, params, dims)
    # ctx[0] = context_p_to_h (-> decoder_pme), ctx[1] = context_h_to_p (-> decoder_hme)

    # ---- teacher-forcing coins: sampled once on device, no per-step host sync ----
    if tf_key is None:
        tf_key = jax.random.PRNGKey(42)
    T = tgt_seq_pme.shape[1]
    tf_mask = (jax.random.uniform(tf_key, (2, T - 1))
               < teacher_forcing_ratio).astype(jnp.int32)

    # tokens as int32 for scalar prefetch: tok_flat[d, t*B + b] = tgt_d[b, t]
    tok = jnp.stack([tgt_seq_pme, tgt_seq_hme]).astype(jnp.int32)        # (2, B, T)
    tokens_flat = jnp.transpose(tok, (0, 2, 1)).reshape(2, T * B)

    # ---- fused dual GRU decode (whole T-1 recurrence in-kernel, per branch) ----
    logits = dual_gru_decode(params, dims, tf_mask, tokens_flat, h0, ctx, T - 1)
    # logits: (2, B, T-1, Vp) -- already (B, T-1, ...) ordered, single :V slice below.

    V, A = dims['V'], dims['A']
    logits_pme = logits[0, :, :, :V]
    logits_hme = logits[1, :, :, :V]
    context_p_to_h = ctx[0, :, :A]
    context_h_to_p = ctx[1, :, :A]
    return logits_pme, logits_hme, context_p_to_h, context_h_to_p


# ------------------------------ parameters ------------------------------

def init_params(key, vocab_size, cfg, in_channels=1):
    E = cfg['emb_dim']
    enc = cfg['encoder_out_channels']
    A = cfg['attention_dim']
    H = cfg['decoder_hidden_dim']
    V = vocab_size
    # lane-dense internal padding (zero-padded -> numerically identical; padded vocab
    # bias is -1e9 so the in-kernel greedy argmax never selects a padded token)
    Cp, Ap, Hp, Vp, Ep = (_round_up(v, 128) for v in (enc, A, H, V, E))
    Cin_p = _round_up(in_channels, 8)
    Kp = _round_up(9 * Cin_p, 128)
    EA = Ep + Ap

    keys = iter(jax.random.split(key, 64))

    def nrm(shape, scale=0.1):
        return scale * jax.random.normal(next(keys), shape, dtype=jnp.float32)

    def pad2(w, rp, cp_, fill=0.0):
        r, c = w.shape
        return jnp.full((rp, cp_), fill, jnp.float32).at[:r, :c].set(w)

    def pad_gates(w, rp, row_off=0):  # (r, 3H) -> (rp, 3*Hp), gate g at cols [g*Hp, g*Hp+H)
        r = w.shape[0]
        out = jnp.zeros((rp, 3 * Hp), jnp.float32)
        for g in range(3):
            out = out.at[row_off:row_off + r, g * Hp:g * Hp + H].set(w[:, g * H:(g + 1) * H])
        return out

    # conv stem weights laid out for im2col: row index = tap*Cin_p + channel
    conv_w, conv_b = [], []
    for _ in range(2):
        w = nrm((9, in_channels, enc))
        wp = jnp.zeros((Kp, Cp), jnp.float32)
        for tap in range(9):
            wp = wp.at[tap * Cin_p:tap * Cin_p + in_channels, :enc].set(w[tap])
        conv_w.append(wp)
        conv_b.append(pad2(jnp.zeros((1, enc), jnp.float32), 1, Cp))

    w_h0 = jnp.stack([pad2(nrm((enc, H)), Cp, Hp) for _ in range(2)])
    b_h0 = jnp.stack([pad2(jnp.zeros((1, H), jnp.float32), 1, Hp) for _ in range(2)])
    attn_w = [pad2(nrm((enc, A)), Cp, Ap) for _ in range(4)]

    dec_emb, wih, bih, whh, bhh, wout, bout = ([] for _ in range(7))
    for _ in range(2):
        dec_emb.append(pad2(nrm((V, E)), Vp, Ep))
        w_ih = nrm((E + A, 3 * H))
        # fused input-gate weight: emb rows at [0:E], ctx rows at [Ep:Ep+A]
        w_fused = pad_gates(w_ih[:E], EA, row_off=0) + pad_gates(w_ih[E:], EA, row_off=Ep)
        wih.append(w_fused)
        bih.append(pad_gates(jnp.zeros((1, 3 * H), jnp.float32), 1))
        whh.append(pad_gates(nrm((H, 3 * H)), Hp))
        bhh.append(pad_gates(jnp.zeros((1, 3 * H), jnp.float32), 1))
        wout.append(pad2(nrm((H, V)), Hp, Vp))
        bout.append(pad2(jnp.zeros((1, V), jnp.float32), 1, Vp, fill=-1e9))

    params = {
        'conv_w': jnp.stack(conv_w), 'conv_b': jnp.stack(conv_b),
        'w_h0': w_h0, 'b_h0': b_h0,
        'wq': attn_w[0], 'wk': attn_w[1], 'wvh': attn_w[2], 'wvp': attn_w[3],
        'dec_emb': jnp.stack(dec_emb),
        'dec_w_ih': jnp.stack(wih), 'dec_b_ih': jnp.stack(bih),
        'dec_w_hh': jnp.stack(whh), 'dec_b_hh': jnp.stack(bhh),
        'dec_w_out': jnp.stack(wout), 'dec_b_out': jnp.stack(bout),
    }
    dims = dict(V=V, Vp=Vp, E=E, Ep=Ep, A=A, Ap=Ap, H=H, Hp=Hp,
                C=enc, Cp=Cp, Cin=in_channels, Cin_p=Cin_p, Kp=Kp, EA=EA)
    return params, dims


# --------------------------------- main ---------------------------------

if __name__ == "__main__":
    key = jax.random.PRNGKey(0)
    k_param, k_imgp, k_imgh, k_tp, k_th, k_tf = jax.random.split(key, 6)

    B, Cin, Himg, Wimg = 2, 1, 16, 16
    vocab_size = 16
    T = 6
    cfg = dict(emb_dim=16, encoder_out_channels=32,
               attention_dim=32, decoder_hidden_dim=32)

    params, dims = init_params(k_param, vocab_size, cfg, in_channels=Cin)

    images_pme = jax.random.normal(k_imgp, (B, Cin, Himg, Wimg), dtype=jnp.float32)
    images_hme = jax.random.normal(k_imgh, (B, Cin, Himg, Wimg), dtype=jnp.float32)
    tgt_seq_pme = jax.random.randint(k_tp, (B, T), 0, vocab_size)
    tgt_seq_hme = jax.random.randint(k_th, (B, T), 0, vocab_size)

    fwd = jax.jit(functools.partial(dla_forward, dims=dims,
                                    teacher_forcing_ratio=0.5))
    out = fwd(params, images_pme, images_hme, tgt_seq_pme, tgt_seq_hme, tf_key=k_tf)
    logits_pme, logits_hme, ctx_ph, ctx_hp = jax.block_until_ready(out)

    assert logits_pme.shape == (B, T - 1, vocab_size)
    assert logits_hme.shape == (B, T - 1, vocab_size)
    assert ctx_ph.shape == (B, cfg['attention_dim'])
    assert ctx_hp.shape == (B, cfg['attention_dim'])
    assert bool(jnp.all(jnp.isfinite(logits_pme))) and bool(jnp.all(jnp.isfinite(logits_hme)))
    print("KERNEL_OK")
</pallas_src>

<mosaic_0001>
module attributes {stable_mosaic.version = 11 : i64} {
  func.func @_dual_conv_pool_kernel(%arg0: i32, %arg1: memref<1x2x18x18x8xf32, #tpu.memory_space<vmem>>, %arg2: memref<1x128x128xf32, #tpu.memory_space<vmem>>, %arg3: memref<1x1x128xf32, #tpu.memory_space<vmem>>, %arg4: memref<128x512xf32, #tpu.memory_space<vmem>>, %arg5: memref<1x2x64x128xf32, #tpu.memory_space<vmem>>) attributes {dimension_semantics = [#tpu.dimension_semantics<parallel>], iteration_bounds = array<i64: 2>, scalar_prefetch = 0 : i64, scratch_operands = 0 : i64, tpu.core_type = #tpu.core_type<tc>, window_params = [{transform_indices = @transform_0, window_bounds = array<i64: 1, 2, 18, 18, 8>}, {transform_indices = @transform_1, window_bounds = array<i64: 1, 128, 128>}, {transform_indices = @transform_2, window_bounds = array<i64: 1, 1, 128>}, {pipeline_mode = #tpu.pipeline_mode<synchronous>, transform_indices = @transform_3, window_bounds = array<i64: 128, 512>}, {transform_indices = @transform_4, window_bounds = array<i64: 1, 2, 64, 128>}]} {
    %c0 = arith.constant 0 : index
    %c0_0 = arith.constant 0 : index
    %c0_1 = arith.constant 0 : index
    %c0_2 = arith.constant 0 : index
    %c0_3 = arith.constant 0 : index
    %0 = vector.load %arg1[%c0, %c0_0, %c0_1, %c0_2, %c0_3] : memref<1x2x18x18x8xf32, #tpu.memory_space<vmem>>, vector<1x2x18x18x8xf32>
    %1 = vector.shape_cast %0 : vector<1x2x18x18x8xf32> to vector<2x18x18x8xf32>
    %2 = vector.extract_strided_slice %1 {offsets = [0, 0, 0, 0], sizes = [2, 16, 16, 8], strides = [1, 1, 1, 1]} : vector<2x18x18x8xf32> to vector<2x16x16x8xf32>
    %3 = vector.shape_cast %2 : vector<2x16x16x8xf32> to vector<512x8xf32>
    %4 = vector.extract_strided_slice %1 {offsets = [0, 0, 1, 0], sizes = [2, 16, 16, 8], strides = [1, 1, 1, 1]} : vector<2x18x18x8xf32> to vector<2x16x16x8xf32>
    %5 = vector.shape_cast %4 : vector<2x16x16x8xf32> to vector<512x8xf32>
    %6 = vector.extract_strided_slice %1 {offsets = [0, 0, 2, 0], sizes = [2, 16, 16, 8], strides = [1, 1, 1, 1]} : vector<2x18x18x8xf32> to vector<2x16x16x8xf32>
    %7 = vector.shape_cast %6 : vector<2x16x16x8xf32> to vector<512x8xf32>
    %8 = vector.extract_strided_slice %1 {offsets = [0, 1, 0, 0], sizes = [2, 16, 16, 8], strides = [1, 1, 1, 1]} : vector<2x18x18x8xf32> to vector<2x16x16x8xf32>
    %9 = vector.shape_cast %8 : vector<2x16x16x8xf32> to vector<512x8xf32>
    %10 = vector.extract_strided_slice %1 {offsets = [0, 1, 1, 0], sizes = [2, 16, 16, 8], strides = [1, 1, 1, 1]} : vector<2x18x18x8xf32> to vector<2x16x16x8xf32>
    %11 = vector.shape_cast %10 : vector<2x16x16x8xf32> to vector<512x8xf32>
    %12 = vector.extract_strided_slice %1 {offsets = [0, 1, 2, 0], sizes = [2, 16, 16, 8], strides = [1, 1, 1, 1]} : vector<2x18x18x8xf32> to vector<2x16x16x8xf32>
    %13 = vector.shape_cast %12 : vector<2x16x16x8xf32> to vector<512x8xf32>
    %14 = vector.extract_strided_slice %1 {offsets = [0, 2, 0, 0], sizes = [2, 16, 16, 8], strides = [1, 1, 1, 1]} : vector<2x18x18x8xf32> to vector<2x16x16x8xf32>
    %15 = vector.shape_cast %14 : vector<2x16x16x8xf32> to vector<512x8xf32>
    %16 = vector.extract_strided_slice %1 {offsets = [0, 2, 1, 0], sizes = [2, 16, 16, 8], strides = [1, 1, 1, 1]} : vector<2x18x18x8xf32> to vector<2x16x16x8xf32>
    %17 = vector.shape_cast %16 : vector<2x16x16x8xf32> to vector<512x8xf32>
    %18 = vector.extract_strided_slice %1 {offsets = [0, 2, 2, 0], sizes = [2, 16, 16, 8], strides = [1, 1, 1, 1]} : vector<2x18x18x8xf32> to vector<2x16x16x8xf32>
    %19 = vector.shape_cast %18 : vector<2x16x16x8xf32> to vector<512x8xf32>
    %cst = arith.constant 0.000000e+00 : f32
    %20 = vector.broadcast %cst : f32 to vector<512x56xf32>
    %21 = tpu.concatenate %3, %5, %7, %9, %11, %13, %15, %17, %19, %20 in 1 : vector<512x8xf32>, vector<512x8xf32>, vector<512x8xf32>, vector<512x8xf32>, vector<512x8xf32>, vector<512x8xf32>, vector<512x8xf32>, vector<512x8xf32>, vector<512x8xf32>, vector<512x56xf32> -> vector<512x128xf32>
    %c0_4 = arith.constant 0 : index
    %c0_5 = arith.constant 0 : index
    %c0_6 = arith.constant 0 : index
    %22 = vector.load %arg2[%c0_4, %c0_5, %c0_6] : memref<1x128x128xf32, #tpu.memory_space<vmem>>, vector<1x128x128xf32>
    %23 = vector.shape_cast %22 : vector<1x128x128xf32> to vector<128x128xf32>
    %cst_7 = arith.constant dense<0.000000e+00> : vector<512x128xf32>
    %24 = tpu.matmul %21, %23, %cst_7 {dimension_numbers = #tpu.dot_dimension_numbers<[1], [0], [0], [1], [0, 0, 1, 1], [], []>} : vector<512x128xf32>, vector<128x128xf32>, vector<512x128xf32> -> vector<512x128xf32>
    %c0_8 = arith.constant 0 : index
    %c0_9 = arith.constant 0 : index
    %c0_10 = arith.constant 0 : index
    %25 = vector.load %arg3[%c0_8, %c0_9, %c0_10] : memref<1x1x128xf32, #tpu.memory_space<vmem>>, vector<1x1x128xf32>
    %26 = vector.shape_cast %25 : vector<1x1x128xf32> to vector<1x128xf32>
    %27 = vector.broadcast %26 : vector<1x128xf32> to vector<512x128xf32>
    %28 = arith.addf %24, %27 : vector<512x128xf32>
    %cst_11 = arith.constant 0.000000e+00 : f32
    %29 = vector.broadcast %cst_11 : f32 to vector<512x128xf32>
    %30 = arith.maximumf %28, %29 : vector<512x128xf32>
    %c0_12 = arith.constant 0 : index
    %c0_13 = arith.constant 0 : index
    %31 = vector.load %arg4[%c0_12, %c0_13] : memref<128x512xf32, #tpu.memory_space<vmem>>, vector<128x512xf32>
    %cst_14 = arith.constant dense<0.000000e+00> : vector<128x128xf32>
    %32 = tpu.matmul %31, %30, %cst_14 {dimension_numbers = #tpu.dot_dimension_numbers<[1], [0], [0], [1], [0, 0, 1, 1], [], []>} : vector<128x512xf32>, vector<512x128xf32>, vector<128x128xf32> -> vector<128x128xf32>
    %33 = vector.shape_cast %32 : vector<128x128xf32> to vector<2x64x128xf32>
    %c0_15 = arith.constant 0 : index
    %c0_16 = arith.constant 0 : index
    %c0_17 = arith.constant 0 : index
    %c0_18 = arith.constant 0 : index
    %34 = vector.load %arg5[%c0_15, %c0_16, %c0_17, %c0_18] : memref<1x2x64x128xf32, #tpu.memory_space<vmem>>, vector<1x2x64x128xf32>
    %35 = vector.shape_cast %34 : vector<1x2x64x128xf32> to vector<2x64x128xf32>
    %36 = vector.shape_cast %33 : vector<2x64x128xf32> to vector<1x2x64x128xf32>
    tpu.vector_store %arg5[%c0_15, %c0_16, %c0_17, %c0_18], %36 {strides = array<i32>} : memref<1x2x64x128xf32, #tpu.memory_space<vmem>>, vector<1x2x64x128xf32>,
    return
  }
  func.func @transform_0(%arg0: i32) -> (i32, i32, i32, i32, i32) {
    %c0_i32 = arith.constant 0 : i32
    %c0_i32_0 = arith.constant 0 : i32
    %c0_i32_1 = arith.constant 0 : i32
    %c0_i32_2 = arith.constant 0 : i32
    %c0_i32_3 = arith.constant 0 : i32
    return %arg0, %c0_i32, %c0_i32_0, %c0_i32_1, %c0_i32_2 : i32, i32, i32, i32, i32
  }
  func.func @transform_1(%arg0: i32) -> (i32, i32, i32) {
    %c0_i32 = arith.constant 0 : i32
    %c0_i32_0 = arith.constant 0 : i32
    %c0_i32_1 = arith.constant 0 : i32
    return %arg0, %c0_i32, %c0_i32_0 : i32, i32, i32
  }
  func.func @transform_2(%arg0: i32) -> (i32, i32, i32) {
    %c0_i32 = arith.constant 0 : i32
    %c0_i32_0 = arith.constant 0 : i32
    %c0_i32_1 = arith.constant 0 : i32
    return %arg0, %c0_i32, %c0_i32_0 : i32, i32, i32
  }
  func.func @transform_3(%arg0: i32) -> (i32, i32) {
    %c0_i32 = arith.constant 0 : i32
    %c0_i32_0 = arith.constant 0 : i32
    %c0_i32_1 = arith.constant 0 : i32
    return %c0_i32, %c0_i32_0 : i32, i32
  }
  func.func @transform_4(%arg0: i32) -> (i32, i32, i32, i32) {
    %c0_i32 = arith.constant 0 : i32
    %c0_i32_0 = arith.constant 0 : i32
    %c0_i32_1 = arith.constant 0 : i32
    %c0_i32_2 = arith.constant 0 : i32
    return %arg0, %c0_i32, %c0_i32_0, %c0_i32_1 : i32, i32, i32, i32
  }
}

module attributes {stable_mosaic.version = 11 : i64} {
  func.func @_dual_gru_decode_kernel(%arg0: i32, %arg1: memref<2x5xi32, #tpu.memory_space<smem>>, %arg2: memref<2x12xi32, #tpu.memory_space<smem>>, %arg3: memref<1x2x128xf32, #tpu.memory_space<vmem>>, %arg4: memref<1x2x128xf32, #tpu.memory_space<vmem>>, %arg5: memref<1x128x128xf32, #tpu.memory_space<vmem>>, %arg6: memref<1x256x384xf32, #tpu.memory_space<vmem>>, %arg7: memref<1x1x384xf32, #tpu.memory_space<vmem>>, %arg8: memref<1x128x384xf32, #tpu.memory_space<vmem>>, %arg9: memref<1x1x384xf32, #tpu.memory_space<vmem>>, %arg10: memref<1x128x128xf32, #tpu.memory_space<vmem>>, %arg11: memref<1x1x128xf32, #tpu.memory_space<vmem>>, %arg12: memref<1x2x5x128xf32, #tpu.memory_space<vmem>>) attributes {dimension_semantics = [#tpu.dimension_semantics<parallel>], iteration_bounds = array<i64: 2>, scalar_prefetch = 2 : i64, scratch_operands = 0 : i64, tpu.core_type = #tpu.core_type<tc>, window_params = [{transform_indices = @transform_0, window_bounds = array<i64: 1, 2, 128>}, {transform_indices = @transform_1, window_bounds = array<i64: 1, 2, 128>}, {transform_indices = @transform_2, window_bounds = array<i64: 1, 128, 128>}, {transform_indices = @transform_3, window_bounds = array<i64: 1, 256, 384>}, {transform_indices = @transform_4, window_bounds = array<i64: 1, 1, 384>}, {transform_indices = @transform_5, window_bounds = array<i64: 1, 128, 384>}, {transform_indices = @transform_6, window_bounds = array<i64: 1, 1, 384>}, {transform_indices = @transform_7, window_bounds = array<i64: 1, 128, 128>}, {transform_indices = @transform_8, window_bounds = array<i64: 1, 1, 128>}, {transform_indices = @transform_9, window_bounds = array<i64: 1, 2, 5, 128>}]} {
    %0 = tpu.iota {dimensions = array<i32: 1>} : vector<1x128xi32>
    %1 = tpu.iota {dimensions = array<i32: 1>} : vector<2x128xi32>
    %c0 = arith.constant 0 : index
    %c0_0 = arith.constant 0 : index
    %c0_1 = arith.constant 0 : index
    %2 = vector.load %arg5[%c0, %c0_0, %c0_1] : memref<1x128x128xf32, #tpu.memory_space<vmem>>, vector<1x128x128xf32>
    %3 = vector.shape_cast %2 : vector<1x128x128xf32> to vector<128x128xf32>
    %c0_2 = arith.constant 0 : index
    %c0_3 = arith.constant 0 : index
    %c0_4 = arith.constant 0 : index
    %4 = vector.load %arg6[%c0_2, %c0_3, %c0_4] : memref<1x256x384xf32, #tpu.memory_space<vmem>>, vector<1x256x384xf32>
    %5 = vector.shape_cast %4 : vector<1x256x384xf32> to vector<256x384xf32>
    %c0_5 = arith.constant 0 : index
    %c0_6 = arith.constant 0 : index
    %c0_7 = arith.constant 0 : index
    %6 = vector.load %arg7[%c0_5, %c0_6, %c0_7] : memref<1x1x384xf32, #tpu.memory_space<vmem>>, vector<1x1x384xf32>
    %7 = vector.shape_cast %6 : vector<1x1x384xf32> to vector<1x384xf32>
    %c0_8 = arith.constant 0 : index
    %c0_9 = arith.constant 0 : index
    %c0_10 = arith.constant 0 : index
    %8 = vector.load %arg8[%c0_8, %c0_9, %c0_10] : memref<1x128x384xf32, #tpu.memory_space<vmem>>, vector<1x128x384xf32>
    %9 = vector.shape_cast %8 : vector<1x128x384xf32> to vector<128x384xf32>
    %c0_11 = arith.constant 0 : index
    %c0_12 = arith.constant 0 : index
    %c0_13 = arith.constant 0 : index
    %10 = vector.load %arg9[%c0_11, %c0_12, %c0_13] : memref<1x1x384xf32, #tpu.memory_space<vmem>>, vector<1x1x384xf32>
    %11 = vector.shape_cast %10 : vector<1x1x384xf32> to vector<1x384xf32>
    %c0_14 = arith.constant 0 : index
    %c0_15 = arith.constant 0 : index
    %c0_16 = arith.constant 0 : index
    %12 = vector.load %arg10[%c0_14, %c0_15, %c0_16] : memref<1x128x128xf32, #tpu.memory_space<vmem>>, vector<1x128x128xf32>
    %13 = vector.shape_cast %12 : vector<1x128x128xf32> to vector<128x128xf32>
    %c0_17 = arith.constant 0 : index
    %c0_18 = arith.constant 0 : index
    %c0_19 = arith.constant 0 : index
    %14 = vector.load %arg11[%c0_17, %c0_18, %c0_19] : memref<1x1x128xf32, #tpu.memory_space<vmem>>, vector<1x1x128xf32>
    %15 = vector.shape_cast %14 : vector<1x1x128xf32> to vector<1x128xf32>
    %c0_20 = arith.constant 0 : index
    %c0_21 = arith.constant 0 : index
    %c0_22 = arith.constant 0 : index
    %16 = vector.load %arg4[%c0_20, %c0_21, %c0_22] : memref<1x2x128xf32, #tpu.memory_space<vmem>>, vector<1x2x128xf32>
    %17 = vector.shape_cast %16 : vector<1x2x128xf32> to vector<2x128xf32>
    %c0_23 = arith.constant 0 : index
    %c0_24 = arith.constant 0 : index
    %c0_25 = arith.constant 0 : index
    %18 = vector.load %arg3[%c0_23, %c0_24, %c0_25] : memref<1x2x128xf32, #tpu.memory_space<vmem>>, vector<1x2x128xf32>
    %19 = vector.shape_cast %18 : vector<1x2x128xf32> to vector<2x128xf32>
    %20 = arith.index_cast %arg0 : i32 to index
    %c0_26 = arith.constant 0 : index
    %21 = memref.load %arg2[%20, %c0_26] : memref<2x12xi32, #tpu.memory_space<smem>>
    %22 = vector.broadcast %21 : i32 to vector<1x128xi32>
    %23 = arith.cmpi eq, %0, %22 : vector<1x128xi32>
    %24 = arith.extui %23 : vector<1x128xi1> to vector<1x128xi32>
    %25 = arith.sitofp %24 : vector<1x128xi32> to vector<1x128xf32>
    %26 = arith.index_cast %arg0 : i32 to index
    %c1 = arith.constant 1 : index
    %27 = memref.load %arg2[%26, %c1] : memref<2x12xi32, #tpu.memory_space<smem>>
    %28 = vector.broadcast %27 : i32 to vector<1x128xi32>
    %29 = arith.cmpi eq, %0, %28 : vector<1x128xi32>
    %30 = arith.extui %29 : vector<1x128xi1> to vector<1x128xi32>
    %31 = arith.sitofp %30 : vector<1x128xi32> to vector<1x128xf32>
    %32 = tpu.concatenate %25, %31 in 0 : vector<1x128xf32>, vector<1x128xf32> -> vector<2x128xf32>
    %cst = arith.constant dense<0.000000e+00> : vector<2x128xf32>
    %33 = tpu.matmul %32, %3, %cst {dimension_numbers = #tpu.dot_dimension_numbers<[1], [0], [0], [1], [0, 0, 1, 1], [], []>} : vector<2x128xf32>, vector<128x128xf32>, vector<2x128xf32> -> vector<2x128xf32>
    %34 = tpu.concatenate %33, %17 in 1 : vector<2x128xf32>, vector<2x128xf32> -> vector<2x256xf32>
    %cst_27 = arith.constant dense<0.000000e+00> : vector<2x384xf32>
    %35 = tpu.matmul %34, %5, %cst_27 {dimension_numbers = #tpu.dot_dimension_numbers<[1], [0], [0], [1], [0, 0, 1, 1], [], []>} : vector<2x256xf32>, vector<256x384xf32>, vector<2x384xf32> -> vector<2x384xf32>
    %36 = vector.broadcast %7 : vector<1x384xf32> to vector<2x384xf32>
    %37 = arith.addf %35, %36 : vector<2x384xf32>
    %cst_28 = arith.constant dense<0.000000e+00> : vector<2x384xf32>
    %38 = tpu.matmul %19, %9, %cst_28 {dimension_numbers = #tpu.dot_dimension_numbers<[1], [0], [0], [1], [0, 0, 1, 1], [], []>} : vector<2x128xf32>, vector<128x384xf32>, vector<2x384xf32> -> vector<2x384xf32>
    %39 = vector.broadcast %11 : vector<1x384xf32> to vector<2x384xf32>
    %40 = arith.addf %38, %39 : vector<2x384xf32>
    %41 = vector.extract_strided_slice %37 {offsets = [0, 0], sizes = [2, 128], strides = [1, 1]} : vector<2x384xf32> to vector<2x128xf32>
    %42 = vector.extract_strided_slice %40 {offsets = [0, 0], sizes = [2, 128], strides = [1, 1]} : vector<2x384xf32> to vector<2x128xf32>
    %43 = arith.addf %41, %42 : vector<2x128xf32>
    %44 = arith.negf %43 : vector<2x128xf32>
    %45 = math.exp %44 : vector<2x128xf32>
    %cst_29 = arith.constant 1.000000e+00 : f32
    %46 = vector.broadcast %cst_29 : f32 to vector<2x128xf32>
    %47 = arith.addf %46, %45 : vector<2x128xf32>
    %48 = arith.divf %46, %47 : vector<2x128xf32>
    %49 = vector.extract_strided_slice %37 {offsets = [0, 128], sizes = [2, 128], strides = [1, 1]} : vector<2x384xf32> to vector<2x128xf32>
    %50 = vector.extract_strided_slice %40 {offsets = [0, 128], sizes = [2, 128], strides = [1, 1]} : vector<2x384xf32> to vector<2x128xf32>
    %51 = arith.addf %49, %50 : vector<2x128xf32>
    %52 = arith.negf %51 : vector<2x128xf32>
    %53 = math.exp %52 : vector<2x128xf32>
    %cst_30 = arith.constant 1.000000e+00 : f32
    %54 = vector.broadcast %cst_30 : f32 to vector<2x128xf32>
    %55 = arith.addf %54, %53 : vector<2x128xf32>
    %56 = arith.divf %54, %55 : vector<2x128xf32>
    %57 = vector.extract_strided_slice %37 {offsets = [0, 256], sizes = [2, 128], strides = [1, 1]} : vector<2x384xf32> to vector<2x128xf32>
    %58 = vector.extract_strided_slice %40 {offsets = [0, 256], sizes = [2, 128], strides = [1, 1]} : vector<2x384xf32> to vector<2x128xf32>
    %59 = arith.mulf %48, %58 : vector<2x128xf32>
    %60 = arith.addf %57, %59 : vector<2x128xf32>
    %61 = math.tanh %60 : vector<2x128xf32>
    %cst_31 = arith.constant 1.000000e+00 : f32
    %62 = vector.broadcast %cst_31 : f32 to vector<2x128xf32>
    %63 = arith.subf %62, %56 : vector<2x128xf32>
    %64 = arith.mulf %63, %61 : vector<2x128xf32>
    %65 = arith.mulf %56, %19 : vector<2x128xf32>
    %66 = arith.addf %64, %65 : vector<2x128xf32>
    %cst_32 = arith.constant dense<0.000000e+00> : vector<2x128xf32>
    %67 = tpu.matmul %66, %13, %cst_32 {dimension_numbers = #tpu.dot_dimension_numbers<[1], [0], [0], [1], [0, 0, 1, 1], [], []>} : vector<2x128xf32>, vector<128x128xf32>, vector<2x128xf32> -> vector<2x128xf32>
    %68 = vector.broadcast %15 : vector<1x128xf32> to vector<2x128xf32>
    %69 = arith.addf %67, %68 : vector<2x128xf32>
    %c0_33 = arith.constant 0 : index
    %c0_34 = arith.constant 0 : index
    %c0_35 = arith.constant 0 : index
    %c0_36 = arith.constant 0 : index
    %70 = vector.load %arg12[%c0_33, %c0_34, %c0_35, %c0_36] : memref<1x2x5x128xf32, #tpu.memory_space<vmem>>, vector<1x2x1x128xf32>
    %71 = vector.shape_cast %70 : vector<1x2x1x128xf32> to vector<2x128xf32>
    %72 = vector.shape_cast %69 : vector<2x128xf32> to vector<1x2x1x128xf32>
    tpu.vector_store %arg12[%c0_33, %c0_34, %c0_35, %c0_36], %72 {strides = array<i32>} : memref<1x2x5x128xf32, #tpu.memory_space<vmem>>, vector<1x2x1x128xf32>,
    %cst_37 = arith.constant dense<0xFF800000> : vector<2xf32>
    %73 = vector.multi_reduction <maximumf>, %69, %cst_37 [1] : vector<2x128xf32> to vector<2xf32>
    %74 = vector.shape_cast %73 : vector<2xf32> to vector<2x1xf32>
    %75 = vector.broadcast %74 : vector<2x1xf32> to vector<2x128xf32>
    %76 = arith.cmpf oge, %69, %75 : vector<2x128xf32>
    %c128_i32 = arith.constant 128 : i32
    %77 = vector.broadcast %c128_i32 : i32 to vector<2x128xi32>
    %78 = arith.select %76, %1, %77 : vector<2x128xi1>, vector<2x128xi32>
    %cst_38 = arith.constant dense<2147483647> : vector<2xi32>
    %79 = vector.multi_reduction <minsi>, %78, %cst_38 [1] : vector<2x128xi32> to vector<2xi32>
    %80 = vector.shape_cast %79 : vector<2xi32> to vector<2x1xi32>
    %81 = vector.broadcast %80 : vector<2x1xi32> to vector<2x128xi32>
    %82 = arith.cmpi eq, %1, %81 : vector<2x128xi32>
    %83 = arith.extui %82 : vector<2x128xi1> to vector<2x128xi32>
    %84 = arith.sitofp %83 : vector<2x128xi32> to vector<2x128xf32>
    %85 = arith.index_cast %arg0 : i32 to index
    %c2 = arith.constant 2 : index
    %86 = memref.load %arg2[%85, %c2] : memref<2x12xi32, #tpu.memory_space<smem>>
    %87 = vector.broadcast %86 : i32 to vector<1x128xi32>
    %88 = arith.cmpi eq, %0, %87 : vector<1x128xi32>
    %89 = arith.extui %88 : vector<1x128xi1> to vector<1x128xi32>
    %90 = arith.sitofp %89 : vector<1x128xi32> to vector<1x128xf32>
    %91 = arith.index_cast %arg0 : i32 to index
    %c3 = arith.constant 3 : index
    %92 = memref.load %arg2[%91, %c3] : memref<2x12xi32, #tpu.memory_space<smem>>
    %93 = vector.broadcast %92 : i32 to vector<1x128xi32>
    %94 = arith.cmpi eq, %0, %93 : vector<1x128xi32>
    %95 = arith.extui %94 : vector<1x128xi1> to vector<1x128xi32>
    %96 = arith.sitofp %95 : vector<1x128xi32> to vector<1x128xf32>
    %97 = tpu.concatenate %90, %96 in 0 : vector<1x128xf32>, vector<1x128xf32> -> vector<2x128xf32>
    %98 = arith.index_cast %arg0 : i32 to index
    %c0_39 = arith.constant 0 : index
    %99 = memref.load %arg1[%98, %c0_39] : memref<2x5xi32, #tpu.memory_space<smem>>
    %c0_i32 = arith.constant 0 : i32
    %100 = arith.cmpi sgt, %99, %c0_i32 : i32
    %101 = arith.extui %100 : i1 to i32
    %102 = arith.sitofp %101 : i32 to f32
    %103 = vector.broadcast %102 : f32 to vector<2x128xf32>
    %104 = arith.mulf %103, %97 : vector<2x128xf32>
    %cst_40 = arith.constant 1.000000e+00 : f32
    %105 = arith.subf %cst_40, %102 : f32
    %106 = vector.broadcast %105 : f32 to vector<2x128xf32>
    %107 = arith.mulf %106, %84 : vector<2x128xf32>
    %108 = arith.addf %104, %107 : vector<2x128xf32>
    %cst_41 = arith.constant dense<0.000000e+00> : vector<2x128xf32>
    %109 = tpu.matmul %108, %3, %cst_41 {dimension_numbers = #tpu.dot_dimension_numbers<[1], [0], [0], [1], [0, 0, 1, 1], [], []>} : vector<2x128xf32>, vector<128x128xf32>, vector<2x128xf32> -> vector<2x128xf32>
    %110 = tpu.concatenate %109, %17 in 1 : vector<2x128xf32>, vector<2x128xf32> -> vector<2x256xf32>
    %cst_42 = arith.constant dense<0.000000e+00> : vector<2x384xf32>
    %111 = tpu.matmul %110, %5, %cst_42 {dimension_numbers = #tpu.dot_dimension_numbers<[1], [0], [0], [1], [0, 0, 1, 1], [], []>} : vector<2x256xf32>, vector<256x384xf32>, vector<2x384xf32> -> vector<2x384xf32>
    %112 = vector.broadcast %7 : vector<1x384xf32> to vector<2x384xf32>
    %113 = arith.addf %111, %112 : vector<2x384xf32>
    %cst_43 = arith.constant dense<0.000000e+00> : vector<2x384xf32>
    %114 = tpu.matmul %66, %9, %cst_43 {dimension_numbers = #tpu.dot_dimension_numbers<[1], [0], [0], [1], [0, 0, 1, 1], [], []>} : vector<2x128xf32>, vector<128x384xf32>, vector<2x384xf32> -> vector<2x384xf32>
    %115 = vector.broadcast %11 : vector<1x384xf32> to vector<2x384xf32>
    %116 = arith.addf %114, %115 : vector<2x384xf32>
    %117 = vector.extract_strided_slice %113 {offsets = [0, 0], sizes = [2, 128], strides = [1, 1]} : vector<2x384xf32> to vector<2x128xf32>
    %118 = vector.extract_strided_slice %116 {offsets = [0, 0], sizes = [2, 128], strides = [1, 1]} : vector<2x384xf32> to vector<2x128xf32>
    %119 = arith.addf %117, %118 : vector<2x128xf32>
    %120 = arith.negf %119 : vector<2x128xf32>
    %121 = math.exp %120 : vector<2x128xf32>
    %cst_44 = arith.constant 1.000000e+00 : f32
    %122 = vector.broadcast %cst_44 : f32 to vector<2x128xf32>
    %123 = arith.addf %122, %121 : vector<2x128xf32>
    %124 = arith.divf %122, %123 : vector<2x128xf32>
    %125 = vector.extract_strided_slice %113 {offsets = [0, 128], sizes = [2, 128], strides = [1, 1]} : vector<2x384xf32> to vector<2x128xf32>
    %126 = vector.extract_strided_slice %116 {offsets = [0, 128], sizes = [2, 128], strides = [1, 1]} : vector<2x384xf32> to vector<2x128xf32>
    %127 = arith.addf %125, %126 : vector<2x128xf32>
    %128 = arith.negf %127 : vector<2x128xf32>
    %129 = math.exp %128 : vector<2x128xf32>
    %cst_45 = arith.constant 1.000000e+00 : f32
    %130 = vector.broadcast %cst_45 : f32 to vector<2x128xf32>
    %131 = arith.addf %130, %129 : vector<2x128xf32>
    %132 = arith.divf %130, %131 : vector<2x128xf32>
    %133 = vector.extract_strided_slice %113 {offsets = [0, 256], sizes = [2, 128], strides = [1, 1]} : vector<2x384xf32> to vector<2x128xf32>
    %134 = vector.extract_strided_slice %116 {offsets = [0, 256], sizes = [2, 128], strides = [1, 1]} : vector<2x384xf32> to vector<2x128xf32>
    %135 = arith.mulf %124, %134 : vector<2x128xf32>
    %136 = arith.addf %133, %135 : vector<2x128xf32>
    %137 = math.tanh %136 : vector<2x128xf32>
    %cst_46 = arith.constant 1.000000e+00 : f32
    %138 = vector.broadcast %cst_46 : f32 to vector<2x128xf32>
    %139 = arith.subf %138, %132 : vector<2x128xf32>
    %140 = arith.mulf %139, %137 : vector<2x128xf32>
    %141 = arith.mulf %132, %66 : vector<2x128xf32>
    %142 = arith.addf %140, %141 : vector<2x128xf32>
    %cst_47 = arith.constant dense<0.000000e+00> : vector<2x128xf32>
    %143 = tpu.matmul %142, %13, %cst_47 {dimension_numbers = #tpu.dot_dimension_numbers<[1], [0], [0], [1], [0, 0, 1, 1], [], []>} : vector<2x128xf32>, vector<128x128xf32>, vector<2x128xf32> -> vector<2x128xf32>
    %144 = vector.broadcast %15 : vector<1x128xf32> to vector<2x128xf32>
    %145 = arith.addf %143, %144 : vector<2x128xf32>
    %c0_48 = arith.constant 0 : index
    %c0_49 = arith.constant 0 : index
    %c1_50 = arith.constant 1 : index
    %c0_51 = arith.constant 0 : index
    %146 = vector.load %arg12[%c0_48, %c0_49, %c1_50, %c0_51] : memref<1x2x5x128xf32, #tpu.memory_space<vmem>>, vector<1x2x1x128xf32>
    %147 = vector.shape_cast %146 : vector<1x2x1x128xf32> to vector<2x128xf32>
    %148 = vector.shape_cast %145 : vector<2x128xf32> to vector<1x2x1x128xf32>
    tpu.vector_store %arg12[%c0_48, %c0_49, %c1_50, %c0_51], %148 {strides = array<i32>} : memref<1x2x5x128xf32, #tpu.memory_space<vmem>>, vector<1x2x1x128xf32>,
    %cst_52 = arith.constant dense<0xFF800000> : vector<2xf32>
    %149 = vector.multi_reduction <maximumf>, %145, %cst_52 [1] : vector<2x128xf32> to vector<2xf32>
    %150 = vector.shape_cast %149 : vector<2xf32> to vector<2x1xf32>
    %151 = vector.broadcast %150 : vector<2x1xf32> to vector<2x128xf32>
    %152 = arith.cmpf oge, %145, %151 : vector<2x128xf32>
    %c128_i32_53 = arith.constant 128 : i32
    %153 = vector.broadcast %c128_i32_53 : i32 to vector<2x128xi32>
    %154 = arith.select %152, %1, %153 : vector<2x128xi1>, vector<2x128xi32>
    %cst_54 = arith.constant dense<2147483647> : vector<2xi32>
    %155 = vector.multi_reduction <minsi>, %154, %cst_54 [1] : vector<2x128xi32> to vector<2xi32>
    %156 = vector.shape_cast %155 : vector<2xi32> to vector<2x1xi32>
    %157 = vector.broadcast %156 : vector<2x1xi32> to vector<2x128xi32>
    %158 = arith.cmpi eq, %1, %157 : vector<2x128xi32>
    %159 = arith.extui %158 : vector<2x128xi1> to vector<2x128xi32>
    %160 = arith.sitofp %159 : vector<2x128xi32> to vector<2x128xf32>
    %161 = arith.index_cast %arg0 : i32 to index
    %c4 = arith.constant 4 : index
    %162 = memref.load %arg2[%161, %c4] : memref<2x12xi32, #tpu.memory_space<smem>>
    %163 = vector.broadcast %162 : i32 to vector<1x128xi32>
    %164 = arith.cmpi eq, %0, %163 : vector<1x128xi32>
    %165 = arith.extui %164 : vector<1x128xi1> to vector<1x128xi32>
    %166 = arith.sitofp %165 : vector<1x128xi32> to vector<1x128xf32>
    %167 = arith.index_cast %arg0 : i32 to index
    %c5 = arith.constant 5 : index
    %168 = memref.load %arg2[%167, %c5] : memref<2x12xi32, #tpu.memory_space<smem>>
    %169 = vector.broadcast %168 : i32 to vector<1x128xi32>
    %170 = arith.cmpi eq, %0, %169 : vector<1x128xi32>
    %171 = arith.extui %170 : vector<1x128xi1> to vector<1x128xi32>
    %172 = arith.sitofp %171 : vector<1x128xi32> to vector<1x128xf32>
    %173 = tpu.concatenate %166, %172 in 0 : vector<1x128xf32>, vector<1x128xf32> -> vector<2x128xf32>
    %174 = arith.index_cast %arg0 : i32 to index
    %c1_55 = arith.constant 1 : index
    %175 = memref.load %arg1[%174, %c1_55] : memref<2x5xi32, #tpu.memory_space<smem>>
    %c0_i32_56 = arith.constant 0 : i32
    %176 = arith.cmpi sgt, %175, %c0_i32_56 : i32
    %177 = arith.extui %176 : i1 to i32
    %178 = arith.sitofp %177 : i32 to f32
    %179 = vector.broadcast %178 : f32 to vector<2x128xf32>
    %180 = arith.mulf %179, %173 : vector<2x128xf32>
    %cst_57 = arith.constant 1.000000e+00 : f32
    %181 = arith.subf %cst_57, %178 : f32
    %182 = vector.broadcast %181 : f32 to vector<2x128xf32>
    %183 = arith.mulf %182, %160 : vector<2x128xf32>
    %184 = arith.addf %180, %183 : vector<2x128xf32>
    %cst_58 = arith.constant dense<0.000000e+00> : vector<2x128xf32>
    %185 = tpu.matmul %184, %3, %cst_58 {dimension_numbers = #tpu.dot_dimension_numbers<[1], [0], [0], [1], [0, 0, 1, 1], [], []>} : vector<2x128xf32>, vector<128x128xf32>, vector<2x128xf32> -> vector<2x128xf32>
    %186 = tpu.concatenate %185, %17 in 1 : vector<2x128xf32>, vector<2x128xf32> -> vector<2x256xf32>
    %cst_59 = arith.constant dense<0.000000e+00> : vector<2x384xf32>
    %187 = tpu.matmul %186, %5, %cst_59 {dimension_numbers = #tpu.dot_dimension_numbers<[1], [0], [0], [1], [0, 0, 1, 1], [], []>} : vector<2x256xf32>, vector<256x384xf32>, vector<2x384xf32> -> vector<2x384xf32>
    %188 = vector.broadcast %7 : vector<1x384xf32> to vector<2x384xf32>
    %189 = arith.addf %187, %188 : vector<2x384xf32>
    %cst_60 = arith.constant dense<0.000000e+00> : vector<2x384xf32>
    %190 = tpu.matmul %142, %9, %cst_60 {dimension_numbers = #tpu.dot_dimension_numbers<[1], [0], [0], [1], [0, 0, 1, 1], [], []>} : vector<2x128xf32>, vector<128x384xf32>, vector<2x384xf32> -> vector<2x384xf32>
    %191 = vector.broadcast %11 : vector<1x384xf32> to vector<2x384xf32>
    %192 = arith.addf %190, %191 : vector<2x384xf32>
    %193 = vector.extract_strided_slice %189 {offsets = [0, 0], sizes = [2, 128], strides = [1, 1]} : vector<2x384xf32> to vector<2x128xf32>
    %194 = vector.extract_strided_slice %192 {offsets = [0, 0], sizes = [2, 128], strides = [1, 1]} : vector<2x384xf32> to vector<2x128xf32>
    %195 = arith.addf %193, %194 : vector<2x128xf32>
    %196 = arith.negf %195 : vector<2x128xf32>
    %197 = math.exp %196 : vector<2x128xf32>
    %cst_61 = arith.constant 1.000000e+00 : f32
    %198 = vector.broadcast %cst_61 : f32 to vector<2x128xf32>
    %199 = arith.addf %198, %197 : vector<2x128xf32>
    %200 = arith.divf %198, %199 : vector<2x128xf32>
    %201 = vector.extract_strided_slice %189 {offsets = [0, 128], sizes = [2, 128], strides = [1, 1]} : vector<2x384xf32> to vector<2x128xf32>
    %202 = vector.extract_strided_slice %192 {offsets = [0, 128], sizes = [2, 128], strides = [1, 1]} : vector<2x384xf32> to vector<2x128xf32>
    %203 = arith.addf %201, %202 : vector<2x128xf32>
    %204 = arith.negf %203 : vector<2x128xf32>
    %205 = math.exp %204 : vector<2x128xf32>
    %cst_62 = arith.constant 1.000000e+00 : f32
    %206 = vector.broadcast %cst_62 : f32 to vector<2x128xf32>
    %207 = arith.addf %206, %205 : vector<2x128xf32>
    %208 = arith.divf %206, %207 : vector<2x128xf32>
    %209 = vector.extract_strided_slice %189 {offsets = [0, 256], sizes = [2, 128], strides = [1, 1]} : vector<2x384xf32> to vector<2x128xf32>
    %210 = vector.extract_strided_slice %192 {offsets = [0, 256], sizes = [2, 128], strides = [1, 1]} : vector<2x384xf32> to vector<2x128xf32>
    %211 = arith.mulf %200, %210 : vector<2x128xf32>
    %212 = arith.addf %209, %211 : vector<2x128xf32>
    %213 = math.tanh %212 : vector<2x128xf32>
    %cst_63 = arith.constant 1.000000e+00 : f32
    %214 = vector.broadcast %cst_63 : f32 to vector<2x128xf32>
    %215 = arith.subf %214, %208 : vector<2x128xf32>
    %216 = arith.mulf %215, %213 : vector<2x128xf32>
    %217 = arith.mulf %208, %142 : vector<2x128xf32>
    %218 = arith.addf %216, %217 : vector<2x128xf32>
    %cst_64 = arith.constant dense<0.000000e+00> : vector<2x128xf32>
    %219 = tpu.matmul %218, %13, %cst_64 {dimension_numbers = #tpu.dot_dimension_numbers<[1], [0], [0], [1], [0, 0, 1, 1], [], []>} : vector<2x128xf32>, vector<128x128xf32>, vector<2x128xf32> -> vector<2x128xf32>
    %220 = vector.broadcast %15 : vector<1x128xf32> to vector<2x128xf32>
    %221 = arith.addf %219, %220 : vector<2x128xf32>
    %c0_65 = arith.constant 0 : index
    %c0_66 = arith.constant 0 : index
    %c2_67 = arith.constant 2 : index
    %c0_68 = arith.constant 0 : index
    %222 = vector.load %arg12[%c0_65, %c0_66, %c2_67, %c0_68] : memref<1x2x5x128xf32, #tpu.memory_space<vmem>>, vector<1x2x1x128xf32>
    %223 = vector.shape_cast %222 : vector<1x2x1x128xf32> to vector<2x128xf32>
    %224 = vector.shape_cast %221 : vector<2x128xf32> to vector<1x2x1x128xf32>
    tpu.vector_store %arg12[%c0_65, %c0_66, %c2_67, %c0_68], %224 {strides = array<i32>} : memref<1x2x5x128xf32, #tpu.memory_space<vmem>>, vector<1x2x1x128xf32>,
    %cst_69 = arith.constant dense<0xFF800000> : vector<2xf32>
    %225 = vector.multi_reduction <maximumf>, %221, %cst_69 [1] : vector<2x128xf32> to vector<2xf32>
    %226 = vector.shape_cast %225 : vector<2xf32> to vector<2x1xf32>
    %227 = vector.broadcast %226 : vector<2x1xf32> to vector<2x128xf32>
    %228 = arith.cmpf oge, %221, %227 : vector<2x128xf32>
    %c128_i32_70 = arith.constant 128 : i32
    %229 = vector.broadcast %c128_i32_70 : i32 to vector<2x128xi32>
    %230 = arith.select %228, %1, %229 : vector<2x128xi1>, vector<2x128xi32>
    %cst_71 = arith.constant dense<2147483647> : vector<2xi32>
    %231 = vector.multi_reduction <minsi>, %230, %cst_71 [1] : vector<2x128xi32> to vector<2xi32>
    %232 = vector.shape_cast %231 : vector<2xi32> to vector<2x1xi32>
    %233 = vector.broadcast %232 : vector<2x1xi32> to vector<2x128xi32>
    %234 = arith.cmpi eq, %1, %233 : vector<2x128xi32>
    %235 = arith.extui %234 : vector<2x128xi1> to vector<2x128xi32>
    %236 = arith.sitofp %235 : vector<2x128xi32> to vector<2x128xf32>
    %237 = arith.index_cast %arg0 : i32 to index
    %c6 = arith.constant 6 : index
    %238 = memref.load %arg2[%237, %c6] : memref<2x12xi32, #tpu.memory_space<smem>>
    %239 = vector.broadcast %238 : i32 to vector<1x128xi32>
    %240 = arith.cmpi eq, %0, %239 : vector<1x128xi32>
    %241 = arith.extui %240 : vector<1x128xi1> to vector<1x128xi32>
    %242 = arith.sitofp %241 : vector<1x128xi32> to vector<1x128xf32>
    %243 = arith.index_cast %arg0 : i32 to index
    %c7 = arith.constant 7 : index
    %244 = memref.load %arg2[%243, %c7] : memref<2x12xi32, #tpu.memory_space<smem>>
    %245 = vector.broadcast %244 : i32 to vector<1x128xi32>
    %246 = arith.cmpi eq, %0, %245 : vector<1x128xi32>
    %247 = arith.extui %246 : vector<1x128xi1> to vector<1x128xi32>
    %248 = arith.sitofp %247 : vector<1x128xi32> to vector<1x128xf32>
    %249 = tpu.concatenate %242, %248 in 0 : vector<1x128xf32>, vector<1x128xf32> -> vector<2x128xf32>
    %250 = arith.index_cast %arg0 : i32 to index
    %c2_72 = arith.constant 2 : index
    %251 = memref.load %arg1[%250, %c2_72] : memref<2x5xi32, #tpu.memory_space<smem>>
    %c0_i32_73 = arith.constant 0 : i32
    %252 = arith.cmpi sgt, %251, %c0_i32_73 : i32
    %253 = arith.extui %252 : i1 to i32
    %254 = arith.sitofp %253 : i32 to f32
    %255 = vector.broadcast %254 : f32 to vector<2x128xf32>
    %256 = arith.mulf %255, %249 : vector<2x128xf32>
    %cst_74 = arith.constant 1.000000e+00 : f32
    %257 = arith.subf %cst_74, %254 : f32
    %258 = vector.broadcast %257 : f32 to vector<2x128xf32>
    %259 = arith.mulf %258, %236 : vector<2x128xf32>
    %260 = arith.addf %256, %259 : vector<2x128xf32>
    %cst_75 = arith.constant dense<0.000000e+00> : vector<2x128xf32>
    %261 = tpu.matmul %260, %3, %cst_75 {dimension_numbers = #tpu.dot_dimension_numbers<[1], [0], [0], [1], [0, 0, 1, 1], [], []>} : vector<2x128xf32>, vector<128x128xf32>, vector<2x128xf32> -> vector<2x128xf32>
    %262 = tpu.concatenate %261, %17 in 1 : vector<2x128xf32>, vector<2x128xf32> -> vector<2x256xf32>
    %cst_76 = arith.constant dense<0.000000e+00> : vector<2x384xf32>
    %263 = tpu.matmul %262, %5, %cst_76 {dimension_numbers = #tpu.dot_dimension_numbers<[1], [0], [0], [1], [0, 0, 1, 1], [], []>} : vector<2x256xf32>, vector<256x384xf32>, vector<2x384xf32> -> vector<2x384xf32>
    %264 = vector.broadcast %7 : vector<1x384xf32> to vector<2x384xf32>
    %265 = arith.addf %263, %264 : vector<2x384xf32>
    %cst_77 = arith.constant dense<0.000000e+00> : vector<2x384xf32>
    %266 = tpu.matmul %218, %9, %cst_77 {dimension_numbers = #tpu.dot_dimension_numbers<[1], [0], [0], [1], [0, 0, 1, 1], [], []>} : vector<2x128xf32>, vector<128x384xf32>, vector<2x384xf32> -> vector<2x384xf32>
    %267 = vector.broadcast %11 : vector<1x384xf32> to vector<2x384xf32>
    %268 = arith.addf %266, %267 : vector<2x384xf32>
    %269 = vector.extract_strided_slice %265 {offsets = [0, 0], sizes = [2, 128], strides = [1, 1]} : vector<2x384xf32> to vector<2x128xf32>
    %270 = vector.extract_strided_slice %268 {offsets = [0, 0], sizes = [2, 128], strides = [1, 1]} : vector<2x384xf32> to vector<2x128xf32>
    %271 = arith.addf %269, %270 : vector<2x128xf32>
    %272 = arith.negf %271 : vector<2x128xf32>
    %273 = math.exp %272 : vector<2x128xf32>
    %cst_78 = arith.constant 1.000000e+00 : f32
    %274 = vector.broadcast %cst_78 : f32 to vector<2x128xf32>
    %275 = arith.addf %274, %273 : vector<2x128xf32>
    %276 = arith.divf %274, %275 : vector<2x128xf32>
    %277 = vector.extract_strided_slice %265 {offsets = [0, 128], sizes = [2, 128], strides = [1, 1]} : vector<2x384xf32> to vector<2x128xf32>
    %278 = vector.extract_strided_slice %268 {offsets = [0, 128], sizes = [2, 128], strides = [1, 1]} : vector<2x384xf32> to vector<2x128xf32>
    %279 = arith.addf %277, %278 : vector<2x128xf32>
    %280 = arith.negf %279 : vector<2x128xf32>
    %281 = math.exp %280 : vector<2x128xf32>
    %cst_79 = arith.constant 1.000000e+00 : f32
    %282 = vector.broadcast %cst_79 : f32 to vector<2x128xf32>
    %283 = arith.addf %282, %281 : vector<2x128xf32>
    %284 = arith.divf %282, %283 : vector<2x128xf32>
    %285 = vector.extract_strided_slice %265 {offsets = [0, 256], sizes = [2, 128], strides = [1, 1]} : vector<2x384xf32> to vector<2x128xf32>
    %286 = vector.extract_strided_slice %268 {offsets = [0, 256], sizes = [2, 128], strides = [1, 1]} : vector<2x384xf32> to vector<2x128xf32>
    %287 = arith.mulf %276, %286 : vector<2x128xf32>
    %288 = arith.addf %285, %287 : vector<2x128xf32>
    %289 = math.tanh %288 : vector<2x128xf32>
    %cst_80 = arith.constant 1.000000e+00 : f32
    %290 = vector.broadcast %cst_80 : f32 to vector<2x128xf32>
    %291 = arith.subf %290, %284 : vector<2x128xf32>
    %292 = arith.mulf %291, %289 : vector<2x128xf32>
    %293 = arith.mulf %284, %218 : vector<2x128xf32>
    %294 = arith.addf %292, %293 : vector<2x128xf32>
    %cst_81 = arith.constant dense<0.000000e+00> : vector<2x128xf32>
    %295 = tpu.matmul %294, %13, %cst_81 {dimension_numbers = #tpu.dot_dimension_numbers<[1], [0], [0], [1], [0, 0, 1, 1], [], []>} : vector<2x128xf32>, vector<128x128xf32>, vector<2x128xf32> -> vector<2x128xf32>
    %296 = vector.broadcast %15 : vector<1x128xf32> to vector<2x128xf32>
    %297 = arith.addf %295, %296 : vector<2x128xf32>
    %c0_82 = arith.constant 0 : index
    %c0_83 = arith.constant 0 : index
    %c3_84 = arith.constant 3 : index
    %c0_85 = arith.constant 0 : index
    %298 = vector.load %arg12[%c0_82, %c0_83, %c3_84, %c0_85] : memref<1x2x5x128xf32, #tpu.memory_space<vmem>>, vector<1x2x1x128xf32>
    %299 = vector.shape_cast %298 : vector<1x2x1x128xf32> to vector<2x128xf32>
    %300 = vector.shape_cast %297 : vector<2x128xf32> to vector<1x2x1x128xf32>
    tpu.vector_store %arg12[%c0_82, %c0_83, %c3_84, %c0_85], %300 {strides = array<i32>} : memref<1x2x5x128xf32, #tpu.memory_space<vmem>>, vector<1x2x1x128xf32>,
    %cst_86 = arith.constant dense<0xFF800000> : vector<2xf32>
    %301 = vector.multi_reduction <maximumf>, %297, %cst_86 [1] : vector<2x128xf32> to vector<2xf32>
    %302 = vector.shape_cast %301 : vector<2xf32> to vector<2x1xf32>
    %303 = vector.broadcast %302 : vector<2x1xf32> to vector<2x128xf32>
    %304 = arith.cmpf oge, %297, %303 : vector<2x128xf32>
    %c128_i32_87 = arith.constant 128 : i32
    %305 = vector.broadcast %c128_i32_87 : i32 to vector<2x128xi32>
    %306 = arith.select %304, %1, %305 : vector<2x128xi1>, vector<2x128xi32>
    %cst_88 = arith.constant dense<2147483647> : vector<2xi32>
    %307 = vector.multi_reduction <minsi>, %306, %cst_88 [1] : vector<2x128xi32> to vector<2xi32>
    %308 = vector.shape_cast %307 : vector<2xi32> to vector<2x1xi32>
    %309 = vector.broadcast %308 : vector<2x1xi32> to vector<2x128xi32>
    %310 = arith.cmpi eq, %1, %309 : vector<2x128xi32>
    %311 = arith.extui %310 : vector<2x128xi1> to vector<2x128xi32>
    %312 = arith.sitofp %311 : vector<2x128xi32> to vector<2x128xf32>
    %313 = arith.index_cast %arg0 : i32 to index
    %c8 = arith.constant 8 : index
    %314 = memref.load %arg2[%313, %c8] : memref<2x12xi32, #tpu.memory_space<smem>>
    %315 = vector.broadcast %314 : i32 to vector<1x128xi32>
    %316 = arith.cmpi eq, %0, %315 : vector<1x128xi32>
    %317 = arith.extui %316 : vector<1x128xi1> to vector<1x128xi32>
    %318 = arith.sitofp %317 : vector<1x128xi32> to vector<1x128xf32>
    %319 = arith.index_cast %arg0 : i32 to index
    %c9 = arith.constant 9 : index
    %320 = memref.load %arg2[%319, %c9] : memref<2x12xi32, #tpu.memory_space<smem>>
    %321 = vector.broadcast %320 : i32 to vector<1x128xi32>
    %322 = arith.cmpi eq, %0, %321 : vector<1x128xi32>
    %323 = arith.extui %322 : vector<1x128xi1> to vector<1x128xi32>
    %324 = arith.sitofp %323 : vector<1x128xi32> to vector<1x128xf32>
    %325 = tpu.concatenate %318, %324 in 0 : vector<1x128xf32>, vector<1x128xf32> -> vector<2x128xf32>
    %326 = arith.index_cast %arg0 : i32 to index
    %c3_89 = arith.constant 3 : index
    %327 = memref.load %arg1[%326, %c3_89] : memref<2x5xi32, #tpu.memory_space<smem>>
    %c0_i32_90 = arith.constant 0 : i32
    %328 = arith.cmpi sgt, %327, %c0_i32_90 : i32
    %329 = arith.extui %328 : i1 to i32
    %330 = arith.sitofp %329 : i32 to f32
    %331 = vector.broadcast %330 : f32 to vector<2x128xf32>
    %332 = arith.mulf %331, %325 : vector<2x128xf32>
    %cst_91 = arith.constant 1.000000e+00 : f32
    %333 = arith.subf %cst_91, %330 : f32
    %334 = vector.broadcast %333 : f32 to vector<2x128xf32>
    %335 = arith.mulf %334, %312 : vector<2x128xf32>
    %336 = arith.addf %332, %335 : vector<2x128xf32>
    %cst_92 = arith.constant dense<0.000000e+00> : vector<2x128xf32>
    %337 = tpu.matmul %336, %3, %cst_92 {dimension_numbers = #tpu.dot_dimension_numbers<[1], [0], [0], [1], [0, 0, 1, 1], [], []>} : vector<2x128xf32>, vector<128x128xf32>, vector<2x128xf32> -> vector<2x128xf32>
    %338 = tpu.concatenate %337, %17 in 1 : vector<2x128xf32>, vector<2x128xf32> -> vector<2x256xf32>
    %cst_93 = arith.constant dense<0.000000e+00> : vector<2x384xf32>
    %339 = tpu.matmul %338, %5, %cst_93 {dimension_numbers = #tpu.dot_dimension_numbers<[1], [0], [0], [1], [0, 0, 1, 1], [], []>} : vector<2x256xf32>, vector<256x384xf32>, vector<2x384xf32> -> vector<2x384xf32>
    %340 = vector.broadcast %7 : vector<1x384xf32> to vector<2x384xf32>
    %341 = arith.addf %339, %340 : vector<2x384xf32>
    %cst_94 = arith.constant dense<0.000000e+00> : vector<2x384xf32>
    %342 = tpu.matmul %294, %9, %cst_94 {dimension_numbers = #tpu.dot_dimension_numbers<[1], [0], [0], [1], [0, 0, 1, 1], [], []>} : vector<2x128xf32>, vector<128x384xf32>, vector<2x384xf32> -> vector<2x384xf32>
    %343 = vector.broadcast %11 : vector<1x384xf32> to vector<2x384xf32>
    %344 = arith.addf %342, %343 : vector<2x384xf32>
    %345 = vector.extract_strided_slice %341 {offsets = [0, 0], sizes = [2, 128], strides = [1, 1]} : vector<2x384xf32> to vector<2x128xf32>
    %346 = vector.extract_strided_slice %344 {offsets = [0, 0], sizes = [2, 128], strides = [1, 1]} : vector<2x384xf32> to vector<2x128xf32>
    %347 = arith.addf %345, %346 : vector<2x128xf32>
    %348 = arith.negf %347 : vector<2x128xf32>
    %349 = math.exp %348 : vector<2x128xf32>
    %cst_95 = arith.constant 1.000000e+00 : f32
    %350 = vector.broadcast %cst_95 : f32 to vector<2x128xf32>
    %351 = arith.addf %350, %349 : vector<2x128xf32>
    %352 = arith.divf %350, %351 : vector<2x128xf32>
    %353 = vector.extract_strided_slice %341 {offsets = [0, 128], sizes = [2, 128], strides = [1, 1]} : vector<2x384xf32> to vector<2x128xf32>
    %354 = vector.extract_strided_slice %344 {offsets = [0, 128], sizes = [2, 128], strides = [1, 1]} : vector<2x384xf32> to vector<2x128xf32>
    %355 = arith.addf %353, %354 : vector<2x128xf32>
    %356 = arith.negf %355 : vector<2x128xf32>
    %357 = math.exp %356 : vector<2x128xf32>
    %cst_96 = arith.constant 1.000000e+00 : f32
    %358 = vector.broadcast %cst_96 : f32 to vector<2x128xf32>
    %359 = arith.addf %358, %357 : vector<2x128xf32>
    %360 = arith.divf %358, %359 : vector<2x128xf32>
    %361 = vector.extract_strided_slice %341 {offsets = [0, 256], sizes = [2, 128], strides = [1, 1]} : vector<2x384xf32> to vector<2x128xf32>
    %362 = vector.extract_strided_slice %344 {offsets = [0, 256], sizes = [2, 128], strides = [1, 1]} : vector<2x384xf32> to vector<2x128xf32>
    %363 = arith.mulf %352, %362 : vector<2x128xf32>
    %364 = arith.addf %361, %363 : vector<2x128xf32>
    %365 = math.tanh %364 : vector<2x128xf32>
    %cst_97 = arith.constant 1.000000e+00 : f32
    %366 = vector.broadcast %cst_97 : f32 to vector<2x128xf32>
    %367 = arith.subf %366, %360 : vector<2x128xf32>
    %368 = arith.mulf %367, %365 : vector<2x128xf32>
    %369 = arith.mulf %360, %294 : vector<2x128xf32>
    %370 = arith.addf %368, %369 : vector<2x128xf32>
    %cst_98 = arith.constant dense<0.000000e+00> : vector<2x128xf32>
    %371 = tpu.matmul %370, %13, %cst_98 {dimension_numbers = #tpu.dot_dimension_numbers<[1], [0], [0], [1], [0, 0, 1, 1], [], []>} : vector<2x128xf32>, vector<128x128xf32>, vector<2x128xf32> -> vector<2x128xf32>
    %372 = vector.broadcast %15 : vector<1x128xf32> to vector<2x128xf32>
    %373 = arith.addf %371, %372 : vector<2x128xf32>
    %c0_99 = arith.constant 0 : index
    %c0_100 = arith.constant 0 : index
    %c4_101 = arith.constant 4 : index
    %c0_102 = arith.constant 0 : index
    %374 = vector.load %arg12[%c0_99, %c0_100, %c4_101, %c0_102] : memref<1x2x5x128xf32, #tpu.memory_space<vmem>>, vector<1x2x1x128xf32>
    %375 = vector.shape_cast %374 : vector<1x2x1x128xf32> to vector<2x128xf32>
    %376 = vector.shape_cast %373 : vector<2x128xf32> to vector<1x2x1x128xf32>
    tpu.vector_store %arg12[%c0_99, %c0_100, %c4_101, %c0_102], %376 {strides = array<i32>} : memref<1x2x5x128xf32, #tpu.memory_space<vmem>>, vector<1x2x1x128xf32>,
    return
  }
  func.func @transform_0(%arg0: i32, %arg1: memref<2x5xi32, #tpu.memory_space<smem>>, %arg2: memref<2x12xi32, #tpu.memory_space<smem>>) -> (i32, i32, i32) {
    %c0_i32 = arith.constant 0 : i32
    %c0_i32_0 = arith.constant 0 : i32
    %c0_i32_1 = arith.constant 0 : i32
    return %arg0, %c0_i32, %c0_i32_0 : i32, i32, i32
  }
  func.func @transform_1(%arg0: i32, %arg1: memref<2x5xi32, #tpu.memory_space<smem>>, %arg2: memref<2x12xi32, #tpu.memory_space<smem>>) -> (i32, i32, i32) {
    %c0_i32 = arith.constant 0 : i32
    %c0_i32_0 = arith.constant 0 : i32
    %c0_i32_1 = arith.constant 0 : i32
    return %arg0, %c0_i32, %c0_i32_0 : i32, i32, i32
  }
  func.func @transform_2(%arg0: i32, %arg1: memref<2x5xi32, #tpu.memory_space<smem>>, %arg2: memref<2x12xi32, #tpu.memory_space<smem>>) -> (i32, i32, i32) {
    %c0_i32 = arith.constant 0 : i32
    %c0_i32_0 = arith.constant 0 : i32
    %c0_i32_1 = arith.constant 0 : i32
    return %arg0, %c0_i32, %c0_i32_0 : i32, i32, i32
  }
  func.func @transform_3(%arg0: i32, %arg1: memref<2x5xi32, #tpu.memory_space<smem>>, %arg2: memref<2x12xi32, #tpu.memory_space<smem>>) -> (i32, i32, i32) {
    %c0_i32 = arith.constant 0 : i32
    %c0_i32_0 = arith.constant 0 : i32
    %c0_i32_1 = arith.constant 0 : i32
    return %arg0, %c0_i32, %c0_i32_0 : i32, i32, i32
  }
  func.func @transform_4(%arg0: i32, %arg1: memref<2x5xi32, #tpu.memory_space<smem>>, %arg2: memref<2x12xi32, #tpu.memory_space<smem>>) -> (i32, i32, i32) {
    %c0_i32 = arith.constant 0 : i32
    %c0_i32_0 = arith.constant 0 : i32
    %c0_i32_1 = arith.constant 0 : i32
    return %arg0, %c0_i32, %c0_i32_0 : i32, i32, i32
  }
  func.func @transform_5(%arg0: i32, %arg1: memref<2x5xi32, #tpu.memory_space<smem>>, %arg2: memref<2x12xi32, #tpu.memory_space<smem>>) -> (i32, i32, i32) {
    %c0_i32 = arith.constant 0 : i32
    %c0_i32_0 = arith.constant 0 : i32
    %c0_i32_1 = arith.constant 0 : i32
    return %arg0, %c0_i32, %c0_i32_0 : i32, i32, i32
  }
  func.func @transform_6(%arg0: i32, %arg1: memref<2x5xi32, #tpu.memory_space<smem>>, %arg2: memref<2x12xi32, #tpu.memory_space<smem>>) -> (i32, i32, i32) {
    %c0_i32 = arith.constant 0 : i32
    %c0_i32_0 = arith.constant 0 : i32
    %c0_i32_1 = arith.constant 0 : i32
    return %arg0, %c0_i32, %c0_i32_0 : i32, i32, i32
  }
  func.func @transform_7(%arg0: i32, %arg1: memref<2x5xi32, #tpu.memory_space<smem>>, %arg2: memref<2x12xi32, #tpu.memory_space<smem>>) -> (i32, i32, i32) {
    %c0_i32 = arith.constant 0 : i32
    %c0_i32_0 = arith.constant 0 : i32
    %c0_i32_1 = arith.constant 0 : i32
    return %arg0, %c0_i32, %c0_i32_0 : i32, i32, i32
  }
  func.func @transform_8(%arg0: i32, %arg1: memref<2x5xi32, #tpu.memory_space<smem>>, %arg2: memref<2x12xi32, #tpu.memory_space<smem>>) -> (i32, i32, i32) {
    %c0_i32 = arith.constant 0 : i32
    %c0_i32_0 = arith.constant 0 : i32
    %c0_i32_1 = arith.constant 0 : i32
    return %arg0, %c0_i32, %c0_i32_0 : i32, i32, i32
  }
  func.func @transform_9(%arg0: i32, %arg1: memref<2x5xi32, #tpu.memory_space<smem>>, %arg2: memref<2x12xi32, #tpu.memory_space<smem>>) -> (i32, i32, i32, i32) {
    %c0_i32 = arith.constant 0 : i32
    %c0_i32_0 = arith.constant 0 : i32
    %c0_i32_1 = arith.constant 0 : i32
    %c0_i32_2 = arith.constant 0 : i32
    return %arg0, %c0_i32, %c0_i32_0, %c0_i32_1 : i32, i32, i32, i32
  }
}

module attributes {stable_mosaic.version = 11 : i64} {
  func.func @_attn_init_kernel(%arg0: i32, %arg1: memref<2x2x64x128xf32, #tpu.memory_space<vmem>>, %arg2: memref<128x128xf32, #tpu.memory_space<vmem>>, %arg3: memref<128x128xf32, #tpu.memory_space<vmem>>, %arg4: memref<128x128xf32, #tpu.memory_space<vmem>>, %arg5: memref<128x128xf32, #tpu.memory_space<vmem>>, %arg6: memref<2x128x128xf32, #tpu.memory_space<vmem>>, %arg7: memref<2x1x128xf32, #tpu.memory_space<vmem>>, %arg8: memref<2x2x128xf32, #tpu.memory_space<vmem>>, %arg9: memref<2x2x128xf32, #tpu.memory_space<vmem>>) attributes {dimension_semantics = [#tpu.dimension_semantics<arbitrary>], iteration_bounds = array<i64: 1>, scalar_prefetch = 0 : i64, scratch_operands = 0 : i64, tpu.core_type = #tpu.core_type<tc>, window_params = [{pipeline_mode = #tpu.pipeline_mode<synchronous>, transform_indices = @transform_0, window_bounds = array<i64: 2, 2, 64, 128>}, {pipeline_mode = #tpu.pipeline_mode<synchronous>, transform_indices = @transform_1, window_bounds = array<i64: 128, 128>}, {pipeline_mode = #tpu.pipeline_mode<synchronous>, transform_indices = @transform_2, window_bounds = array<i64: 128, 128>}, {pipeline_mode = #tpu.pipeline_mode<synchronous>, transform_indices = @transform_3, window_bounds = array<i64: 128, 128>}, {pipeline_mode = #tpu.pipeline_mode<synchronous>, transform_indices = @transform_4, window_bounds = array<i64: 128, 128>}, {pipeline_mode = #tpu.pipeline_mode<synchronous>, transform_indices = @transform_5, window_bounds = array<i64: 2, 128, 128>}, {pipeline_mode = #tpu.pipeline_mode<synchronous>, transform_indices = @transform_6, window_bounds = array<i64: 2, 1, 128>}, {pipeline_mode = #tpu.pipeline_mode<synchronous>, transform_indices = @transform_7, window_bounds = array<i64: 2, 2, 128>}, {pipeline_mode = #tpu.pipeline_mode<synchronous>, transform_indices = @transform_8, window_bounds = array<i64: 2, 2, 128>}]} {
    %c0 = arith.constant 0 : index
    %c0_0 = arith.constant 0 : index
    %c0_1 = arith.constant 0 : index
    %c0_2 = arith.constant 0 : index
    %0 = vector.load %arg1[%c0, %c0_0, %c0_1, %c0_2] : memref<2x2x64x128xf32, #tpu.memory_space<vmem>>, vector<1x2x64x128xf32>
    %1 = vector.shape_cast %0 : vector<1x2x64x128xf32> to vector<2x64x128xf32>
    %c1 = arith.constant 1 : index
    %c0_3 = arith.constant 0 : index
    %c0_4 = arith.constant 0 : index
    %c0_5 = arith.constant 0 : index
    %2 = vector.load %arg1[%c1, %c0_3, %c0_4, %c0_5] : memref<2x2x64x128xf32, #tpu.memory_space<vmem>>, vector<1x2x64x128xf32>
    %3 = vector.shape_cast %2 : vector<1x2x64x128xf32> to vector<2x64x128xf32>
    %4 = vector.shape_cast %1 : vector<2x64x128xf32> to vector<128x128xf32>
    %5 = vector.shape_cast %3 : vector<2x64x128xf32> to vector<128x128xf32>
    %c0_6 = arith.constant 0 : index
    %c0_7 = arith.constant 0 : index
    %6 = vector.load %arg2[%c0_6, %c0_7] : memref<128x128xf32, #tpu.memory_space<vmem>>, vector<128x128xf32>
    %cst = arith.constant dense<0.000000e+00> : vector<128x128xf32>
    %7 = tpu.matmul %4, %6, %cst {dimension_numbers = #tpu.dot_dimension_numbers<[1], [0], [0], [1], [0, 0, 1, 1], [], []>} : vector<128x128xf32>, vector<128x128xf32>, vector<128x128xf32> -> vector<128x128xf32>
    %8 = vector.shape_cast %7 : vector<128x128xf32> to vector<2x64x128xf32>
    %c0_8 = arith.constant 0 : index
    %c0_9 = arith.constant 0 : index
    %9 = vector.load %arg3[%c0_8, %c0_9] : memref<128x128xf32, #tpu.memory_space<vmem>>, vector<128x128xf32>
    %cst_10 = arith.constant dense<0.000000e+00> : vector<128x128xf32>
    %10 = tpu.matmul %5, %9, %cst_10 {dimension_numbers = #tpu.dot_dimension_numbers<[1], [0], [0], [1], [0, 0, 1, 1], [], []>} : vector<128x128xf32>, vector<128x128xf32>, vector<128x128xf32> -> vector<128x128xf32>
    %11 = vector.shape_cast %10 : vector<128x128xf32> to vector<2x64x128xf32>
    "tpu.trace_start"() <{level = 10 : i32, message = "bna,bma->bnm"}> : () -> ()
    %cst_11 = arith.constant dense<0.000000e+00> : vector<2x64x64xf32>
    %12 = tpu.matmul %8, %11, %cst_11 {dimension_numbers = #tpu.dot_dimension_numbers<[2], [2], [1], [1], [0, 0, 0, 1, 1, 1], [0], [0]>} : vector<2x64x128xf32>, vector<2x64x128xf32>, vector<2x64x64xf32> -> vector<2x64x64xf32>
    "tpu.trace_stop"() : () -> ()
    %cst_12 = arith.constant 0.176776692 : f32
    %13 = vector.broadcast %cst_12 : f32 to vector<2x64x64xf32>
    %14 = arith.mulf %12, %13 : vector<2x64x64xf32>
    %cst_13 = arith.constant dense<0xFF800000> : vector<2x64xf32>
    %15 = vector.multi_reduction <maximumf>, %14, %cst_13 [2] : vector<2x64x64xf32> to vector<2x64xf32>
    %16 = vector.shape_cast %15 : vector<2x64xf32> to vector<2x64x1xf32>
    %17 = vector.broadcast %16 : vector<2x64x1xf32> to vector<2x64x64xf32>
    %18 = arith.subf %14, %17 : vector<2x64x64xf32>
    %19 = math.exp %18 : vector<2x64x64xf32>
    %cst_14 = arith.constant dense<0.000000e+00> : vector<2x64xf32>
    %20 = vector.multi_reduction <add>, %19, %cst_14 [2] : vector<2x64x64xf32> to vector<2x64xf32>
    %21 = vector.shape_cast %20 : vector<2x64xf32> to vector<2x64x1xf32>
    %22 = tpu.reciprocal %21 {approx = true} : vector<2x64x1xf32> -> vector<2x64x1xf32>
    %23 = vector.broadcast %22 : vector<2x64x1xf32> to vector<2x64x64xf32>
    %24 = arith.mulf %19, %23 : vector<2x64x64xf32>
    %cst_15 = arith.constant dense<0.000000e+00> : vector<2x64xf32>
    %25 = vector.multi_reduction <add>, %24, %cst_15 [1] : vector<2x64x64xf32> to vector<2x64xf32>
    %26 = vector.shape_cast %25 : vector<2x64xf32> to vector<2x1x64xf32>
    %cst_16 = arith.constant 6.400000e+01 : f32
    %27 = vector.broadcast %cst_16 : f32 to vector<2x1x64xf32>
    %28 = arith.divf %26, %27 : vector<2x1x64xf32>
    "tpu.trace_start"() <{level = 10 : i32, message = "bnm,bmc->bnc"}> : () -> ()
    %cst_17 = arith.constant dense<0.000000e+00> : vector<2x1x128xf32>
    %29 = tpu.matmul %28, %3, %cst_17 {dimension_numbers = #tpu.dot_dimension_numbers<[2], [1], [1], [2], [0, 0, 0, 1, 1, 2], [0], [0]>} : vector<2x1x64xf32>, vector<2x64x128xf32>, vector<2x1x128xf32> -> vector<2x1x128xf32>
    "tpu.trace_stop"() : () -> ()
    %30 = vector.shape_cast %29 : vector<2x1x128xf32> to vector<2x128xf32>
    %c0_18 = arith.constant 0 : index
    %c0_19 = arith.constant 0 : index
    %31 = vector.load %arg4[%c0_18, %c0_19] : memref<128x128xf32, #tpu.memory_space<vmem>>, vector<128x128xf32>
    %cst_20 = arith.constant dense<0.000000e+00> : vector<2x128xf32>
    %32 = tpu.matmul %30, %31, %cst_20 {dimension_numbers = #tpu.dot_dimension_numbers<[1], [0], [0], [1], [0, 0, 1, 1], [], []>} : vector<2x128xf32>, vector<128x128xf32>, vector<2x128xf32> -> vector<2x128xf32>
    %c0_21 = arith.constant 0 : index
    %c0_22 = arith.constant 0 : index
    %c0_23 = arith.constant 0 : index
    %33 = vector.load %arg8[%c0_21, %c0_22, %c0_23] : memref<2x2x128xf32, #tpu.memory_space<vmem>>, vector<1x2x128xf32>
    %34 = vector.shape_cast %33 : vector<1x2x128xf32> to vector<2x128xf32>
    %35 = vector.shape_cast %32 : vector<2x128xf32> to vector<1x2x128xf32>
    tpu.vector_store %arg8[%c0_21, %c0_22, %c0_23], %35 {strides = array<i32>} : memref<2x2x128xf32, #tpu.memory_space<vmem>>, vector<1x2x128xf32>,
    %36 = tpu.transpose %14, [0, 2, 1] : vector<2x64x64xf32> -> vector<2x64x64xf32>
    %cst_24 = arith.constant dense<0xFF800000> : vector<2x64xf32>
    %37 = vector.multi_reduction <maximumf>, %36, %cst_24 [2] : vector<2x64x64xf32> to vector<2x64xf32>
    %38 = vector.shape_cast %37 : vector<2x64xf32> to vector<2x64x1xf32>
    %39 = vector.broadcast %38 : vector<2x64x1xf32> to vector<2x64x64xf32>
    %40 = arith.subf %36, %39 : vector<2x64x64xf32>
    %41 = math.exp %40 : vector<2x64x64xf32>
    %cst_25 = arith.constant dense<0.000000e+00> : vector<2x64xf32>
    %42 = vector.multi_reduction <add>, %41, %cst_25 [2] : vector<2x64x64xf32> to vector<2x64xf32>
    %43 = vector.shape_cast %42 : vector<2x64xf32> to vector<2x64x1xf32>
    %44 = tpu.reciprocal %43 {approx = true} : vector<2x64x1xf32> -> vector<2x64x1xf32>
    %45 = vector.broadcast %44 : vector<2x64x1xf32> to vector<2x64x64xf32>
    %46 = arith.mulf %41, %45 : vector<2x64x64xf32>
    %cst_26 = arith.constant dense<0.000000e+00> : vector<2x64xf32>
    %47 = vector.multi_reduction <add>, %46, %cst_26 [1] : vector<2x64x64xf32> to vector<2x64xf32>
    %48 = vector.shape_cast %47 : vector<2x64xf32> to vector<2x1x64xf32>
    %cst_27 = arith.constant 6.400000e+01 : f32
    %49 = vector.broadcast %cst_27 : f32 to vector<2x1x64xf32>
    %50 = arith.divf %48, %49 : vector<2x1x64xf32>
    "tpu.trace_start"() <{level = 10 : i32, message = "bnm,bmc->bnc"}> : () -> ()
    %cst_28 = arith.constant dense<0.000000e+00> : vector<2x1x128xf32>
    %51 = tpu.matmul %50, %1, %cst_28 {dimension_numbers = #tpu.dot_dimension_numbers<[2], [1], [1], [2], [0, 0, 0, 1, 1, 2], [0], [0]>} : vector<2x1x64xf32>, vector<2x64x128xf32>, vector<2x1x128xf32> -> vector<2x1x128xf32>
    "tpu.trace_stop"() : () -> ()
    %52 = vector.shape_cast %51 : vector<2x1x128xf32> to vector<2x128xf32>
    %c0_29 = arith.constant 0 : index
    %c0_30 = arith.constant 0 : index
    %53 = vector.load %arg5[%c0_29, %c0_30] : memref<128x128xf32, #tpu.memory_space<vmem>>, vector<128x128xf32>
    %cst_31 = arith.constant dense<0.000000e+00> : vector<2x128xf32>
    %54 = tpu.matmul %52, %53, %cst_31 {dimension_numbers = #tpu.dot_dimension_numbers<[1], [0], [0], [1], [0, 0, 1, 1], [], []>} : vector<2x128xf32>, vector<128x128xf32>, vector<2x128xf32> -> vector<2x128xf32>
    %c1_32 = arith.constant 1 : index
    %c0_33 = arith.constant 0 : index
    %c0_34 = arith.constant 0 : index
    %55 = vector.load %arg8[%c1_32, %c0_33, %c0_34] : memref<2x2x128xf32, #tpu.memory_space<vmem>>, vector<1x2x128xf32>
    %56 = vector.shape_cast %55 : vector<1x2x128xf32> to vector<2x128xf32>
    %57 = vector.shape_cast %54 : vector<2x128xf32> to vector<1x2x128xf32>
    tpu.vector_store %arg8[%c1_32, %c0_33, %c0_34], %57 {strides = array<i32>} : memref<2x2x128xf32, #tpu.memory_space<vmem>>, vector<1x2x128xf32>,
    %cst_35 = arith.constant dense<0.000000e+00> : vector<2x128xf32>
    %58 = vector.multi_reduction <add>, %1, %cst_35 [1] : vector<2x64x128xf32> to vector<2x128xf32>
    %cst_36 = arith.constant 6.400000e+01 : f32
    %59 = vector.broadcast %cst_36 : f32 to vector<2x128xf32>
    %60 = arith.divf %58, %59 : vector<2x128xf32>
    %cst_37 = arith.constant dense<0.000000e+00> : vector<2x128xf32>
    %61 = vector.multi_reduction <add>, %3, %cst_37 [1] : vector<2x64x128xf32> to vector<2x128xf32>
    %cst_38 = arith.constant 6.400000e+01 : f32
    %62 = vector.broadcast %cst_38 : f32 to vector<2x128xf32>
    %63 = arith.divf %61, %62 : vector<2x128xf32>
    %c0_39 = arith.constant 0 : index
    %c0_40 = arith.constant 0 : index
    %c0_41 = arith.constant 0 : index
    %64 = vector.load %arg6[%c0_39, %c0_40, %c0_41] : memref<2x128x128xf32, #tpu.memory_space<vmem>>, vector<1x128x128xf32>
    %65 = vector.shape_cast %64 : vector<1x128x128xf32> to vector<128x128xf32>
    %cst_42 = arith.constant dense<0.000000e+00> : vector<2x128xf32>
    %66 = tpu.matmul %60, %65, %cst_42 {dimension_numbers = #tpu.dot_dimension_numbers<[1], [0], [0], [1], [0, 0, 1, 1], [], []>} : vector<2x128xf32>, vector<128x128xf32>, vector<2x128xf32> -> vector<2x128xf32>
    %c0_43 = arith.constant 0 : index
    %c0_44 = arith.constant 0 : index
    %c0_45 = arith.constant 0 : index
    %67 = vector.load %arg7[%c0_43, %c0_44, %c0_45] : memref<2x1x128xf32, #tpu.memory_space<vmem>>, vector<1x1x128xf32>
    %68 = vector.shape_cast %67 : vector<1x1x128xf32> to vector<1x128xf32>
    %69 = vector.broadcast %68 : vector<1x128xf32> to vector<2x128xf32>
    %70 = arith.addf %66, %69 : vector<2x128xf32>
    %c0_46 = arith.constant 0 : index
    %c0_47 = arith.constant 0 : index
    %c0_48 = arith.constant 0 : index
    %71 = vector.load %arg9[%c0_46, %c0_47, %c0_48] : memref<2x2x128xf32, #tpu.memory_space<vmem>>, vector<1x2x128xf32>
    %72 = vector.shape_cast %71 : vector<1x2x128xf32> to vector<2x128xf32>
    %73 = vector.shape_cast %70 : vector<2x128xf32> to vector<1x2x128xf32>
    tpu.vector_store %arg9[%c0_46, %c0_47, %c0_48], %73 {strides = array<i32>} : memref<2x2x128xf32, #tpu.memory_space<vmem>>, vector<1x2x128xf32>,
    %c1_49 = arith.constant 1 : index
    %c0_50 = arith.constant 0 : index
    %c0_51 = arith.constant 0 : index
    %74 = vector.load %arg6[%c1_49, %c0_50, %c0_51] : memref<2x128x128xf32, #tpu.memory_space<vmem>>, vector<1x128x128xf32>
    %75 = vector.shape_cast %74 : vector<1x128x128xf32> to vector<128x128xf32>
    %cst_52 = arith.constant dense<0.000000e+00> : vector<2x128xf32>
    %76 = tpu.matmul %63, %75, %cst_52 {dimension_numbers = #tpu.dot_dimension_numbers<[1], [0], [0], [1], [0, 0, 1, 1], [], []>} : vector<2x128xf32>, vector<128x128xf32>, vector<2x128xf32> -> vector<2x128xf32>
    %c1_53 = arith.constant 1 : index
    %c0_54 = arith.constant 0 : index
    %c0_55 = arith.constant 0 : index
    %77 = vector.load %arg7[%c1_53, %c0_54, %c0_55] : memref<2x1x128xf32, #tpu.memory_space<vmem>>, vector<1x1x128xf32>
    %78 = vector.shape_cast %77 : vector<1x1x128xf32> to vector<1x128xf32>
    %79 = vector.broadcast %78 : vector<1x128xf32> to vector<2x128xf32>
    %80 = arith.addf %76, %79 : vector<2x128xf32>
    %c1_56 = arith.constant 1 : index
    %c0_57 = arith.constant 0 : index
    %c0_58 = arith.constant 0 : index
    %81 = vector.load %arg9[%c1_56, %c0_57, %c0_58] : memref<2x2x128xf32, #tpu.memory_space<vmem>>, vector<1x2x128xf32>
    %82 = vector.shape_cast %81 : vector<1x2x128xf32> to vector<2x128xf32>
    %83 = vector.shape_cast %80 : vector<2x128xf32> to vector<1x2x128xf32>
    tpu.vector_store %arg9[%c1_56, %c0_57, %c0_58], %83 {strides = array<i32>} : memref<2x2x128xf32, #tpu.memory_space<vmem>>, vector<1x2x128xf32>,
    return
  }
  func.func @transform_0(%arg0: i32) -> (i32, i32, i32, i32) {
    %c0_i32 = arith.constant 0 : i32
    %c0_i32_0 = arith.constant 0 : i32
    %c0_i32_1 = arith.constant 0 : i32
    %c0_i32_2 = arith.constant 0 : i32
    %c0_i32_3 = arith.constant 0 : i32
    return %c0_i32, %c0_i32_0, %c0_i32_1, %c0_i32_2 : i32, i32, i32, i32
  }
  func.func @transform_1(%arg0: i32) -> (i32, i32) {
    %c0_i32 = arith.constant 0 : i32
    %c0_i32_0 = arith.constant 0 : i32
    %c0_i32_1 = arith.constant 0 : i32
    return %c0_i32, %c0_i32_0 : i32, i32
  }
  func.func @transform_2(%arg0: i32) -> (i32, i32) {
    %c0_i32 = arith.constant 0 : i32
    %c0_i32_0 = arith.constant 0 : i32
    %c0_i32_1 = arith.constant 0 : i32
    return %c0_i32, %c0_i32_0 : i32, i32
  }
  func.func @transform_3(%arg0: i32) -> (i32, i32) {
    %c0_i32 = arith.constant 0 : i32
    %c0_i32_0 = arith.constant 0 : i32
    %c0_i32_1 = arith.constant 0 : i32
    return %c0_i32, %c0_i32_0 : i32, i32
  }
  func.func @transform_4(%arg0: i32) -> (i32, i32) {
    %c0_i32 = arith.constant 0 : i32
    %c0_i32_0 = arith.constant 0 : i32
    %c0_i32_1 = arith.constant 0 : i32
    return %c0_i32, %c0_i32_0 : i32, i32
  }
  func.func @transform_5(%arg0: i32) -> (i32, i32, i32) {
    %c0_i32 = arith.constant 0 : i32
    %c0_i32_0 = arith.constant 0 : i32
    %c0_i32_1 = arith.constant 0 : i32
    %c0_i32_2 = arith.constant 0 : i32
    return %c0_i32, %c0_i32_0, %c0_i32_1 : i32, i32, i32
  }
  func.func @transform_6(%arg0: i32) -> (i32, i32, i32) {
    %c0_i32 = arith.constant 0 : i32
    %c0_i32_0 = arith.constant 0 : i32
    %c0_i32_1 = arith.constant 0 : i32
    %c0_i32_2 = arith.constant 0 : i32
    return %c0_i32, %c0_i32_0, %c0_i32_1 : i32, i32, i32
  }
  func.func @transform_7(%arg0: i32) -> (i32, i32, i32) {
    %c0_i32 = arith.constant 0 : i32
    %c0_i32_0 = arith.constant 0 : i32
    %c0_i32_1 = arith.constant 0 : i32
    %c0_i32_2 = arith.constant 0 : i32
    return %c0_i32, %c0_i32_0, %c0_i32_1 : i32, i32, i32
  }
  func.func @transform_8(%arg0: i32) -> (i32, i32, i32) {
    %c0_i32 = arith.constant 0 : i32
    %c0_i32_0 = arith.constant 0 : i32
    %c0_i32_1 = arith.constant 0 : i32
    %c0_i32_2 = arith.constant 0 : i32
    return %c0_i32, %c0_i32_0, %c0_i32_1 : i32, i32, i32
  }
}

</mosaic_0001>

<llo_original>
// kernel: dla_forward.4
$region0: #{dla_forward.4}
  #allocation0 [shape = 'u32[]', space=smem, size = 0x4, offset = 0x4, fixed_abs, tag = 'smem constant byte address 0x4 - core index']
  #allocation1 [shape = 'u32[144,128]{1,0:T(1,128)}', space=vmem, size = 0x12000, scoped, tag = 'internal scratch']
  %s0 = inlined_call_operand.vmem [shape: f32[2,2,64,128], index: 0, kind: input, shape index: {}]
  %s1 = inlined_call_operand.vmem [shape: f32[128,128], index: 1, kind: input, shape index: {}]
  %s2 = inlined_call_operand.vmem [shape: f32[128,128], index: 2, kind: input, shape index: {}]
  %s3 = inlined_call_operand.vmem [shape: f32[128,128], index: 3, kind: input, shape index: {}]
  %s4 = inlined_call_operand.vmem [shape: f32[128,128], index: 4, kind: input, shape index: {}]
  %s5 = inlined_call_operand.vmem [shape: f32[2,128,128], index: 5, kind: input, shape index: {}]
  %s6 = inlined_call_operand.vmem [shape: f32[2,1,128], index: 6, kind: input, shape index: {}]
  %s7 = inlined_call_operand.vmem [shape: f32[2,2,128], index: 7, kind: output, shape index: {0}]
  %s8 = inlined_call_operand.vmem [shape: f32[2,2,128], index: 8, kind: output, shape index: {1}]
  %9 = xla_tuple %s7, %s8
  %s10 = sld [smem:[#allocation0]]
  $region46: #{dla_forward.4} parent=0
    _
  %s12 = ssub.s32 1, %s10
  %s13 = scalar_select 0, %s12, %s10
  // Predicated region
  $region2: #{dla_forward.4} parent=0 // pred_check
    _
  $region3: #{dla_forward.4} parent=0 // pred_check_branch
    %15 = sbr.rel (0) target = $region5
  $region4: #{dla_forward.4} parent=0 // pred_region
    _
  $region5: #{dla_forward.4} parent=0 // pred_fallthru
    _
  // Predicated region
  $region6: #{dla_forward.4} parent=0 // pred_check
    _
  $region7: #{dla_forward.4} parent=0 // pred_check_branch
    %17 = sbr.rel (0) target = $region9
  $region8: #{dla_forward.4} parent=0 // pred_region
    _
  $region9: #{dla_forward.4} parent=0 // pred_fallthru
    _
  // Predicated region
  $region10: #{dla_forward.4} parent=0 // pred_check
    _
  $region11: #{dla_forward.4} parent=0 // pred_check_branch
    %19 = sbr.rel (0) target = $region13
  $region12: #{dla_forward.4} parent=0 // pred_region
    _
  $region13: #{dla_forward.4} parent=0 // pred_fallthru
    _
  // Predicated region
  $region14: #{dla_forward.4} parent=0 // pred_check
    _
  $region15: #{dla_forward.4} parent=0 // pred_check_branch
    %21 = sbr.rel (0) target = $region17
  $region16: #{dla_forward.4} parent=0 // pred_region
    _
  $region17: #{dla_forward.4} parent=0 // pred_fallthru
    _
  // Predicated region
  $region18: #{dla_forward.4} parent=0 // pred_check
    _
  $region19: #{dla_forward.4} parent=0 // pred_check_branch
    %23 = sbr.rel (0) target = $region21
  $region20: #{dla_forward.4} parent=0 // pred_region
    _
  $region21: #{dla_forward.4} parent=0 // pred_fallthru
    _
  // Predicated region
  $region22: #{dla_forward.4} parent=0 // pred_check
    _
  $region23: #{dla_forward.4} parent=0 // pred_check_branch
    %25 = sbr.rel (0) target = $region25
  $region24: #{dla_forward.4} parent=0 // pred_region
    _
  $region25: #{dla_forward.4} parent=0 // pred_fallthru
    _
  // Predicated region
  $region26: #{dla_forward.4} parent=0 // pred_check
    _
  $region27: #{dla_forward.4} parent=0 // pred_check_branch
    %27 = sbr.rel (0) target = $region29
  $region28: #{dla_forward.4} parent=0 // pred_region
    _
  $region29: #{dla_forward.4} parent=0 // pred_fallthru
    _
  %v28 = vld [vmem:[%s0] sm:$0xff]
  %v29 = vld [vmem:[%s0 + $0x8] sm:$0xff]
  %v30 = vld [vmem:[%s0 + $0x10] sm:$0xff]
  %v31 = vld [vmem:[%s0 + $0x18] sm:$0xff]
  %v32 = vld [vmem:[%s0 + $0x20] sm:$0xff]
  %v33 = vld [vmem:[%s0 + $0x28] sm:$0xff]
  %v34 = vld [vmem:[%s0 + $0x30] sm:$0xff]
  %v35 = vld [vmem:[%s0 + $0x38] sm:$0xff]
  %v36 = vld [vmem:[%s0 + $0x40] sm:$0xff]
  %v37 = vld [vmem:[%s0 + $0x48] sm:$0xff]
  %v38 = vld [vmem:[%s0 + $0x50] sm:$0xff]
  %v39 = vld [vmem:[%s0 + $0x58] sm:$0xff]
  %v40 = vld [vmem:[%s0 + $0x60] sm:$0xff]
  %v41 = vld [vmem:[%s0 + $0x68] sm:$0xff]
  %v42 = vld [vmem:[%s0 + $0x70] sm:$0xff]
  %v43 = vld [vmem:[%s0 + $0x78] sm:$0xff]
  %s44 = scalar_lea.vmem %s0, 128
  %v45 = vld [vmem:[%s44] sm:$0xff]
  %v46 = vld [vmem:[%s44 + $0x8] sm:$0xff]
  %v47 = vld [vmem:[%s44 + $0x10] sm:$0xff]
  %v48 = vld [vmem:[%s44 + $0x18] sm:$0xff]
  %v49 = vld [vmem:[%s44 + $0x20] sm:$0xff]
  %v50 = vld [vmem:[%s44 + $0x28] sm:$0xff]
  %v51 = vld [vmem:[%s44 + $0x30] sm:$0xff]
  %v52 = vld [vmem:[%s44 + $0x38] sm:$0xff]
  %v53 = vld [vmem:[%s44 + $0x40] sm:$0xff]
  %v54 = vld [vmem:[%s44 + $0x48] sm:$0xff]
  %v55 = vld [vmem:[%s44 + $0x50] sm:$0xff]
  %v56 = vld [vmem:[%s44 + $0x58] sm:$0xff]
  %v57 = vld [vmem:[%s44 + $0x60] sm:$0xff]
  %v58 = vld [vmem:[%s44 + $0x68] sm:$0xff]
  %v59 = vld [vmem:[%s44 + $0x70] sm:$0xff]
  %v60 = vld [vmem:[%s44 + $0x78] sm:$0xff]
  %v61 = vld [vmem:[%s1] sm:$0xff]
  %v62 = vld [vmem:[%s1 + $0x8] sm:$0xff]
  %v63 = vld [vmem:[%s1 + $0x10] sm:$0xff]
  %v64 = vld [vmem:[%s1 + $0x18] sm:$0xff]
  %v65 = vld [vmem:[%s1 + $0x20] sm:$0xff]
  %v66 = vld [vmem:[%s1 + $0x28] sm:$0xff]
  %v67 = vld [vmem:[%s1 + $0x30] sm:$0xff]
  %v68 = vld [vmem:[%s1 + $0x38] sm:$0xff]
  %v69 = vld [vmem:[%s1 + $0x40] sm:$0xff]
  %v70 = vld [vmem:[%s1 + $0x48] sm:$0xff]
  %v71 = vld [vmem:[%s1 + $0x50] sm:$0xff]
  %v72 = vld [vmem:[%s1 + $0x58] sm:$0xff]
  %v73 = vld [vmem:[%s1 + $0x60] sm:$0xff]
  %v74 = vld [vmem:[%s1 + $0x68] sm:$0xff]
  %v75 = vld [vmem:[%s1 + $0x70] sm:$0xff]
  %v76 = vld [vmem:[%s1 + $0x78] sm:$0xff]
  %77 = vmatprep.subr.mxu0 0.0
  %78 = vmatpush1.msra.mxu0 %v61
  %79 = vmatprep.subr.mxu0 0.0
  %80 = vmatpush1.msra.mxu0 %v62
  %81 = vmatprep.subr.mxu0 0.0
  %82 = vmatpush1.msra.mxu0 %v63
  %83 = vmatprep.subr.mxu0 0.0
  %84 = vmatpush1.msra.mxu0 %v64
  %85 = vmatprep.subr.mxu0 0.0
  %86 = vmatpush1.msra.mxu0 %v65
  %87 = vmatprep.subr.mxu0 0.0
  %88 = vmatpush1.msra.mxu0 %v66
  %89 = vmatprep.subr.mxu0 0.0
  %90 = vmatpush1.msra.mxu0 %v67
  %91 = vmatprep.subr.mxu0 0.0
  %92 = vmatpush1.msra.mxu0 %v68
  %93 = vmatprep.subr.mxu0 0.0
  %94 = vmatpush1.msra.mxu0 %v69
  %95 = vmatprep.subr.mxu0 0.0
  %96 = vmatpush1.msra.mxu0 %v70
  %97 = vmatprep.subr.mxu0 0.0
  %98 = vmatpush1.msra.mxu0 %v71
  %99 = vmatprep.subr.mxu0 0.0
  %100 = vmatpush1.msra.mxu0 %v72
  %101 = vmatprep.subr.mxu0 0.0
  %102 = vmatpush1.msra.mxu0 %v73
  %103 = vmatprep.subr.mxu0 0.0
  %104 = vmatpush1.msra.mxu0 %v74
  %105 = vmatprep.subr.mxu0 0.0
  %106 = vmatpush1.msra.mxu0 %v75
  %107 = vmatprep.subr.mxu0 0.0
  %108 = vmatpush1.msra.mxu0 %v76
  %109 = vmatprep.subr.mxu0 0.0
  %110 = vmatpush1.msra.mxu0 0.0
  %111 = vmatprep.subr.mxu0 0.0
  %112 = vmatpush1.msra.mxu0 0.0
  %113 = vmatprep.subr.mxu0 0.0
  %114 = vmatpush1.msra.mxu0 0.0
  %115 = vmatprep.subr.mxu0 0.0
  %116 = vmatpush1.msra.mxu0 0.0
  %117 = vmatprep.subr.mxu0 0.0
  %118 = vmatpush1.msra.mxu0 0.0
  %119 = vmatprep.subr.mxu0 0.0
  %120 = vmatpush1.msra.mxu0 0.0
  %121 = vmatprep.subr.mxu0 0.0
  %122 = vmatpush1.msra.mxu0 0.0
  %123 = vmatprep.subr.mxu0 0.0
  %124 = vmatpush1.msra.mxu0 0.0
  %125 = vmatprep.subr.mxu0 0.0
  %126 = vmatpush1.msra.mxu0 0.0
  %127 = vmatprep.subr.mxu0 0.0
  %128 = vmatpush1.msra.mxu0 0.0
  %129 = vmatprep.subr.mxu0 0.0
  %130 = vmatpush1.msra.mxu0 0.0
  %131 = vmatprep.subr.mxu0 0.0
  %132 = vmatpush1.msra.mxu0 0.0
  %133 = vmatprep.subr.mxu0 0.0
  %134 = vmatpush1.msra.mxu0 0.0
  %135 = vmatprep.subr.mxu0 0.0
  %136 = vmatpush1.msra.mxu0 0.0
  %137 = vmatprep.subr.mxu0 0.0
  %138 = vmatpush1.msra.mxu0 0.0
  %139 = vmatprep.subr.mxu0 0.0
  %140 = vmatpush1.msra.mxu0 0.0
  %141 = vmatprep.mubr.f32.mxu0 0.0
  %142 = vmatmul.mubr.f32.gmra.mrb[0].mxu0 %v28
  %v143 = vpop.f32.mrb[0].mxu0
  %v144 = vadd.f32 0.0, %v143
  %v145 = vpop.f32.mrb[0].mxu0
  %146 = vmatprep.mubr.f32.mxu0 0.0
  %147 = vmatmul.mubr.f32.gmra.mrb[0].mxu0 %v29
  %v148 = vpop.f32.mrb[0].mxu0
  %v149 = vadd.f32 0.0, %v148
  %v150 = vpop.f32.mrb[0].mxu0
  %151 = vmatprep.mubr.f32.mxu0 0.0
  %152 = vmatmul.mubr.f32.gmra.mrb[0].mxu0 %v30
  %v153 = vpop.f32.mrb[0].mxu0
  %v154 = vadd.f32 0.0, %v153
  %v155 = vpop.f32.mrb[0].mxu0
  %156 = vmatprep.mubr.f32.mxu0 0.0
  %157 = vmatmul.mubr.f32.gmra.mrb[0].mxu0 %v31
  %v158 = vpop.f32.mrb[0].mxu0
  %v159 = vadd.f32 0.0, %v158
  %v160 = vpop.f32.mrb[0].mxu0
  %161 = vmatprep.mubr.f32.mxu0 0.0
  %162 = vmatmul.mubr.f32.gmra.mrb[0].mxu0 %v32
  %v163 = vpop.f32.mrb[0].mxu0
  %v164 = vadd.f32 0.0, %v163
  %v165 = vpop.f32.mrb[0].mxu0
  %166 = vmatprep.mubr.f32.mxu0 0.0
  %167 = vmatmul.mubr.f32.gmra.mrb[0].mxu0 %v33
  %v168 = vpop.f32.mrb[0].mxu0
  %v169 = vadd.f32 0.0, %v168
  %v170 = vpop.f32.mrb[0].mxu0
  %171 = vmatprep.mubr.f32.mxu0 0.0
  %172 = vmatmul.mubr.f32.gmra.mrb[0].mxu0 %v34
  %v173 = vpop.f32.mrb[0].mxu0
  %v174 = vadd.f32 0.0, %v173
  %v175 = vpop.f32.mrb[0].mxu0
  %176 = vmatprep.mubr.f32.mxu0 0.0
  %177 = vmatmul.mubr.f32.gmra.mrb[0].mxu0 %v35
  %v178 = vpop.f32.mrb[0].mxu0
  %v179 = vadd.f32 0.0, %v178
  %v180 = vpop.f32.mrb[0].mxu0
  %181 = vmatprep.mubr.f32.mxu0 0.0
  %182 = vmatmul.mubr.f32.gmra.mrb[0].mxu0 %v36
  %v183 = vpop.f32.mrb[0].mxu0
  %v184 = vadd.f32 0.0, %v183
  %v185 = vpop.f32.mrb[0].mxu0
  %186 = vmatprep.mubr.f32.mxu0 0.0
  %187 = vmatmul.mubr.f32.gmra.mrb[0].mxu0 %v37
  %v188 = vpop.f32.mrb[0].mxu0
  %v189 = vadd.f32 0.0, %v188
  %v190 = vpop.f32.mrb[0].mxu0
  %191 = vmatprep.mubr.f32.mxu0 0.0
  %192 = vmatmul.mubr.f32.gmra.mrb[0].mxu0 %v38
  %v193 = vpop.f32.mrb[0].mxu0
  %v194 = vadd.f32 0.0, %v193
  %v195 = vpop.f32.mrb[0].mxu0
  %196 = vmatprep.mubr.f32.mxu0 0.0
  %197 = vmatmul.mubr.f32.gmra.mrb[0].mxu0 %v39
  %v198 = vpop.f32.mrb[0].mxu0
  %v199 = vadd.f32 0.0, %v198
  %v200 = vpop.f32.mrb[0].mxu0
  %201 = vmatprep.mubr.f32.mxu0 0.0
  %202 = vmatmul.mubr.f32.gmra.mrb[0].mxu0 %v40
  %v203 = vpop.f32.mrb[0].mxu0
  %v204 = vadd.f32 0.0, %v203
  %v205 = vpop.f32.mrb[0].mxu0
  %206 = vmatprep.mubr.f32.mxu0 0.0
  %207 = vmatmul.mubr.f32.gmra.mrb[0].mxu0 %v41
  %v208 = vpop.f32.mrb[0].mxu0
  %v209 = vadd.f32 0.0, %v208
  %v210 = vpop.f32.mrb[0].mxu0
  %211 = vmatprep.mubr.f32.mxu0 0.0
  %212 = vmatmul.mubr.f32.gmra.mrb[0].mxu0 %v42
  %v213 = vpop.f32.mrb[0].mxu0
  %v214 = vadd.f32 0.0, %v213
  %v215 = vpop.f32.mrb[0].mxu0
  %216 = vmatprep.mubr.f32.mxu0 0.0
  %217 = vmatmul.mubr.f32.gmra.mrb[0].mxu0 %v43
  %v218 = vpop.f32.mrb[0].mxu0
  %v219 = vadd.f32 0.0, %v218
  %v220 = vpop.f32.mrb[0].mxu0
  %221 = vdwg.mxu0
  %v222 = vld [vmem:[%s2] sm:$0xff]
  %v223 = vld [vmem:[%s2 + $0x8] sm:$0xff]
  %v224 = vld [vmem:[%s2 + $0x10] sm:$0xff]
  %v225 = vld [vmem:[%s2 + $0x18] sm:$0xff]
  %v226 = vld [vmem:[%s2 + $0x20] sm:$0xff]
  %v227 = vld [vmem:[%s2 + $0x28] sm:$0xff]
  %v228 = vld [vmem:[%s2 + $0x30] sm:$0xff]
  %v229 = vld [vmem:[%s2 + $0x38] sm:$0xff]
  %v230 = vld [vmem:[%s2 + $0x40] sm:$0xff]
  %v231 = vld [vmem:[%s2 + $0x48] sm:$0xff]
  %v232 = vld [vmem:[%s2 + $0x50] sm:$0xff]
  %v233 = vld [vmem:[%s2 + $0x58] sm:$0xff]
  %v234 = vld [vmem:[%s2 + $0x60] sm:$0xff]
  %v235 = vld [vmem:[%s2 + $0x68] sm:$0xff]
  %v236 = vld [vmem:[%s2 + $0x70] sm:$0xff]
  %v237 = vld [vmem:[%s2 + $0x78] sm:$0xff]
  %238 = vmatprep.subr.mxu0 0.0
  %239 = vmatpush1.msra.mxu0 %v222
  %240 = vmatprep.subr.mxu0 0.0
  %241 = vmatpush1.msra.mxu0 %v223
  %242 = vmatprep.subr.mxu0 0.0
  %243 = vmatpush1.msra.mxu0 %v224
  %244 = vmatprep.subr.mxu0 0.0
  %245 = vmatpush1.msra.mxu0 %v225
  %246 = vmatprep.subr.mxu0 0.0
  %247 = vmatpush1.msra.mxu0 %v226
  %248 = vmatprep.subr.mxu0 0.0
  %249 = vmatpush1.msra.mxu0 %v227
  %250 = vmatprep.subr.mxu0 0.0
  %251 = vmatpush1.msra.mxu0 %v228
  %252 = vmatprep.subr.mxu0 0.0
  %253 = vmatpush1.msra.mxu0 %v229
  %254 = vmatprep.subr.mxu0 0.0
  %255 = vmatpush1.msra.mxu0 %v230
  %256 = vmatprep.subr.mxu0 0.0
  %257 = vmatpush1.msra.mxu0 %v231
  %258 = vmatprep.subr.mxu0 0.0
  %259 = vmatpush1.msra.mxu0 %v232
  %260 = vmatprep.subr.mxu0 0.0
  %261 = vmatpush1.msra.mxu0 %v233
  %262 = vmatprep.subr.mxu0 0.0
  %263 = vmatpush1.msra.mxu0 %v234
  %264 = vmatprep.subr.mxu0 0.0
  %265 = vmatpush1.msra.mxu0 %v235
  %266 = vmatprep.subr.mxu0 0.0
  %267 = vmatpush1.msra.mxu0 %v236
  %268 = vmatprep.subr.mxu0 0.0
  %269 = vmatpush1.msra.mxu0 %v237
  %270 = vmatprep.subr.mxu0 0.0
  %271 = vmatpush1.msra.mxu0 0.0
  %272 = vmatprep.subr.mxu0 0.0
  %273 = vmatpush1.msra.mxu0 0.0
  %274 = vmatprep.subr.mxu0 0.0
  %275 = vmatpush1.msra.mxu0 0.0
  %276 = vmatprep.subr.mxu0 0.0
  %277 = vmatpush1.msra.mxu0 0.0
  %278 = vmatprep.subr.mxu0 0.0
  %279 = vmatpush1.msra.mxu0 0.0
  %280 = vmatprep.subr.mxu0 0.0
  %281 = vmatpush1.msra.mxu0 0.0
  %282 = vmatprep.subr.mxu0 0.0
  %283 = vmatpush1.msra.mxu0 0.0
  %284 = vmatprep.subr.mxu0 0.0
  %285 = vmatpush1.msra.mxu0 0.0
  %286 = vmatprep.subr.mxu0 0.0
  %287 = vmatpush1.msra.mxu0 0.0
  %288 = vmatprep.subr.mxu0 0.0
  %289 = vmatpush1.msra.mxu0 0.0
  %290 = vmatprep.subr.mxu0 0.0
  %291 = vmatpush1.msra.mxu0 0.0
  %292 = vmatprep.subr.mxu0 0.0
  %293 = vmatpush1.msra.mxu0 0.0
  %294 = vmatprep.subr.mxu0 0.0
  %295 = vmatpush1.msra.mxu0 0.0
  %296 = vmatprep.subr.mxu0 0.0
  %297 = vmatpush1.msra.mxu0 0.0
  %298 = vmatprep.subr.mxu0 0.0
  %299 = vmatpush1.msra.mxu0 0.0
  %300 = vmatprep.subr.mxu0 0.0
  %301 = vmatpush1.msra.mxu0 0.0
  %302 = vmatprep.mubr.f32.mxu0 0.0
  %303 = vmatmul.mubr.f32.gmra.mrb[0].mxu0 %v45
  %v304 = vpop.f32.mrb[0].mxu0
  %v305 = vadd.f32 0.0, %v304
  %v306 = vpop.f32.mrb[0].mxu0
  %307 = vmatprep.mubr.f32.mxu0 0.0
  %308 = vmatmul.mubr.f32.gmra.mrb[0].mxu0 %v46
  %v309 = vpop.f32.mrb[0].mxu0
  %v310 = vadd.f32 0.0, %v309
  %v311 = vpop.f32.mrb[0].mxu0
  %312 = vmatprep.mubr.f32.mxu0 0.0
  %313 = vmatmul.mubr.f32.gmra.mrb[0].mxu0 %v47
  %v314 = vpop.f32.mrb[0].mxu0
  %v315 = vadd.f32 0.0, %v314
  %v316 = vpop.f32.mrb[0].mxu0
  %317 = vmatprep.mubr.f32.mxu0 0.0
  %318 = vmatmul.mubr.f32.gmra.mrb[0].mxu0 %v48
  %v319 = vpop.f32.mrb[0].mxu0
  %v320 = vadd.f32 0.0, %v319
  %v321 = vpop.f32.mrb[0].mxu0
  %322 = vmatprep.mubr.f32.mxu0 0.0
  %323 = vmatmul.mubr.f32.gmra.mrb[0].mxu0 %v49
  %v324 = vpop.f32.mrb[0].mxu0
  %v325 = vadd.f32 0.0, %v324
  %v326 = vpop.f32.mrb[0].mxu0
  %327 = vmatprep.mubr.f32.mxu0 0.0
  %328 = vmatmul.mubr.f32.gmra.mrb[0].mxu0 %v50
  %v329 = vpop.f32.mrb[0].mxu0
  %v330 = vadd.f32 0.0, %v329
  %v331 = vpop.f32.mrb[0].mxu0
  %332 = vmatprep.mubr.f32.mxu0 0.0
  %333 = vmatmul.mubr.f32.gmra.mrb[0].mxu0 %v51
  %v334 = vpop.f32.mrb[0].mxu0
  %v335 = vadd.f32 0.0, %v334
  %v336 = vpop.f32.mrb[0].mxu0
  %337 = vmatprep.mubr.f32.mxu0 0.0
  %338 = vmatmul.mubr.f32.gmra.mrb[0].mxu0 %v52
  %v339 = vpop.f32.mrb[0].mxu0
  %v340 = vadd.f32 0.0, %v339
  %v341 = vpop.f32.mrb[0].mxu0
  %342 = vmatprep.mubr.f32.mxu0 0.0
  %343 = vmatmul.mubr.f32.gmra.mrb[0].mxu0 %v53
  %v344 = vpop.f32.mrb[0].mxu0
  %v345 = vadd.f32 0.0, %v344
  %v346 = vpop.f32.mrb[0].mxu0
  %347 = vmatprep.mubr.f32.mxu0 0.0
  %348 = vmatmul.mubr.f32.gmra.mrb[0].mxu0 %v54
  %v349 = vpop.f32.mrb[0].mxu0
  %v350 = vadd.f32 0.0, %v349
  %v351 = vpop.f32.mrb[0].mxu0
  %352 = vmatprep.mubr.f32.mxu0 0.0
  %353 = vmatmul.mubr.f32.gmra.mrb[0].mxu0 %v55
  %v354 = vpop.f32.mrb[0].mxu0
  %v355 = vadd.f32 0.0, %v354
  %v356 = vpop.f32.mrb[0].mxu0
  %357 = vmatprep.mubr.f32.mxu0 0.0
  %358 = vmatmul.mubr.f32.gmra.mrb[0].mxu0 %v56
  %v359 = vpop.f32.mrb[0].mxu0
  %v360 = vadd.f32 0.0, %v359
  %v361 = vpop.f32.mrb[0].mxu0
  %362 = vmatprep.mubr.f32.mxu0 0.0
  %363 = vmatmul.mubr.f32.gmra.mrb[0].mxu0 %v57
  %v364 = vpop.f32.mrb[0].mxu0
  %v365 = vadd.f32 0.0, %v364
  %v366 = vpop.f32.mrb[0].mxu0
  %367 = vmatprep.mubr.f32.mxu0 0.0
  %368 = vmatmul.mubr.f32.gmra.mrb[0].mxu0 %v58
  %v369 = vpop.f32.mrb[0].mxu0
  %v370 = vadd.f32 0.0, %v369
  %v371 = vpop.f32.mrb[0].mxu0
  %372 = vmatprep.mubr.f32.mxu0 0.0
  %373 = vmatmul.mubr.f32.gmra.mrb[0].mxu0 %v59
  %v374 = vpop.f32.mrb[0].mxu0
  %v375 = vadd.f32 0.0, %v374
  %v376 = vpop.f32.mrb[0].mxu0
  %377 = vmatprep.mubr.f32.mxu0 0.0
  %378 = vmatmul.mubr.f32.gmra.mrb[0].mxu0 %v60
  %v379 = vpop.f32.mrb[0].mxu0
  %v380 = vadd.f32 0.0, %v379
  %v381 = vpop.f32.mrb[0].mxu0
  %382 = vdwg.mxu0
  %383 = vmatprep.subr.mxu0 0.0
  %384 = vmatpush1.xpose.msra.mxu0 %v305
  %385 = vmatprep.subr.mxu0 0.0
  %386 = vmatpush1.xpose.msra.mxu0 %v310
  %387 = vmatprep.subr.mxu0 0.0
  %388 = vmatpush1.xpose.msra.mxu0 %v315
  %389 = vmatprep.subr.mxu0 0.0
  %390 = vmatpush1.xpose.msra.mxu0 %v320
  %391 = vmatprep.subr.mxu0 0.0
  %392 = vmatpush1.xpose.msra.mxu0 %v325
  %393 = vmatprep.subr.mxu0 0.0
  %394 = vmatpush1.xpose.msra.mxu0 %v330
  %395 = vmatprep.subr.mxu0 0.0
  %396 = vmatpush1.xpose.msra.mxu0 %v335
  %397 = vmatprep.subr.mxu0 0.0
  %398 = vmatpush1.xpose.msra.mxu0 %v340
  %399 = vmatprep.subr.mxu0 0.0
  %400 = vmatpush1.xpose.msra.mxu0 0.0
  %401 = vmatprep.subr.mxu0 0.0
  %402 = vmatpush1.xpose.msra.mxu0 0.0
  %403 = vmatprep.subr.mxu0 0.0
  %404 = vmatpush1.xpose.msra.mxu0 0.0
  %405 = vmatprep.subr.mxu0 0.0
  %406 = vmatpush1.xpose.msra.mxu0 0.0
  %407 = vmatprep.subr.mxu0 0.0
  %408 = vmatpush1.xpose.msra.mxu0 0.0
  %409 = vmatprep.subr.mxu0 0.0
  %410 = vmatpush1.xpose.msra.mxu0 0.0
  %411 = vmatprep.subr.mxu0 0.0
  %412 = vmatpush1.xpose.msra.mxu0 0.0
  %413 = vmatprep.subr.mxu0 0.0
  %414 = vmatpush1.xpose.msra.mxu0 0.0
  %415 = vmatprep.subr.mxu0 0.0
  %416 = vmatpush1.xpose.msra.mxu0 0.0
  %417 = vmatprep.subr.mxu0 0.0
  %418 = vmatpush1.xpose.msra.mxu0 0.0
  %419 = vmatprep.subr.mxu0 0.0
  %420 = vmatpush1.xpose.msra.mxu0 0.0
  %421 = vmatprep.subr.mxu0 0.0
  %422 = vmatpush1.xpose.msra.mxu0 0.0
  %423 = vmatprep.subr.mxu0 0.0
  %424 = vmatpush1.xpose.msra.mxu0 0.0
  %425 = vmatprep.subr.mxu0 0.0
  %426 = vmatpush1.xpose.msra.mxu0 0.0
  %427 = vmatprep.subr.mxu0 0.0
  %428 = vmatpush1.xpose.msra.mxu0 0.0
  %429 = vmatprep.subr.mxu0 0.0
  %430 = vmatpush1.xpose.msra.mxu0 0.0
  %431 = vmatprep.subr.mxu0 0.0
  %432 = vmatpush1.xpose.msra.mxu0 0.0
  %433 = vmatprep.subr.mxu0 0.0
  %434 = vmatpush1.xpose.msra.mxu0 0.0
  %435 = vmatprep.subr.mxu0 0.0
  %436 = vmatpush1.xpose.msra.mxu0 0.0
  %437 = vmatprep.subr.mxu0 0.0
  %438 = vmatpush1.xpose.msra.mxu0 0.0
  %439 = vmatprep.subr.mxu0 0.0
  %440 = vmatpush1.xpose.msra.mxu0 0.0
  %441 = vmatprep.subr.mxu0 0.0
  %442 = vmatpush1.xpose.msra.mxu0 0.0
  %443 = vmatprep.subr.mxu0 0.0
  %444 = vmatpush1.xpose.msra.mxu0 0.0
  %445 = vmatprep.subr.mxu0 0.0
  %446 = vmatpush1.xpose.msra.mxu0 0.0
  %447 = vmatprep.mubr.f32.mxu0 0.0
  %448 = vmatmul.mubr.f32.gmra.mrb[0].mxu0 %v144
  %v449 = vpop.f32.mrb[0].mxu0
  %v450 = vadd.f32 0.0, %v449
  %v451 = vpop.f32.mrb[0].mxu0
  %452 = vmatprep.mubr.f32.mxu0 0.0
  %453 = vmatmul.mubr.f32.gmra.mrb[0].mxu0 %v149
  %v454 = vpop.f32.mrb[0].mxu0
  %v455 = vadd.f32 0.0, %v454
  %v456 = vpop.f32.mrb[0].mxu0
  %457 = vmatprep.mubr.f32.mxu0 0.0
  %458 = vmatmul.mubr.f32.gmra.mrb[0].mxu0 %v154
  %v459 = vpop.f32.mrb[0].mxu0
  %v460 = vadd.f32 0.0, %v459
  %v461 = vpop.f32.mrb[0].mxu0
  %462 = vmatprep.mubr.f32.mxu0 0.0
  %463 = vmatmul.mubr.f32.gmra.mrb[0].mxu0 %v159
  %v464 = vpop.f32.mrb[0].mxu0
  %v465 = vadd.f32 0.0, %v464
  %v466 = vpop.f32.mrb[0].mxu0
  %467 = vmatprep.mubr.f32.mxu0 0.0
  %468 = vmatmul.mubr.f32.gmra.mrb[0].mxu0 %v164
  %v469 = vpop.f32.mrb[0].mxu0
  %v470 = vadd.f32 0.0, %v469
  %v471 = vpop.f32.mrb[0].mxu0
  %472 = vmatprep.mubr.f32.mxu0 0.0
  %473 = vmatmul.mubr.f32.gmra.mrb[0].mxu0 %v169
  %v474 = vpop.f32.mrb[0].mxu0
  %v475 = vadd.f32 0.0, %v474
  %v476 = vpop.f32.mrb[0].mxu0
  %477 = vmatprep.mubr.f32.mxu0 0.0
  %478 = vmatmul.mubr.f32.gmra.mrb[0].mxu0 %v174
  %v479 = vpop.f32.mrb[0].mxu0
  %v480 = vadd.f32 0.0, %v479
  %v481 = vpop.f32.mrb[0].mxu0
  %482 = vmatprep.mubr.f32.mxu0 0.0
  %483 = vmatmul.mubr.f32.gmra.mrb[0].mxu0 %v179
  %v484 = vpop.f32.mrb[0].mxu0
  %v485 = vadd.f32 0.0, %v484
  %v486 = vpop.f32.mrb[0].mxu0
  %487 = vdwg.mxu0
  %488 = vmatprep.subr.mxu0 0.0
  %489 = vmatpush1.xpose.msra.mxu0 %v345
  %490 = vmatprep.subr.mxu0 0.0
  %491 = vmatpush1.xpose.msra.mxu0 %v350
  %492 = vmatprep.subr.mxu0 0.0
  %493 = vmatpush1.xpose.msra.mxu0 %v355
  %494 = vmatprep.subr.mxu0 0.0
  %495 = vmatpush1.xpose.msra.mxu0 %v360
  %496 = vmatprep.subr.mxu0 0.0
  %497 = vmatpush1.xpose.msra.mxu0 %v365
  %498 = vmatprep.subr.mxu0 0.0
  %499 = vmatpush1.xpose.msra.mxu0 %v370
  %500 = vmatprep.subr.mxu0 0.0
  %501 = vmatpush1.xpose.msra.mxu0 %v375
  %502 = vmatprep.subr.mxu0 0.0
  %503 = vmatpush1.xpose.msra.mxu0 %v380
  %504 = vmatprep.subr.mxu0 0.0
  %505 = vmatpush1.xpose.msra.mxu0 0.0
  %506 = vmatprep.subr.mxu0 0.0
  %507 = vmatpush1.xpose.msra.mxu0 0.0
  %508 = vmatprep.subr.mxu0 0.0
  %509 = vmatpush1.xpose.msra.mxu0 0.0
  %510 = vmatprep.subr.mxu0 0.0
  %511 = vmatpush1.xpose.msra.mxu0 0.0
  %512 = vmatprep.subr.mxu0 0.0
  %513 = vmatpush1.xpose.msra.mxu0 0.0
  %514 = vmatprep.subr.mxu0 0.0
  %515 = vmatpush1.xpose.msra.mxu0 0.0
  %516 = vmatprep.subr.mxu0 0.0
  %517 = vmatpush1.xpose.msra.mxu0 0.0
  %518 = vmatprep.subr.mxu0 0.0
  %519 = vmatpush1.xpose.msra.mxu0 0.0
  %520 = vmatprep.subr.mxu0 0.0
  %521 = vmatpush1.xpose.msra.mxu0 0.0
  %522 = vmatprep.subr.mxu0 0.0
  %523 = vmatpush1.xpose.msra.mxu0 0.0
  %524 = vmatprep.subr.mxu0 0.0
  %525 = vmatpush1.xpose.msra.mxu0 0.0
  %526 = vmatprep.subr.mxu0 0.0
  %527 = vmatpush1.xpose.msra.mxu0 0.0
  %528 = vmatprep.subr.mxu0 0.0
  %529 = vmatpush1.xpose.msra.mxu0 0.0
  %530 = vmatprep.subr.mxu0 0.0
  %531 = vmatpush1.xpose.msra.mxu0 0.0
  %532 = vmatprep.subr.mxu0 0.0
  %533 = vmatpush1.xpose.msra.mxu0 0.0
  %534 = vmatprep.subr.mxu0 0.0
  %535 = vmatpush1.xpose.msra.mxu0 0.0
  %536 = vmatprep.subr.mxu0 0.0
  %537 = vmatpush1.xpose.msra.mxu0 0.0
  %538 = vmatprep.subr.mxu0 0.0
  %539 = vmatpush1.xpose.msra.mxu0 0.0
  %540 = vmatprep.subr.mxu0 0.0
  %541 = vmatpush1.xpose.msra.mxu0 0.0
  %542 = vmatprep.subr.mxu0 0.0
  %543 = vmatpush1.xpose.msra.mxu0 0.0
  %544 = vmatprep.subr.mxu0 0.0
  %545 = vmatpush1.xpose.msra.mxu0 0.0
  %546 = vmatprep.subr.mxu0 0.0
  %547 = vmatpush1.xpose.msra.mxu0 0.0
  %548 = vmatprep.subr.mxu0 0.0
  %549 = vmatpush1.xpose.msra.mxu0 0.0
  %550 = vmatprep.subr.mxu0 0.0
  %551 = vmatpush1.xpose.msra.mxu0 0.0
  %552 = vmatprep.mubr.f32.mxu0 0.0
  %553 = vmatmul.mubr.f32.gmra.mrb[0].mxu0 %v184
  %v554 = vpop.f32.mrb[0].mxu0
  %v555 = vadd.f32 0.0, %v554
  %v556 = vpop.f32.mrb[0].mxu0
  %557 = vmatprep.mubr.f32.mxu0 0.0
  %558 = vmatmul.mubr.f32.gmra.mrb[0].mxu0 %v189
  %v559 = vpop.f32.mrb[0].mxu0
  %v560 = vadd.f32 0.0, %v559
  %v561 = vpop.f32.mrb[0].mxu0
  %562 = vmatprep.mubr.f32.mxu0 0.0
  %563 = vmatmul.mubr.f32.gmra.mrb[0].mxu0 %v194
  %v564 = vpop.f32.mrb[0].mxu0
  %v565 = vadd.f32 0.0, %v564
  %v566 = vpop.f32.mrb[0].mxu0
  %567 = vmatprep.mubr.f32.mxu0 0.0
  %568 = vmatmul.mubr.f32.gmra.mrb[0].mxu0 %v199
  %v569 = vpop.f32.mrb[0].mxu0
  %v570 = vadd.f32 0.0, %v569
  %v571 = vpop.f32.mrb[0].mxu0
  %572 = vmatprep.mubr.f32.mxu0 0.0
  %573 = vmatmul.mubr.f32.gmra.mrb[0].mxu0 %v204
  %v574 = vpop.f32.mrb[0].mxu0
  %v575 = vadd.f32 0.0, %v574
  %v576 = vpop.f32.mrb[0].mxu0
  %577 = vmatprep.mubr.f32.mxu0 0.0
  %578 = vmatmul.mubr.f32.gmra.mrb[0].mxu0 %v209
  %v579 = vpop.f32.mrb[0].mxu0
  %v580 = vadd.f32 0.0, %v579
  %v581 = vpop.f32.mrb[0].mxu0
  %582 = vmatprep.mubr.f32.mxu0 0.0
  %583 = vmatmul.mubr.f32.gmra.mrb[0].mxu0 %v214
  %v584 = vpop.f32.mrb[0].mxu0
  %v585 = vadd.f32 0.0, %v584
  %v586 = vpop.f32.mrb[0].mxu0
  %587 = vmatprep.mubr.f32.mxu0 0.0
  %588 = vmatmul.mubr.f32.gmra.mrb[0].mxu0 %v219
  %v589 = vpop.f32.mrb[0].mxu0
  %v590 = vadd.f32 0.0, %v589
  %v591 = vpop.f32.mrb[0].mxu0
  %592 = vdwg.mxu0
  %v593 = vmul.f32 %v450, 0.17677669
  %v594 = vmul.f32 %v455, 0.17677669
  %v595 = vmul.f32 %v460, 0.17677669
  %v596 = vmul.f32 %v465, 0.17677669
  %v597 = vmul.f32 %v470, 0.17677669
  %v598 = vmul.f32 %v475, 0.17677669
  %v599 = vmul.f32 %v480, 0.17677669
  %v600 = vmul.f32 %v485, 0.17677669
  %v601 = vmul.f32 %v555, 0.17677669
  %v602 = vmul.f32 %v560, 0.17677669
  %v603 = vmul.f32 %v565, 0.17677669
  %v604 = vmul.f32 %v570, 0.17677669
  %v605 = vmul.f32 %v575, 0.17677669
  %v606 = vmul.f32 %v580, 0.17677669
  %v607 = vmul.f32 %v585, 0.17677669
  %v608 = vmul.f32 %v590, 0.17677669
  %vm609 = vcmask 523264
  %v610 = vsel %vm609, %v593, -inf
  %611 = vmax.xlane.f32.xlu0 %v610
  %v612 = vpop.xlane.xlu0 %611
  %v613 = vsel %vm609, %v594, -inf
  %614 = vmax.xlane.f32.xlu0 %v613
  %v615 = vpop.xlane.xlu0 %614
  %v616 = vsel %vm609, %v595, -inf
  %617 = vmax.xlane.f32.xlu0 %v616
  %v618 = vpop.xlane.xlu0 %617
  %v619 = vsel %vm609, %v596, -inf
  %620 = vmax.xlane.f32.xlu0 %v619
  %v621 = vpop.xlane.xlu0 %620
  %v622 = vsel %vm609, %v597, -inf
  %623 = vmax.xlane.f32.xlu0 %v622
  %v624 = vpop.xlane.xlu0 %623
  %v625 = vsel %vm609, %v598, -inf
  %626 = vmax.xlane.f32.xlu0 %v625
  %v627 = vpop.xlane.xlu0 %626
  %v628 = vsel %vm609, %v599, -inf
  %629 = vmax.xlane.f32.xlu0 %v628
  %v630 = vpop.xlane.xlu0 %629
  %v631 = vsel %vm609, %v600, -inf
  %632 = vmax.xlane.f32.xlu0 %v631
  %v633 = vpop.xlane.xlu0 %632
  %v634 = vsel %vm609, %v601, -inf
  %635 = vmax.xlane.f32.xlu0 %v634
  %v636 = vpop.xlane.xlu0 %635
  %v637 = vsel %vm609, %v602, -inf
  %638 = vmax.xlane.f32.xlu0 %v637
  %v639 = vpop.xlane.xlu0 %638
  %v640 = vsel %vm609, %v603, -inf
  %641 = vmax.xlane.f32.xlu0 %v640
  %v642 = vpop.xlane.xlu0 %641
  %v643 = vsel %vm609, %v604, -inf
  %644 = vmax.xlane.f32.xlu0 %v643
  %v645 = vpop.xlane.xlu0 %644
  %v646 = vsel %vm609, %v605, -inf
  %647 = vmax.xlane.f32.xlu0 %v646
  %v648 = vpop.xlane.xlu0 %647
  %v649 = vsel %vm609, %v606, -inf
  %650 = vmax.xlane.f32.xlu0 %v649
  %v651 = vpop.xlane.xlu0 %650
  %v652 = vsel %vm609, %v607, -inf
  %653 = vmax.xlane.f32.xlu0 %v652
  %v654 = vpop.xlane.xlu0 %653
  %v655 = vsel %vm609, %v608, -inf
  %656 = vmax.xlane.f32.xlu0 %v655
  %v657 = vpop.xlane.xlu0 %656
  %v658 = vsub.f32 %v593, %v612
  %v659 = vsub.f32 %v594, %v615
  %v660 = vsub.f32 %v595, %v618
  %v661 = vsub.f32 %v596, %v621
  %v662 = vsub.f32 %v597, %v624
  %v663 = vsub.f32 %v598, %v627
  %v664 = vsub.f32 %v599, %v630
  %v665 = vsub.f32 %v600, %v633
  %v666 = vsub.f32 %v601, %v636
  %v667 = vsub.f32 %v602, %v639
  %v668 = vsub.f32 %v603, %v642
  %v669 = vsub.f32 %v604, %v645
  %v670 = vsub.f32 %v605, %v648
  %v671 = vsub.f32 %v606, %v651
  %v672 = vsub.f32 %v607, %v654
  %v673 = vsub.f32 %v608, %v657
  %v674 = vmul.f32 %v658, 1.442695
  %v675 = vpow.pop %v674
  %v676 = vmul.f32 %v659, 1.442695
  %v677 = vpow.pop %v676
  %v678 = vmul.f32 %v660, 1.442695
  %v679 = vpow.pop %v678
  %v680 = vmul.f32 %v661, 1.442695
  %v681 = vpow.pop %v680
  %v682 = vmul.f32 %v662, 1.442695
  %v683 = vpow.pop %v682
  %v684 = vmul.f32 %v663, 1.442695
  %v685 = vpow.pop %v684
  %v686 = vmul.f32 %v664, 1.442695
  %v687 = vpow.pop %v686
  %v688 = vmul.f32 %v665, 1.442695
  %v689 = vpow.pop %v688
  %v690 = vmul.f32 %v666, 1.442695
  %v691 = vpow.pop %v690
  %v692 = vmul.f32 %v667, 1.442695
  %v693 = vpow.pop %v692
  %v694 = vmul.f32 %v668, 1.442695
  %v695 = vpow.pop %v694
  %v696 = vmul.f32 %v669, 1.442695
  %v697 = vpow.pop %v696
  %v698 = vmul.f32 %v670, 1.442695
  %v699 = vpow.pop %v698
  %v700 = vmul.f32 %v671, 1.442695
  %v701 = vpow.pop %v700
  %v702 = vmul.f32 %v672, 1.442695
  %v703 = vpow.pop %v702
  %v704 = vmul.f32 %v673, 1.442695
  %v705 = vpow.pop %v704
  %v706 = vsel %vm609, %v675, 0.0
  %707 = vadd.xlane.f32.xlu0 %v706
  %v708 = vpop.xlane.xlu0 %707
  %v709 = vsel %vm609, %v677, 0.0
  %710 = vadd.xlane.f32.xlu0 %v709
  %v711 = vpop.xlane.xlu0 %710
  %v712 = vsel %vm609, %v679, 0.0
  %713 = vadd.xlane.f32.xlu0 %v712
  %v714 = vpop.xlane.xlu0 %713
  %v715 = vsel %vm609, %v681, 0.0
  %716 = vadd.xlane.f32.xlu0 %v715
  %v717 = vpop.xlane.xlu0 %716
  %v718 = vsel %vm609, %v683, 0.0
  %719 = vadd.xlane.f32.xlu0 %v718
  %v720 = vpop.xlane.xlu0 %719
  %v721 = vsel %vm609, %v685, 0.0
  %722 = vadd.xlane.f32.xlu0 %v721
  %v723 = vpop.xlane.xlu0 %722
  %v724 = vsel %vm609, %v687, 0.0
  %725 = vadd.xlane.f32.xlu0 %v724
  %v726 = vpop.xlane.xlu0 %725
  %v727 = vsel %vm609, %v689, 0.0
  %728 = vadd.xlane.f32.xlu0 %v727
  %v729 = vpop.xlane.xlu0 %728
  %v730 = vsel %vm609, %v691, 0.0
  %731 = vadd.xlane.f32.xlu0 %v730
  %v732 = vpop.xlane.xlu0 %731
  %v733 = vsel %vm609, %v693, 0.0
  %734 = vadd.xlane.f32.xlu0 %v733
  %v735 = vpop.xlane.xlu0 %734
  %v736 = vsel %vm609, %v695, 0.0
  %737 = vadd.xlane.f32.xlu0 %v736
  %v738 = vpop.xlane.xlu0 %737
  %v739 = vsel %vm609, %v697, 0.0
  %740 = vadd.xlane.f32.xlu0 %v739
  %v741 = vpop.xlane.xlu0 %740
  %v742 = vsel %vm609, %v699, 0.0
  %743 = vadd.xlane.f32.xlu0 %v742
  %v744 = vpop.xlane.xlu0 %743
  %v745 = vsel %vm609, %v701, 0.0
  %746 = vadd.xlane.f32.xlu0 %v745
  %v747 = vpop.xlane.xlu0 %746
  %v748 = vsel %vm609, %v703, 0.0
  %749 = vadd.xlane.f32.xlu0 %v748
  %v750 = vpop.xlane.xlu0 %749
  %v751 = vsel %vm609, %v705, 0.0
  %752 = vadd.xlane.f32.xlu0 %v751
  %v753 = vpop.xlane.xlu0 %752
  %v754 = vrcp.pop %v708
  %v755 = vrcp.pop %v711
  %v756 = vrcp.pop %v714
  %v757 = vrcp.pop %v717
  %v758 = vrcp.pop %v720
  %v759 = vrcp.pop %v723
  %v760 = vrcp.pop %v726
  %v761 = vrcp.pop %v729
  %v762 = vrcp.pop %v732
  %v763 = vrcp.pop %v735
  %v764 = vrcp.pop %v738
  %v765 = vrcp.pop %v741
  %v766 = vrcp.pop %v744
  %v767 = vrcp.pop %v747
  %v768 = vrcp.pop %v750
  %v769 = vrcp.pop %v753
  %v770 = vmul.f32 %v675, %v754
  %v771 = vmul.f32 %v677, %v755
  %v772 = vmul.f32 %v679, %v756
  %v773 = vmul.f32 %v681, %v757
  %v774 = vmul.f32 %v683, %v758
  %v775 = vmul.f32 %v685, %v759
  %v776 = vmul.f32 %v687, %v760
  %v777 = vmul.f32 %v689, %v761
  %v778 = vmul.f32 %v691, %v762
  %v779 = vmul.f32 %v693, %v763
  %v780 = vmul.f32 %v695, %v764
  %v781 = vmul.f32 %v697, %v765
  %v782 = vmul.f32 %v699, %v766
  %v783 = vmul.f32 %v701, %v767
  %v784 = vmul.f32 %v703, %v768
  %v785 = vmul.f32 %v705, %v769
  %v786 = vsel %vm609, %v770, 0.0
  %v787 = vsel %vm609, %v771, 0.0
  %v788 = vadd.f32 %v786, %v787
  %v789 = vsel %vm609, %v772, 0.0
  %v790 = vadd.f32 %v788, %v789
  %v791 = vsel %vm609, %v773, 0.0
  %v792 = vadd.f32 %v790, %v791
  %v793 = vsel %vm609, %v774, 0.0
  %v794 = vadd.f32 %v792, %v793
  %v795 = vsel %vm609, %v775, 0.0
  %v796 = vadd.f32 %v794, %v795
  %v797 = vsel %vm609, %v776, 0.0
  %v798 = vadd.f32 %v796, %v797
  %v799 = vsel %vm609, %v777, 0.0
  %v800 = vadd.f32 %v798, %v799
  %v801 = vrot.slane %v800, 4
  %v802 = vadd.f32 %v800, %v801
  %v803 = vrot.slane %v802, 2
  %v804 = vadd.f32 %v802, %v803
  %v805 = vrot.slane %v804, 1
  %v806 = vadd.f32 %v804, %v805
  %v807 = vsel %vm609, %v778, 0.0
  %v808 = vsel %vm609, %v779, 0.0
  %v809 = vadd.f32 %v807, %v808
  %v810 = vsel %vm609, %v780, 0.0
  %v811 = vadd.f32 %v809, %v810
  %v812 = vsel %vm609, %v781, 0.0
  %v813 = vadd.f32 %v811, %v812
  %v814 = vsel %vm609, %v782, 0.0
  %v815 = vadd.f32 %v813, %v814
  %v816 = vsel %vm609, %v783, 0.0
  %v817 = vadd.f32 %v815, %v816
  %v818 = vsel %vm609, %v784, 0.0
  %v819 = vadd.f32 %v817, %v818
  %v820 = vsel %vm609, %v785, 0.0
  %v821 = vadd.f32 %v819, %v820
  %v822 = vrot.slane %v821, 4
  %v823 = vadd.f32 %v821, %v822
  %v824 = vrot.slane %v823, 2
  %v825 = vadd.f32 %v823, %v824
  %v826 = vrot.slane %v825, 1
  %v827 = vadd.f32 %v825, %v826
  %v828 = vrcp.pop 64.0
  %v829 = vmul.f32 %v806, %v828
  %v830 = vmul.f32 %v827, %v828
  %v832 = vsel %vm609, %v829, 0
  %834 = vmatprep.subr.mxu0 0.0
  %835 = vmatpush1.msra.mxu0 %v45
  %836 = vmatprep.subr.mxu0 0.0
  %837 = vmatpush1.msra.mxu0 %v46
  %838 = vmatprep.subr.mxu0 0.0
  %839 = vmatpush1.msra.mxu0 %v47
  %840 = vmatprep.subr.mxu0 0.0
  %841 = vmatpush1.msra.mxu0 %v48
  %842 = vmatprep.subr.mxu0 0.0
  %843 = vmatpush1.msra.mxu0 %v49
  %844 = vmatprep.subr.mxu0 0.0
  %845 = vmatpush1.msra.mxu0 %v50
  %846 = vmatprep.subr.mxu0 0.0
  %847 = vmatpush1.msra.mxu0 %v51
  %848 = vmatprep.subr.mxu0 0.0
  %849 = vmatpush1.msra.mxu0 %v52
  %850 = vmatprep.subr.mxu0 0.0
  %851 = vmatpush1.msra.mxu0 0.0
  %852 = vmatprep.subr.mxu0 0.0
  %853 = vmatpush1.msra.mxu0 0.0
  %854 = vmatprep.subr.mxu0 0.0
  %855 = vmatpush1.msra.mxu0 0.0
  %856 = vmatprep.subr.mxu0 0.0
  %857 = vmatpush1.msra.mxu0 0.0
  %858 = vmatprep.subr.mxu0 0.0
  %859 = vmatpush1.msra.mxu0 0.0
  %860 = vmatprep.subr.mxu0 0.0
  %861 = vmatpush1.msra.mxu0 0.0
  %862 = vmatprep.subr.mxu0 0.0
  %863 = vmatpush1.msra.mxu0 0.0
  %864 = vmatprep.subr.mxu0 0.0
  %865 = vmatpush1.msra.mxu0 0.0
  %866 = vmatprep.subr.mxu0 0.0
  %867 = vmatpush1.msra.mxu0 0.0
  %868 = vmatprep.subr.mxu0 0.0
  %869 = vmatpush1.msra.mxu0 0.0
  %870 = vmatprep.subr.mxu0 0.0
  %871 = vmatpush1.msra.mxu0 0.0
  %872 = vmatprep.subr.mxu0 0.0
  %873 = vmatpush1.msra.mxu0 0.0
  %874 = vmatprep.subr.mxu0 0.0
  %875 = vmatpush1.msra.mxu0 0.0
  %876 = vmatprep.subr.mxu0 0.0
  %877 = vmatpush1.msra.mxu0 0.0
  %878 = vmatprep.subr.mxu0 0.0
  %879 = vmatpush1.msra.mxu0 0.0
  %880 = vmatprep.subr.mxu0 0.0
  %881 = vmatpush1.msra.mxu0 0.0
  %882 = vmatprep.subr.mxu0 0.0
  %883 = vmatpush1.msra.mxu0 0.0
  %884 = vmatprep.subr.mxu0 0.0
  %885 = vmatpush1.msra.mxu0 0.0
  %886 = vmatprep.subr.mxu0 0.0
  %887 = vmatpush1.msra.mxu0 0.0
  %888 = vmatprep.subr.mxu0 0.0
  %889 = vmatpush1.msra.mxu0 0.0
  %890 = vmatprep.subr.mxu0 0.0
  %891 = vmatpush1.msra.mxu0 0.0
  %892 = vmatprep.subr.mxu0 0.0
  %893 = vmatpush1.msra.mxu0 0.0
  %894 = vmatprep.subr.mxu0 0.0
  %895 = vmatpush1.msra.mxu0 0.0
  %896 = vmatprep.subr.mxu0 0.0
  %897 = vmatpush1.msra.mxu0 0.0
  %898 = vmatprep.mubr.f32.mxu0 0.0
  %899 = vmatmul.mubr.f32.gmra.mrb[0].mxu0 %v832
  %v900 = vpop.f32.mrb[0].mxu0
  %v901 = vadd.f32 0.0, %v900
  %v902 = vpop.f32.mrb[0].mxu0
  %903 = vdwg.mxu0
  %v905 = vsel %vm609, %v830, 0
  %907 = vmatprep.subr.mxu0 0.0
  %908 = vmatpush1.msra.mxu0 %v53
  %909 = vmatprep.subr.mxu0 0.0
  %910 = vmatpush1.msra.mxu0 %v54
  %911 = vmatprep.subr.mxu0 0.0
  %912 = vmatpush1.msra.mxu0 %v55
  %913 = vmatprep.subr.mxu0 0.0
  %914 = vmatpush1.msra.mxu0 %v56
  %915 = vmatprep.subr.mxu0 0.0
  %916 = vmatpush1.msra.mxu0 %v57
  %917 = vmatprep.subr.mxu0 0.0
  %918 = vmatpush1.msra.mxu0 %v58
  %919 = vmatprep.subr.mxu0 0.0
  %920 = vmatpush1.msra.mxu0 %v59
  %921 = vmatprep.subr.mxu0 0.0
  %922 = vmatpush1.msra.mxu0 %v60
  %923 = vmatprep.subr.mxu0 0.0
  %924 = vmatpush1.msra.mxu0 0.0
  %925 = vmatprep.subr.mxu0 0.0
  %926 = vmatpush1.msra.mxu0 0.0
  %927 = vmatprep.subr.mxu0 0.0
  %928 = vmatpush1.msra.mxu0 0.0
  %929 = vmatprep.subr.mxu0 0.0
  %930 = vmatpush1.msra.mxu0 0.0
  %931 = vmatprep.subr.mxu0 0.0
  %932 = vmatpush1.msra.mxu0 0.0
  %933 = vmatprep.subr.mxu0 0.0
  %934 = vmatpush1.msra.mxu0 0.0
  %935 = vmatprep.subr.mxu0 0.0
  %936 = vmatpush1.msra.mxu0 0.0
  %937 = vmatprep.subr.mxu0 0.0
  %938 = vmatpush1.msra.mxu0 0.0
  %939 = vmatprep.subr.mxu0 0.0
  %940 = vmatpush1.msra.mxu0 0.0
  %941 = vmatprep.subr.mxu0 0.0
  %942 = vmatpush1.msra.mxu0 0.0
  %943 = vmatprep.subr.mxu0 0.0
  %944 = vmatpush1.msra.mxu0 0.0
  %945 = vmatprep.subr.mxu0 0.0
  %946 = vmatpush1.msra.mxu0 0.0
  %947 = vmatprep.subr.mxu0 0.0
  %948 = vmatpush1.msra.mxu0 0.0
  %949 = vmatprep.subr.mxu0 0.0
  %950 = vmatpush1.msra.mxu0 0.0
  %951 = vmatprep.subr.mxu0 0.0
  %952 = vmatpush1.msra.mxu0 0.0
  %953 = vmatprep.subr.mxu0 0.0
  %954 = vmatpush1.msra.mxu0 0.0
  %955 = vmatprep.subr.mxu0 0.0
  %956 = vmatpush1.msra.mxu0 0.0
  %957 = vmatprep.subr.mxu0 0.0
  %958 = vmatpush1.msra.mxu0 0.0
  %959 = vmatprep.subr.mxu0 0.0
  %960 = vmatpush1.msra.mxu0 0.0
  %961 = vmatprep.subr.mxu0 0.0
  %962 = vmatpush1.msra.mxu0 0.0
  %963 = vmatprep.subr.mxu0 0.0
  %964 = vmatpush1.msra.mxu0 0.0
  %965 = vmatprep.subr.mxu0 0.0
  %966 = vmatpush1.msra.mxu0 0.0
  %967 = vmatprep.subr.mxu0 0.0
  %968 = vmatpush1.msra.mxu0 0.0
  %969 = vmatprep.subr.mxu0 0.0
  %970 = vmatpush1.msra.mxu0 0.0
  %971 = vmatprep.mubr.f32.mxu0 0.0
  %972 = vmatmul.mubr.f32.gmra.mrb[0].mxu0 %v905
  %v973 = vpop.f32.mrb[0].mxu0
  %v974 = vadd.f32 0.0, %v973
  %v975 = vpop.f32.mrb[0].mxu0
  %976 = vdwg.mxu0
  %v977 = vld [vmem:[%s3] sm:$0xff]
  %v978 = vld [vmem:[%s3 + $0x8] sm:$0xff]
  %v979 = vld [vmem:[%s3 + $0x10] sm:$0xff]
  %v980 = vld [vmem:[%s3 + $0x18] sm:$0xff]
  %v981 = vld [vmem:[%s3 + $0x20] sm:$0xff]
  %v982 = vld [vmem:[%s3 + $0x28] sm:$0xff]
  %v983 = vld [vmem:[%s3 + $0x30] sm:$0xff]
  %v984 = vld [vmem:[%s3 + $0x38] sm:$0xff]
  %v985 = vld [vmem:[%s3 + $0x40] sm:$0xff]
  %v986 = vld [vmem:[%s3 + $0x48] sm:$0xff]
  %v987 = vld [vmem:[%s3 + $0x50] sm:$0xff]
  %v988 = vld [vmem:[%s3 + $0x58] sm:$0xff]
  %v989 = vld [vmem:[%s3 + $0x60] sm:$0xff]
  %v990 = vld [vmem:[%s3 + $0x68] sm:$0xff]
  %v991 = vld [vmem:[%s3 + $0x70] sm:$0xff]
  %v992 = vld [vmem:[%s3 + $0x78] sm:$0xff]
  %v995 = vrot.slane %v974, 7
  %vm996 = vcmask 1041409
  %v997 = vsel %vm996, %v995, %v901
  %999 = vmatprep.subr.mxu0 0.0
  %1000 = vmatpush1.msra.mxu0 %v977
  %1001 = vmatprep.subr.mxu0 0.0
  %1002 = vmatpush1.msra.mxu0 %v978
  %1003 = vmatprep.subr.mxu0 0.0
  %1004 = vmatpush1.msra.mxu0 %v979
  %1005 = vmatprep.subr.mxu0 0.0
  %1006 = vmatpush1.msra.mxu0 %v980
  %1007 = vmatprep.subr.mxu0 0.0
  %1008 = vmatpush1.msra.mxu0 %v981
  %1009 = vmatprep.subr.mxu0 0.0
  %1010 = vmatpush1.msra.mxu0 %v982
  %1011 = vmatprep.subr.mxu0 0.0
  %1012 = vmatpush1.msra.mxu0 %v983
  %1013 = vmatprep.subr.mxu0 0.0
  %1014 = vmatpush1.msra.mxu0 %v984
  %1015 = vmatprep.subr.mxu0 0.0
  %1016 = vmatpush1.msra.mxu0 %v985
  %1017 = vmatprep.subr.mxu0 0.0
  %1018 = vmatpush1.msra.mxu0 %v986
  %1019 = vmatprep.subr.mxu0 0.0
  %1020 = vmatpush1.msra.mxu0 %v987
  %1021 = vmatprep.subr.mxu0 0.0
  %1022 = vmatpush1.msra.mxu0 %v988
  %1023 = vmatprep.subr.mxu0 0.0
  %1024 = vmatpush1.msra.mxu0 %v989
  %1025 = vmatprep.subr.mxu0 0.0
  %1026 = vmatpush1.msra.mxu0 %v990
  %1027 = vmatprep.subr.mxu0 0.0
  %1028 = vmatpush1.msra.mxu0 %v991
  %1029 = vmatprep.subr.mxu0 0.0
  %1030 = vmatpush1.msra.mxu0 %v992
  %1031 = vmatprep.subr.mxu0 0.0
  %1032 = vmatpush1.msra.mxu0 0.0
  %1033 = vmatprep.subr.mxu0 0.0
  %1034 = vmatpush1.msra.mxu0 0.0
  %1035 = vmatprep.subr.mxu0 0.0
  %1036 = vmatpush1.msra.mxu0 0.0
  %1037 = vmatprep.subr.mxu0 0.0
  %1038 = vmatpush1.msra.mxu0 0.0
  %1039 = vmatprep.subr.mxu0 0.0
  %1040 = vmatpush1.msra.mxu0 0.0
  %1041 = vmatprep.subr.mxu0 0.0
  %1042 = vmatpush1.msra.mxu0 0.0
  %1043 = vmatprep.subr.mxu0 0.0
  %1044 = vmatpush1.msra.mxu0 0.0
  %1045 = vmatprep.subr.mxu0 0.0
  %1046 = vmatpush1.msra.mxu0 0.0
  %1047 = vmatprep.subr.mxu0 0.0
  %1048 = vmatpush1.msra.mxu0 0.0
  %1049 = vmatprep.subr.mxu0 0.0
  %1050 = vmatpush1.msra.mxu0 0.0
  %1051 = vmatprep.subr.mxu0 0.0
  %1052 = vmatpush1.msra.mxu0 0.0
  %1053 = vmatprep.subr.mxu0 0.0
  %1054 = vmatpush1.msra.mxu0 0.0
  %1055 = vmatprep.subr.mxu0 0.0
  %1056 = vmatpush1.msra.mxu0 0.0
  %1057 = vmatprep.subr.mxu0 0.0
  %1058 = vmatpush1.msra.mxu0 0.0
  %1059 = vmatprep.subr.mxu0 0.0
  %1060 = vmatpush1.msra.mxu0 0.0
  %1061 = vmatprep.subr.mxu0 0.0
  %1062 = vmatpush1.msra.mxu0 0.0
  %1063 = vmatprep.mubr.f32.mxu0 0.0
  %1064 = vmatmul.mubr.f32.gmra.mrb[0].mxu0 %v997
  %v1065 = vpop.f32.mrb[0].mxu0
  %v1066 = vadd.f32 0.0, %v1065
  %v1067 = vpop.f32.mrb[0].mxu0
  %1068 = vdwg.mxu0
  %1069 = vst [vmem:[%s7] sm:$0x3] %v1066
  %1070 = vxpose.xlu0.b32.start [1/16] %v593, 128
  %1071 = vxpose.xlu0.b32.cont [2/16] %v594, 128
  %1072 = vxpose.xlu0.b32.cont [3/16] %v595, 128
  %1073 = vxpose.xlu0.b32.cont [4/16] %v596, 128
  %1074 = vxpose.xlu0.b32.cont [5/16] %v597, 128
  %1075 = vxpose.xlu0.b32.cont [6/16] %v598, 128
  %1076 = vxpose.xlu0.b32.cont [7/16] %v599, 128
  %1077 = vxpose.xlu0.b32.cont [8/16] %v600, 128
  %1078 = vxpose.xlu0.b32.cont [9/16] 0.0, 128
  %1079 = vxpose.xlu0.b32.cont [10/16] 0.0, 128
  %1080 = vxpose.xlu0.b32.cont [11/16] 0.0, 128
  %1081 = vxpose.xlu0.b32.cont [12/16] 0.0, 128
  %1082 = vxpose.xlu0.b32.cont [13/16] 0.0, 128
  %1083 = vxpose.xlu0.b32.cont [14/16] 0.0, 128
  %1084 = vxpose.xlu0.b32.cont [15/16] 0.0, 128
  %1085 = vxpose.xlu0.b32.end [16/16] 0.0, 128
  %v1086 = vpop.trf.xlu0
  %v1087 = vpop.trf.xlu0
  %v1088 = vpop.trf.xlu0
  %v1089 = vpop.trf.xlu0
  %v1090 = vpop.trf.xlu0
  %v1091 = vpop.trf.xlu0
  %v1092 = vpop.trf.xlu0
  %v1093 = vpop.trf.xlu0
  %v1094 = vpop.trf.xlu0
  %v1095 = vpop.trf.xlu0
  %v1096 = vpop.trf.xlu0
  %v1097 = vpop.trf.xlu0
  %v1098 = vpop.trf.xlu0
  %v1099 = vpop.trf.xlu0
  %v1100 = vpop.trf.xlu0
  %v1101 = vpop.trf.xlu0
  %1102 = vxpose.xlu0.b32.start [1/16] %v601, 128
  %1103 = vxpose.xlu0.b32.cont [2/16] %v602, 128
  %1104 = vxpose.xlu0.b32.cont [3/16] %v603, 128
  %1105 = vxpose.xlu0.b32.cont [4/16] %v604, 128
  %1106 = vxpose.xlu0.b32.cont [5/16] %v605, 128
  %1107 = vxpose.xlu0.b32.cont [6/16] %v606, 128
  %1108 = vxpose.xlu0.b32.cont [7/16] %v607, 128
  %1109 = vxpose.xlu0.b32.cont [8/16] %v608, 128
  %1110 = vxpose.xlu0.b32.cont [9/16] 0.0, 128
  %1111 = vxpose.xlu0.b32.cont [10/16] 0.0, 128
  %1112 = vxpose.xlu0.b32.cont [11/16] 0.0, 128
  %1113 = vxpose.xlu0.b32.cont [12/16] 0.0, 128
  %1114 = vxpose.xlu0.b32.cont [13/16] 0.0, 128
  %1115 = vxpose.xlu0.b32.cont [14/16] 0.0, 128
  %1116 = vxpose.xlu0.b32.cont [15/16] 0.0, 128
  %1117 = vxpose.xlu0.b32.end [16/16] 0.0, 128
  %v1118 = vpop.trf.xlu0
  %v1119 = vpop.trf.xlu0
  %v1120 = vpop.trf.xlu0
  %v1121 = vpop.trf.xlu0
  %v1122 = vpop.trf.xlu0
  %v1123 = vpop.trf.xlu0
  %v1124 = vpop.trf.xlu0
  %v1125 = vpop.trf.xlu0
  %v1126 = vpop.trf.xlu0
  %v1127 = vpop.trf.xlu0
  %v1128 = vpop.trf.xlu0
  %v1129 = vpop.trf.xlu0
  %v1130 = vpop.trf.xlu0
  %v1131 = vpop.trf.xlu0
  %v1132 = vpop.trf.xlu0
  %v1133 = vpop.trf.xlu0
  %v1134 = vsel %vm609, %v1086, -inf
  %1135 = vmax.xlane.f32.xlu0 %v1134
  %v1136 = vpop.xlane.xlu0 %1135
  %v1137 = vsel %vm609, %v1087, -inf
  %1138 = vmax.xlane.f32.xlu0 %v1137
  %v1139 = vpop.xlane.xlu0 %1138
  %v1140 = vsel %vm609, %v1088, -inf
  %1141 = vmax.xlane.f32.xlu0 %v1140
  %v1142 = vpop.xlane.xlu0 %1141
  %v1143 = vsel %vm609, %v1089, -inf
  %1144 = vmax.xlane.f32.xlu0 %v1143
  %v1145 = vpop.xlane.xlu0 %1144
  %v1146 = vsel %vm609, %v1090, -inf
  %1147 = vmax.xlane.f32.xlu0 %v1146
  %v1148 = vpop.xlane.xlu0 %1147
  %v1149 = vsel %vm609, %v1091, -inf
  %1150 = vmax.xlane.f32.xlu0 %v1149
  %v1151 = vpop.xlane.xlu0 %1150
  %v1152 = vsel %vm609, %v1092, -inf
  %1153 = vmax.xlane.f32.xlu0 %v1152
  %v1154 = vpop.xlane.xlu0 %1153
  %v1155 = vsel %vm609, %v1093, -inf
  %1156 = vmax.xlane.f32.xlu0 %v1155
  %v1157 = vpop.xlane.xlu0 %1156
  %v1158 = vsel %vm609, %v1118, -inf
  %1159 = vmax.xlane.f32.xlu0 %v1158
  %v1160 = vpop.xlane.xlu0 %1159
  %v1161 = vsel %vm609, %v1119, -inf
  %1162 = vmax.xlane.f32.xlu0 %v1161
  %v1163 = vpop.xlane.xlu0 %1162
  %v1164 = vsel %vm609, %v1120, -inf
  %1165 = vmax.xlane.f32.xlu0 %v1164
  %v1166 = vpop.xlane.xlu0 %1165
  %v1167 = vsel %vm609, %v1121, -inf
  %1168 = vmax.xlane.f32.xlu0 %v1167
  %v1169 = vpop.xlane.xlu0 %1168
  %v1170 = vsel %vm609, %v1122, -inf
  %1171 = vmax.xlane.f32.xlu0 %v1170
  %v1172 = vpop.xlane.xlu0 %1171
  %v1173 = vsel %vm609, %v1123, -inf
  %1174 = vmax.xlane.f32.xlu0 %v1173
  %v1175 = vpop.xlane.xlu0 %1174
  %v1176 = vsel %vm609, %v1124, -inf
  %1177 = vmax.xlane.f32.xlu0 %v1176
  %v1178 = vpop.xlane.xlu0 %1177
  %v1179 = vsel %vm609, %v1125, -inf
  %1180 = vmax.xlane.f32.xlu0 %v1179
  %v1181 = vpop.xlane.xlu0 %1180
  %v1182 = vsub.f32 %v1086, %v1136
  %v1183 = vsub.f32 %v1087, %v1139
  %v1184 = vsub.f32 %v1088, %v1142
  %v1185 = vsub.f32 %v1089, %v1145
  %v1186 = vsub.f32 %v1090, %v1148
  %v1187 = vsub.f32 %v1091, %v1151
  %v1188 = vsub.f32 %v1092, %v1154
  %v1189 = vsub.f32 %v1093, %v1157
  %v1190 = vsub.f32 %v1118, %v1160
  %v1191 = vsub.f32 %v1119, %v1163
  %v1192 = vsub.f32 %v1120, %v1166
  %v1193 = vsub.f32 %v1121, %v1169
  %v1194 = vsub.f32 %v1122, %v1172
  %v1195 = vsub.f32 %v1123, %v1175
  %v1196 = vsub.f32 %v1124, %v1178
  %v1197 = vsub.f32 %v1125, %v1181
  %v1198 = vmul.f32 %v1182, 1.442695
  %v1199 = vpow.pop %v1198
  %v1200 = vmul.f32 %v1183, 1.442695
  %v1201 = vpow.pop %v1200
  %v1202 = vmul.f32 %v1184, 1.442695
  %v1203 = vpow.pop %v1202
  %v1204 = vmul.f32 %v1185, 1.442695
  %v1205 = vpow.pop %v1204
  %v1206 = vmul.f32 %v1186, 1.442695
  %v1207 = vpow.pop %v1206
  %v1208 = vmul.f32 %v1187, 1.442695
  %v1209 = vpow.pop %v1208
  %v1210 = vmul.f32 %v1188, 1.442695
  %v1211 = vpow.pop %v1210
  %v1212 = vmul.f32 %v1189, 1.442695
  %v1213 = vpow.pop %v1212
  %v1214 = vmul.f32 %v1190, 1.442695
  %v1215 = vpow.pop %v1214
  %v1216 = vmul.f32 %v1191, 1.442695
  %v1217 = vpow.pop %v1216
  %v1218 = vmul.f32 %v1192, 1.442695
  %v1219 = vpow.pop %v1218
  %v1220 = vmul.f32 %v1193, 1.442695
  %v1221 = vpow.pop %v1220
  %v1222 = vmul.f32 %v1194, 1.442695
  %v1223 = vpow.pop %v1222
  %v1224 = vmul.f32 %v1195, 1.442695
  %v1225 = vpow.pop %v1224
  %v1226 = vmul.f32 %v1196, 1.442695
  %v1227 = vpow.pop %v1226
  %v1228 = vmul.f32 %v1197, 1.442695
  %v1229 = vpow.pop %v1228
  %v1230 = vsel %vm609, %v1199, 0.0
  %1231 = vadd.xlane.f32.xlu0 %v1230
  %v1232 = vpop.xlane.xlu0 %1231
  %v1233 = vsel %vm609, %v1201, 0.0
  %1234 = vadd.xlane.f32.xlu0 %v1233
  %v1235 = vpop.xlane.xlu0 %1234
  %v1236 = vsel %vm609, %v1203, 0.0
  %1237 = vadd.xlane.f32.xlu0 %v1236
  %v1238 = vpop.xlane.xlu0 %1237
  %v1239 = vsel %vm609, %v1205, 0.0
  %1240 = vadd.xlane.f32.xlu0 %v1239
  %v1241 = vpop.xlane.xlu0 %1240
  %v1242 = vsel %vm609, %v1207, 0.0
  %1243 = vadd.xlane.f32.xlu0 %v1242
  %v1244 = vpop.xlane.xlu0 %1243
  %v1245 = vsel %vm609, %v1209, 0.0
  %1246 = vadd.xlane.f32.xlu0 %v1245
  %v1247 = vpop.xlane.xlu0 %1246
  %v1248 = vsel %vm609, %v1211, 0.0
  %1249 = vadd.xlane.f32.xlu0 %v1248
  %v1250 = vpop.xlane.xlu0 %1249
  %v1251 = vsel %vm609, %v1213, 0.0
  %1252 = vadd.xlane.f32.xlu0 %v1251
  %v1253 = vpop.xlane.xlu0 %1252
  %v1254 = vsel %vm609, %v1215, 0.0
  %1255 = vadd.xlane.f32.xlu0 %v1254
  %v1256 = vpop.xlane.xlu0 %1255
  %v1257 = vsel %vm609, %v1217, 0.0
  %1258 = vadd.xlane.f32.xlu0 %v1257
  %v1259 = vpop.xlane.xlu0 %1258
  %v1260 = vsel %vm609, %v1219, 0.0
  %1261 = vadd.xlane.f32.xlu0 %v1260
  %v1262 = vpop.xlane.xlu0 %1261
  %v1263 = vsel %vm609, %v1221, 0.0
  %1264 = vadd.xlane.f32.xlu0 %v1263
  %v1265 = vpop.xlane.xlu0 %1264
  %v1266 = vsel %vm609, %v1223, 0.0
  %1267 = vadd.xlane.f32.xlu0 %v1266
  %v1268 = vpop.xlane.xlu0 %1267
  %v1269 = vsel %vm609, %v1225, 0.0
  %1270 = vadd.xlane.f32.xlu0 %v1269
  %v1271 = vpop.xlane.xlu0 %1270
  %v1272 = vsel %vm609, %v1227, 0.0
  %1273 = vadd.xlane.f32.xlu0 %v1272
  %v1274 = vpop.xlane.xlu0 %1273
  %v1275 = vsel %vm609, %v1229, 0.0
  %1276 = vadd.xlane.f32.xlu0 %v1275
  %v1277 = vpop.xlane.xlu0 %1276
  %v1278 = vrcp.pop %v1232
  %v1279 = vrcp.pop %v1235
  %v1280 = vrcp.pop %v1238
  %v1281 = vrcp.pop %v1241
  %v1282 = vrcp.pop %v1244
  %v1283 = vrcp.pop %v1247
  %v1284 = vrcp.pop %v1250
  %v1285 = vrcp.pop %v1253
  %v1286 = vrcp.pop %v1256
  %v1287 = vrcp.pop %v1259
  %v1288 = vrcp.pop %v1262
  %v1289 = vrcp.pop %v1265
  %v1290 = vrcp.pop %v1268
  %v1291 = vrcp.pop %v1271
  %v1292 = vrcp.pop %v1274
  %v1293 = vrcp.pop %v1277
  %v1294 = vmul.f32 %v1199, %v1278
  %v1295 = vmul.f32 %v1201, %v1279
  %v1296 = vmul.f32 %v1203, %v1280
  %v1297 = vmul.f32 %v1205, %v1281
  %v1298 = vmul.f32 %v1207, %v1282
  %v1299 = vmul.f32 %v1209, %v1283
  %v1300 = vmul.f32 %v1211, %v1284
  %v1301 = vmul.f32 %v1213, %v1285
  %v1302 = vmul.f32 %v1215, %v1286
  %v1303 = vmul.f32 %v1217, %v1287
  %v1304 = vmul.f32 %v1219, %v1288
  %v1305 = vmul.f32 %v1221, %v1289
  %v1306 = vmul.f32 %v1223, %v1290
  %v1307 = vmul.f32 %v1225, %v1291
  %v1308 = vmul.f32 %v1227, %v1292
  %v1309 = vmul.f32 %v1229, %v1293
  %v1310 = vsel %vm609, %v1294, 0.0
  %v1311 = vsel %vm609, %v1295, 0.0
  %v1312 = vadd.f32 %v1310, %v1311
  %v1313 = vsel %vm609, %v1296, 0.0
  %v1314 = vadd.f32 %v1312, %v1313
  %v1315 = vsel %vm609, %v1297, 0.0
  %v1316 = vadd.f32 %v1314, %v1315
  %v1317 = vsel %vm609, %v1298, 0.0
  %v1318 = vadd.f32 %v1316, %v1317
  %v1319 = vsel %vm609, %v1299, 0.0
  %v1320 = vadd.f32 %v1318, %v1319
  %v1321 = vsel %vm609, %v1300, 0.0
  %v1322 = vadd.f32 %v1320, %v1321
  %v1323 = vsel %vm609, %v1301, 0.0
  %v1324 = vadd.f32 %v1322, %v1323
  %v1325 = vrot.slane %v1324, 4
  %v1326 = vadd.f32 %v1324, %v1325
  %v1327 = vrot.slane %v1326, 2
  %v1328 = vadd.f32 %v1326, %v1327
  %v1329 = vrot.slane %v1328, 1
  %v1330 = vadd.f32 %v1328, %v1329
  %v1331 = vsel %vm609, %v1302, 0.0
  %v1332 = vsel %vm609, %v1303, 0.0
  %v1333 = vadd.f32 %v1331, %v1332
  %v1334 = vsel %vm609, %v1304, 0.0
  %v1335 = vadd.f32 %v1333, %v1334
  %v1336 = vsel %vm609, %v1305, 0.0
  %v1337 = vadd.f32 %v1335, %v1336
  %v1338 = vsel %vm609, %v1306, 0.0
  %v1339 = vadd.f32 %v1337, %v1338
  %v1340 = vsel %vm609, %v1307, 0.0
  %v1341 = vadd.f32 %v1339, %v1340
  %v1342 = vsel %vm609, %v1308, 0.0
  %v1343 = vadd.f32 %v1341, %v1342
  %v1344 = vsel %vm609, %v1309, 0.0
  %v1345 = vadd.f32 %v1343, %v1344
  %v1346 = vrot.slane %v1345, 4
  %v1347 = vadd.f32 %v1345, %v1346
  %v1348 = vrot.slane %v1347, 2
  %v1349 = vadd.f32 %v1347, %v1348
  %v1350 = vrot.slane %v1349, 1
  %v1351 = vadd.f32 %v1349, %v1350
  %v1352 = vmul.f32 %v1330, %v828
  %v1353 = vmul.f32 %v1351, %v828
  %v1355 = vsel %vm609, %v1352, 0
  %1357 = vmatprep.subr.mxu0 0.0
  %1358 = vmatpush1.msra.mxu0 %v28
  %1359 = vmatprep.subr.mxu0 0.0
  %1360 = vmatpush1.msra.mxu0 %v29
  %1361 = vmatprep.subr.mxu0 0.0
  %1362 = vmatpush1.msra.mxu0 %v30
  %1363 = vmatprep.subr.mxu0 0.0
  %1364 = vmatpush1.msra.mxu0 %v31
  %1365 = vmatprep.subr.mxu0 0.0
  %1366 = vmatpush1.msra.mxu0 %v32
  %1367 = vmatprep.subr.mxu0 0.0
  %1368 = vmatpush1.msra.mxu0 %v33
  %1369 = vmatprep.subr.mxu0 0.0
  %1370 = vmatpush1.msra.mxu0 %v34
  %1371 = vmatprep.subr.mxu0 0.0
  %1372 = vmatpush1.msra.mxu0 %v35
  %1373 = vmatprep.subr.mxu0 0.0
  %1374 = vmatpush1.msra.mxu0 0.0
  %1375 = vmatprep.subr.mxu0 0.0
  %1376 = vmatpush1.msra.mxu0 0.0
  %1377 = vmatprep.subr.mxu0 0.0
  %1378 = vmatpush1.msra.mxu0 0.0
  %1379 = vmatprep.subr.mxu0 0.0
  %1380 = vmatpush1.msra.mxu0 0.0
  %1381 = vmatprep.subr.mxu0 0.0
  %1382 = vmatpush1.msra.mxu0 0.0
  %1383 = vmatprep.subr.mxu0 0.0
  %1384 = vmatpush1.msra.mxu0 0.0
  %1385 = vmatprep.subr.mxu0 0.0
  %1386 = vmatpush1.msra.mxu0 0.0
  %1387 = vmatprep.subr.mxu0 0.0
  %1388 = vmatpush1.msra.mxu0 0.0
  %1389 = vmatprep.subr.mxu0 0.0
  %1390 = vmatpush1.msra.mxu0 0.0
  %1391 = vmatprep.subr.mxu0 0.0
  %1392 = vmatpush1.msra.mxu0 0.0
  %1393 = vmatprep.subr.mxu0 0.0
  %1394 = vmatpush1.msra.mxu0 0.0
  %1395 = vmatprep.subr.mxu0 0.0
  %1396 = vmatpush1.msra.mxu0 0.0
  %1397 = vmatprep.subr.mxu0 0.0
  %1398 = vmatpush1.msra.mxu0 0.0
  %1399 = vmatprep.subr.mxu0 0.0
  %1400 = vmatpush1.msra.mxu0 0.0
  %1401 = vmatprep.subr.mxu0 0.0
  %1402 = vmatpush1.msra.mxu0 0.0
  %1403 = vmatprep.subr.mxu0 0.0
  %1404 = vmatpush1.msra.mxu0 0.0
  %1405 = vmatprep.subr.mxu0 0.0
  %1406 = vmatpush1.msra.mxu0 0.0
  %1407 = vmatprep.subr.mxu0 0.0
  %1408 = vmatpush1.msra.mxu0 0.0
  %1409 = vmatprep.subr.mxu0 0.0
  %1410 = vmatpush1.msra.mxu0 0.0
  %1411 = vmatprep.subr.mxu0 0.0
  %1412 = vmatpush1.msra.mxu0 0.0
  %1413 = vmatprep.subr.mxu0 0.0
  %1414 = vmatpush1.msra.mxu0 0.0
  %1415 = vmatprep.subr.mxu0 0.0
  %1416 = vmatpush1.msra.mxu0 0.0
  %1417 = vmatprep.subr.mxu0 0.0
  %1418 = vmatpush1.msra.mxu0 0.0
  %1419 = vmatprep.subr.mxu0 0.0
  %1420 = vmatpush1.msra.mxu0 0.0
  %1421 = vmatprep.mubr.f32.mxu0 0.0
  %1422 = vmatmul.mubr.f32.gmra.mrb[0].mxu0 %v1355
  %v1423 = vpop.f32.mrb[0].mxu0
  %v1424 = vadd.f32 0.0, %v1423
  %v1425 = vpop.f32.mrb[0].mxu0
  %1426 = vdwg.mxu0
  %v1428 = vsel %vm609, %v1353, 0
  %1430 = vmatprep.subr.mxu0 0.0
  %1431 = vmatpush1.msra.mxu0 %v36
  %1432 = vmatprep.subr.mxu0 0.0
  %1433 = vmatpush1.msra.mxu0 %v37
  %1434 = vmatprep.subr.mxu0 0.0
  %1435 = vmatpush1.msra.mxu0 %v38
  %1436 = vmatprep.subr.mxu0 0.0
  %1437 = vmatpush1.msra.mxu0 %v39
  %1438 = vmatprep.subr.mxu0 0.0
  %1439 = vmatpush1.msra.mxu0 %v40
  %1440 = vmatprep.subr.mxu0 0.0
  %1441 = vmatpush1.msra.mxu0 %v41
  %1442 = vmatprep.subr.mxu0 0.0
  %1443 = vmatpush1.msra.mxu0 %v42
  %1444 = vmatprep.subr.mxu0 0.0
  %1445 = vmatpush1.msra.mxu0 %v43
  %1446 = vmatprep.subr.mxu0 0.0
  %1447 = vmatpush1.msra.mxu0 0.0
  %1448 = vmatprep.subr.mxu0 0.0
  %1449 = vmatpush1.msra.mxu0 0.0
  %1450 = vmatprep.subr.mxu0 0.0
  %1451 = vmatpush1.msra.mxu0 0.0
  %1452 = vmatprep.subr.mxu0 0.0
  %1453 = vmatpush1.msra.mxu0 0.0
  %1454 = vmatprep.subr.mxu0 0.0
  %1455 = vmatpush1.msra.mxu0 0.0
  %1456 = vmatprep.subr.mxu0 0.0
  %1457 = vmatpush1.msra.mxu0 0.0
  %1458 = vmatprep.subr.mxu0 0.0
  %1459 = vmatpush1.msra.mxu0 0.0
  %1460 = vmatprep.subr.mxu0 0.0
  %1461 = vmatpush1.msra.mxu0 0.0
  %1462 = vmatprep.subr.mxu0 0.0
  %1463 = vmatpush1.msra.mxu0 0.0
  %1464 = vmatprep.subr.mxu0 0.0
  %1465 = vmatpush1.msra.mxu0 0.0
  %1466 = vmatprep.subr.mxu0 0.0
  %1467 = vmatpush1.msra.mxu0 0.0
  %1468 = vmatprep.subr.mxu0 0.0
  %1469 = vmatpush1.msra.mxu0 0.0
  %1470 = vmatprep.subr.mxu0 0.0
  %1471 = vmatpush1.msra.mxu0 0.0
  %1472 = vmatprep.subr.mxu0 0.0
  %1473 = vmatpush1.msra.mxu0 0.0
  %1474 = vmatprep.subr.mxu0 0.0
  %1475 = vmatpush1.msra.mxu0 0.0
  %1476 = vmatprep.subr.mxu0 0.0
  %1477 = vmatpush1.msra.mxu0 0.0
  %1478 = vmatprep.subr.mxu0 0.0
  %1479 = vmatpush1.msra.mxu0 0.0
  %1480 = vmatprep.subr.mxu0 0.0
  %1481 = vmatpush1.msra.mxu0 0.0
  %1482 = vmatprep.subr.mxu0 0.0
  %1483 = vmatpush1.msra.mxu0 0.0
  %1484 = vmatprep.subr.mxu0 0.0
  %1485 = vmatpush1.msra.mxu0 0.0
  %1486 = vmatprep.subr.mxu0 0.0
  %1487 = vmatpush1.msra.mxu0 0.0
  %1488 = vmatprep.subr.mxu0 0.0
  %1489 = vmatpush1.msra.mxu0 0.0
  %1490 = vmatprep.subr.mxu0 0.0
  %1491 = vmatpush1.msra.mxu0 0.0
  %1492 = vmatprep.subr.mxu0 0.0
  %1493 = vmatpush1.msra.mxu0 0.0
  %1494 = vmatprep.mubr.f32.mxu0 0.0
  %1495 = vmatmul.mubr.f32.gmra.mrb[0].mxu0 %v1428
  %v1496 = vpop.f32.mrb[0].mxu0
  %v1497 = vadd.f32 0.0, %v1496
  %v1498 = vpop.f32.mrb[0].mxu0
  %1499 = vdwg.mxu0
  %v1500 = vld [vmem:[%s4] sm:$0xff]
  %v1501 = vld [vmem:[%s4 + $0x8] sm:$0xff]
  %v1502 = vld [vmem:[%s4 + $0x10] sm:$0xff]
  %v1503 = vld [vmem:[%s4 + $0x18] sm:$0xff]
  %v1504 = vld [vmem:[%s4 + $0x20] sm:$0xff]
  %v1505 = vld [vmem:[%s4 + $0x28] sm:$0xff]
  %v1506 = vld [vmem:[%s4 + $0x30] sm:$0xff]
  %v1507 = vld [vmem:[%s4 + $0x38] sm:$0xff]
  %v1508 = vld [vmem:[%s4 + $0x40] sm:$0xff]
  %v1509 = vld [vmem:[%s4 + $0x48] sm:$0xff]
  %v1510 = vld [vmem:[%s4 + $0x50] sm:$0xff]
  %v1511 = vld [vmem:[%s4 + $0x58] sm:$0xff]
  %v1512 = vld [vmem:[%s4 + $0x60] sm:$0xff]
  %v1513 = vld [vmem:[%s4 + $0x68] sm:$0xff]
  %v1514 = vld [vmem:[%s4 + $0x70] sm:$0xff]
  %v1515 = vld [vmem:[%s4 + $0x78] sm:$0xff]
  %v1518 = vrot.slane %v1497, 7
  %v1519 = vsel %vm996, %v1518, %v1424
  %1521 = vmatprep.subr.mxu0 0.0
  %1522 = vmatpush1.msra.mxu0 %v1500
  %1523 = vmatprep.subr.mxu0 0.0
  %1524 = vmatpush1.msra.mxu0 %v1501
  %1525 = vmatprep.subr.mxu0 0.0
  %1526 = vmatpush1.msra.mxu0 %v1502
  %1527 = vmatprep.subr.mxu0 0.0
  %1528 = vmatpush1.msra.mxu0 %v1503
  %1529 = vmatprep.subr.mxu0 0.0
  %1530 = vmatpush1.msra.mxu0 %v1504
  %1531 = vmatprep.subr.mxu0 0.0
  %1532 = vmatpush1.msra.mxu0 %v1505
  %1533 = vmatprep.subr.mxu0 0.0
  %1534 = vmatpush1.msra.mxu0 %v1506
  %1535 = vmatprep.subr.mxu0 0.0
  %1536 = vmatpush1.msra.mxu0 %v1507
  %1537 = vmatprep.subr.mxu0 0.0
  %1538 = vmatpush1.msra.mxu0 %v1508
  %1539 = vmatprep.subr.mxu0 0.0
  %1540 = vmatpush1.msra.mxu0 %v1509
  %1541 = vmatprep.subr.mxu0 0.0
  %1542 = vmatpush1.msra.mxu0 %v1510
  %1543 = vmatprep.subr.mxu0 0.0
  %1544 = vmatpush1.msra.mxu0 %v1511
  %1545 = vmatprep.subr.mxu0 0.0
  %1546 = vmatpush1.msra.mxu0 %v1512
  %1547 = vmatprep.subr.mxu0 0.0
  %1548 = vmatpush1.msra.mxu0 %v1513
  %1549 = vmatprep.subr.mxu0 0.0
  %1550 = vmatpush1.msra.mxu0 %v1514
  %1551 = vmatprep.subr.mxu0 0.0
  %1552 = vmatpush1.msra.mxu0 %v1515
  %1553 = vmatprep.subr.mxu0 0.0
  %1554 = vmatpush1.msra.mxu0 0.0
  %1555 = vmatprep.subr.mxu0 0.0
  %1556 = vmatpush1.msra.mxu0 0.0
  %1557 = vmatprep.subr.mxu0 0.0
  %1558 = vmatpush1.msra.mxu0 0.0
  %1559 = vmatprep.subr.mxu0 0.0
  %1560 = vmatpush1.msra.mxu0 0.0
  %1561 = vmatprep.subr.mxu0 0.0
  %1562 = vmatpush1.msra.mxu0 0.0
  %1563 = vmatprep.subr.mxu0 0.0
  %1564 = vmatpush1.msra.mxu0 0.0
  %1565 = vmatprep.subr.mxu0 0.0
  %1566 = vmatpush1.msra.mxu0 0.0
  %1567 = vmatprep.subr.mxu0 0.0
  %1568 = vmatpush1.msra.mxu0 0.0
  %1569 = vmatprep.subr.mxu0 0.0
  %1570 = vmatpush1.msra.mxu0 0.0
  %1571 = vmatprep.subr.mxu0 0.0
  %1572 = vmatpush1.msra.mxu0 0.0
  %1573 = vmatprep.subr.mxu0 0.0
  %1574 = vmatpush1.msra.mxu0 0.0
  %1575 = vmatprep.subr.mxu0 0.0
  %1576 = vmatpush1.msra.mxu0 0.0
  %1577 = vmatprep.subr.mxu0 0.0
  %1578 = vmatpush1.msra.mxu0 0.0
  %1579 = vmatprep.subr.mxu0 0.0
  %1580 = vmatpush1.msra.mxu0 0.0
  %1581 = vmatprep.subr.mxu0 0.0
  %1582 = vmatpush1.msra.mxu0 0.0
  %1583 = vmatprep.subr.mxu0 0.0
  %1584 = vmatpush1.msra.mxu0 0.0
  %1585 = vmatprep.mubr.f32.mxu0 0.0
  %1586 = vmatmul.mubr.f32.gmra.mrb[0].mxu0 %v1519
  %v1587 = vpop.f32.mrb[0].mxu0
  %v1588 = vadd.f32 0.0, %v1587
  %v1589 = vpop.f32.mrb[0].mxu0
  %1590 = vdwg.mxu0
  %s1591 = scalar_lea.vmem %s7, 2
  %1592 = vst [vmem:[%s1591] sm:$0x3] %v1588
  %v1593 = vadd.f32 %v28, %v29
  %v1594 = vadd.f32 %v1593, %v30
  %v1595 = vadd.f32 %v1594, %v31
  %v1596 = vadd.f32 %v1595, %v32
  %v1597 = vadd.f32 %v1596, %v33
  %v1598 = vadd.f32 %v1597, %v34
  %v1599 = vadd.f32 %v1598, %v35
  %v1600 = vrot.slane %v1599, 4
  %v1601 = vadd.f32 %v1599, %v1600
  %v1602 = vrot.slane %v1601, 2
  %v1603 = vadd.f32 %v1601, %v1602
  %v1604 = vrot.slane %v1603, 1
  %v1605 = vadd.f32 %v1603, %v1604
  %v1606 = vadd.f32 %v36, %v37
  %v1607 = vadd.f32 %v1606, %v38
  %v1608 = vadd.f32 %v1607, %v39
  %v1609 = vadd.f32 %v1608, %v40
  %v1610 = vadd.f32 %v1609, %v41
  %v1611 = vadd.f32 %v1610, %v42
  %v1612 = vadd.f32 %v1611, %v43
  %v1613 = vrot.slane %v1612, 4
  %v1614 = vadd.f32 %v1612, %v1613
  %v1615 = vrot.slane %v1614, 2
  %v1616 = vadd.f32 %v1614, %v1615
  %v1617 = vrot.slane %v1616, 1
  %v1618 = vadd.f32 %v1616, %v1617
  %v1619 = vmul.f32 %v1605, %v828
  %v1620 = vmul.f32 %v1618, %v828
  %v1621 = vadd.f32 %v45, %v46
  %v1622 = vadd.f32 %v1621, %v47
  %v1623 = vadd.f32 %v1622, %v48
  %v1624 = vadd.f32 %v1623, %v49
  %v1625 = vadd.f32 %v1624, %v50
  %v1626 = vadd.f32 %v1625, %v51
  %v1627 = vadd.f32 %v1626, %v52
  %v1628 = vrot.slane %v1627, 4
  %v1629 = vadd.f32 %v1627, %v1628
  %v1630 = vrot.slane %v1629, 2
  %v1631 = vadd.f32 %v1629, %v1630
  %v1632 = vrot.slane %v1631, 1
  %v1633 = vadd.f32 %v1631, %v1632
  %v1634 = vadd.f32 %v53, %v54
  %v1635 = vadd.f32 %v1634, %v55
  %v1636 = vadd.f32 %v1635, %v56
  %v1637 = vadd.f32 %v1636, %v57
  %v1638 = vadd.f32 %v1637, %v58
  %v1639 = vadd.f32 %v1638, %v59
  %v1640 = vadd.f32 %v1639, %v60
  %v1641 = vrot.slane %v1640, 4
  %v1642 = vadd.f32 %v1640, %v1641
  %v1643 = vrot.slane %v1642, 2
  %v1644 = vadd.f32 %v1642, %v1643
  %v1645 = vrot.slane %v1644, 1
  %v1646 = vadd.f32 %v1644, %v1645
  %v1647 = vmul.f32 %v1633, %v828
  %v1648 = vmul.f32 %v1646, %v828
  %v1649 = vld [vmem:[%s5] sm:$0xff]
  %v1650 = vld [vmem:[%s5 + $0x8] sm:$0xff]
  %v1651 = vld [vmem:[%s5 + $0x10] sm:$0xff]
  %v1652 = vld [vmem:[%s5 + $0x18] sm:$0xff]
  %v1653 = vld [vmem:[%s5 + $0x20] sm:$0xff]
  %v1654 = vld [vmem:[%s5 + $0x28] sm:$0xff]
  %v1655 = vld [vmem:[%s5 + $0x30] sm:$0xff]
  %v1656 = vld [vmem:[%s5 + $0x38] sm:$0xff]
  %v1657 = vld [vmem:[%s5 + $0x40] sm:$0xff]
  %v1658 = vld [vmem:[%s5 + $0x48] sm:$0xff]
  %v1659 = vld [vmem:[%s5 + $0x50] sm:$0xff]
  %v1660 = vld [vmem:[%s5 + $0x58] sm:$0xff]
  %v1661 = vld [vmem:[%s5 + $0x60] sm:$0xff]
  %v1662 = vld [vmem:[%s5 + $0x68] sm:$0xff]
  %v1663 = vld [vmem:[%s5 + $0x70] sm:$0xff]
  %v1664 = vld [vmem:[%s5 + $0x78] sm:$0xff]
  %v1665 = vld [vmem:[%s6] sm:$0x1]
  %v1667 = vlaneseq
  %v1668 = vshrl.u32 %v1667, 7
  %v1669 = vsub.s32 0, %v1668
  %v1670 = vrot.slane %v1665, %v1669
  %v1674 = vsel %vm996, %v1620, %v1619
  %1676 = vmatprep.subr.mxu0 0.0
  %1677 = vmatpush1.msra.mxu0 %v1649
  %1678 = vmatprep.subr.mxu0 0.0
  %1679 = vmatpush1.msra.mxu0 %v1650
  %1680 = vmatprep.subr.mxu0 0.0
  %1681 = vmatpush1.msra.mxu0 %v1651
  %1682 = vmatprep.subr.mxu0 0.0
  %1683 = vmatpush1.msra.mxu0 %v1652
  %1684 = vmatprep.subr.mxu0 0.0
  %1685 = vmatpush1.msra.mxu0 %v1653
  %1686 = vmatprep.subr.mxu0 0.0
  %1687 = vmatpush1.msra.mxu0 %v1654
  %1688 = vmatprep.subr.mxu0 0.0
  %1689 = vmatpush1.msra.mxu0 %v1655
  %1690 = vmatprep.subr.mxu0 0.0
  %1691 = vmatpush1.msra.mxu0 %v1656
  %1692 = vmatprep.subr.mxu0 0.0
  %1693 = vmatpush1.msra.mxu0 %v1657
  %1694 = vmatprep.subr.mxu0 0.0
  %1695 = vmatpush1.msra.mxu0 %v1658
  %1696 = vmatprep.subr.mxu0 0.0
  %1697 = vmatpush1.msra.mxu0 %v1659
  %1698 = vmatprep.subr.mxu0 0.0
  %1699 = vmatpush1.msra.mxu0 %v1660
  %1700 = vmatprep.subr.mxu0 0.0
  %1701 = vmatpush1.msra.mxu0 %v1661
  %1702 = vmatprep.subr.mxu0 0.0
  %1703 = vmatpush1.msra.mxu0 %v1662
  %1704 = vmatprep.subr.mxu0 0.0
  %1705 = vmatpush1.msra.mxu0 %v1663
  %1706 = vmatprep.subr.mxu0 0.0
  %1707 = vmatpush1.msra.mxu0 %v1664
  %1708 = vmatprep.subr.mxu0 0.0
  %1709 = vmatpush1.msra.mxu0 0.0
  %1710 = vmatprep.subr.mxu0 0.0
  %1711 = vmatpush1.msra.mxu0 0.0
  %1712 = vmatprep.subr.mxu0 0.0
  %1713 = vmatpush1.msra.mxu0 0.0
  %1714 = vmatprep.subr.mxu0 0.0
  %1715 = vmatpush1.msra.mxu0 0.0
  %1716 = vmatprep.subr.mxu0 0.0
  %1717 = vmatpush1.msra.mxu0 0.0
  %1718 = vmatprep.subr.mxu0 0.0
  %1719 = vmatpush1.msra.mxu0 0.0
  %1720 = vmatprep.subr.mxu0 0.0
  %1721 = vmatpush1.msra.mxu0 0.0
  %1722 = vmatprep.subr.mxu0 0.0
  %1723 = vmatpush1.msra.mxu0 0.0
  %1724 = vmatprep.subr.mxu0 0.0
  %1725 = vmatpush1.msra.mxu0 0.0
  %1726 = vmatprep.subr.mxu0 0.0
  %1727 = vmatpush1.msra.mxu0 0.0
  %1728 = vmatprep.subr.mxu0 0.0
  %1729 = vmatpush1.msra.mxu0 0.0
  %1730 = vmatprep.subr.mxu0 0.0
  %1731 = vmatpush1.msra.mxu0 0.0
  %1732 = vmatprep.subr.mxu0 0.0
  %1733 = vmatpush1.msra.mxu0 0.0
  %1734 = vmatprep.subr.mxu0 0.0
  %1735 = vmatpush1.msra.mxu0 0.0
  %1736 = vmatprep.subr.mxu0 0.0
  %1737 = vmatpush1.msra.mxu0 0.0
  %1738 = vmatprep.subr.mxu0 0.0
  %1739 = vmatpush1.msra.mxu0 0.0
  %1740 = vmatprep.mubr.f32.mxu0 0.0
  %1741 = vmatmul.mubr.f32.gmra.mrb[0].mxu0 %v1674
  %v1742 = vpop.f32.mrb[0].mxu0
  %v1743 = vadd.f32 %v1670, %v1742
  %v1744 = vpop.f32.mrb[0].mxu0
  %1745 = vdwg.mxu0
  %1746 = vst [vmem:[%s8] sm:$0x3] %v1743
  %s1747 = scalar_lea.vmem %s5, 128
  %v1748 = vld [vmem:[%s1747] sm:$0xff]
  %v1749 = vld [vmem:[%s1747 + $0x8] sm:$0xff]
  %v1750 = vld [vmem:[%s1747 + $0x10] sm:$0xff]
  %v1751 = vld [vmem:[%s1747 + $0x18] sm:$0xff]
  %v1752 = vld [vmem:[%s1747 + $0x20] sm:$0xff]
  %v1753 = vld [vmem:[%s1747 + $0x28] sm:$0xff]
  %v1754 = vld [vmem:[%s1747 + $0x30] sm:$0xff]
  %v1755 = vld [vmem:[%s1747 + $0x38] sm:$0xff]
  %v1756 = vld [vmem:[%s1747 + $0x40] sm:$0xff]
  %v1757 = vld [vmem:[%s1747 + $0x48] sm:$0xff]
  %v1758 = vld [vmem:[%s1747 + $0x50] sm:$0xff]
  %v1759 = vld [vmem:[%s1747 + $0x58] sm:$0xff]
  %v1760 = vld [vmem:[%s1747 + $0x60] sm:$0xff]
  %v1761 = vld [vmem:[%s1747 + $0x68] sm:$0xff]
  %v1762 = vld [vmem:[%s1747 + $0x70] sm:$0xff]
  %v1763 = vld [vmem:[%s1747 + $0x78] sm:$0xff]
  %s1764 = scalar_lea.vmem %s6, 1
  %v1765 = vld [vmem:[%s1764] sm:$0x1]
  %v1767 = vlaneseq
  %v1768 = vshrl.u32 %v1767, 7
  %v1769 = vsub.s32 0, %v1768
  %v1770 = vrot.slane %v1765, %v1769
  %v1774 = vsel %vm996, %v1648, %v1647
  %1776 = vmatprep.subr.mxu0 0.0
  %1777 = vmatpush1.msra.mxu0 %v1748
  %1778 = vmatprep.subr.mxu0 0.0
  %1779 = vmatpush1.msra.mxu0 %v1749
  %1780 = vmatprep.subr.mxu0 0.0
  %1781 = vmatpush1.msra.mxu0 %v1750
  %1782 = vmatprep.subr.mxu0 0.0
  %1783 = vmatpush1.msra.mxu0 %v1751
  %1784 = vmatprep.subr.mxu0 0.0
  %1785 = vmatpush1.msra.mxu0 %v1752
  %1786 = vmatprep.subr.mxu0 0.0
  %1787 = vmatpush1.msra.mxu0 %v1753
  %1788 = vmatprep.subr.mxu0 0.0
  %1789 = vmatpush1.msra.mxu0 %v1754
  %1790 = vmatprep.subr.mxu0 0.0
  %1791 = vmatpush1.msra.mxu0 %v1755
  %1792 = vmatprep.subr.mxu0 0.0
  %1793 = vmatpush1.msra.mxu0 %v1756
  %1794 = vmatprep.subr.mxu0 0.0
  %1795 = vmatpush1.msra.mxu0 %v1757
  %1796 = vmatprep.subr.mxu0 0.0
  %1797 = vmatpush1.msra.mxu0 %v1758
  %1798 = vmatprep.subr.mxu0 0.0
  %1799 = vmatpush1.msra.mxu0 %v1759
  %1800 = vmatprep.subr.mxu0 0.0
  %1801 = vmatpush1.msra.mxu0 %v1760
  %1802 = vmatprep.subr.mxu0 0.0
  %1803 = vmatpush1.msra.mxu0 %v1761
  %1804 = vmatprep.subr.mxu0 0.0
  %1805 = vmatpush1.msra.mxu0 %v1762
  %1806 = vmatprep.subr.mxu0 0.0
  %1807 = vmatpush1.msra.mxu0 %v1763
  %1808 = vmatprep.subr.mxu0 0.0
  %1809 = vmatpush1.msra.mxu0 0.0
  %1810 = vmatprep.subr.mxu0 0.0
  %1811 = vmatpush1.msra.mxu0 0.0
  %1812 = vmatprep.subr.mxu0 0.0
  %1813 = vmatpush1.msra.mxu0 0.0
  %1814 = vmatprep.subr.mxu0 0.0
  %1815 = vmatpush1.msra.mxu0 0.0
  %1816 = vmatprep.subr.mxu0 0.0
  %1817 = vmatpush1.msra.mxu0 0.0
  %1818 = vmatprep.subr.mxu0 0.0
  %1819 = vmatpush1.msra.mxu0 0.0
  %1820 = vmatprep.subr.mxu0 0.0
  %1821 = vmatpush1.msra.mxu0 0.0
  %1822 = vmatprep.subr.mxu0 0.0
  %1823 = vmatpush1.msra.mxu0 0.0
  %1824 = vmatprep.subr.mxu0 0.0
  %1825 = vmatpush1.msra.mxu0 0.0
  %1826 = vmatprep.subr.mxu0 0.0
  %1827 = vmatpush1.msra.mxu0 0.0
  %1828 = vmatprep.subr.mxu0 0.0
  %1829 = vmatpush1.msra.mxu0 0.0
  %1830 = vmatprep.subr.mxu0 0.0
  %1831 = vmatpush1.msra.mxu0 0.0
  %1832 = vmatprep.subr.mxu0 0.0
  %1833 = vmatpush1.msra.mxu0 0.0
  %1834 = vmatprep.subr.mxu0 0.0
  %1835 = vmatpush1.msra.mxu0 0.0
  %1836 = vmatprep.subr.mxu0 0.0
  %1837 = vmatpush1.msra.mxu0 0.0
  %1838 = vmatprep.subr.mxu0 0.0
  %1839 = vmatpush1.msra.mxu0 0.0
  %1840 = vmatprep.mubr.f32.mxu0 0.0
  %1841 = vmatmul.mubr.f32.gmra.mrb[0].mxu0 %v1774
  %v1842 = vpop.f32.mrb[0].mxu0
  %v1843 = vadd.f32 %v1770, %v1842
  %v1844 = vpop.f32.mrb[0].mxu0
  %1845 = vdwg.mxu0
  %s1846 = scalar_lea.vmem %s8, 2
  %1847 = vst [vmem:[%s1846] sm:$0x3] %v1843
  // Predicated region
  $region30: #{dla_forward.4} parent=0 // pred_check
    _
  $region31: #{dla_forward.4} parent=0 // pred_check_branch
    %1849 = sbr.rel (0) target = $region33
  $region32: #{dla_forward.4} parent=0 // pred_region
    _
  $region33: #{dla_forward.4} parent=0 // pred_fallthru
    _
  // Predicated region
  $region34: #{dla_forward.4} parent=0 // pred_check
    _
  $region35: #{dla_forward.4} parent=0 // pred_check_branch
    %1851 = sbr.rel (0) target = $region37
  $region36: #{dla_forward.4} parent=0 // pred_region
    _
  $region37: #{dla_forward.4} parent=0 // pred_fallthru
    _
  // Predicated region
  $region38: #{dla_forward.4} parent=0 // pred_check
    _
  $region39: #{dla_forward.4} parent=0 // pred_check_branch
    %1853 = sbr.rel (0) target = $region41
  $region40: #{dla_forward.4} parent=0 // pred_region
    _
  $region41: #{dla_forward.4} parent=0 // pred_fallthru
    _
  // Predicated region
  $region42: #{dla_forward.4} parent=0 // pred_check
    _
  $region43: #{dla_forward.4} parent=0 // pred_check_branch
    %1855 = sbr.rel (0) target = $region45
  $region44: #{dla_forward.4} parent=0 // pred_region
    _
  $region45: #{dla_forward.4} parent=0 // pred_fallthru
    _

// kernel: dla_forward.5
$region0: #{dla_forward.5}
  #allocation0 [shape = 'u32[]', space=smem, size = 0x4, offset = 0x4, fixed_abs, tag = 'smem constant byte address 0x4 - core index']
  #allocation1 [shape = 'u32[144,128]{1,0:T(1,128)}', space=vmem, size = 0x12000, scoped, tag = 'internal scratch']
  #allocation2 [shape = 's32[1]{0}', space=sflag, size = 0x4, scoped, tag = 'scoped memory for dla_forward.5']
  #allocation3 [shape = 'u8[1024]{0}', space=smem, size = 0x400, scoped, tag = 'prefetched SMEM operand 0']
  #allocation4 [shape = 'u8[1024]{0}', space=smem, size = 0x400, scoped, tag = 'prefetched SMEM operand 1']
  %s0 = inlined_call_operand.vmem [shape: s32[2,5], index: 0, kind: input, shape index: {}]
  %s1 = inlined_call_operand.vmem [shape: s32[2,12], index: 1, kind: input, shape index: {}]
  %s2 = inlined_call_operand.vmem [shape: f32[2,2,128], index: 2, kind: input, shape index: {}]
  %s3 = inlined_call_operand.vmem [shape: f32[2,2,128], index: 3, kind: input, shape index: {}]
  %s4 = inlined_call_operand.vmem [shape: f32[2,128,128], index: 4, kind: input, shape index: {}]
  %s5 = inlined_call_operand.vmem [shape: f32[2,256,384], index: 5, kind: input, shape index: {}]
  %s6 = inlined_call_operand.vmem [shape: f32[2,1,384], index: 6, kind: input, shape index: {}]
  %s7 = inlined_call_operand.vmem [shape: f32[2,128,384], index: 7, kind: input, shape index: {}]
  %s8 = inlined_call_operand.vmem [shape: f32[2,1,384], index: 8, kind: input, shape index: {}]
  %s9 = inlined_call_operand.vmem [shape: f32[2,128,128], index: 9, kind: input, shape index: {}]
  %s10 = inlined_call_operand.vmem [shape: f32[2,1,128], index: 10, kind: input, shape index: {}]
  %s11 = inlined_call_operand.vmem [shape: f32[2,2,5,128], index: 11, kind: output, shape index: {}]
  %s12 = sld [smem:[#allocation0]]
  $region69: #{dla_forward.5} parent=0
    _
  %s14 = ssub.s32 1, %s12
  %s15 = scalar_select 0, %s14, %s12
  %s16 = sshll.u32 %s0, 4
  %s17 = int_to_ptr.vmem [resolvable:$true] %s16
  %19 = dma.vmem_to_smem %s17, 32, [#allocation3], [#allocation2]
  %s20 = sshll.u32 %s1, 4
  %s21 = int_to_ptr.vmem [resolvable:$true] %s20
  %23 = dma.vmem_to_smem %s21, 32, [#allocation4], [#allocation2]
  %24 = dma.done [#allocation2], 64
  %25 = sfence
  loop: start=0, step=1, limit=4
  $region2: #{dla_forward.5} parent=0 // loop_pre_header
    _
  $region3: #{dla_forward.5} parent=0 // loop_header
    %s27 = sphi 0, %s31
    %p28 = scmp.ge.s32.totalorder %s27, 4
    %s37 = sphi 0, %s39
    %s40 = sphi 0, %s37
    %s41 = sphi 0, %s40
    %s57 = sphi 0, %s41
    %s63 = sphi 0, %s65
    %s66 = sphi 0, %s63
    %s67 = sphi 0, %s66
    %s83 = sphi 0, %s67
    %s89 = sphi 0, %s91
    %s92 = sphi 0, %s89
    %s93 = sphi 0, %s92
    %s109 = sphi 0, %s93
    %s115 = sphi 0, %s117
    %s118 = sphi 0, %s115
    %s119 = sphi 0, %s118
    %s135 = sphi 0, %s119
    %s141 = sphi 0, %s143
    %s144 = sphi 0, %s141
    %s145 = sphi 0, %s144
    %s161 = sphi 0, %s145
    %s167 = sphi 0, %s169
    %s170 = sphi 0, %s167
    %s171 = sphi 0, %s170
    %s187 = sphi 0, %s171
    %s193 = sphi 0, %s195
    %s196 = sphi 0, %s193
    %s197 = sphi 0, %s196
    %s213 = sphi 0, %s197
    %s219 = sphi 0, %s221
    %s222 = sphi 0, %s219
    %s223 = sphi 0, %s222
    %s239 = sphi 0, %s223
    %s245 = sphi 0, %s247
    %s248 = sphi 0, %s245
    %s249 = sphi 0, %s248
    %s265 = sphi 0, %s249
    %s271 = sphi 0, %s273
    %s274 = sphi 0, %s271
    %s275 = sphi 0, %s274
    %s291 = sphi 0, %s275
  $region4: #{dla_forward.5} parent=0 // loop_header_branch
    %30 = sbr.rel (%p28) target = $region8
  $region5: #{dla_forward.5} parent=0 // loop_body
    %s32 = ssub.s32 %s27, 1
    %s33 = ssub.s32 %s27, 2
    %s34 = sadd.s32 %s27, 1
    %s35 = ssub.s32 %s27, %s34
    %p36 = scmp.eq.s32.totalorder %s35, 0
    %s38 = sadd.s32 %s37, 1
    %s39 = scalar_select %p36, %s37, %s38
    %p42 = pneg %p36
    %p43 = scmp.eq.s32.totalorder %s27, 1
    %p44 = por %p42, %p43
    %p45 = scmp.ne.s32.totalorder %s37, %s40
    %p46 = scmp.eq.s32.totalorder %s27, 0
    %p47 = por %p45, %p46
    %p48 = scmp.ne.s32.totalorder %s37, %s40
    %p49 = scmp.eq.s32.totalorder %s32, 1
    %p50 = por %p48, %p49
    %p51 = scmp.ne.s32.totalorder %s40, %s41
    %p52 = scmp.eq.s32.totalorder %s32, 0
    %p53 = por %p51, %p52
    %p54 = scmp.ne.s32.totalorder %s40, %s41
    %p55 = scmp.eq.s32.totalorder %s33, 1
    %p56 = por %p54, %p55
    %p58 = scmp.ne.s32.totalorder %s41, %s57
    %p59 = scmp.eq.s32.totalorder %s33, 0
    %p60 = por %p58, %p59
    %s61 = ssub.s32 %s27, %s34
    %p62 = scmp.eq.s32.totalorder %s61, 0
    %s64 = sadd.s32 %s63, 1
    %s65 = scalar_select %p62, %s63, %s64
    %p68 = pneg %p62
    %p69 = scmp.eq.s32.totalorder %s27, 1
    %p70 = por %p68, %p69
    %p71 = scmp.ne.s32.totalorder %s63, %s66
    %p72 = scmp.eq.s32.totalorder %s27, 0
    %p73 = por %p71, %p72
    %p74 = scmp.ne.s32.totalorder %s63, %s66
    %p75 = scmp.eq.s32.totalorder %s32, 1
    %p76 = por %p74, %p75
    %p77 = scmp.ne.s32.totalorder %s66, %s67
    %p78 = scmp.eq.s32.totalorder %s32, 0
    %p79 = por %p77, %p78
    %p80 = scmp.ne.s32.totalorder %s66, %s67
    %p81 = scmp.eq.s32.totalorder %s33, 1
    %p82 = por %p80, %p81
    %p84 = scmp.ne.s32.totalorder %s67, %s83
    %p85 = scmp.eq.s32.totalorder %s33, 0
    %p86 = por %p84, %p85
    %s87 = ssub.s32 %s27, %s34
    %p88 = scmp.eq.s32.totalorder %s87, 0
    %s90 = sadd.s32 %s89, 1
    %s91 = scalar_select %p88, %s89, %s90
    %p94 = pneg %p88
    %p95 = scmp.eq.s32.totalorder %s27, 1
    %p96 = por %p94, %p95
    %p97 = scmp.ne.s32.totalorder %s89, %s92
    %p98 = scmp.eq.s32.totalorder %s27, 0
    %p99 = por %p97, %p98
    %p100 = scmp.ne.s32.totalorder %s89, %s92
    %p101 = scmp.eq.s32.totalorder %s32, 1
    %p102 = por %p100, %p101
    %p103 = scmp.ne.s32.totalorder %s92, %s93
    %p104 = scmp.eq.s32.totalorder %s32, 0
    %p105 = por %p103, %p104
    %p106 = scmp.ne.s32.totalorder %s92, %s93
    %p107 = scmp.eq.s32.totalorder %s33, 1
    %p108 = por %p106, %p107
    %p110 = scmp.ne.s32.totalorder %s93, %s109
    %p111 = scmp.eq.s32.totalorder %s33, 0
    %p112 = por %p110, %p111
    %s113 = ssub.s32 %s27, %s34
    %p114 = scmp.eq.s32.totalorder %s113, 0
    %s116 = sadd.s32 %s115, 1
    %s117 = scalar_select %p114, %s115, %s116
    %p120 = pneg %p114
    %p121 = scmp.eq.s32.totalorder %s27, 1
    %p122 = por %p120, %p121
    %p123 = scmp.ne.s32.totalorder %s115, %s118
    %p124 = scmp.eq.s32.totalorder %s27, 0
    %p125 = por %p123, %p124
    %p126 = scmp.ne.s32.totalorder %s115, %s118
    %p127 = scmp.eq.s32.totalorder %s32, 1
    %p128 = por %p126, %p127
    %p129 = scmp.ne.s32.totalorder %s118, %s119
    %p130 = scmp.eq.s32.totalorder %s32, 0
    %p131 = por %p129, %p130
    %p132 = scmp.ne.s32.totalorder %s118, %s119
    %p133 = scmp.eq.s32.totalorder %s33, 1
    %p134 = por %p132, %p133
    %p136 = scmp.ne.s32.totalorder %s119, %s135
    %p137 = scmp.eq.s32.totalorder %s33, 0
    %p138 = por %p136, %p137
    %s139 = ssub.s32 %s27, %s34
    %p140 = scmp.eq.s32.totalorder %s139, 0
    %s142 = sadd.s32 %s141, 1
    %s143 = scalar_select %p140, %s141, %s142
    %p146 = pneg %p140
    %p147 = scmp.eq.s32.totalorder %s27, 1
    %p148 = por %p146, %p147
    %p149 = scmp.ne.s32.totalorder %s141, %s144
    %p150 = scmp.eq.s32.totalorder %s27, 0
    %p151 = por %p149, %p150
    %p152 = scmp.ne.s32.totalorder %s141, %s144
    %p153 = scmp.eq.s32.totalorder %s32, 1
    %p154 = por %p152, %p153
    %p155 = scmp.ne.s32.totalorder %s144, %s145
    %p156 = scmp.eq.s32.totalorder %s32, 0
    %p157 = por %p155, %p156
    %p158 = scmp.ne.s32.totalorder %s144, %s145
    %p159 = scmp.eq.s32.totalorder %s33, 1
    %p160 = por %p158, %p159
    %p162 = scmp.ne.s32.totalorder %s145, %s161
    %p163 = scmp.eq.s32.totalorder %s33, 0
    %p164 = por %p162, %p163
    %s165 = ssub.s32 %s27, %s34
    %p166 = scmp.eq.s32.totalorder %s165, 0
    %s168 = sadd.s32 %s167, 1
    %s169 = scalar_select %p166, %s167, %s168
    %p172 = pneg %p166
    %p173 = scmp.eq.s32.totalorder %s27, 1
    %p174 = por %p172, %p173
    %p175 = scmp.ne.s32.totalorder %s167, %s170
    %p176 = scmp.eq.s32.totalorder %s27, 0
    %p177 = por %p175, %p176
    %p178 = scmp.ne.s32.totalorder %s167, %s170
    %p179 = scmp.eq.s32.totalorder %s32, 1
    %p180 = por %p178, %p179
    %p181 = scmp.ne.s32.totalorder %s170, %s171
    %p182 = scmp.eq.s32.totalorder %s32, 0
    %p183 = por %p181, %p182
    %p184 = scmp.ne.s32.totalorder %s170, %s171
    %p185 = scmp.eq.s32.totalorder %s33, 1
    %p186 = por %p184, %p185
    %p188 = scmp.ne.s32.totalorder %s171, %s187
    %p189 = scmp.eq.s32.totalorder %s33, 0
    %p190 = por %p188, %p189
    %s191 = ssub.s32 %s27, %s34
    %p192 = scmp.eq.s32.totalorder %s191, 0
    %s194 = sadd.s32 %s193, 1
    %s195 = scalar_select %p192, %s193, %s194
    %p198 = pneg %p192
    %p199 = scmp.eq.s32.totalorder %s27, 1
    %p200 = por %p198, %p199
    %p201 = scmp.ne.s32.totalorder %s193, %s196
    %p202 = scmp.eq.s32.totalorder %s27, 0
    %p203 = por %p201, %p202
    %p204 = scmp.ne.s32.totalorder %s193, %s196
    %p205 = scmp.eq.s32.totalorder %s32, 1
    %p206 = por %p204, %p205
    %p207 = scmp.ne.s32.totalorder %s196, %s197
    %p208 = scmp.eq.s32.totalorder %s32, 0
    %p209 = por %p207, %p208
    %p210 = scmp.ne.s32.totalorder %s196, %s197
    %p211 = scmp.eq.s32.totalorder %s33, 1
    %p212 = por %p210, %p211
    %p214 = scmp.ne.s32.totalorder %s197, %s213
    %p215 = scmp.eq.s32.totalorder %s33, 0
    %p216 = por %p214, %p215
    %s217 = ssub.s32 %s27, %s34
    %p218 = scmp.eq.s32.totalorder %s217, 0
    %s220 = sadd.s32 %s219, 1
    %s221 = scalar_select %p218, %s219, %s220
    %p224 = pneg %p218
    %p225 = scmp.eq.s32.totalorder %s27, 1
    %p226 = por %p224, %p225
    %p227 = scmp.ne.s32.totalorder %s219, %s222
    %p228 = scmp.eq.s32.totalorder %s27, 0
    %p229 = por %p227, %p228
    %p230 = scmp.ne.s32.totalorder %s219, %s222
    %p231 = scmp.eq.s32.totalorder %s32, 1
    %p232 = por %p230, %p231
    %p233 = scmp.ne.s32.totalorder %s222, %s223
    %p234 = scmp.eq.s32.totalorder %s32, 0
    %p235 = por %p233, %p234
    %p236 = scmp.ne.s32.totalorder %s222, %s223
    %p237 = scmp.eq.s32.totalorder %s33, 1
    %p238 = por %p236, %p237
    %p240 = scmp.ne.s32.totalorder %s223, %s239
    %p241 = scmp.eq.s32.totalorder %s33, 0
    %p242 = por %p240, %p241
    %s243 = ssub.s32 %s27, %s34
    %p244 = scmp.eq.s32.totalorder %s243, 0
    %s246 = sadd.s32 %s245, 1
    %s247 = scalar_select %p244, %s245, %s246
    %p250 = pneg %p244
    %p251 = scmp.eq.s32.totalorder %s27, 1
    %p252 = por %p250, %p251
    %p253 = scmp.ne.s32.totalorder %s245, %s248
    %p254 = scmp.eq.s32.totalorder %s27, 0
    %p255 = por %p253, %p254
    %p256 = scmp.ne.s32.totalorder %s245, %s248
    %p257 = scmp.eq.s32.totalorder %s32, 1
    %p258 = por %p256, %p257
    %p259 = scmp.ne.s32.totalorder %s248, %s249
    %p260 = scmp.eq.s32.totalorder %s32, 0
    %p261 = por %p259, %p260
    %p262 = scmp.ne.s32.totalorder %s248, %s249
    %p263 = scmp.eq.s32.totalorder %s33, 1
    %p264 = por %p262, %p263
    %p266 = scmp.ne.s32.totalorder %s249, %s265
    %p267 = scmp.eq.s32.totalorder %s33, 0
    %p268 = por %p266, %p267
    %s269 = ssub.s32 %s27, %s34
    %p270 = scmp.eq.s32.totalorder %s269, 0
    %s272 = sadd.s32 %s271, 1
    %s273 = scalar_select %p270, %s271, %s272
    %p276 = pneg %p270
    %p277 = scmp.eq.s32.totalorder %s27, 1
    %p278 = por %p276, %p277
    %p279 = scmp.ne.s32.totalorder %s271, %s274
    %p280 = scmp.eq.s32.totalorder %s27, 0
    %p281 = por %p279, %p280
    %p282 = scmp.ne.s32.totalorder %s271, %s274
    %p283 = scmp.eq.s32.totalorder %s32, 1
    %p284 = por %p282, %p283
    %p285 = scmp.ne.s32.totalorder %s274, %s275
    %p286 = scmp.eq.s32.totalorder %s32, 0
    %p287 = por %p285, %p286
    %p288 = scmp.ne.s32.totalorder %s274, %s275
    %p289 = scmp.eq.s32.totalorder %s33, 1
    %p290 = por %p288, %p289
    %p292 = scmp.ne.s32.totalorder %s275, %s291
    %p293 = scmp.eq.s32.totalorder %s33, 0
    %p294 = por %p292, %p293
    %p295 = scmp.le.s32.totalorder 1, %s27
    %p296 = scmp.lt.s32.totalorder %s27, 3
    %p297 = pnand %p295, %p296
    %p298 = pneg %p297
    // Predicated region
    $region9: #{dla_forward.5} parent=5 // pred_check
      _
    $region10: #{dla_forward.5} parent=5 // pred_check_branch
      %300 = sbr.rel (%p297) target = $region12
    $region11: #{dla_forward.5} parent=5 // pred_region
      %s301 = ssub.s32 %s27, 1
    $region12: #{dla_forward.5} parent=5 // pred_fallthru
      _
    %p302 = scmp.lt.s32.totalorder %s27, 2
    // Predicated region
    $region13: #{dla_forward.5} parent=5 // pred_check
      %p303 = pneg %p302
    $region14: #{dla_forward.5} parent=5 // pred_check_branch
      %305 = sbr.rel (%p303) target = $region16
    $region15: #{dla_forward.5} parent=5 // pred_region
      // Predicated region
      $region17: #{dla_forward.5} parent=15 // pred_check
        %p306 = pneg %p47
      $region18: #{dla_forward.5} parent=15 // pred_check_branch
        %308 = sbr.rel (%p306) target = $region20
      $region19: #{dla_forward.5} parent=15 // pred_region
        %p309 = scmp.lt.s32.totalorder %s27, 1
        %s310 = scalar_select %p309, %s27, 1
        %s311 = smul.addr %s310, 2
        %s312 = scalar_lea.vmem %s2, %s311
      $region20: #{dla_forward.5} parent=15 // pred_fallthru
        _
      // Predicated region
      $region21: #{dla_forward.5} parent=15 // pred_check
        %p313 = pneg %p73
      $region22: #{dla_forward.5} parent=15 // pred_check_branch
        %315 = sbr.rel (%p313) target = $region24
      $region23: #{dla_forward.5} parent=15 // pred_region
        %p316 = scmp.lt.s32.totalorder %s27, 1
        %s317 = scalar_select %p316, %s27, 1
        %s318 = smul.addr %s317, 2
        %s319 = scalar_lea.vmem %s3, %s318
      $region24: #{dla_forward.5} parent=15 // pred_fallthru
        _
      // Predicated region
      $region25: #{dla_forward.5} parent=15 // pred_check
        %p320 = pneg %p99
      $region26: #{dla_forward.5} parent=15 // pred_check_branch
        %322 = sbr.rel (%p320) target = $region28
      $region27: #{dla_forward.5} parent=15 // pred_region
        %p323 = scmp.lt.s32.totalorder %s27, 1
        %s324 = scalar_select %p323, %s27, 1
        %s325 = smul.addr %s324, 16
        %s326 = smul.addr %s325, 8
        %s327 = scalar_lea.vmem %s4, %s326
      $region28: #{dla_forward.5} parent=15 // pred_fallthru
        _
      // Predicated region
      $region29: #{dla_forward.5} parent=15 // pred_check
        %p328 = pneg %p125
      $region30: #{dla_forward.5} parent=15 // pred_check_branch
        %330 = sbr.rel (%p328) target = $region32
      $region31: #{dla_forward.5} parent=15 // pred_region
        %p331 = scmp.lt.s32.totalorder %s27, 1
        %s332 = scalar_select %p331, %s27, 1
        %s333 = smul.addr %s332, 96
        %s334 = smul.addr %s333, 8
        %s335 = scalar_lea.vmem %s5, %s334
      $region32: #{dla_forward.5} parent=15 // pred_fallthru
        _
      // Predicated region
      $region33: #{dla_forward.5} parent=15 // pred_check
        %p336 = pneg %p151
      $region34: #{dla_forward.5} parent=15 // pred_check_branch
        %338 = sbr.rel (%p336) target = $region36
      $region35: #{dla_forward.5} parent=15 // pred_region
        %p339 = scmp.lt.s32.totalorder %s27, 1
        %s340 = scalar_select %p339, %s27, 1
        %s341 = smul.addr %s340, 3
        %s342 = scalar_lea.vmem %s6, %s341
      $region36: #{dla_forward.5} parent=15 // pred_fallthru
        _
      // Predicated region
      $region37: #{dla_forward.5} parent=15 // pred_check
        %p343 = pneg %p177
      $region38: #{dla_forward.5} parent=15 // pred_check_branch
        %345 = sbr.rel (%p343) target = $region40
      $region39: #{dla_forward.5} parent=15 // pred_region
        %p346 = scmp.lt.s32.totalorder %s27, 1
        %s347 = scalar_select %p346, %s27, 1
        %s348 = smul.addr %s347, 48
        %s349 = smul.addr %s348, 8
        %s350 = scalar_lea.vmem %s7, %s349
      $region40: #{dla_forward.5} parent=15 // pred_fallthru
        _
      // Predicated region
      $region41: #{dla_forward.5} parent=15 // pred_check
        %p351 = pneg %p203
      $region42: #{dla_forward.5} parent=15 // pred_check_branch
        %353 = sbr.rel (%p351) target = $region44
      $region43: #{dla_forward.5} parent=15 // pred_region
        %p354 = scmp.lt.s32.totalorder %s27, 1
        %s355 = scalar_select %p354, %s27, 1
        %s356 = smul.addr %s355, 3
        %s357 = scalar_lea.vmem %s8, %s356
      $region44: #{dla_forward.5} parent=15 // pred_fallthru
        _
      // Predicated region
      $region45: #{dla_forward.5} parent=15 // pred_check
        %p358 = pneg %p229
      $region46: #{dla_forward.5} parent=15 // pred_check_branch
        %360 = sbr.rel (%p358) target = $region48
      $region47: #{dla_forward.5} parent=15 // pred_region
        %p361 = scmp.lt.s32.totalorder %s27, 1
        %s362 = scalar_select %p361, %s27, 1
        %s363 = smul.addr %s362, 16
        %s364 = smul.addr %s363, 8
        %s365 = scalar_lea.vmem %s9, %s364
      $region48: #{dla_forward.5} parent=15 // pred_fallthru
        _
      // Predicated region
      $region49: #{dla_forward.5} parent=15 // pred_check
        %p366 = pneg %p255
      $region50: #{dla_forward.5} parent=15 // pred_check_branch
        %368 = sbr.rel (%p366) target = $region52
      $region51: #{dla_forward.5} parent=15 // pred_region
        %p369 = scmp.lt.s32.totalorder %s27, 1
        %s370 = scalar_select %p369, %s27, 1
        %s371 = scalar_lea.vmem %s10, %s370
      $region52: #{dla_forward.5} parent=15 // pred_fallthru
        _
    $region16: #{dla_forward.5} parent=5 // pred_fallthru
      _
    %p372 = scmp.le.s32.totalorder 1, %s27
    %p373 = scmp.lt.s32.totalorder %s27, 3
    %p374 = pnand %p372, %p373
    %p375 = pneg %p374
    // Predicated region
    $region53: #{dla_forward.5} parent=5 // pred_check
      _
    $region54: #{dla_forward.5} parent=5 // pred_check_branch
      %377 = sbr.rel (%p374) target = $region56
    $region55: #{dla_forward.5} parent=5 // pred_region
      %s378 = ssub.s32 %s27, 1
      %p379 = scmp.lt.s32.totalorder %s32, 1
      %s380 = scalar_select %p379, %s32, 1
      %s381 = smul.addr %s380, 2
      %s382 = scalar_lea.vmem %s2, %s381
      %p383 = pneg %p53
      %p384 = pneg %p50
      %p385 = scmp.lt.s32.totalorder %s32, 1
      %s386 = scalar_select %p385, %s32, 1
      %s387 = smul.addr %s386, 2
      %s388 = scalar_lea.vmem %s3, %s387
      %p389 = pneg %p79
      %p390 = pneg %p76
      %p391 = scmp.lt.s32.totalorder %s32, 1
      %s392 = scalar_select %p391, %s32, 1
      %s393 = smul.addr %s392, 16
      %s394 = smul.addr %s393, 8
      %s395 = scalar_lea.vmem %s4, %s394
      %p396 = pneg %p105
      %p397 = pneg %p102
      %p398 = scmp.lt.s32.totalorder %s32, 1
      %s399 = scalar_select %p398, %s32, 1
      %s400 = smul.addr %s399, 96
      %s401 = smul.addr %s400, 8
      %s402 = scalar_lea.vmem %s5, %s401
      %p403 = pneg %p131
      %p404 = pneg %p128
      %p405 = scmp.lt.s32.totalorder %s32, 1
      %s406 = scalar_select %p405, %s32, 1
      %s407 = smul.addr %s406, 3
      %s408 = scalar_lea.vmem %s6, %s407
      %p409 = pneg %p157
      %p410 = pneg %p154
      %p411 = scmp.lt.s32.totalorder %s32, 1
      %s412 = scalar_select %p411, %s32, 1
      %s413 = smul.addr %s412, 48
      %s414 = smul.addr %s413, 8
      %s415 = scalar_lea.vmem %s7, %s414
      %p416 = pneg %p183
      %p417 = pneg %p180
      %p418 = scmp.lt.s32.totalorder %s32, 1
      %s419 = scalar_select %p418, %s32, 1
      %s420 = smul.addr %s419, 3
      %s421 = scalar_lea.vmem %s8, %s420
      %p422 = pneg %p209
      %p423 = pneg %p206
      %p424 = scmp.lt.s32.totalorder %s32, 1
      %s425 = scalar_select %p424, %s32, 1
      %s426 = smul.addr %s425, 16
      %s427 = smul.addr %s426, 8
      %s428 = scalar_lea.vmem %s9, %s427
      %p429 = pneg %p235
      %p430 = pneg %p232
      %p431 = scmp.lt.s32.totalorder %s32, 1
      %s432 = scalar_select %p431, %s32, 1
      %s433 = scalar_lea.vmem %s10, %s432
      %p434 = pneg %p261
      %p435 = pneg %p258
      %p436 = pneg %p287
      %p437 = pneg %p284
      %p438 = scmp.lt.s32.totalorder %s32, 1
      %s439 = scalar_select %p438, %s32, 1
      %s440 = smul.addr %s439, 2
      %s441 = smul.addr %s440, 8
      %s442 = scalar_lea.vmem %s11, %s441
      %p443 = scmp.lt.s32.totalorder %s32, 1
      %s444 = scalar_select %p443, %s32, 1
      %s445 = smul.addr %s444, 2
      %s446 = scalar_lea.vmem %s2, %s445
      %p447 = scmp.lt.s32.totalorder %s32, 1
      %s448 = scalar_select %p447, %s32, 1
      %s449 = smul.addr %s448, 2
      %s450 = scalar_lea.vmem %s3, %s449
      %p451 = scmp.lt.s32.totalorder %s32, 1
      %s452 = scalar_select %p451, %s32, 1
      %s453 = smul.addr %s452, 16
      %s454 = smul.addr %s453, 8
      %s455 = scalar_lea.vmem %s4, %s454
      %p456 = scmp.lt.s32.totalorder %s32, 1
      %s457 = scalar_select %p456, %s32, 1
      %s458 = smul.addr %s457, 96
      %s459 = smul.addr %s458, 8
      %s460 = scalar_lea.vmem %s5, %s459
      %p461 = scmp.lt.s32.totalorder %s32, 1
      %s462 = scalar_select %p461, %s32, 1
      %s463 = smul.addr %s462, 3
      %s464 = scalar_lea.vmem %s6, %s463
      %p465 = scmp.lt.s32.totalorder %s32, 1
      %s466 = scalar_select %p465, %s32, 1
      %s467 = smul.addr %s466, 48
      %s468 = smul.addr %s467, 8
      %s469 = scalar_lea.vmem %s7, %s468
      %p470 = scmp.lt.s32.totalorder %s32, 1
      %s471 = scalar_select %p470, %s32, 1
      %s472 = smul.addr %s471, 3
      %s473 = scalar_lea.vmem %s8, %s472
      %p474 = scmp.lt.s32.totalorder %s32, 1
      %s475 = scalar_select %p474, %s32, 1
      %s476 = smul.addr %s475, 16
      %s477 = smul.addr %s476, 8
      %s478 = scalar_lea.vmem %s9, %s477
      %p479 = scmp.lt.s32.totalorder %s32, 1
      %s480 = scalar_select %p479, %s32, 1
      %s481 = scalar_lea.vmem %s10, %s480
      %p482 = scmp.lt.s32.totalorder %s32, 1
      %s483 = scalar_select %p482, %s32, 1
      %s484 = smul.addr %s483, 2
      %s485 = smul.addr %s484, 8
      %s486 = scalar_lea.vmem %s11, %s485
      %v487 = vlaneseq
      %v488 = vand.u32 %v487, 127
      %v489 = vld [vmem:[%s455] sm:$0xff]
      %v490 = vld [vmem:[%s455 + $0x8] sm:$0xff]
      %v491 = vld [vmem:[%s455 + $0x10] sm:$0xff]
      %v492 = vld [vmem:[%s455 + $0x18] sm:$0xff]
      %v493 = vld [vmem:[%s455 + $0x20] sm:$0xff]
      %v494 = vld [vmem:[%s455 + $0x28] sm:$0xff]
      %v495 = vld [vmem:[%s455 + $0x30] sm:$0xff]
      %v496 = vld [vmem:[%s455 + $0x38] sm:$0xff]
      %v497 = vld [vmem:[%s455 + $0x40] sm:$0xff]
      %v498 = vld [vmem:[%s455 + $0x48] sm:$0xff]
      %v499 = vld [vmem:[%s455 + $0x50] sm:$0xff]
      %v500 = vld [vmem:[%s455 + $0x58] sm:$0xff]
      %v501 = vld [vmem:[%s455 + $0x60] sm:$0xff]
      %v502 = vld [vmem:[%s455 + $0x68] sm:$0xff]
      %v503 = vld [vmem:[%s455 + $0x70] sm:$0xff]
      %v504 = vld [vmem:[%s455 + $0x78] sm:$0xff]
      %v505 = vld [vmem:[%s460] sm:$0xff]
      %v506 = vld [vmem:[%s460 + $0x8] sm:$0xff]
      %v507 = vld [vmem:[%s460 + $0x10] sm:$0xff]
      %v508 = vld [vmem:[%s460 + $0x18] sm:$0xff]
      %v509 = vld [vmem:[%s460 + $0x20] sm:$0xff]
      %v510 = vld [vmem:[%s460 + $0x28] sm:$0xff]
      %v511 = vld [vmem:[%s460 + $0x30] sm:$0xff]
      %v512 = vld [vmem:[%s460 + $0x38] sm:$0xff]
      %v513 = vld [vmem:[%s460 + $0x40] sm:$0xff]
      %v514 = vld [vmem:[%s460 + $0x48] sm:$0xff]
      %v515 = vld [vmem:[%s460 + $0x50] sm:$0xff]
      %v516 = vld [vmem:[%s460 + $0x58] sm:$0xff]
      %v517 = vld [vmem:[%s460 + $0x60] sm:$0xff]
      %v518 = vld [vmem:[%s460 + $0x68] sm:$0xff]
      %v519 = vld [vmem:[%s460 + $0x70] sm:$0xff]
      %v520 = vld [vmem:[%s460 + $0x78] sm:$0xff]
      %v521 = vld [vmem:[%s460 + $0x80] sm:$0xff]
      %v522 = vld [vmem:[%s460 + $0x88] sm:$0xff]
      %v523 = vld [vmem:[%s460 + $0x90] sm:$0xff]
      %v524 = vld [vmem:[%s460 + $0x98] sm:$0xff]
      %v525 = vld [vmem:[%s460 + $0xa0] sm:$0xff]
      %v526 = vld [vmem:[%s460 + $0xa8] sm:$0xff]
      %v527 = vld [vmem:[%s460 + $0xb0] sm:$0xff]
      %v528 = vld [vmem:[%s460 + $0xb8] sm:$0xff]
      %v529 = vld [vmem:[%s460 + $0xc0] sm:$0xff]
      %v530 = vld [vmem:[%s460 + $0xc8] sm:$0xff]
      %v531 = vld [vmem:[%s460 + $0xd0] sm:$0xff]
      %v532 = vld [vmem:[%s460 + $0xd8] sm:$0xff]
      %v533 = vld [vmem:[%s460 + $0xe0] sm:$0xff]
      %v534 = vld [vmem:[%s460 + $0xe8] sm:$0xff]
      %v535 = vld [vmem:[%s460 + $0xf0] sm:$0xff]
      %v536 = vld [vmem:[%s460 + $0xf8] sm:$0xff]
      %v537 = vld [vmem:[%s460 + $0x100] sm:$0xff]
      %v538 = vld [vmem:[%s460 + $0x108] sm:$0xff]
      %v539 = vld [vmem:[%s460 + $0x110] sm:$0xff]
      %v540 = vld [vmem:[%s460 + $0x118] sm:$0xff]
      %v541 = vld [vmem:[%s460 + $0x120] sm:$0xff]
      %v542 = vld [vmem:[%s460 + $0x128] sm:$0xff]
      %v543 = vld [vmem:[%s460 + $0x130] sm:$0xff]
      %v544 = vld [vmem:[%s460 + $0x138] sm:$0xff]
      %v545 = vld [vmem:[%s460 + $0x140] sm:$0xff]
      %v546 = vld [vmem:[%s460 + $0x148] sm:$0xff]
      %v547 = vld [vmem:[%s460 + $0x150] sm:$0xff]
      %v548 = vld [vmem:[%s460 + $0x158] sm:$0xff]
      %v549 = vld [vmem:[%s460 + $0x160] sm:$0xff]
      %v550 = vld [vmem:[%s460 + $0x168] sm:$0xff]
      %v551 = vld [vmem:[%s460 + $0x170] sm:$0xff]
      %v552 = vld [vmem:[%s460 + $0x178] sm:$0xff]
      %v553 = vld [vmem:[%s460 + $0x180] sm:$0xff]
      %v554 = vld [vmem:[%s460 + $0x188] sm:$0xff]
      %v555 = vld [vmem:[%s460 + $0x190] sm:$0xff]
      %v556 = vld [vmem:[%s460 + $0x198] sm:$0xff]
      %v557 = vld [vmem:[%s460 + $0x1a0] sm:$0xff]
      %v558 = vld [vmem:[%s460 + $0x1a8] sm:$0xff]
      %v559 = vld [vmem:[%s460 + $0x1b0] sm:$0xff]
      %v560 = vld [vmem:[%s460 + $0x1b8] sm:$0xff]
      %v561 = vld [vmem:[%s460 + $0x1c0] sm:$0xff]
      %v562 = vld [vmem:[%s460 + $0x1c8] sm:$0xff]
      %v563 = vld [vmem:[%s460 + $0x1d0] sm:$0xff]
      %v564 = vld [vmem:[%s460 + $0x1d8] sm:$0xff]
      %v565 = vld [vmem:[%s460 + $0x1e0] sm:$0xff]
      %v566 = vld [vmem:[%s460 + $0x1e8] sm:$0xff]
      %v567 = vld [vmem:[%s460 + $0x1f0] sm:$0xff]
      %v568 = vld [vmem:[%s460 + $0x1f8] sm:$0xff]
      %v569 = vld [vmem:[%s460 + $0x200] sm:$0xff]
      %v570 = vld [vmem:[%s460 + $0x208] sm:$0xff]
      %v571 = vld [vmem:[%s460 + $0x210] sm:$0xff]
      %v572 = vld [vmem:[%s460 + $0x218] sm:$0xff]
      %v573 = vld [vmem:[%s460 + $0x220] sm:$0xff]
      %v574 = vld [vmem:[%s460 + $0x228] sm:$0xff]
      %v575 = vld [vmem:[%s460 + $0x230] sm:$0xff]
      %v576 = vld [vmem:[%s460 + $0x238] sm:$0xff]
      %v577 = vld [vmem:[%s460 + $0x240] sm:$0xff]
      %v578 = vld [vmem:[%s460 + $0x248] sm:$0xff]
      %v579 = vld [vmem:[%s460 + $0x250] sm:$0xff]
      %v580 = vld [vmem:[%s460 + $0x258] sm:$0xff]
      %v581 = vld [vmem:[%s460 + $0x260] sm:$0xff]
      %v582 = vld [vmem:[%s460 + $0x268] sm:$0xff]
      %v583 = vld [vmem:[%s460 + $0x270] sm:$0xff]
      %v584 = vld [vmem:[%s460 + $0x278] sm:$0xff]
      %v585 = vld [vmem:[%s460 + $0x280] sm:$0xff]
      %v586 = vld [vmem:[%s460 + $0x288] sm:$0xff]
      %v587 = vld [vmem:[%s460 + $0x290] sm:$0xff]
      %v588 = vld [vmem:[%s460 + $0x298] sm:$0xff]
      %v589 = vld [vmem:[%s460 + $0x2a0] sm:$0xff]
      %v590 = vld [vmem:[%s460 + $0x2a8] sm:$0xff]
      %v591 = vld [vmem:[%s460 + $0x2b0] sm:$0xff]
      %v592 = vld [vmem:[%s460 + $0x2b8] sm:$0xff]
      %v593 = vld [vmem:[%s460 + $0x2c0] sm:$0xff]
      %v594 = vld [vmem:[%s460 + $0x2c8] sm:$0xff]
      %v595 = vld [vmem:[%s460 + $0x2d0] sm:$0xff]
      %v596 = vld [vmem:[%s460 + $0x2d8] sm:$0xff]
      %v597 = vld [vmem:[%s460 + $0x2e0] sm:$0xff]
      %v598 = vld [vmem:[%s460 + $0x2e8] sm:$0xff]
      %v599 = vld [vmem:[%s460 + $0x2f0] sm:$0xff]
      %v600 = vld [vmem:[%s460 + $0x2f8] sm:$0xff]
      %v601 = vld [vmem:[%s464] sm:$0x7]
      %v602 = vld [vmem:[%s469] sm:$0xff]
      %v603 = vld [vmem:[%s469 + $0x8] sm:$0xff]
      %v604 = vld [vmem:[%s469 + $0x10] sm:$0xff]
      %v605 = vld [vmem:[%s469 + $0x18] sm:$0xff]
      %v606 = vld [vmem:[%s469 + $0x20] sm:$0xff]
      %v607 = vld [vmem:[%s469 + $0x28] sm:$0xff]
      %v608 = vld [vmem:[%s469 + $0x30] sm:$0xff]
      %v609 = vld [vmem:[%s469 + $0x38] sm:$0xff]
      %v610 = vld [vmem:[%s469 + $0x40] sm:$0xff]
      %v611 = vld [vmem:[%s469 + $0x48] sm:$0xff]
      %v612 = vld [vmem:[%s469 + $0x50] sm:$0xff]
      %v613 = vld [vmem:[%s469 + $0x58] sm:$0xff]
      %v614 = vld [vmem:[%s469 + $0x60] sm:$0xff]
      %v615 = vld [vmem:[%s469 + $0x68] sm:$0xff]
      %v616 = vld [vmem:[%s469 + $0x70] sm:$0xff]
      %v617 = vld [vmem:[%s469 + $0x78] sm:$0xff]
      %v618 = vld [vmem:[%s469 + $0x80] sm:$0xff]
      %v619 = vld [vmem:[%s469 + $0x88] sm:$0xff]
      %v620 = vld [vmem:[%s469 + $0x90] sm:$0xff]
      %v621 = vld [vmem:[%s469 + $0x98] sm:$0xff]
      %v622 = vld [vmem:[%s469 + $0xa0] sm:$0xff]
      %v623 = vld [vmem:[%s469 + $0xa8] sm:$0xff]
      %v624 = vld [vmem:[%s469 + $0xb0] sm:$0xff]
      %v625 = vld [vmem:[%s469 + $0xb8] sm:$0xff]
      %v626 = vld [vmem:[%s469 + $0xc0] sm:$0xff]
      %v627 = vld [vmem:[%s469 + $0xc8] sm:$0xff]
      %v628 = vld [vmem:[%s469 + $0xd0] sm:$0xff]
      %v629 = vld [vmem:[%s469 + $0xd8] sm:$0xff]
      %v630 = vld [vmem:[%s469 + $0xe0] sm:$0xff]
      %v631 = vld [vmem:[%s469 + $0xe8] sm:$0xff]
      %v632 = vld [vmem:[%s469 + $0xf0] sm:$0xff]
      %v633 = vld [vmem:[%s469 + $0xf8] sm:$0xff]
      %v634 = vld [vmem:[%s469 + $0x100] sm:$0xff]
      %v635 = vld [vmem:[%s469 + $0x108] sm:$0xff]
      %v636 = vld [vmem:[%s469 + $0x110] sm:$0xff]
      %v637 = vld [vmem:[%s469 + $0x118] sm:$0xff]
      %v638 = vld [vmem:[%s469 + $0x120] sm:$0xff]
      %v639 = vld [vmem:[%s469 + $0x128] sm:$0xff]
      %v640 = vld [vmem:[%s469 + $0x130] sm:$0xff]
      %v641 = vld [vmem:[%s469 + $0x138] sm:$0xff]
      %v642 = vld [vmem:[%s469 + $0x140] sm:$0xff]
      %v643 = vld [vmem:[%s469 + $0x148] sm:$0xff]
      %v644 = vld [vmem:[%s469 + $0x150] sm:$0xff]
      %v645 = vld [vmem:[%s469 + $0x158] sm:$0xff]
      %v646 = vld [vmem:[%s469 + $0x160] sm:$0xff]
      %v647 = vld [vmem:[%s469 + $0x168] sm:$0xff]
      %v648 = vld [vmem:[%s469 + $0x170] sm:$0xff]
      %v649 = vld [vmem:[%s469 + $0x178] sm:$0xff]
      %v650 = vld [vmem:[%s473] sm:$0x7]
      %v651 = vld [vmem:[%s478] sm:$0xff]
      %v652 = vld [vmem:[%s478 + $0x8] sm:$0xff]
      %v653 = vld [vmem:[%s478 + $0x10] sm:$0xff]
      %v654 = vld [vmem:[%s478 + $0x18] sm:$0xff]
      %v655 = vld [vmem:[%s478 + $0x20] sm:$0xff]
      %v656 = vld [vmem:[%s478 + $0x28] sm:$0xff]
      %v657 = vld [vmem:[%s478 + $0x30] sm:$0xff]
      %v658 = vld [vmem:[%s478 + $0x38] sm:$0xff]
      %v659 = vld [vmem:[%s478 + $0x40] sm:$0xff]
      %v660 = vld [vmem:[%s478 + $0x48] sm:$0xff]
      %v661 = vld [vmem:[%s478 + $0x50] sm:$0xff]
      %v662 = vld [vmem:[%s478 + $0x58] sm:$0xff]
      %v663 = vld [vmem:[%s478 + $0x60] sm:$0xff]
      %v664 = vld [vmem:[%s478 + $0x68] sm:$0xff]
      %v665 = vld [vmem:[%s478 + $0x70] sm:$0xff]
      %v666 = vld [vmem:[%s478 + $0x78] sm:$0xff]
      %v667 = vld [vmem:[%s481] sm:$0x1]
      %v668 = vld [vmem:[%s450] sm:$0x3]
      %v669 = vld [vmem:[%s446] sm:$0x3]
      %s670 = smul.u32 %s32, 128
      %s671 = sld [smem:[#allocation4 + %s670]]
      %v672 = vstv %s671
      %vm673 = vcmp.eq.s32.totalorder %v488, %v672
      %v674 = vsel %vm673, 1, 0
      %v675 = vcvt.s32.f32 %v674
      %s676 = sadd.s32 %s670, 1
      %s677 = sld [smem:[#allocation4 + %s676]]
      %v678 = vstv %s677
      %vm679 = vcmp.eq.s32.totalorder %v488, %v678
      %v680 = vsel %vm679, 1, 0
      %v681 = vcvt.s32.f32 %v680
      %vm682 = vcmask 1040384
      %v683 = vsel %vm682, %v675, %v681
      %684 = vmatprep.subr.mxu0 0.0
      %685 = vmatpush1.msra.mxu0 %v489
      %686 = vmatprep.subr.mxu0 0.0
      %687 = vmatpush1.msra.mxu0 %v490
      %688 = vmatprep.subr.mxu0 0.0
      %689 = vmatpush1.msra.mxu0 %v491
      %690 = vmatprep.subr.mxu0 0.0
      %691 = vmatpush1.msra.mxu0 %v492
      %692 = vmatprep.subr.mxu0 0.0
      %693 = vmatpush1.msra.mxu0 %v493
      %694 = vmatprep.subr.mxu0 0.0
      %695 = vmatpush1.msra.mxu0 %v494
      %696 = vmatprep.subr.mxu0 0.0
      %697 = vmatpush1.msra.mxu0 %v495
      %698 = vmatprep.subr.mxu0 0.0
      %699 = vmatpush1.msra.mxu0 %v496
      %700 = vmatprep.subr.mxu0 0.0
      %701 = vmatpush1.msra.mxu0 %v497
      %702 = vmatprep.subr.mxu0 0.0
      %703 = vmatpush1.msra.mxu0 %v498
      %704 = vmatprep.subr.mxu0 0.0
      %705 = vmatpush1.msra.mxu0 %v499
      %706 = vmatprep.subr.mxu0 0.0
      %707 = vmatpush1.msra.mxu0 %v500
      %708 = vmatprep.subr.mxu0 0.0
      %709 = vmatpush1.msra.mxu0 %v501
      %710 = vmatprep.subr.mxu0 0.0
      %711 = vmatpush1.msra.mxu0 %v502
      %712 = vmatprep.subr.mxu0 0.0
      %713 = vmatpush1.msra.mxu0 %v503
      %714 = vmatprep.subr.mxu0 0.0
      %715 = vmatpush1.msra.mxu0 %v504
      %716 = vmatprep.subr.mxu0 0.0
      %717 = vmatpush1.msra.mxu0 0.0
      %718 = vmatprep.subr.mxu0 0.0
      %719 = vmatpush1.msra.mxu0 0.0
      %720 = vmatprep.subr.mxu0 0.0
      %721 = vmatpush1.msra.mxu0 0.0
      %722 = vmatprep.subr.mxu0 0.0
      %723 = vmatpush1.msra.mxu0 0.0
      %724 = vmatprep.subr.mxu0 0.0
      %725 = vmatpush1.msra.mxu0 0.0
      %726 = vmatprep.subr.mxu0 0.0
      %727 = vmatpush1.msra.mxu0 0.0
      %728 = vmatprep.subr.mxu0 0.0
      %729 = vmatpush1.msra.mxu0 0.0
      %730 = vmatprep.subr.mxu0 0.0
      %731 = vmatpush1.msra.mxu0 0.0
      %732 = vmatprep.subr.mxu0 0.0
      %733 = vmatpush1.msra.mxu0 0.0
      %734 = vmatprep.subr.mxu0 0.0
      %735 = vmatpush1.msra.mxu0 0.0
      %736 = vmatprep.subr.mxu0 0.0
      %737 = vmatpush1.msra.mxu0 0.0
      %738 = vmatprep.subr.mxu0 0.0
      %739 = vmatpush1.msra.mxu0 0.0
      %740 = vmatprep.subr.mxu0 0.0
      %741 = vmatpush1.msra.mxu0 0.0
      %742 = vmatprep.subr.mxu0 0.0
      %743 = vmatpush1.msra.mxu0 0.0
      %744 = vmatprep.subr.mxu0 0.0
      %745 = vmatpush1.msra.mxu0 0.0
      %746 = vmatprep.subr.mxu0 0.0
      %747 = vmatpush1.msra.mxu0 0.0
      %748 = vmatprep.mubr.f32.mxu0 0.0
      %749 = vmatmul.mubr.f32.gmra.mrb[0].mxu0 %v683
      %v750 = vpop.f32.mrb[0].mxu0
      %v751 = vadd.f32 0.0, %v750
      %v752 = vpop.f32.mrb[0].mxu0
      %753 = vdwg.mxu0
      %v755 = vlaneseq
      %v756 = vshrl.u32 %v755, 7
      %v757 = vsub.s32 0, %v756
      %v758 = vrot.slane %v601, %v757
      %v759 = vlaneseq
      %v760 = vshrl.u32 %v759, 7
      %v761 = vsub.s32 1, %v760
      %v762 = vrot.slane %v601, %v761
      %v763 = vlaneseq
      %v764 = vshrl.u32 %v763, 7
      %v765 = vsub.s32 2, %v764
      %v766 = vrot.slane %v601, %v765
      %770 = vmatprep.subr.mxu0 %v506
      %771 = vmatpush1.msra.mxu0 %v505
      %772 = vmatprep.subr.mxu0 %v509
      %773 = vmatpush1.msra.mxu0 %v508
      %774 = vmatprep.subr.mxu0 %v512
      %775 = vmatpush1.msra.mxu0 %v511
      %776 = vmatprep.subr.mxu0 %v515
      %777 = vmatpush1.msra.mxu0 %v514
      %778 = vmatprep.subr.mxu0 %v518
      %779 = vmatpush1.msra.mxu0 %v517
      %780 = vmatprep.subr.mxu0 %v521
      %781 = vmatpush1.msra.mxu0 %v520
      %782 = vmatprep.subr.mxu0 %v524
      %783 = vmatpush1.msra.mxu0 %v523
      %784 = vmatprep.subr.mxu0 %v527
      %785 = vmatpush1.msra.mxu0 %v526
      %786 = vmatprep.subr.mxu0 %v530
      %787 = vmatpush1.msra.mxu0 %v529
      %788 = vmatprep.subr.mxu0 %v533
      %789 = vmatpush1.msra.mxu0 %v532
      %790 = vmatprep.subr.mxu0 %v536
      %791 = vmatpush1.msra.mxu0 %v535
      %792 = vmatprep.subr.mxu0 %v539
      %793 = vmatpush1.msra.mxu0 %v538
      %794 = vmatprep.subr.mxu0 %v542
      %795 = vmatpush1.msra.mxu0 %v541
      %796 = vmatprep.subr.mxu0 %v545
      %797 = vmatpush1.msra.mxu0 %v544
      %798 = vmatprep.subr.mxu0 %v548
      %799 = vmatpush1.msra.mxu0 %v547
      %800 = vmatprep.subr.mxu0 %v551
      %801 = vmatpush1.msra.mxu0 %v550
      %802 = vmatprep.subr.mxu0 %v554
      %803 = vmatpush1.msra.mxu0 %v553
      %804 = vmatprep.subr.mxu0 %v557
      %805 = vmatpush1.msra.mxu0 %v556
      %806 = vmatprep.subr.mxu0 %v560
      %807 = vmatpush1.msra.mxu0 %v559
      %808 = vmatprep.subr.mxu0 %v563
      %809 = vmatpush1.msra.mxu0 %v562
      %810 = vmatprep.subr.mxu0 %v566
      %811 = vmatpush1.msra.mxu0 %v565
      %812 = vmatprep.subr.mxu0 %v569
      %813 = vmatpush1.msra.mxu0 %v568
      %814 = vmatprep.subr.mxu0 %v572
      %815 = vmatpush1.msra.mxu0 %v571
      %816 = vmatprep.subr.mxu0 %v575
      %817 = vmatpush1.msra.mxu0 %v574
      %818 = vmatprep.subr.mxu0 %v578
      %819 = vmatpush1.msra.mxu0 %v577
      %820 = vmatprep.subr.mxu0 %v581
      %821 = vmatpush1.msra.mxu0 %v580
      %822 = vmatprep.subr.mxu0 %v584
      %823 = vmatpush1.msra.mxu0 %v583
      %824 = vmatprep.subr.mxu0 %v587
      %825 = vmatpush1.msra.mxu0 %v586
      %826 = vmatprep.subr.mxu0 %v590
      %827 = vmatpush1.msra.mxu0 %v589
      %828 = vmatprep.subr.mxu0 %v593
      %829 = vmatpush1.msra.mxu0 %v592
      %830 = vmatprep.subr.mxu0 %v596
      %831 = vmatpush1.msra.mxu0 %v595
      %832 = vmatprep.subr.mxu0 %v599
      %833 = vmatpush1.msra.mxu0 %v598
      %834 = vmatprep.mubr.f32.mxu0 %v668
      %835 = vmatmul.mubr.f32.gmra.mrb[0].mxu0 %v751
      %v836 = vpop.f32.mrb[0].mxu0
      %v837 = vadd.f32 %v758, %v836
      %v838 = vpop.f32.mrb[0].mxu0
      %v839 = vadd.f32 %v762, %v838
      %840 = vdwg.mxu0
      %841 = vmatprep.subr.mxu0 0.0
      %842 = vmatpush1.msra.mxu0 %v507
      %843 = vmatprep.subr.mxu0 0.0
      %844 = vmatpush1.msra.mxu0 %v510
      %845 = vmatprep.subr.mxu0 0.0
      %846 = vmatpush1.msra.mxu0 %v513
      %847 = vmatprep.subr.mxu0 0.0
      %848 = vmatpush1.msra.mxu0 %v516
      %849 = vmatprep.subr.mxu0 0.0
      %850 = vmatpush1.msra.mxu0 %v519
      %851 = vmatprep.subr.mxu0 0.0
      %852 = vmatpush1.msra.mxu0 %v522
      %853 = vmatprep.subr.mxu0 0.0
      %854 = vmatpush1.msra.mxu0 %v525
      %855 = vmatprep.subr.mxu0 0.0
      %856 = vmatpush1.msra.mxu0 %v528
      %857 = vmatprep.subr.mxu0 0.0
      %858 = vmatpush1.msra.mxu0 %v531
      %859 = vmatprep.subr.mxu0 0.0
      %860 = vmatpush1.msra.mxu0 %v534
      %861 = vmatprep.subr.mxu0 0.0
      %862 = vmatpush1.msra.mxu0 %v537
      %863 = vmatprep.subr.mxu0 0.0
      %864 = vmatpush1.msra.mxu0 %v540
      %865 = vmatprep.subr.mxu0 0.0
      %866 = vmatpush1.msra.mxu0 %v543
      %867 = vmatprep.subr.mxu0 0.0
      %868 = vmatpush1.msra.mxu0 %v546
      %869 = vmatprep.subr.mxu0 0.0
      %870 = vmatpush1.msra.mxu0 %v549
      %871 = vmatprep.subr.mxu0 0.0
      %872 = vmatpush1.msra.mxu0 %v552
      %873 = vmatprep.subr.mxu0 0.0
      %874 = vmatpush1.msra.mxu0 %v555
      %875 = vmatprep.subr.mxu0 0.0
      %876 = vmatpush1.msra.mxu0 %v558
      %877 = vmatprep.subr.mxu0 0.0
      %878 = vmatpush1.msra.mxu0 %v561
      %879 = vmatprep.subr.mxu0 0.0
      %880 = vmatpush1.msra.mxu0 %v564
      %881 = vmatprep.subr.mxu0 0.0
      %882 = vmatpush1.msra.mxu0 %v567
      %883 = vmatprep.subr.mxu0 0.0
      %884 = vmatpush1.msra.mxu0 %v570
      %885 = vmatprep.subr.mxu0 0.0
      %886 = vmatpush1.msra.mxu0 %v573
      %887 = vmatprep.subr.mxu0 0.0
      %888 = vmatpush1.msra.mxu0 %v576
      %889 = vmatprep.subr.mxu0 0.0
      %890 = vmatpush1.msra.mxu0 %v579
      %891 = vmatprep.subr.mxu0 0.0
      %892 = vmatpush1.msra.mxu0 %v582
      %893 = vmatprep.subr.mxu0 0.0
      %894 = vmatpush1.msra.mxu0 %v585
      %895 = vmatprep.subr.mxu0 0.0
      %896 = vmatpush1.msra.mxu0 %v588
      %897 = vmatprep.subr.mxu0 0.0
      %898 = vmatpush1.msra.mxu0 %v591
      %899 = vmatprep.subr.mxu0 0.0
      %900 = vmatpush1.msra.mxu0 %v594
      %901 = vmatprep.subr.mxu0 0.0
      %902 = vmatpush1.msra.mxu0 %v597
      %903 = vmatprep.subr.mxu0 0.0
      %904 = vmatpush1.msra.mxu0 %v600
      %905 = vmatprep.mubr.f32.mxu0 %v668
      %906 = vmatmul.mubr.f32.gmra.mrb[0].mxu0 %v751
      %v907 = vpop.f32.mrb[0].mxu0
      %v908 = vadd.f32 %v766, %v907
      %v909 = vpop.f32.mrb[0].mxu0
      %910 = vdwg.mxu0
      %v912 = vlaneseq
      %v913 = vshrl.u32 %v912, 7
      %v914 = vsub.s32 0, %v913
      %v915 = vrot.slane %v650, %v914
      %v916 = vlaneseq
      %v917 = vshrl.u32 %v916, 7
      %v918 = vsub.s32 1, %v917
      %v919 = vrot.slane %v650, %v918
      %v920 = vlaneseq
      %v921 = vshrl.u32 %v920, 7
      %v922 = vsub.s32 2, %v921
      %v923 = vrot.slane %v650, %v922
      %927 = vmatprep.subr.mxu0 %v603
      %928 = vmatpush1.msra.mxu0 %v602
      %929 = vmatprep.subr.mxu0 %v606
      %930 = vmatpush1.msra.mxu0 %v605
      %931 = vmatprep.subr.mxu0 %v609
      %932 = vmatpush1.msra.mxu0 %v608
      %933 = vmatprep.subr.mxu0 %v612
      %934 = vmatpush1.msra.mxu0 %v611
      %935 = vmatprep.subr.mxu0 %v615
      %936 = vmatpush1.msra.mxu0 %v614
      %937 = vmatprep.subr.mxu0 %v618
      %938 = vmatpush1.msra.mxu0 %v617
      %939 = vmatprep.subr.mxu0 %v621
      %940 = vmatpush1.msra.mxu0 %v620
      %941 = vmatprep.subr.mxu0 %v624
      %942 = vmatpush1.msra.mxu0 %v623
      %943 = vmatprep.subr.mxu0 %v627
      %944 = vmatpush1.msra.mxu0 %v626
      %945 = vmatprep.subr.mxu0 %v630
      %946 = vmatpush1.msra.mxu0 %v629
      %947 = vmatprep.subr.mxu0 %v633
      %948 = vmatpush1.msra.mxu0 %v632
      %949 = vmatprep.subr.mxu0 %v636
      %950 = vmatpush1.msra.mxu0 %v635
      %951 = vmatprep.subr.mxu0 %v639
      %952 = vmatpush1.msra.mxu0 %v638
      %953 = vmatprep.subr.mxu0 %v642
      %954 = vmatpush1.msra.mxu0 %v641
      %955 = vmatprep.subr.mxu0 %v645
      %956 = vmatpush1.msra.mxu0 %v644
      %957 = vmatprep.subr.mxu0 %v648
      %958 = vmatpush1.msra.mxu0 %v647
      %959 = vmatprep.subr.mxu0 0.0
      %960 = vmatpush1.msra.mxu0 0.0
      %961 = vmatprep.subr.mxu0 0.0
      %962 = vmatpush1.msra.mxu0 0.0
      %963 = vmatprep.subr.mxu0 0.0
      %964 = vmatpush1.msra.mxu0 0.0
      %965 = vmatprep.subr.mxu0 0.0
      %966 = vmatpush1.msra.mxu0 0.0
      %967 = vmatprep.subr.mxu0 0.0
      %968 = vmatpush1.msra.mxu0 0.0
      %969 = vmatprep.subr.mxu0 0.0
      %970 = vmatpush1.msra.mxu0 0.0
      %971 = vmatprep.subr.mxu0 0.0
      %972 = vmatpush1.msra.mxu0 0.0
      %973 = vmatprep.subr.mxu0 0.0
      %974 = vmatpush1.msra.mxu0 0.0
      %975 = vmatprep.subr.mxu0 0.0
      %976 = vmatpush1.msra.mxu0 0.0
      %977 = vmatprep.subr.mxu0 0.0
      %978 = vmatpush1.msra.mxu0 0.0
      %979 = vmatprep.subr.mxu0 0.0
      %980 = vmatpush1.msra.mxu0 0.0
      %981 = vmatprep.subr.mxu0 0.0
      %982 = vmatpush1.msra.mxu0 0.0
      %983 = vmatprep.subr.mxu0 0.0
      %984 = vmatpush1.msra.mxu0 0.0
      %985 = vmatprep.subr.mxu0 0.0
      %986 = vmatpush1.msra.mxu0 0.0
      %987 = vmatprep.subr.mxu0 0.0
      %988 = vmatpush1.msra.mxu0 0.0
      %989 = vmatprep.subr.mxu0 0.0
      %990 = vmatpush1.msra.mxu0 0.0
      %991 = vmatprep.mubr.f32.mxu0 0.0
      %992 = vmatmul.mubr.f32.gmra.mrb[0].mxu0 %v669
      %v993 = vpop.f32.mrb[0].mxu0
      %v994 = vadd.f32 %v915, %v993
      %v995 = vpop.f32.mrb[0].mxu0
      %v996 = vadd.f32 %v919, %v995
      %997 = vdwg.mxu0
      %998 = vmatprep.subr.mxu0 0.0
      %999 = vmatpush1.msra.mxu0 %v604
      %1000 = vmatprep.subr.mxu0 0.0
      %1001 = vmatpush1.msra.mxu0 %v607
      %1002 = vmatprep.subr.mxu0 0.0
      %1003 = vmatpush1.msra.mxu0 %v610
      %1004 = vmatprep.subr.mxu0 0.0
      %1005 = vmatpush1.msra.mxu0 %v613
      %1006 = vmatprep.subr.mxu0 0.0
      %1007 = vmatpush1.msra.mxu0 %v616
      %1008 = vmatprep.subr.mxu0 0.0
      %1009 = vmatpush1.msra.mxu0 %v619
      %1010 = vmatprep.subr.mxu0 0.0
      %1011 = vmatpush1.msra.mxu0 %v622
      %1012 = vmatprep.subr.mxu0 0.0
      %1013 = vmatpush1.msra.mxu0 %v625
      %1014 = vmatprep.subr.mxu0 0.0
      %1015 = vmatpush1.msra.mxu0 %v628
      %1016 = vmatprep.subr.mxu0 0.0
      %1017 = vmatpush1.msra.mxu0 %v631
      %1018 = vmatprep.subr.mxu0 0.0
      %1019 = vmatpush1.msra.mxu0 %v634
      %1020 = vmatprep.subr.mxu0 0.0
      %1021 = vmatpush1.msra.mxu0 %v637
      %1022 = vmatprep.subr.mxu0 0.0
      %1023 = vmatpush1.msra.mxu0 %v640
      %1024 = vmatprep.subr.mxu0 0.0
      %1025 = vmatpush1.msra.mxu0 %v643
      %1026 = vmatprep.subr.mxu0 0.0
      %1027 = vmatpush1.msra.mxu0 %v646
      %1028 = vmatprep.subr.mxu0 0.0
      %1029 = vmatpush1.msra.mxu0 %v649
      %1030 = vmatprep.subr.mxu0 0.0
      %1031 = vmatpush1.msra.mxu0 0.0
      %1032 = vmatprep.subr.mxu0 0.0
      %1033 = vmatpush1.msra.mxu0 0.0
      %1034 = vmatprep.subr.mxu0 0.0
      %1035 = vmatpush1.msra.mxu0 0.0
      %1036 = vmatprep.subr.mxu0 0.0
      %1037 = vmatpush1.msra.mxu0 0.0
      %1038 = vmatprep.subr.mxu0 0.0
      %1039 = vmatpush1.msra.mxu0 0.0
      %1040 = vmatprep.subr.mxu0 0.0
      %1041 = vmatpush1.msra.mxu0 0.0
      %1042 = vmatprep.subr.mxu0 0.0
      %1043 = vmatpush1.msra.mxu0 0.0
      %1044 = vmatprep.subr.mxu0 0.0
      %1045 = vmatpush1.msra.mxu0 0.0
      %1046 = vmatprep.subr.mxu0 0.0
      %1047 = vmatpush1.msra.mxu0 0.0
      %1048 = vmatprep.subr.mxu0 0.0
      %1049 = vmatpush1.msra.mxu0 0.0
      %1050 = vmatprep.subr.mxu0 0.0
      %1051 = vmatpush1.msra.mxu0 0.0
      %1052 = vmatprep.subr.mxu0 0.0
      %1053 = vmatpush1.msra.mxu0 0.0
      %1054 = vmatprep.subr.mxu0 0.0
      %1055 = vmatpush1.msra.mxu0 0.0
      %1056 = vmatprep.subr.mxu0 0.0
      %1057 = vmatpush1.msra.mxu0 0.0
      %1058 = vmatprep.subr.mxu0 0.0
      %1059 = vmatpush1.msra.mxu0 0.0
      %1060 = vmatprep.subr.mxu0 0.0
      %1061 = vmatpush1.msra.mxu0 0.0
      %1062 = vmatprep.mubr.f32.mxu0 0.0
      %1063 = vmatmul.mubr.f32.gmra.mrb[0].mxu0 %v669
      %v1064 = vpop.f32.mrb[0].mxu0
      %v1065 = vadd.f32 %v923, %v1064
      %v1066 = vpop.f32.mrb[0].mxu0
      %1067 = vdwg.mxu0
      %v1068 = vadd.f32 %v837, %v994
      %v1069 = vxor.u32 %v1068, 2147483648
      %v1070 = vmul.f32 %v1069, 1.442695
      %v1071 = vpow.pop %v1070
      %v1072 = vadd.f32 %v1071, 1.0
      %v1073 = vrcp.pop %v1072
      %v1074 = vmul.f32 1.0, %v1073
      %v1075 = vadd.f32 %v839, %v996
      %v1076 = vxor.u32 %v1075, 2147483648
      %v1077 = vmul.f32 %v1076, 1.442695
      %v1078 = vpow.pop %v1077
      %v1079 = vadd.f32 %v1078, 1.0
      %v1080 = vrcp.pop %v1079
      %v1081 = vmul.f32 1.0, %v1080
      %v1082 = vmul.f32 %v1074, %v1065
      %v1083 = vadd.f32 %v908, %v1082
      %v1084 = vtanh.pop %v1083
      %v1085 = vsub.f32 1.0, %v1081
      %v1086 = vmul.f32 %v1085, %v1084
      %v1087 = vmul.f32 %v1081, %v669
      %v1088 = vadd.f32 %v1086, %v1087
      %v1090 = vlaneseq
      %v1091 = vshrl.u32 %v1090, 7
      %v1092 = vsub.s32 0, %v1091
      %v1093 = vrot.slane %v667, %v1092
      %1095 = vmatprep.subr.mxu0 0.0
      %1096 = vmatpush1.msra.mxu0 %v651
      %1097 = vmatprep.subr.mxu0 0.0
      %1098 = vmatpush1.msra.mxu0 %v652
      %1099 = vmatprep.subr.mxu0 0.0
      %1100 = vmatpush1.msra.mxu0 %v653
      %1101 = vmatprep.subr.mxu0 0.0
      %1102 = vmatpush1.msra.mxu0 %v654
      %1103 = vmatprep.subr.mxu0 0.0
      %1104 = vmatpush1.msra.mxu0 %v655
      %1105 = vmatprep.subr.mxu0 0.0
      %1106 = vmatpush1.msra.mxu0 %v656
      %1107 = vmatprep.subr.mxu0 0.0
      %1108 = vmatpush1.msra.mxu0 %v657
      %1109 = vmatprep.subr.mxu0 0.0
      %1110 = vmatpush1.msra.mxu0 %v658
      %1111 = vmatprep.subr.mxu0 0.0
      %1112 = vmatpush1.msra.mxu0 %v659
      %1113 = vmatprep.subr.mxu0 0.0
      %1114 = vmatpush1.msra.mxu0 %v660
      %1115 = vmatprep.subr.mxu0 0.0
      %1116 = vmatpush1.msra.mxu0 %v661
      %1117 = vmatprep.subr.mxu0 0.0
      %1118 = vmatpush1.msra.mxu0 %v662
      %1119 = vmatprep.subr.mxu0 0.0
      %1120 = vmatpush1.msra.mxu0 %v663
      %1121 = vmatprep.subr.mxu0 0.0
      %1122 = vmatpush1.msra.mxu0 %v664
      %1123 = vmatprep.subr.mxu0 0.0
      %1124 = vmatpush1.msra.mxu0 %v665
      %1125 = vmatprep.subr.mxu0 0.0
      %1126 = vmatpush1.msra.mxu0 %v666
      %1127 = vmatprep.subr.mxu0 0.0
      %1128 = vmatpush1.msra.mxu0 0.0
      %1129 = vmatprep.subr.mxu0 0.0
      %1130 = vmatpush1.msra.mxu0 0.0
      %1131 = vmatprep.subr.mxu0 0.0
      %1132 = vmatpush1.msra.mxu0 0.0
      %1133 = vmatprep.subr.mxu0 0.0
      %1134 = vmatpush1.msra.mxu0 0.0
      %1135 = vmatprep.subr.mxu0 0.0
      %1136 = vmatpush1.msra.mxu0 0.0
      %1137 = vmatprep.subr.mxu0 0.0
      %1138 = vmatpush1.msra.mxu0 0.0
      %1139 = vmatprep.subr.mxu0 0.0
      %1140 = vmatpush1.msra.mxu0 0.0
      %1141 = vmatprep.subr.mxu0 0.0
      %1142 = vmatpush1.msra.mxu0 0.0
      %1143 = vmatprep.subr.mxu0 0.0
      %1144 = vmatpush1.msra.mxu0 0.0
      %1145 = vmatprep.subr.mxu0 0.0
      %1146 = vmatpush1.msra.mxu0 0.0
      %1147 = vmatprep.subr.mxu0 0.0
      %1148 = vmatpush1.msra.mxu0 0.0
      %1149 = vmatprep.subr.mxu0 0.0
      %1150 = vmatpush1.msra.mxu0 0.0
      %1151 = vmatprep.subr.mxu0 0.0
      %1152 = vmatpush1.msra.mxu0 0.0
      %1153 = vmatprep.subr.mxu0 0.0
      %1154 = vmatpush1.msra.mxu0 0.0
      %1155 = vmatprep.subr.mxu0 0.0
      %1156 = vmatpush1.msra.mxu0 0.0
      %1157 = vmatprep.subr.mxu0 0.0
      %1158 = vmatpush1.msra.mxu0 0.0
      %1159 = vmatprep.mubr.f32.mxu0 0.0
      %1160 = vmatmul.mubr.f32.gmra.mrb[0].mxu0 %v1088
      %v1161 = vpop.f32.mrb[0].mxu0
      %v1162 = vadd.f32 %v1093, %v1161
      %v1163 = vpop.f32.mrb[0].mxu0
      %1164 = vdwg.mxu0
      %v1167 = vunpack.c.l.s4 1966171168
      %v1168 = vunpack.c.0.s8 %v1167
      %v1169 = vlaneseq
      %v1170 = vshrl.u32 %v1169, 7
      %v1171 = vsub.s32 %v1168, %v1170
      %v1172 = vrot.slane %v1162, %v1171
      %v1173 = vcombine.high %v1172, %v1172
      %v1175 = vunpack.c.l.s4 1966171168
      %v1176 = vunpack.c.0.s8 %v1175
      %v1177 = vlaneseq
      %v1178 = vshrl.u32 %v1177, 7
      %v1179 = vsub.s32 %v1176, %v1178
      %v1180 = vrot.slane %v1172, %v1179
      %v1182 = vunpack.c.l.s4 1966171168
      %v1183 = vunpack.c.0.s8 %v1182
      %v1184 = vlaneseq
      %v1185 = vshrl.u32 %v1184, 7
      %v1186 = vsub.s32 %v1183, %v1185
      %v1187 = vrot.slane %v1173, %v1186
      %1190 = vst [vmem:[%s486] sm:$0x1] %v1180
      %1191 = vst [vmem:[%s486 + $0x8] sm:$0x1] %v1187
      %vm1192 = vcmask 1041408
      %v1193 = vsel %vm1192, %v1162, -inf
      %1194 = vmax.xlane.f32.xlu0 %v1193
      %v1195 = vpop.xlane.xlu0 %1194
      %vm1196 = vcmp.ge.f32.partialorder %v1162, %v1195
      %v1197 = vsel %vm1196, %v488, 128
      %v1198 = vsel %vm1192, %v1197, 2147483647
      %v1199 = vand.u32 %v1198, 65535
      %v1200 = vshra.s32 %v1198, 16
      %v1201 = vcvt.s32.f32 %v1199
      %v1202 = vcvt.s32.f32 %v1200
      %1203 = vmin.xlane.f32.xlu0 %v1202
      %v1204 = vpop.xlane.xlu0 %1203
      %vm1205 = vcmp.eq.f32.partialorder %v1202, %v1204
      %v1206 = vsel %vm1205, %v1201, inf
      %1207 = vmin.xlane.f32.xlu0 %v1206
      %v1208 = vpop.xlane.xlu0 %1207
      %v1209 = vcvt.f32.s32 %v1208
      %v1210 = vcvt.f32.s32 %v1204
      %v1211 = vshll.u32 %v1210, 16
      %v1212 = vadd.s32 %v1211, %v1209
      %vm1213 = vcmp.eq.s32.totalorder %v488, %v1212
      %v1214 = vsel %vm1213, 1, 0
      %v1215 = vcvt.s32.f32 %v1214
      %s1216 = sadd.s32 %s670, 2
      %s1217 = sld [smem:[#allocation4 + %s1216]]
      %v1218 = vstv %s1217
      %vm1219 = vcmp.eq.s32.totalorder %v488, %v1218
      %v1220 = vsel %vm1219, 1, 0
      %v1221 = vcvt.s32.f32 %v1220
      %s1222 = sadd.s32 %s670, 3
      %s1223 = sld [smem:[#allocation4 + %s1222]]
      %v1224 = vstv %s1223
      %vm1225 = vcmp.eq.s32.totalorder %v488, %v1224
      %v1226 = vsel %vm1225, 1, 0
      %v1227 = vcvt.s32.f32 %v1226
      %v1228 = vsel %vm682, %v1221, %v1227
      %s1229 = sld [smem:[#allocation3 + %s670]]
      %p1230 = scmp.gt.s32.totalorder %s1229, 0
      %s1231 = scalar_select %p1230, 1, 0
      %s1232 = scvt.s32.f32 %s1231
      %v1233 = vstv %s1232
      %v1234 = vmul.f32 %v1233, %v1228
      %s1235 = ssub.f32 1.0, %s1232
      %v1236 = vstv %s1235
      %v1237 = vmul.f32 %v1236, %v1215
      %v1238 = vadd.f32 %v1234, %v1237
      %1239 = vmatprep.subr.mxu0 0.0
      %1240 = vmatpush1.msra.mxu0 %v489
      %1241 = vmatprep.subr.mxu0 0.0
      %1242 = vmatpush1.msra.mxu0 %v490
      %1243 = vmatprep.subr.mxu0 0.0
      %1244 = vmatpush1.msra.mxu0 %v491
      %1245 = vmatprep.subr.mxu0 0.0
      %1246 = vmatpush1.msra.mxu0 %v492
      %1247 = vmatprep.subr.mxu0 0.0
      %1248 = vmatpush1.msra.mxu0 %v493
      %1249 = vmatprep.subr.mxu0 0.0
      %1250 = vmatpush1.msra.mxu0 %v494
      %1251 = vmatprep.subr.mxu0 0.0
      %1252 = vmatpush1.msra.mxu0 %v495
      %1253 = vmatprep.subr.mxu0 0.0
      %1254 = vmatpush1.msra.mxu0 %v496
      %1255 = vmatprep.subr.mxu0 0.0
      %1256 = vmatpush1.msra.mxu0 %v497
      %1257 = vmatprep.subr.mxu0 0.0
      %1258 = vmatpush1.msra.mxu0 %v498
      %1259 = vmatprep.subr.mxu0 0.0
      %1260 = vmatpush1.msra.mxu0 %v499
      %1261 = vmatprep.subr.mxu0 0.0
      %1262 = vmatpush1.msra.mxu0 %v500
      %1263 = vmatprep.subr.mxu0 0.0
      %1264 = vmatpush1.msra.mxu0 %v501
      %1265 = vmatprep.subr.mxu0 0.0
      %1266 = vmatpush1.msra.mxu0 %v502
      %1267 = vmatprep.subr.mxu0 0.0
      %1268 = vmatpush1.msra.mxu0 %v503
      %1269 = vmatprep.subr.mxu0 0.0
      %1270 = vmatpush1.msra.mxu0 %v504
      %1271 = vmatprep.subr.mxu0 0.0
      %1272 = vmatpush1.msra.mxu0 0.0
      %1273 = vmatprep.subr.mxu0 0.0
      %1274 = vmatpush1.msra.mxu0 0.0
      %1275 = vmatprep.subr.mxu0 0.0
      %1276 = vmatpush1.msra.mxu0 0.0
      %1277 = vmatprep.subr.mxu0 0.0
      %1278 = vmatpush1.msra.mxu0 0.0
      %1279 = vmatprep.subr.mxu0 0.0
      %1280 = vmatpush1.msra.mxu0 0.0
      %1281 = vmatprep.subr.mxu0 0.0
      %1282 = vmatpush1.msra.mxu0 0.0
      %1283 = vmatprep.subr.mxu0 0.0
      %1284 = vmatpush1.msra.mxu0 0.0
      %1285 = vmatprep.subr.mxu0 0.0
      %1286 = vmatpush1.msra.mxu0 0.0
      %1287 = vmatprep.subr.mxu0 0.0
      %1288 = vmatpush1.msra.mxu0 0.0
      %1289 = vmatprep.subr.mxu0 0.0
      %1290 = vmatpush1.msra.mxu0 0.0
      %1291 = vmatprep.subr.mxu0 0.0
      %1292 = vmatpush1.msra.mxu0 0.0
      %1293 = vmatprep.subr.mxu0 0.0
      %1294 = vmatpush1.msra.mxu0 0.0
      %1295 = vmatprep.subr.mxu0 0.0
      %1296 = vmatpush1.msra.mxu0 0.0
      %1297 = vmatprep.subr.mxu0 0.0
      %1298 = vmatpush1.msra.mxu0 0.0
      %1299 = vmatprep.subr.mxu0 0.0
      %1300 = vmatpush1.msra.mxu0 0.0
      %1301 = vmatprep.subr.mxu0 0.0
      %1302 = vmatpush1.msra.mxu0 0.0
      %1303 = vmatprep.mubr.f32.mxu0 0.0
      %1304 = vmatmul.mubr.f32.gmra.mrb[0].mxu0 %v1238
      %v1305 = vpop.f32.mrb[0].mxu0
      %v1306 = vadd.f32 0.0, %v1305
      %v1307 = vpop.f32.mrb[0].mxu0
      %1308 = vdwg.mxu0
      %1309 = vmatprep.subr.mxu0 %v506
      %1310 = vmatpush1.msra.mxu0 %v505
      %1311 = vmatprep.subr.mxu0 %v509
      %1312 = vmatpush1.msra.mxu0 %v508
      %1313 = vmatprep.subr.mxu0 %v512
      %1314 = vmatpush1.msra.mxu0 %v511
      %1315 = vmatprep.subr.mxu0 %v515
      %1316 = vmatpush1.msra.mxu0 %v514
      %1317 = vmatprep.subr.mxu0 %v518
      %1318 = vmatpush1.msra.mxu0 %v517
      %1319 = vmatprep.subr.mxu0 %v521
      %1320 = vmatpush1.msra.mxu0 %v520
      %1321 = vmatprep.subr.mxu0 %v524
      %1322 = vmatpush1.msra.mxu0 %v523
      %1323 = vmatprep.subr.mxu0 %v527
      %1324 = vmatpush1.msra.mxu0 %v526
      %1325 = vmatprep.subr.mxu0 %v530
      %1326 = vmatpush1.msra.mxu0 %v529
      %1327 = vmatprep.subr.mxu0 %v533
      %1328 = vmatpush1.msra.mxu0 %v532
      %1329 = vmatprep.subr.mxu0 %v536
      %1330 = vmatpush1.msra.mxu0 %v535
      %1331 = vmatprep.subr.mxu0 %v539
      %1332 = vmatpush1.msra.mxu0 %v538
      %1333 = vmatprep.subr.mxu0 %v542
      %1334 = vmatpush1.msra.mxu0 %v541
      %1335 = vmatprep.subr.mxu0 %v545
      %1336 = vmatpush1.msra.mxu0 %v544
      %1337 = vmatprep.subr.mxu0 %v548
      %1338 = vmatpush1.msra.mxu0 %v547
      %1339 = vmatprep.subr.mxu0 %v551
      %1340 = vmatpush1.msra.mxu0 %v550
      %1341 = vmatprep.subr.mxu0 %v554
      %1342 = vmatpush1.msra.mxu0 %v553
      %1343 = vmatprep.subr.mxu0 %v557
      %1344 = vmatpush1.msra.mxu0 %v556
      %1345 = vmatprep.subr.mxu0 %v560
      %1346 = vmatpush1.msra.mxu0 %v559
      %1347 = vmatprep.subr.mxu0 %v563
      %1348 = vmatpush1.msra.mxu0 %v562
      %1349 = vmatprep.subr.mxu0 %v566
      %1350 = vmatpush1.msra.mxu0 %v565
      %1351 = vmatprep.subr.mxu0 %v569
      %1352 = vmatpush1.msra.mxu0 %v568
      %1353 = vmatprep.subr.mxu0 %v572
      %1354 = vmatpush1.msra.mxu0 %v571
      %1355 = vmatprep.subr.mxu0 %v575
      %1356 = vmatpush1.msra.mxu0 %v574
      %1357 = vmatprep.subr.mxu0 %v578
      %1358 = vmatpush1.msra.mxu0 %v577
      %1359 = vmatprep.subr.mxu0 %v581
      %1360 = vmatpush1.msra.mxu0 %v580
      %1361 = vmatprep.subr.mxu0 %v584
      %1362 = vmatpush1.msra.mxu0 %v583
      %1363 = vmatprep.subr.mxu0 %v587
      %1364 = vmatpush1.msra.mxu0 %v586
      %1365 = vmatprep.subr.mxu0 %v590
      %1366 = vmatpush1.msra.mxu0 %v589
      %1367 = vmatprep.subr.mxu0 %v593
      %1368 = vmatpush1.msra.mxu0 %v592
      %1369 = vmatprep.subr.mxu0 %v596
      %1370 = vmatpush1.msra.mxu0 %v595
      %1371 = vmatprep.subr.mxu0 %v599
      %1372 = vmatpush1.msra.mxu0 %v598
      %1373 = vmatprep.mubr.f32.mxu0 %v668
      %1374 = vmatmul.mubr.f32.gmra.mrb[0].mxu0 %v1306
      %v1375 = vpop.f32.mrb[0].mxu0
      %v1376 = vadd.f32 %v758, %v1375
      %v1377 = vpop.f32.mrb[0].mxu0
      %v1378 = vadd.f32 %v762, %v1377
      %1379 = vdwg.mxu0
      %1380 = vmatprep.subr.mxu0 0.0
      %1381 = vmatpush1.msra.mxu0 %v507
      %1382 = vmatprep.subr.mxu0 0.0
      %1383 = vmatpush1.msra.mxu0 %v510
      %1384 = vmatprep.subr.mxu0 0.0
      %1385 = vmatpush1.msra.mxu0 %v513
      %1386 = vmatprep.subr.mxu0 0.0
      %1387 = vmatpush1.msra.mxu0 %v516
      %1388 = vmatprep.subr.mxu0 0.0
      %1389 = vmatpush1.msra.mxu0 %v519
      %1390 = vmatprep.subr.mxu0 0.0
      %1391 = vmatpush1.msra.mxu0 %v522
      %1392 = vmatprep.subr.mxu0 0.0
      %1393 = vmatpush1.msra.mxu0 %v525
      %1394 = vmatprep.subr.mxu0 0.0
      %1395 = vmatpush1.msra.mxu0 %v528
      %1396 = vmatprep.subr.mxu0 0.0
      %1397 = vmatpush1.msra.mxu0 %v531
      %1398 = vmatprep.subr.mxu0 0.0
      %1399 = vmatpush1.msra.mxu0 %v534
      %1400 = vmatprep.subr.mxu0 0.0
      %1401 = vmatpush1.msra.mxu0 %v537
      %1402 = vmatprep.subr.mxu0 0.0
      %1403 = vmatpush1.msra.mxu0 %v540
      %1404 = vmatprep.subr.mxu0 0.0
      %1405 = vmatpush1.msra.mxu0 %v543
      %1406 = vmatprep.subr.mxu0 0.0
      %1407 = vmatpush1.msra.mxu0 %v546
      %1408 = vmatprep.subr.mxu0 0.0
      %1409 = vmatpush1.msra.mxu0 %v549
      %1410 = vmatprep.subr.mxu0 0.0
      %1411 = vmatpush1.msra.mxu0 %v552
      %1412 = vmatprep.subr.mxu0 0.0
      %1413 = vmatpush1.msra.mxu0 %v555
      %1414 = vmatprep.subr.mxu0 0.0
      %1415 = vmatpush1.msra.mxu0 %v558
      %1416 = vmatprep.subr.mxu0 0.0
      %1417 = vmatpush1.msra.mxu0 %v561
      %1418 = vmatprep.subr.mxu0 0.0
      %1419 = vmatpush1.msra.mxu0 %v564
      %1420 = vmatprep.subr.mxu0 0.0
      %1421 = vmatpush1.msra.mxu0 %v567
      %1422 = vmatprep.subr.mxu0 0.0
      %1423 = vmatpush1.msra.mxu0 %v570
      %1424 = vmatprep.subr.mxu0 0.0
      %1425 = vmatpush1.msra.mxu0 %v573
      %1426 = vmatprep.subr.mxu0 0.0
      %1427 = vmatpush1.msra.mxu0 %v576
      %1428 = vmatprep.subr.mxu0 0.0
      %1429 = vmatpush1.msra.mxu0 %v579
      %1430 = vmatprep.subr.mxu0 0.0
      %1431 = vmatpush1.msra.mxu0 %v582
      %1432 = vmatprep.subr.mxu0 0.0
      %1433 = vmatpush1.msra.mxu0 %v585
      %1434 = vmatprep.subr.mxu0 0.0
      %1435 = vmatpush1.msra.mxu0 %v588
      %1436 = vmatprep.subr.mxu0 0.0
      %1437 = vmatpush1.msra.mxu0 %v591
      %1438 = vmatprep.subr.mxu0 0.0
      %1439 = vmatpush1.msra.mxu0 %v594
      %1440 = vmatprep.subr.mxu0 0.0
      %1441 = vmatpush1.msra.mxu0 %v597
      %1442 = vmatprep.subr.mxu0 0.0
      %1443 = vmatpush1.msra.mxu0 %v600
      %1444 = vmatprep.mubr.f32.mxu0 %v668
      %1445 = vmatmul.mubr.f32.gmra.mrb[0].mxu0 %v1306
      %v1446 = vpop.f32.mrb[0].mxu0
      %v1447 = vadd.f32 %v766, %v1446
      %v1448 = vpop.f32.mrb[0].mxu0
      %1449 = vdwg.mxu0
      %1450 = vmatprep.subr.mxu0 %v603
      %1451 = vmatpush1.msra.mxu0 %v602
      %1452 = vmatprep.subr.mxu0 %v606
      %1453 = vmatpush1.msra.mxu0 %v605
      %1454 = vmatprep.subr.mxu0 %v609
      %1455 = vmatpush1.msra.mxu0 %v608
      %1456 = vmatprep.subr.mxu0 %v612
      %1457 = vmatpush1.msra.mxu0 %v611
      %1458 = vmatprep.subr.mxu0 %v615
      %1459 = vmatpush1.msra.mxu0 %v614
      %1460 = vmatprep.subr.mxu0 %v618
      %1461 = vmatpush1.msra.mxu0 %v617
      %1462 = vmatprep.subr.mxu0 %v621
      %1463 = vmatpush1.msra.mxu0 %v620
      %1464 = vmatprep.subr.mxu0 %v624
      %1465 = vmatpush1.msra.mxu0 %v623
      %1466 = vmatprep.subr.mxu0 %v627
      %1467 = vmatpush1.msra.mxu0 %v626
      %1468 = vmatprep.subr.mxu0 %v630
      %1469 = vmatpush1.msra.mxu0 %v629
      %1470 = vmatprep.subr.mxu0 %v633
      %1471 = vmatpush1.msra.mxu0 %v632
      %1472 = vmatprep.subr.mxu0 %v636
      %1473 = vmatpush1.msra.mxu0 %v635
      %1474 = vmatprep.subr.mxu0 %v639
      %1475 = vmatpush1.msra.mxu0 %v638
      %1476 = vmatprep.subr.mxu0 %v642
      %1477 = vmatpush1.msra.mxu0 %v641
      %1478 = vmatprep.subr.mxu0 %v645
      %1479 = vmatpush1.msra.mxu0 %v644
      %1480 = vmatprep.subr.mxu0 %v648
      %1481 = vmatpush1.msra.mxu0 %v647
      %1482 = vmatprep.subr.mxu0 0.0
      %1483 = vmatpush1.msra.mxu0 0.0
      %1484 = vmatprep.subr.mxu0 0.0
      %1485 = vmatpush1.msra.mxu0 0.0
      %1486 = vmatprep.subr.mxu0 0.0
      %1487 = vmatpush1.msra.mxu0 0.0
      %1488 = vmatprep.subr.mxu0 0.0
      %1489 = vmatpush1.msra.mxu0 0.0
      %1490 = vmatprep.subr.mxu0 0.0
      %1491 = vmatpush1.msra.mxu0 0.0
      %1492 = vmatprep.subr.mxu0 0.0
      %1493 = vmatpush1.msra.mxu0 0.0
      %1494 = vmatprep.subr.mxu0 0.0
      %1495 = vmatpush1.msra.mxu0 0.0
      %1496 = vmatprep.subr.mxu0 0.0
      %1497 = vmatpush1.msra.mxu0 0.0
      %1498 = vmatprep.subr.mxu0 0.0
      %1499 = vmatpush1.msra.mxu0 0.0
      %1500 = vmatprep.subr.mxu0 0.0
      %1501 = vmatpush1.msra.mxu0 0.0
      %1502 = vmatprep.subr.mxu0 0.0
      %1503 = vmatpush1.msra.mxu0 0.0
      %1504 = vmatprep.subr.mxu0 0.0
      %1505 = vmatpush1.msra.mxu0 0.0
      %1506 = vmatprep.subr.mxu0 0.0
      %1507 = vmatpush1.msra.mxu0 0.0
      %1508 = vmatprep.subr.mxu0 0.0
      %1509 = vmatpush1.msra.mxu0 0.0
      %1510 = vmatprep.subr.mxu0 0.0
      %1511 = vmatpush1.msra.mxu0 0.0
      %1512 = vmatprep.subr.mxu0 0.0
      %1513 = vmatpush1.msra.mxu0 0.0
      %1514 = vmatprep.mubr.f32.mxu0 0.0
      %1515 = vmatmul.mubr.f32.gmra.mrb[0].mxu0 %v1088
      %v1516 = vpop.f32.mrb[0].mxu0
      %v1517 = vadd.f32 %v915, %v1516
      %v1518 = vpop.f32.mrb[0].mxu0
      %v1519 = vadd.f32 %v919, %v1518
      %1520 = vdwg.mxu0
      %1521 = vmatprep.subr.mxu0 0.0
      %1522 = vmatpush1.msra.mxu0 %v604
      %1523 = vmatprep.subr.mxu0 0.0
      %1524 = vmatpush1.msra.mxu0 %v607
      %1525 = vmatprep.subr.mxu0 0.0
      %1526 = vmatpush1.msra.mxu0 %v610
      %1527 = vmatprep.subr.mxu0 0.0
      %1528 = vmatpush1.msra.mxu0 %v613
      %1529 = vmatprep.subr.mxu0 0.0
      %1530 = vmatpush1.msra.mxu0 %v616
      %1531 = vmatprep.subr.mxu0 0.0
      %1532 = vmatpush1.msra.mxu0 %v619
      %1533 = vmatprep.subr.mxu0 0.0
      %1534 = vmatpush1.msra.mxu0 %v622
      %1535 = vmatprep.subr.mxu0 0.0
      %1536 = vmatpush1.msra.mxu0 %v625
      %1537 = vmatprep.subr.mxu0 0.0
      %1538 = vmatpush1.msra.mxu0 %v628
      %1539 = vmatprep.subr.mxu0 0.0
      %1540 = vmatpush1.msra.mxu0 %v631
      %1541 = vmatprep.subr.mxu0 0.0
      %1542 = vmatpush1.msra.mxu0 %v634
      %1543 = vmatprep.subr.mxu0 0.0
      %1544 = vmatpush1.msra.mxu0 %v637
      %1545 = vmatprep.subr.mxu0 0.0
      %1546 = vmatpush1.msra.mxu0 %v640
      %1547 = vmatprep.subr.mxu0 0.0
      %1548 = vmatpush1.msra.mxu0 %v643
      %1549 = vmatprep.subr.mxu0 0.0
      %1550 = vmatpush1.msra.mxu0 %v646
      %1551 = vmatprep.subr.mxu0 0.0
      %1552 = vmatpush1.msra.mxu0 %v649
      %1553 = vmatprep.subr.mxu0 0.0
      %1554 = vmatpush1.msra.mxu0 0.0
      %1555 = vmatprep.subr.mxu0 0.0
      %1556 = vmatpush1.msra.mxu0 0.0
      %1557 = vmatprep.subr.mxu0 0.0
      %1558 = vmatpush1.msra.mxu0 0.0
      %1559 = vmatprep.subr.mxu0 0.0
      %1560 = vmatpush1.msra.mxu0 0.0
      %1561 = vmatprep.subr.mxu0 0.0
      %1562 = vmatpush1.msra.mxu0 0.0
      %1563 = vmatprep.subr.mxu0 0.0
      %1564 = vmatpush1.msra.mxu0 0.0
      %1565 = vmatprep.subr.mxu0 0.0
      %1566 = vmatpush1.msra.mxu0 0.0
      %1567 = vmatprep.subr.mxu0 0.0
      %1568 = vmatpush1.msra.mxu0 0.0
      %1569 = vmatprep.subr.mxu0 0.0
      %1570 = vmatpush1.msra.mxu0 0.0
      %1571 = vmatprep.subr.mxu0 0.0
      %1572 = vmatpush1.msra.mxu0 0.0
      %1573 = vmatprep.subr.mxu0 0.0
      %1574 = vmatpush1.msra.mxu0 0.0
      %1575 = vmatprep.subr.mxu0 0.0
      %1576 = vmatpush1.msra.mxu0 0.0
      %1577 = vmatprep.subr.mxu0 0.0
      %1578 = vmatpush1.msra.mxu0 0.0
      %1579 = vmatprep.subr.mxu0 0.0
      %1580 = vmatpush1.msra.mxu0 0.0
      %1581 = vmatprep.subr.mxu0 0.0
      %1582 = vmatpush1.msra.mxu0 0.0
      %1583 = vmatprep.subr.mxu0 0.0
      %1584 = vmatpush1.msra.mxu0 0.0
      %1585 = vmatprep.mubr.f32.mxu0 0.0
      %1586 = vmatmul.mubr.f32.gmra.mrb[0].mxu0 %v1088
      %v1587 = vpop.f32.mrb[0].mxu0
      %v1588 = vadd.f32 %v923, %v1587
      %v1589 = vpop.f32.mrb[0].mxu0
      %1590 = vdwg.mxu0
      %v1591 = vadd.f32 %v1376, %v1517
      %v1592 = vxor.u32 %v1591, 2147483648
      %v1593 = vmul.f32 %v1592, 1.442695
      %v1594 = vpow.pop %v1593
      %v1595 = vadd.f32 %v1594, 1.0
      %v1596 = vrcp.pop %v1595
      %v1597 = vmul.f32 1.0, %v1596
      %v1598 = vadd.f32 %v1378, %v1519
      %v1599 = vxor.u32 %v1598, 2147483648
      %v1600 = vmul.f32 %v1599, 1.442695
      %v1601 = vpow.pop %v1600
      %v1602 = vadd.f32 %v1601, 1.0
      %v1603 = vrcp.pop %v1602
      %v1604 = vmul.f32 1.0, %v1603
      %v1605 = vmul.f32 %v1597, %v1588
      %v1606 = vadd.f32 %v1447, %v1605
      %v1607 = vtanh.pop %v1606
      %v1608 = vsub.f32 1.0, %v1604
      %v1609 = vmul.f32 %v1608, %v1607
      %v1610 = vmul.f32 %v1604, %v1088
      %v1611 = vadd.f32 %v1609, %v1610
      %1612 = vmatprep.subr.mxu0 0.0
      %1613 = vmatpush1.msra.mxu0 %v651
      %1614 = vmatprep.subr.mxu0 0.0
      %1615 = vmatpush1.msra.mxu0 %v652
      %1616 = vmatprep.subr.mxu0 0.0
      %1617 = vmatpush1.msra.mxu0 %v653
      %1618 = vmatprep.subr.mxu0 0.0
      %1619 = vmatpush1.msra.mxu0 %v654
      %1620 = vmatprep.subr.mxu0 0.0
      %1621 = vmatpush1.msra.mxu0 %v655
      %1622 = vmatprep.subr.mxu0 0.0
      %1623 = vmatpush1.msra.mxu0 %v656
      %1624 = vmatprep.subr.mxu0 0.0
      %1625 = vmatpush1.msra.mxu0 %v657
      %1626 = vmatprep.subr.mxu0 0.0
      %1627 = vmatpush1.msra.mxu0 %v658
      %1628 = vmatprep.subr.mxu0 0.0
      %1629 = vmatpush1.msra.mxu0 %v659
      %1630 = vmatprep.subr.mxu0 0.0
      %1631 = vmatpush1.msra.mxu0 %v660
      %1632 = vmatprep.subr.mxu0 0.0
      %1633 = vmatpush1.msra.mxu0 %v661
      %1634 = vmatprep.subr.mxu0 0.0
      %1635 = vmatpush1.msra.mxu0 %v662
      %1636 = vmatprep.subr.mxu0 0.0
      %1637 = vmatpush1.msra.mxu0 %v663
      %1638 = vmatprep.subr.mxu0 0.0
      %1639 = vmatpush1.msra.mxu0 %v664
      %1640 = vmatprep.subr.mxu0 0.0
      %1641 = vmatpush1.msra.mxu0 %v665
      %1642 = vmatprep.subr.mxu0 0.0
      %1643 = vmatpush1.msra.mxu0 %v666
      %1644 = vmatprep.subr.mxu0 0.0
      %1645 = vmatpush1.msra.mxu0 0.0
      %1646 = vmatprep.subr.mxu0 0.0
      %1647 = vmatpush1.msra.mxu0 0.0
      %1648 = vmatprep.subr.mxu0 0.0
      %1649 = vmatpush1.msra.mxu0 0.0
      %1650 = vmatprep.subr.mxu0 0.0
      %1651 = vmatpush1.msra.mxu0 0.0
      %1652 = vmatprep.subr.mxu0 0.0
      %1653 = vmatpush1.msra.mxu0 0.0
      %1654 = vmatprep.subr.mxu0 0.0
      %1655 = vmatpush1.msra.mxu0 0.0
      %1656 = vmatprep.subr.mxu0 0.0
      %1657 = vmatpush1.msra.mxu0 0.0
      %1658 = vmatprep.subr.mxu0 0.0
      %1659 = vmatpush1.msra.mxu0 0.0
      %1660 = vmatprep.subr.mxu0 0.0
      %1661 = vmatpush1.msra.mxu0 0.0
      %1662 = vmatprep.subr.mxu0 0.0
      %1663 = vmatpush1.msra.mxu0 0.0
      %1664 = vmatprep.subr.mxu0 0.0
      %1665 = vmatpush1.msra.mxu0 0.0
      %1666 = vmatprep.subr.mxu0 0.0
      %1667 = vmatpush1.msra.mxu0 0.0
      %1668 = vmatprep.subr.mxu0 0.0
      %1669 = vmatpush1.msra.mxu0 0.0
      %1670 = vmatprep.subr.mxu0 0.0
      %1671 = vmatpush1.msra.mxu0 0.0
      %1672 = vmatprep.subr.mxu0 0.0
      %1673 = vmatpush1.msra.mxu0 0.0
      %1674 = vmatprep.subr.mxu0 0.0
      %1675 = vmatpush1.msra.mxu0 0.0
      %1676 = vmatprep.mubr.f32.mxu0 0.0
      %1677 = vmatmul.mubr.f32.gmra.mrb[0].mxu0 %v1611
      %v1678 = vpop.f32.mrb[0].mxu0
      %v1679 = vadd.f32 %v1093, %v1678
      %v1680 = vpop.f32.mrb[0].mxu0
      %1681 = vdwg.mxu0
      %v1684 = vunpack.c.l.s4 1966171168
      %v1685 = vunpack.c.0.s8 %v1684
      %v1686 = vlaneseq
      %v1687 = vshrl.u32 %v1686, 7
      %v1688 = vsub.s32 %v1685, %v1687
      %v1689 = vrot.slane %v1679, %v1688
      %v1690 = vcombine.high %v1689, %v1689
      %v1692 = vunpack.c.l.s4 1966171168
      %v1693 = vunpack.c.0.s8 %v1692
      %v1694 = vlaneseq
      %v1695 = vshrl.u32 %v1694, 7
      %v1696 = vsub.s32 %v1693, %v1695
      %v1697 = vrot.slane %v1689, %v1696
      %v1699 = vunpack.c.l.s4 1966171168
      %v1700 = vunpack.c.0.s8 %v1699
      %v1701 = vlaneseq
      %v1702 = vshrl.u32 %v1701, 7
      %v1703 = vsub.s32 %v1700, %v1702
      %v1704 = vrot.slane %v1690, %v1703
      %1707 = vst [vmem:[%s486 + $0x1] sm:$0x1] %v1697
      %1708 = vst [vmem:[%s486 + $0x9] sm:$0x1] %v1704
      %v1709 = vsel %vm1192, %v1679, -inf
      %1710 = vmax.xlane.f32.xlu0 %v1709
      %v1711 = vpop.xlane.xlu0 %1710
      %vm1712 = vcmp.ge.f32.partialorder %v1679, %v1711
      %v1713 = vsel %vm1712, %v488, 128
      %v1714 = vsel %vm1192, %v1713, 2147483647
      %v1715 = vand.u32 %v1714, 65535
      %v1716 = vshra.s32 %v1714, 16
      %v1717 = vcvt.s32.f32 %v1715
      %v1718 = vcvt.s32.f32 %v1716
      %1719 = vmin.xlane.f32.xlu0 %v1718
      %v1720 = vpop.xlane.xlu0 %1719
      %vm1721 = vcmp.eq.f32.partialorder %v1718, %v1720
      %v1722 = vsel %vm1721, %v1717, inf
      %1723 = vmin.xlane.f32.xlu0 %v1722
      %v1724 = vpop.xlane.xlu0 %1723
      %v1725 = vcvt.f32.s32 %v1724
      %v1726 = vcvt.f32.s32 %v1720
      %v1727 = vshll.u32 %v1726, 16
      %v1728 = vadd.s32 %v1727, %v1725
      %vm1729 = vcmp.eq.s32.totalorder %v488, %v1728
      %v1730 = vsel %vm1729, 1, 0
      %v1731 = vcvt.s32.f32 %v1730
      %s1732 = sadd.s32 %s670, 4
      %s1733 = sld [smem:[#allocation4 + %s1732]]
      %v1734 = vstv %s1733
      %vm1735 = vcmp.eq.s32.totalorder %v488, %v1734
      %v1736 = vsel %vm1735, 1, 0
      %v1737 = vcvt.s32.f32 %v1736
      %s1738 = sadd.s32 %s670, 5
      %s1739 = sld [smem:[#allocation4 + %s1738]]
      %v1740 = vstv %s1739
      %vm1741 = vcmp.eq.s32.totalorder %v488, %v1740
      %v1742 = vsel %vm1741, 1, 0
      %v1743 = vcvt.s32.f32 %v1742
      %v1744 = vsel %vm682, %v1737, %v1743
      %s1745 = sld [smem:[#allocation3 + %s676]]
      %p1746 = scmp.gt.s32.totalorder %s1745, 0
      %s1747 = scalar_select %p1746, 1, 0
      %s1748 = scvt.s32.f32 %s1747
      %v1749 = vstv %s1748
      %v1750 = vmul.f32 %v1749, %v1744
      %s1751 = ssub.f32 1.0, %s1748
      %v1752 = vstv %s1751
      %v1753 = vmul.f32 %v1752, %v1731
      %v1754 = vadd.f32 %v1750, %v1753
      %1755 = vmatprep.subr.mxu0 0.0
      %1756 = vmatpush1.msra.mxu0 %v489
      %1757 = vmatprep.subr.mxu0 0.0
      %1758 = vmatpush1.msra.mxu0 %v490
      %1759 = vmatprep.subr.mxu0 0.0
      %1760 = vmatpush1.msra.mxu0 %v491
      %1761 = vmatprep.subr.mxu0 0.0
      %1762 = vmatpush1.msra.mxu0 %v492
      %1763 = vmatprep.subr.mxu0 0.0
      %1764 = vmatpush1.msra.mxu0 %v493
      %1765 = vmatprep.subr.mxu0 0.0
      %1766 = vmatpush1.msra.mxu0 %v494
      %1767 = vmatprep.subr.mxu0 0.0
      %1768 = vmatpush1.msra.mxu0 %v495
      %1769 = vmatprep.subr.mxu0 0.0
      %1770 = vmatpush1.msra.mxu0 %v496
      %1771 = vmatprep.subr.mxu0 0.0
      %1772 = vmatpush1.msra.mxu0 %v497
      %1773 = vmatprep.subr.mxu0 0.0
      %1774 = vmatpush1.msra.mxu0 %v498
      %1775 = vmatprep.subr.mxu0 0.0
      %1776 = vmatpush1.msra.mxu0 %v499
      %1777 = vmatprep.subr.mxu0 0.0
      %1778 = vmatpush1.msra.mxu0 %v500
      %1779 = vmatprep.subr.mxu0 0.0
      %1780 = vmatpush1.msra.mxu0 %v501
      %1781 = vmatprep.subr.mxu0 0.0
      %1782 = vmatpush1.msra.mxu0 %v502
      %1783 = vmatprep.subr.mxu0 0.0
      %1784 = vmatpush1.msra.mxu0 %v503
      %1785 = vmatprep.subr.mxu0 0.0
      %1786 = vmatpush1.msra.mxu0 %v504
      %1787 = vmatprep.subr.mxu0 0.0
      %1788 = vmatpush1.msra.mxu0 0.0
      %1789 = vmatprep.subr.mxu0 0.0
      %1790 = vmatpush1.msra.mxu0 0.0
      %1791 = vmatprep.subr.mxu0 0.0
      %1792 = vmatpush1.msra.mxu0 0.0
      %1793 = vmatprep.subr.mxu0 0.0
      %1794 = vmatpush1.msra.mxu0 0.0
      %1795 = vmatprep.subr.mxu0 0.0
      %1796 = vmatpush1.msra.mxu0 0.0
      %1797 = vmatprep.subr.mxu0 0.0
      %1798 = vmatpush1.msra.mxu0 0.0
      %1799 = vmatprep.subr.mxu0 0.0
      %1800 = vmatpush1.msra.mxu0 0.0
      %1801 = vmatprep.subr.mxu0 0.0
      %1802 = vmatpush1.msra.mxu0 0.0
      %1803 = vmatprep.subr.mxu0 0.0
      %1804 = vmatpush1.msra.mxu0 0.0
      %1805 = vmatprep.subr.mxu0 0.0
      %1806 = vmatpush1.msra.mxu0 0.0
      %1807 = vmatprep.subr.mxu0 0.0
      %1808 = vmatpush1.msra.mxu0 0.0
      %1809 = vmatprep.subr.mxu0 0.0
      %1810 = vmatpush1.msra.mxu0 0.0
      %1811 = vmatprep.subr.mxu0 0.0
      %1812 = vmatpush1.msra.mxu0 0.0
      %1813 = vmatprep.subr.mxu0 0.0
      %1814 = vmatpush1.msra.mxu0 0.0
      %1815 = vmatprep.subr.mxu0 0.0
      %1816 = vmatpush1.msra.mxu0 0.0
      %1817 = vmatprep.subr.mxu0 0.0
      %1818 = vmatpush1.msra.mxu0 0.0
      %1819 = vmatprep.mubr.f32.mxu0 0.0
      %1820 = vmatmul.mubr.f32.gmra.mrb[0].mxu0 %v1754
      %v1821 = vpop.f32.mrb[0].mxu0
      %v1822 = vadd.f32 0.0, %v1821
      %v1823 = vpop.f32.mrb[0].mxu0
      %1824 = vdwg.mxu0
      %1825 = vmatprep.subr.mxu0 %v506
      %1826 = vmatpush1.msra.mxu0 %v505
      %1827 = vmatprep.subr.mxu0 %v509
      %1828 = vmatpush1.msra.mxu0 %v508
      %1829 = vmatprep.subr.mxu0 %v512
      %1830 = vmatpush1.msra.mxu0 %v511
      %1831 = vmatprep.subr.mxu0 %v515
      %1832 = vmatpush1.msra.mxu0 %v514
      %1833 = vmatprep.subr.mxu0 %v518
      %1834 = vmatpush1.msra.mxu0 %v517
      %1835 = vmatprep.subr.mxu0 %v521
      %1836 = vmatpush1.msra.mxu0 %v520
      %1837 = vmatprep.subr.mxu0 %v524
      %1838 = vmatpush1.msra.mxu0 %v523
      %1839 = vmatprep.subr.mxu0 %v527
      %1840 = vmatpush1.msra.mxu0 %v526
      %1841 = vmatprep.subr.mxu0 %v530
      %1842 = vmatpush1.msra.mxu0 %v529
      %1843 = vmatprep.subr.mxu0 %v533
      %1844 = vmatpush1.msra.mxu0 %v532
      %1845 = vmatprep.subr.mxu0 %v536
      %1846 = vmatpush1.msra.mxu0 %v535
      %1847 = vmatprep.subr.mxu0 %v539
      %1848 = vmatpush1.msra.mxu0 %v538
      %1849 = vmatprep.subr.mxu0 %v542
      %1850 = vmatpush1.msra.mxu0 %v541
      %1851 = vmatprep.subr.mxu0 %v545
      %1852 = vmatpush1.msra.mxu0 %v544
      %1853 = vmatprep.subr.mxu0 %v548
      %1854 = vmatpush1.msra.mxu0 %v547
      %1855 = vmatprep.subr.mxu0 %v551
      %1856 = vmatpush1.msra.mxu0 %v550
      %1857 = vmatprep.subr.mxu0 %v554
      %1858 = vmatpush1.msra.mxu0 %v553
      %1859 = vmatprep.subr.mxu0 %v557
      %1860 = vmatpush1.msra.mxu0 %v556
      %1861 = vmatprep.subr.mxu0 %v560
      %1862 = vmatpush1.msra.mxu0 %v559
      %1863 = vmatprep.subr.mxu0 %v563
      %1864 = vmatpush1.msra.mxu0 %v562
      %1865 = vmatprep.subr.mxu0 %v566
      %1866 = vmatpush1.msra.mxu0 %v565
      %1867 = vmatprep.subr.mxu0 %v569
      %1868 = vmatpush1.msra.mxu0 %v568
      %1869 = vmatprep.subr.mxu0 %v572
      %1870 = vmatpush1.msra.mxu0 %v571
      %1871 = vmatprep.subr.mxu0 %v575
      %1872 = vmatpush1.msra.mxu0 %v574
      %1873 = vmatprep.subr.mxu0 %v578
      %1874 = vmatpush1.msra.mxu0 %v577
      %1875 = vmatprep.subr.mxu0 %v581
      %1876 = vmatpush1.msra.mxu0 %v580
      %1877 = vmatprep.subr.mxu0 %v584
      %1878 = vmatpush1.msra.mxu0 %v583
      %1879 = vmatprep.subr.mxu0 %v587
      %1880 = vmatpush1.msra.mxu0 %v586
      %1881 = vmatprep.subr.mxu0 %v590
      %1882 = vmatpush1.msra.mxu0 %v589
      %1883 = vmatprep.subr.mxu0 %v593
      %1884 = vmatpush1.msra.mxu0 %v592
      %1885 = vmatprep.subr.mxu0 %v596
      %1886 = vmatpush1.msra.mxu0 %v595
      %1887 = vmatprep.subr.mxu0 %v599
      %1888 = vmatpush1.msra.mxu0 %v598
      %1889 = vmatprep.mubr.f32.mxu0 %v668
      %1890 = vmatmul.mubr.f32.gmra.mrb[0].mxu0 %v1822
      %v1891 = vpop.f32.mrb[0].mxu0
      %v1892 = vadd.f32 %v758, %v1891
      %v1893 = vpop.f32.mrb[0].mxu0
      %v1894 = vadd.f32 %v762, %v1893
      %1895 = vdwg.mxu0
      %1896 = vmatprep.subr.mxu0 0.0
      %1897 = vmatpush1.msra.mxu0 %v507
      %1898 = vmatprep.subr.mxu0 0.0
      %1899 = vmatpush1.msra.mxu0 %v510
      %1900 = vmatprep.subr.mxu0 0.0
      %1901 = vmatpush1.msra.mxu0 %v513
      %1902 = vmatprep.subr.mxu0 0.0
      %1903 = vmatpush1.msra.mxu0 %v516
      %1904 = vmatprep.subr.mxu0 0.0
      %1905 = vmatpush1.msra.mxu0 %v519
      %1906 = vmatprep.subr.mxu0 0.0
      %1907 = vmatpush1.msra.mxu0 %v522
      %1908 = vmatprep.subr.mxu0 0.0
      %1909 = vmatpush1.msra.mxu0 %v525
      %1910 = vmatprep.subr.mxu0 0.0
      %1911 = vmatpush1.msra.mxu0 %v528
      %1912 = vmatprep.subr.mxu0 0.0
      %1913 = vmatpush1.msra.mxu0 %v531
      %1914 = vmatprep.subr.mxu0 0.0
      %1915 = vmatpush1.msra.mxu0 %v534
      %1916 = vmatprep.subr.mxu0 0.0
      %1917 = vmatpush1.msra.mxu0 %v537
      %1918 = vmatprep.subr.mxu0 0.0
      %1919 = vmatpush1.msra.mxu0 %v540
      %1920 = vmatprep.subr.mxu0 0.0
      %1921 = vmatpush1.msra.mxu0 %v543
      %1922 = vmatprep.subr.mxu0 0.0
      %1923 = vmatpush1.msra.mxu0 %v546
      %1924 = vmatprep.subr.mxu0 0.0
      %1925 = vmatpush1.msra.mxu0 %v549
      %1926 = vmatprep.subr.mxu0 0.0
      %1927 = vmatpush1.msra.mxu0 %v552
      %1928 = vmatprep.subr.mxu0 0.0
      %1929 = vmatpush1.msra.mxu0 %v555
      %1930 = vmatprep.subr.mxu0 0.0
      %1931 = vmatpush1.msra.mxu0 %v558
      %1932 = vmatprep.subr.mxu0 0.0
      %1933 = vmatpush1.msra.mxu0 %v561
      %1934 = vmatprep.subr.mxu0 0.0
      %1935 = vmatpush1.msra.mxu0 %v564
      %1936 = vmatprep.subr.mxu0 0.0
      %1937 = vmatpush1.msra.mxu0 %v567
      %1938 = vmatprep.subr.mxu0 0.0
      %1939 = vmatpush1.msra.mxu0 %v570
      %1940 = vmatprep.subr.mxu0 0.0
      %1941 = vmatpush1.msra.mxu0 %v573
      %1942 = vmatprep.subr.mxu0 0.0
      %1943 = vmatpush1.msra.mxu0 %v576
      %1944 = vmatprep.subr.mxu0 0.0
      %1945 = vmatpush1.msra.mxu0 %v579
      %1946 = vmatprep.subr.mxu0 0.0
      %1947 = vmatpush1.msra.mxu0 %v582
      %1948 = vmatprep.subr.mxu0 0.0
      %1949 = vmatpush1.msra.mxu0 %v585
      %1950 = vmatprep.subr.mxu0 0.0
      %1951 = vmatpush1.msra.mxu0 %v588
      %1952 = vmatprep.subr.mxu0 0.0
      %1953 = vmatpush1.msra.mxu0 %v591
      %1954 = vmatprep.subr.mxu0 0.0
      %1955 = vmatpush1.msra.mxu0 %v594
      %1956 = vmatprep.subr.mxu0 0.0
      %1957 = vmatpush1.msra.mxu0 %v597
      %1958 = vmatprep.subr.mxu0 0.0
      %1959 = vmatpush1.msra.mxu0 %v600
      %1960 = vmatprep.mubr.f32.mxu0 %v668
      %1961 = vmatmul.mubr.f32.gmra.mrb[0].mxu0 %v1822
      %v1962 = vpop.f32.mrb[0].mxu0
      %v1963 = vadd.f32 %v766, %v1962
      %v1964 = vpop.f32.mrb[0].mxu0
      %1965 = vdwg.mxu0
      %1966 = vmatprep.subr.mxu0 %v603
      %1967 = vmatpush1.msra.mxu0 %v602
      %1968 = vmatprep.subr.mxu0 %v606
      %1969 = vmatpush1.msra.mxu0 %v605
      %1970 = vmatprep.subr.mxu0 %v609
      %1971 = vmatpush1.msra.mxu0 %v608
      %1972 = vmatprep.subr.mxu0 %v612
      %1973 = vmatpush1.msra.mxu0 %v611
      %1974 = vmatprep.subr.mxu0 %v615
      %1975 = vmatpush1.msra.mxu0 %v614
      %1976 = vmatprep.subr.mxu0 %v618
      %1977 = vmatpush1.msra.mxu0 %v617
      %1978 = vmatprep.subr.mxu0 %v621
      %1979 = vmatpush1.msra.mxu0 %v620
      %1980 = vmatprep.subr.mxu0 %v624
      %1981 = vmatpush1.msra.mxu0 %v623
      %1982 = vmatprep.subr.mxu0 %v627
      %1983 = vmatpush1.msra.mxu0 %v626
      %1984 = vmatprep.subr.mxu0 %v630
      %1985 = vmatpush1.msra.mxu0 %v629
      %1986 = vmatprep.subr.mxu0 %v633
      %1987 = vmatpush1.msra.mxu0 %v632
      %1988 = vmatprep.subr.mxu0 %v636
      %1989 = vmatpush1.msra.mxu0 %v635
      %1990 = vmatprep.subr.mxu0 %v639
      %1991 = vmatpush1.msra.mxu0 %v638
      %1992 = vmatprep.subr.mxu0 %v642
      %1993 = vmatpush1.msra.mxu0 %v641
      %1994 = vmatprep.subr.mxu0 %v645
      %1995 = vmatpush1.msra.mxu0 %v644
      %1996 = vmatprep.subr.mxu0 %v648
      %1997 = vmatpush1.msra.mxu0 %v647
      %1998 = vmatprep.subr.mxu0 0.0
      %1999 = vmatpush1.msra.mxu0 0.0
      %2000 = vmatprep.subr.mxu0 0.0
      %2001 = vmatpush1.msra.mxu0 0.0
      %2002 = vmatprep.subr.mxu0 0.0
      %2003 = vmatpush1.msra.mxu0 0.0
      %2004 = vmatprep.subr.mxu0 0.0
      %2005 = vmatpush1.msra.mxu0 0.0
      %2006 = vmatprep.subr.mxu0 0.0
      %2007 = vmatpush1.msra.mxu0 0.0
      %2008 = vmatprep.subr.mxu0 0.0
      %2009 = vmatpush1.msra.mxu0 0.0
      %2010 = vmatprep.subr.mxu0 0.0
      %2011 = vmatpush1.msra.mxu0 0.0
      %2012 = vmatprep.subr.mxu0 0.0
      %2013 = vmatpush1.msra.mxu0 0.0
      %2014 = vmatprep.subr.mxu0 0.0
      %2015 = vmatpush1.msra.mxu0 0.0
      %2016 = vmatprep.subr.mxu0 0.0
      %2017 = vmatpush1.msra.mxu0 0.0
      %2018 = vmatprep.subr.mxu0 0.0
      %2019 = vmatpush1.msra.mxu0 0.0
      %2020 = vmatprep.subr.mxu0 0.0
      %2021 = vmatpush1.msra.mxu0 0.0
      %2022 = vmatprep.subr.mxu0 0.0
      %2023 = vmatpush1.msra.mxu0 0.0
      %2024 = vmatprep.subr.mxu0 0.0
      %2025 = vmatpush1.msra.mxu0 0.0
      %2026 = vmatprep.subr.mxu0 0.0
      %2027 = vmatpush1.msra.mxu0 0.0
      %2028 = vmatprep.subr.mxu0 0.0
      %2029 = vmatpush1.msra.mxu0 0.0
      %2030 = vmatprep.mubr.f32.mxu0 0.0
      %2031 = vmatmul.mubr.f32.gmra.mrb[0].mxu0 %v1611
      %v2032 = vpop.f32.mrb[0].mxu0
      %v2033 = vadd.f32 %v915, %v2032
      %v2034 = vpop.f32.mrb[0].mxu0
      %v2035 = vadd.f32 %v919, %v2034
      %2036 = vdwg.mxu0
      %2037 = vmatprep.subr.mxu0 0.0
      %2038 = vmatpush1.msra.mxu0 %v604
      %2039 = vmatprep.subr.mxu0 0.0
      %2040 = vmatpush1.msra.mxu0 %v607
      %2041 = vmatprep.subr.mxu0 0.0
      %2042 = vmatpush1.msra.mxu0 %v610
      %2043 = vmatprep.subr.mxu0 0.0
      %2044 = vmatpush1.msra.mxu0 %v613
      %2045 = vmatprep.subr.mxu0 0.0
      %2046 = vmatpush1.msra.mxu0 %v616
      %2047 = vmatprep.subr.mxu0 0.0
      %2048 = vmatpush1.msra.mxu0 %v619
      %2049 = vmatprep.subr.mxu0 0.0
      %2050 = vmatpush1.msra.mxu0 %v622
      %2051 = vmatprep.subr.mxu0 0.0
      %2052 = vmatpush1.msra.mxu0 %v625
      %2053 = vmatprep.subr.mxu0 0.0
      %2054 = vmatpush1.msra.mxu0 %v628
      %2055 = vmatprep.subr.mxu0 0.0
      %2056 = vmatpush1.msra.mxu0 %v631
      %2057 = vmatprep.subr.mxu0 0.0
      %2058 = vmatpush1.msra.mxu0 %v634
      %2059 = vmatprep.subr.mxu0 0.0
      %2060 = vmatpush1.msra.mxu0 %v637
      %2061 = vmatprep.subr.mxu0 0.0
      %2062 = vmatpush1.msra.mxu0 %v640
      %2063 = vmatprep.subr.mxu0 0.0
      %2064 = vmatpush1.msra.mxu0 %v643
      %2065 = vmatprep.subr.mxu0 0.0
      %2066 = vmatpush1.msra.mxu0 %v646
      %2067 = vmatprep.subr.mxu0 0.0
      %2068 = vmatpush1.msra.mxu0 %v649
      %2069 = vmatprep.subr.mxu0 0.0
      %2070 = vmatpush1.msra.mxu0 0.0
      %2071 = vmatprep.subr.mxu0 0.0
      %2072 = vmatpush1.msra.mxu0 0.0
      %2073 = vmatprep.subr.mxu0 0.0
      %2074 = vmatpush1.msra.mxu0 0.0
      %2075 = vmatprep.subr.mxu0 0.0
      %2076 = vmatpush1.msra.mxu0 0.0
      %2077 = vmatprep.subr.mxu0 0.0
      %2078 = vmatpush1.msra.mxu0 0.0
      %2079 = vmatprep.subr.mxu0 0.0
      %2080 = vmatpush1.msra.mxu0 0.0
      %2081 = vmatprep.subr.mxu0 0.0
      %2082 = vmatpush1.msra.mxu0 0.0
      %2083 = vmatprep.subr.mxu0 0.0
      %2084 = vmatpush1.msra.mxu0 0.0
      %2085 = vmatprep.subr.mxu0 0.0
      %2086 = vmatpush1.msra.mxu0 0.0
      %2087 = vmatprep.subr.mxu0 0.0
      %2088 = vmatpush1.msra.mxu0 0.0
      %2089 = vmatprep.subr.mxu0 0.0
      %2090 = vmatpush1.msra.mxu0 0.0
      %2091 = vmatprep.subr.mxu0 0.0
      %2092 = vmatpush1.msra.mxu0 0.0
      %2093 = vmatprep.subr.mxu0 0.0
      %2094 = vmatpush1.msra.mxu0 0.0
      %2095 = vmatprep.subr.mxu0 0.0
      %2096 = vmatpush1.msra.mxu0 0.0
      %2097 = vmatprep.subr.mxu0 0.0
      %2098 = vmatpush1.msra.mxu0 0.0
      %2099 = vmatprep.subr.mxu0 0.0
      %2100 = vmatpush1.msra.mxu0 0.0
      %2101 = vmatprep.mubr.f32.mxu0 0.0
      %2102 = vmatmul.mubr.f32.gmra.mrb[0].mxu0 %v1611
      %v2103 = vpop.f32.mrb[0].mxu0
      %v2104 = vadd.f32 %v923, %v2103
      %v2105 = vpop.f32.mrb[0].mxu0
      %2106 = vdwg.mxu0
      %v2107 = vadd.f32 %v1892, %v2033
      %v2108 = vxor.u32 %v2107, 2147483648
      %v2109 = vmul.f32 %v2108, 1.442695
      %v2110 = vpow.pop %v2109
      %v2111 = vadd.f32 %v2110, 1.0
      %v2112 = vrcp.pop %v2111
      %v2113 = vmul.f32 1.0, %v2112
      %v2114 = vadd.f32 %v1894, %v2035
      %v2115 = vxor.u32 %v2114, 2147483648
      %v2116 = vmul.f32 %v2115, 1.442695
      %v2117 = vpow.pop %v2116
      %v2118 = vadd.f32 %v2117, 1.0
      %v2119 = vrcp.pop %v2118
      %v2120 = vmul.f32 1.0, %v2119
      %v2121 = vmul.f32 %v2113, %v2104
      %v2122 = vadd.f32 %v1963, %v2121
      %v2123 = vtanh.pop %v2122
      %v2124 = vsub.f32 1.0, %v2120
      %v2125 = vmul.f32 %v2124, %v2123
      %v2126 = vmul.f32 %v2120, %v1611
      %v2127 = vadd.f32 %v2125, %v2126
      %2128 = vmatprep.subr.mxu0 0.0
      %2129 = vmatpush1.msra.mxu0 %v651
      %2130 = vmatprep.subr.mxu0 0.0
      %2131 = vmatpush1.msra.mxu0 %v652
      %2132 = vmatprep.subr.mxu0 0.0
      %2133 = vmatpush1.msra.mxu0 %v653
      %2134 = vmatprep.subr.mxu0 0.0
      %2135 = vmatpush1.msra.mxu0 %v654
      %2136 = vmatprep.subr.mxu0 0.0
      %2137 = vmatpush1.msra.mxu0 %v655
      %2138 = vmatprep.subr.mxu0 0.0
      %2139 = vmatpush1.msra.mxu0 %v656
      %2140 = vmatprep.subr.mxu0 0.0
      %2141 = vmatpush1.msra.mxu0 %v657
      %2142 = vmatprep.subr.mxu0 0.0
      %2143 = vmatpush1.msra.mxu0 %v658
      %2144 = vmatprep.subr.mxu0 0.0
      %2145 = vmatpush1.msra.mxu0 %v659
      %2146 = vmatprep.subr.mxu0 0.0
      %2147 = vmatpush1.msra.mxu0 %v660
      %2148 = vmatprep.subr.mxu0 0.0
      %2149 = vmatpush1.msra.mxu0 %v661
      %2150 = vmatprep.subr.mxu0 0.0
      %2151 = vmatpush1.msra.mxu0 %v662
      %2152 = vmatprep.subr.mxu0 0.0
      %2153 = vmatpush1.msra.mxu0 %v663
      %2154 = vmatprep.subr.mxu0 0.0
      %2155 = vmatpush1.msra.mxu0 %v664
      %2156 = vmatprep.subr.mxu0 0.0
      %2157 = vmatpush1.msra.mxu0 %v665
      %2158 = vmatprep.subr.mxu0 0.0
      %2159 = vmatpush1.msra.mxu0 %v666
      %2160 = vmatprep.subr.mxu0 0.0
      %2161 = vmatpush1.msra.mxu0 0.0
      %2162 = vmatprep.subr.mxu0 0.0
      %2163 = vmatpush1.msra.mxu0 0.0
      %2164 = vmatprep.subr.mxu0 0.0
      %2165 = vmatpush1.msra.mxu0 0.0
      %2166 = vmatprep.subr.mxu0 0.0
      %2167 = vmatpush1.msra.mxu0 0.0
      %2168 = vmatprep.subr.mxu0 0.0
      %2169 = vmatpush1.msra.mxu0 0.0
      %2170 = vmatprep.subr.mxu0 0.0
      %2171 = vmatpush1.msra.mxu0 0.0
      %2172 = vmatprep.subr.mxu0 0.0
      %2173 = vmatpush1.msra.mxu0 0.0
      %2174 = vmatprep.subr.mxu0 0.0
      %2175 = vmatpush1.msra.mxu0 0.0
      %2176 = vmatprep.subr.mxu0 0.0
      %2177 = vmatpush1.msra.mxu0 0.0
      %2178 = vmatprep.subr.mxu0 0.0
      %2179 = vmatpush1.msra.mxu0 0.0
      %2180 = vmatprep.subr.mxu0 0.0
      %2181 = vmatpush1.msra.mxu0 0.0
      %2182 = vmatprep.subr.mxu0 0.0
      %2183 = vmatpush1.msra.mxu0 0.0
      %2184 = vmatprep.subr.mxu0 0.0
      %2185 = vmatpush1.msra.mxu0 0.0
      %2186 = vmatprep.subr.mxu0 0.0
      %2187 = vmatpush1.msra.mxu0 0.0
      %2188 = vmatprep.subr.mxu0 0.0
      %2189 = vmatpush1.msra.mxu0 0.0
      %2190 = vmatprep.subr.mxu0 0.0
      %2191 = vmatpush1.msra.mxu0 0.0
      %2192 = vmatprep.mubr.f32.mxu0 0.0
      %2193 = vmatmul.mubr.f32.gmra.mrb[0].mxu0 %v2127
      %v2194 = vpop.f32.mrb[0].mxu0
      %v2195 = vadd.f32 %v1093, %v2194
      %v2196 = vpop.f32.mrb[0].mxu0
      %2197 = vdwg.mxu0
      %v2200 = vunpack.c.l.s4 1966171168
      %v2201 = vunpack.c.0.s8 %v2200
      %v2202 = vlaneseq
      %v2203 = vshrl.u32 %v2202, 7
      %v2204 = vsub.s32 %v2201, %v2203
      %v2205 = vrot.slane %v2195, %v2204
      %v2206 = vcombine.high %v2205, %v2205
      %v2208 = vunpack.c.l.s4 1966171168
      %v2209 = vunpack.c.0.s8 %v2208
      %v2210 = vlaneseq
      %v2211 = vshrl.u32 %v2210, 7
      %v2212 = vsub.s32 %v2209, %v2211
      %v2213 = vrot.slane %v2205, %v2212
      %v2215 = vunpack.c.l.s4 1966171168
      %v2216 = vunpack.c.0.s8 %v2215
      %v2217 = vlaneseq
      %v2218 = vshrl.u32 %v2217, 7
      %v2219 = vsub.s32 %v2216, %v2218
      %v2220 = vrot.slane %v2206, %v2219
      %2223 = vst [vmem:[%s486 + $0x2] sm:$0x1] %v2213
      %2224 = vst [vmem:[%s486 + $0xa] sm:$0x1] %v2220
      %v2225 = vsel %vm1192, %v2195, -inf
      %2226 = vmax.xlane.f32.xlu0 %v2225
      %v2227 = vpop.xlane.xlu0 %2226
      %vm2228 = vcmp.ge.f32.partialorder %v2195, %v2227
      %v2229 = vsel %vm2228, %v488, 128
      %v2230 = vsel %vm1192, %v2229, 2147483647
      %v2231 = vand.u32 %v2230, 65535
      %v2232 = vshra.s32 %v2230, 16
      %v2233 = vcvt.s32.f32 %v2231
      %v2234 = vcvt.s32.f32 %v2232
      %2235 = vmin.xlane.f32.xlu0 %v2234
      %v2236 = vpop.xlane.xlu0 %2235
      %vm2237 = vcmp.eq.f32.partialorder %v2234, %v2236
      %v2238 = vsel %vm2237, %v2233, inf
      %2239 = vmin.xlane.f32.xlu0 %v2238
      %v2240 = vpop.xlane.xlu0 %2239
      %v2241 = vcvt.f32.s32 %v2240
      %v2242 = vcvt.f32.s32 %v2236
      %v2243 = vshll.u32 %v2242, 16
      %v2244 = vadd.s32 %v2243, %v2241
      %vm2245 = vcmp.eq.s32.totalorder %v488, %v2244
      %v2246 = vsel %vm2245, 1, 0
      %v2247 = vcvt.s32.f32 %v2246
      %s2248 = sadd.s32 %s670, 6
      %s2249 = sld [smem:[#allocation4 + %s2248]]
      %v2250 = vstv %s2249
      %vm2251 = vcmp.eq.s32.totalorder %v488, %v2250
      %v2252 = vsel %vm2251, 1, 0
      %v2253 = vcvt.s32.f32 %v2252
      %s2254 = sadd.s32 %s670, 7
      %s2255 = sld [smem:[#allocation4 + %s2254]]
      %v2256 = vstv %s2255
      %vm2257 = vcmp.eq.s32.totalorder %v488, %v2256
      %v2258 = vsel %vm2257, 1, 0
      %v2259 = vcvt.s32.f32 %v2258
      %v2260 = vsel %vm682, %v2253, %v2259
      %s2261 = sld [smem:[#allocation3 + %s1216]]
      %p2262 = scmp.gt.s32.totalorder %s2261, 0
      %s2263 = scalar_select %p2262, 1, 0
      %s2264 = scvt.s32.f32 %s2263
      %v2265 = vstv %s2264
      %v2266 = vmul.f32 %v2265, %v2260
      %s2267 = ssub.f32 1.0, %s2264
      %v2268 = vstv %s2267
      %v2269 = vmul.f32 %v2268, %v2247
      %v2270 = vadd.f32 %v2266, %v2269
      %2271 = vmatprep.subr.mxu0 0.0
      %2272 = vmatpush1.msra.mxu0 %v489
      %2273 = vmatprep.subr.mxu0 0.0
      %2274 = vmatpush1.msra.mxu0 %v490
      %2275 = vmatprep.subr.mxu0 0.0
      %2276 = vmatpush1.msra.mxu0 %v491
      %2277 = vmatprep.subr.mxu0 0.0
      %2278 = vmatpush1.msra.mxu0 %v492
      %2279 = vmatprep.subr.mxu0 0.0
      %2280 = vmatpush1.msra.mxu0 %v493
      %2281 = vmatprep.subr.mxu0 0.0
      %2282 = vmatpush1.msra.mxu0 %v494
      %2283 = vmatprep.subr.mxu0 0.0
      %2284 = vmatpush1.msra.mxu0 %v495
      %2285 = vmatprep.subr.mxu0 0.0
      %2286 = vmatpush1.msra.mxu0 %v496
      %2287 = vmatprep.subr.mxu0 0.0
      %2288 = vmatpush1.msra.mxu0 %v497
      %2289 = vmatprep.subr.mxu0 0.0
      %2290 = vmatpush1.msra.mxu0 %v498
      %2291 = vmatprep.subr.mxu0 0.0
      %2292 = vmatpush1.msra.mxu0 %v499
      %2293 = vmatprep.subr.mxu0 0.0
      %2294 = vmatpush1.msra.mxu0 %v500
      %2295 = vmatprep.subr.mxu0 0.0
      %2296 = vmatpush1.msra.mxu0 %v501
      %2297 = vmatprep.subr.mxu0 0.0
      %2298 = vmatpush1.msra.mxu0 %v502
      %2299 = vmatprep.subr.mxu0 0.0
      %2300 = vmatpush1.msra.mxu0 %v503
      %2301 = vmatprep.subr.mxu0 0.0
      %2302 = vmatpush1.msra.mxu0 %v504
      %2303 = vmatprep.subr.mxu0 0.0
      %2304 = vmatpush1.msra.mxu0 0.0
      %2305 = vmatprep.subr.mxu0 0.0
      %2306 = vmatpush1.msra.mxu0 0.0
      %2307 = vmatprep.subr.mxu0 0.0
      %2308 = vmatpush1.msra.mxu0 0.0
      %2309 = vmatprep.subr.mxu0 0.0
      %2310 = vmatpush1.msra.mxu0 0.0
      %2311 = vmatprep.subr.mxu0 0.0
      %2312 = vmatpush1.msra.mxu0 0.0
      %2313 = vmatprep.subr.mxu0 0.0
      %2314 = vmatpush1.msra.mxu0 0.0
      %2315 = vmatprep.subr.mxu0 0.0
      %2316 = vmatpush1.msra.mxu0 0.0
      %2317 = vmatprep.subr.mxu0 0.0
      %2318 = vmatpush1.msra.mxu0 0.0
      %2319 = vmatprep.subr.mxu0 0.0
      %2320 = vmatpush1.msra.mxu0 0.0
      %2321 = vmatprep.subr.mxu0 0.0
      %2322 = vmatpush1.msra.mxu0 0.0
      %2323 = vmatprep.subr.mxu0 0.0
      %2324 = vmatpush1.msra.mxu0 0.0
      %2325 = vmatprep.subr.mxu0 0.0
      %2326 = vmatpush1.msra.mxu0 0.0
      %2327 = vmatprep.subr.mxu0 0.0
      %2328 = vmatpush1.msra.mxu0 0.0
      %2329 = vmatprep.subr.mxu0 0.0
      %2330 = vmatpush1.msra.mxu0 0.0
      %2331 = vmatprep.subr.mxu0 0.0
      %2332 = vmatpush1.msra.mxu0 0.0
      %2333 = vmatprep.subr.mxu0 0.0
      %2334 = vmatpush1.msra.mxu0 0.0
      %2335 = vmatprep.mubr.f32.mxu0 0.0
      %2336 = vmatmul.mubr.f32.gmra.mrb[0].mxu0 %v2270
      %v2337 = vpop.f32.mrb[0].mxu0
      %v2338 = vadd.f32 0.0, %v2337
      %v2339 = vpop.f32.mrb[0].mxu0
      %2340 = vdwg.mxu0
      %2341 = vmatprep.subr.mxu0 %v506
      %2342 = vmatpush1.msra.mxu0 %v505
      %2343 = vmatprep.subr.mxu0 %v509
      %2344 = vmatpush1.msra.mxu0 %v508
      %2345 = vmatprep.subr.mxu0 %v512
      %2346 = vmatpush1.msra.mxu0 %v511
      %2347 = vmatprep.subr.mxu0 %v515
      %2348 = vmatpush1.msra.mxu0 %v514
      %2349 = vmatprep.subr.mxu0 %v518
      %2350 = vmatpush1.msra.mxu0 %v517
      %2351 = vmatprep.subr.mxu0 %v521
      %2352 = vmatpush1.msra.mxu0 %v520
      %2353 = vmatprep.subr.mxu0 %v524
      %2354 = vmatpush1.msra.mxu0 %v523
      %2355 = vmatprep.subr.mxu0 %v527
      %2356 = vmatpush1.msra.mxu0 %v526
      %2357 = vmatprep.subr.mxu0 %v530
      %2358 = vmatpush1.msra.mxu0 %v529
      %2359 = vmatprep.subr.mxu0 %v533
      %2360 = vmatpush1.msra.mxu0 %v532
      %2361 = vmatprep.subr.mxu0 %v536
      %2362 = vmatpush1.msra.mxu0 %v535
      %2363 = vmatprep.subr.mxu0 %v539
      %2364 = vmatpush1.msra.mxu0 %v538
      %2365 = vmatprep.subr.mxu0 %v542
      %2366 = vmatpush1.msra.mxu0 %v541
      %2367 = vmatprep.subr.mxu0 %v545
      %2368 = vmatpush1.msra.mxu0 %v544
      %2369 = vmatprep.subr.mxu0 %v548
      %2370 = vmatpush1.msra.mxu0 %v547
      %2371 = vmatprep.subr.mxu0 %v551
      %2372 = vmatpush1.msra.mxu0 %v550
      %2373 = vmatprep.subr.mxu0 %v554
      %2374 = vmatpush1.msra.mxu0 %v553
      %2375 = vmatprep.subr.mxu0 %v557
      %2376 = vmatpush1.msra.mxu0 %v556
      %2377 = vmatprep.subr.mxu0 %v560
      %2378 = vmatpush1.msra.mxu0 %v559
      %2379 = vmatprep.subr.mxu0 %v563
      %2380 = vmatpush1.msra.mxu0 %v562
      %2381 = vmatprep.subr.mxu0 %v566
      %2382 = vmatpush1.msra.mxu0 %v565
      %2383 = vmatprep.subr.mxu0 %v569
      %2384 = vmatpush1.msra.mxu0 %v568
      %2385 = vmatprep.subr.mxu0 %v572
      %2386 = vmatpush1.msra.mxu0 %v571
      %2387 = vmatprep.subr.mxu0 %v575
      %2388 = vmatpush1.msra.mxu0 %v574
      %2389 = vmatprep.subr.mxu0 %v578
      %2390 = vmatpush1.msra.mxu0 %v577
      %2391 = vmatprep.subr.mxu0 %v581
      %2392 = vmatpush1.msra.mxu0 %v580
      %2393 = vmatprep.subr.mxu0 %v584
      %2394 = vmatpush1.msra.mxu0 %v583
      %2395 = vmatprep.subr.mxu0 %v587
      %2396 = vmatpush1.msra.mxu0 %v586
      %2397 = vmatprep.subr.mxu0 %v590
      %2398 = vmatpush1.msra.mxu0 %v589
      %2399 = vmatprep.subr.mxu0 %v593
      %2400 = vmatpush1.msra.mxu0 %v592
      %2401 = vmatprep.subr.mxu0 %v596
      %2402 = vmatpush1.msra.mxu0 %v595
      %2403 = vmatprep.subr.mxu0 %v599
      %2404 = vmatpush1.msra.mxu0 %v598
      %2405 = vmatprep.mubr.f32.mxu0 %v668
      %2406 = vmatmul.mubr.f32.gmra.mrb[0].mxu0 %v2338
      %v2407 = vpop.f32.mrb[0].mxu0
      %v2408 = vadd.f32 %v758, %v2407
      %v2409 = vpop.f32.mrb[0].mxu0
      %v2410 = vadd.f32 %v762, %v2409
      %2411 = vdwg.mxu0
      %2412 = vmatprep.subr.mxu0 0.0
      %2413 = vmatpush1.msra.mxu0 %v507
      %2414 = vmatprep.subr.mxu0 0.0
      %2415 = vmatpush1.msra.mxu0 %v510
      %2416 = vmatprep.subr.mxu0 0.0
      %2417 = vmatpush1.msra.mxu0 %v513
      %2418 = vmatprep.subr.mxu0 0.0
      %2419 = vmatpush1.msra.mxu0 %v516
      %2420 = vmatprep.subr.mxu0 0.0
      %2421 = vmatpush1.msra.mxu0 %v519
      %2422 = vmatprep.subr.mxu0 0.0
      %2423 = vmatpush1.msra.mxu0 %v522
      %2424 = vmatprep.subr.mxu0 0.0
      %2425 = vmatpush1.msra.mxu0 %v525
      %2426 = vmatprep.subr.mxu0 0.0
      %2427 = vmatpush1.msra.mxu0 %v528
      %2428 = vmatprep.subr.mxu0 0.0
      %2429 = vmatpush1.msra.mxu0 %v531
      %2430 = vmatprep.subr.mxu0 0.0
      %2431 = vmatpush1.msra.mxu0 %v534
      %2432 = vmatprep.subr.mxu0 0.0
      %2433 = vmatpush1.msra.mxu0 %v537
      %2434 = vmatprep.subr.mxu0 0.0
      %2435 = vmatpush1.msra.mxu0 %v540
      %2436 = vmatprep.subr.mxu0 0.0
      %2437 = vmatpush1.msra.mxu0 %v543
      %2438 = vmatprep.subr.mxu0 0.0
      %2439 = vmatpush1.msra.mxu0 %v546
      %2440 = vmatprep.subr.mxu0 0.0
      %2441 = vmatpush1.msra.mxu0 %v549
      %2442 = vmatprep.subr.mxu0 0.0
      %2443 = vmatpush1.msra.mxu0 %v552
      %2444 = vmatprep.subr.mxu0 0.0
      %2445 = vmatpush1.msra.mxu0 %v555
      %2446 = vmatprep.subr.mxu0 0.0
      %2447 = vmatpush1.msra.mxu0 %v558
      %2448 = vmatprep.subr.mxu0 0.0
      %2449 = vmatpush1.msra.mxu0 %v561
      %2450 = vmatprep.subr.mxu0 0.0
      %2451 = vmatpush1.msra.mxu0 %v564
      %2452 = vmatprep.subr.mxu0 0.0
      %2453 = vmatpush1.msra.mxu0 %v567
      %2454 = vmatprep.subr.mxu0 0.0
      %2455 = vmatpush1.msra.mxu0 %v570
      %2456 = vmatprep.subr.mxu0 0.0
      %2457 = vmatpush1.msra.mxu0 %v573
      %2458 = vmatprep.subr.mxu0 0.0
      %2459 = vmatpush1.msra.mxu0 %v576
      %2460 = vmatprep.subr.mxu0 0.0
      %2461 = vmatpush1.msra.mxu0 %v579
      %2462 = vmatprep.subr.mxu0 0.0
      %2463 = vmatpush1.msra.mxu0 %v582
      %2464 = vmatprep.subr.mxu0 0.0
      %2465 = vmatpush1.msra.mxu0 %v585
      %2466 = vmatprep.subr.mxu0 0.0
      %2467 = vmatpush1.msra.mxu0 %v588
      %2468 = vmatprep.subr.mxu0 0.0
      %2469 = vmatpush1.msra.mxu0 %v591
      %2470 = vmatprep.subr.mxu0 0.0
      %2471 = vmatpush1.msra.mxu0 %v594
      %2472 = vmatprep.subr.mxu0 0.0
      %2473 = vmatpush1.msra.mxu0 %v597
      %2474 = vmatprep.subr.mxu0 0.0
      %2475 = vmatpush1.msra.mxu0 %v600
      %2476 = vmatprep.mubr.f32.mxu0 %v668
      %2477 = vmatmul.mubr.f32.gmra.mrb[0].mxu0 %v2338
      %v2478 = vpop.f32.mrb[0].mxu0
      %v2479 = vadd.f32 %v766, %v2478
      %v2480 = vpop.f32.mrb[0].mxu0
      %2481 = vdwg.mxu0
      %2482 = vmatprep.subr.mxu0 %v603
      %2483 = vmatpush1.msra.mxu0 %v602
      %2484 = vmatprep.subr.mxu0 %v606
      %2485 = vmatpush1.msra.mxu0 %v605
      %2486 = vmatprep.subr.mxu0 %v609
      %2487 = vmatpush1.msra.mxu0 %v608
      %2488 = vmatprep.subr.mxu0 %v612
      %2489 = vmatpush1.msra.mxu0 %v611
      %2490 = vmatprep.subr.mxu0 %v615
      %2491 = vmatpush1.msra.mxu0 %v614
      %2492 = vmatprep.subr.mxu0 %v618
      %2493 = vmatpush1.msra.mxu0 %v617
      %2494 = vmatprep.subr.mxu0 %v621
      %2495 = vmatpush1.msra.mxu0 %v620
      %2496 = vmatprep.subr.mxu0 %v624
      %2497 = vmatpush1.msra.mxu0 %v623
      %2498 = vmatprep.subr.mxu0 %v627
      %2499 = vmatpush1.msra.mxu0 %v626
      %2500 = vmatprep.subr.mxu0 %v630
      %2501 = vmatpush1.msra.mxu0 %v629
      %2502 = vmatprep.subr.mxu0 %v633
      %2503 = vmatpush1.msra.mxu0 %v632
      %2504 = vmatprep.subr.mxu0 %v636
      %2505 = vmatpush1.msra.mxu0 %v635
      %2506 = vmatprep.subr.mxu0 %v639
      %2507 = vmatpush1.msra.mxu0 %v638
      %2508 = vmatprep.subr.mxu0 %v642
      %2509 = vmatpush1.msra.mxu0 %v641
      %2510 = vmatprep.subr.mxu0 %v645
      %2511 = vmatpush1.msra.mxu0 %v644
      %2512 = vmatprep.subr.mxu0 %v648
      %2513 = vmatpush1.msra.mxu0 %v647
      %2514 = vmatprep.subr.mxu0 0.0
      %2515 = vmatpush1.msra.mxu0 0.0
      %2516 = vmatprep.subr.mxu0 0.0
      %2517 = vmatpush1.msra.mxu0 0.0
      %2518 = vmatprep.subr.mxu0 0.0
      %2519 = vmatpush1.msra.mxu0 0.0
      %2520 = vmatprep.subr.mxu0 0.0
      %2521 = vmatpush1.msra.mxu0 0.0
      %2522 = vmatprep.subr.mxu0 0.0
      %2523 = vmatpush1.msra.mxu0 0.0
      %2524 = vmatprep.subr.mxu0 0.0
      %2525 = vmatpush1.msra.mxu0 0.0
      %2526 = vmatprep.subr.mxu0 0.0
      %2527 = vmatpush1.msra.mxu0 0.0
      %2528 = vmatprep.subr.mxu0 0.0
      %2529 = vmatpush1.msra.mxu0 0.0
      %2530 = vmatprep.subr.mxu0 0.0
      %2531 = vmatpush1.msra.mxu0 0.0
      %2532 = vmatprep.subr.mxu0 0.0
      %2533 = vmatpush1.msra.mxu0 0.0
      %2534 = vmatprep.subr.mxu0 0.0
      %2535 = vmatpush1.msra.mxu0 0.0
      %2536 = vmatprep.subr.mxu0 0.0
      %2537 = vmatpush1.msra.mxu0 0.0
      %2538 = vmatprep.subr.mxu0 0.0
      %2539 = vmatpush1.msra.mxu0 0.0
      %2540 = vmatprep.subr.mxu0 0.0
      %2541 = vmatpush1.msra.mxu0 0.0
      %2542 = vmatprep.subr.mxu0 0.0
      %2543 = vmatpush1.msra.mxu0 0.0
      %2544 = vmatprep.subr.mxu0 0.0
      %2545 = vmatpush1.msra.mxu0 0.0
      %2546 = vmatprep.mubr.f32.mxu0 0.0
      %2547 = vmatmul.mubr.f32.gmra.mrb[0].mxu0 %v2127
      %v2548 = vpop.f32.mrb[0].mxu0
      %v2549 = vadd.f32 %v915, %v2548
      %v2550 = vpop.f32.mrb[0].mxu0
      %v2551 = vadd.f32 %v919, %v2550
      %2552 = vdwg.mxu0
      %2553 = vmatprep.subr.mxu0 0.0
      %2554 = vmatpush1.msra.mxu0 %v604
      %2555 = vmatprep.subr.mxu0 0.0
      %2556 = vmatpush1.msra.mxu0 %v607
      %2557 = vmatprep.subr.mxu0 0.0
      %2558 = vmatpush1.msra.mxu0 %v610
      %2559 = vmatprep.subr.mxu0 0.0
      %2560 = vmatpush1.msra.mxu0 %v613
      %2561 = vmatprep.subr.mxu0 0.0
      %2562 = vmatpush1.msra.mxu0 %v616
      %2563 = vmatprep.subr.mxu0 0.0
      %2564 = vmatpush1.msra.mxu0 %v619
      %2565 = vmatprep.subr.mxu0 0.0
      %2566 = vmatpush1.msra.mxu0 %v622
      %2567 = vmatprep.subr.mxu0 0.0
      %2568 = vmatpush1.msra.mxu0 %v625
      %2569 = vmatprep.subr.mxu0 0.0
      %2570 = vmatpush1.msra.mxu0 %v628
      %2571 = vmatprep.subr.mxu0 0.0
      %2572 = vmatpush1.msra.mxu0 %v631
      %2573 = vmatprep.subr.mxu0 0.0
      %2574 = vmatpush1.msra.mxu0 %v634
      %2575 = vmatprep.subr.mxu0 0.0
      %2576 = vmatpush1.msra.mxu0 %v637
      %2577 = vmatprep.subr.mxu0 0.0
      %2578 = vmatpush1.msra.mxu0 %v640
      %2579 = vmatprep.subr.mxu0 0.0
      %2580 = vmatpush1.msra.mxu0 %v643
      %2581 = vmatprep.subr.mxu0 0.0
      %2582 = vmatpush1.msra.mxu0 %v646
      %2583 = vmatprep.subr.mxu0 0.0
      %2584 = vmatpush1.msra.mxu0 %v649
      %2585 = vmatprep.subr.mxu0 0.0
      %2586 = vmatpush1.msra.mxu0 0.0
      %2587 = vmatprep.subr.mxu0 0.0
      %2588 = vmatpush1.msra.mxu0 0.0
      %2589 = vmatprep.subr.mxu0 0.0
      %2590 = vmatpush1.msra.mxu0 0.0
      %2591 = vmatprep.subr.mxu0 0.0
      %2592 = vmatpush1.msra.mxu0 0.0
      %2593 = vmatprep.subr.mxu0 0.0
      %2594 = vmatpush1.msra.mxu0 0.0
      %2595 = vmatprep.subr.mxu0 0.0
      %2596 = vmatpush1.msra.mxu0 0.0
      %2597 = vmatprep.subr.mxu0 0.0
      %2598 = vmatpush1.msra.mxu0 0.0
      %2599 = vmatprep.subr.mxu0 0.0
      %2600 = vmatpush1.msra.mxu0 0.0
      %2601 = vmatprep.subr.mxu0 0.0
      %2602 = vmatpush1.msra.mxu0 0.0
      %2603 = vmatprep.subr.mxu0 0.0
      %2604 = vmatpush1.msra.mxu0 0.0
      %2605 = vmatprep.subr.mxu0 0.0
      %2606 = vmatpush1.msra.mxu0 0.0
      %2607 = vmatprep.subr.mxu0 0.0
      %2608 = vmatpush1.msra.mxu0 0.0
      %2609 = vmatprep.subr.mxu0 0.0
      %2610 = vmatpush1.msra.mxu0 0.0
      %2611 = vmatprep.subr.mxu0 0.0
      %2612 = vmatpush1.msra.mxu0 0.0
      %2613 = vmatprep.subr.mxu0 0.0
      %2614 = vmatpush1.msra.mxu0 0.0
      %2615 = vmatprep.subr.mxu0 0.0
      %2616 = vmatpush1.msra.mxu0 0.0
      %2617 = vmatprep.mubr.f32.mxu0 0.0
      %2618 = vmatmul.mubr.f32.gmra.mrb[0].mxu0 %v2127
      %v2619 = vpop.f32.mrb[0].mxu0
      %v2620 = vadd.f32 %v923, %v2619
      %v2621 = vpop.f32.mrb[0].mxu0
      %2622 = vdwg.mxu0
      %v2623 = vadd.f32 %v2408, %v2549
      %v2624 = vxor.u32 %v2623, 2147483648
      %v2625 = vmul.f32 %v2624, 1.442695
      %v2626 = vpow.pop %v2625
      %v2627 = vadd.f32 %v2626, 1.0
      %v2628 = vrcp.pop %v2627
      %v2629 = vmul.f32 1.0, %v2628
      %v2630 = vadd.f32 %v2410, %v2551
      %v2631 = vxor.u32 %v2630, 2147483648
      %v2632 = vmul.f32 %v2631, 1.442695
      %v2633 = vpow.pop %v2632
      %v2634 = vadd.f32 %v2633, 1.0
      %v2635 = vrcp.pop %v2634
      %v2636 = vmul.f32 1.0, %v2635
      %v2637 = vmul.f32 %v2629, %v2620
      %v2638 = vadd.f32 %v2479, %v2637
      %v2639 = vtanh.pop %v2638
      %v2640 = vsub.f32 1.0, %v2636
      %v2641 = vmul.f32 %v2640, %v2639
      %v2642 = vmul.f32 %v2636, %v2127
      %v2643 = vadd.f32 %v2641, %v2642
      %2644 = vmatprep.subr.mxu0 0.0
      %2645 = vmatpush1.msra.mxu0 %v651
      %2646 = vmatprep.subr.mxu0 0.0
      %2647 = vmatpush1.msra.mxu0 %v652
      %2648 = vmatprep.subr.mxu0 0.0
      %2649 = vmatpush1.msra.mxu0 %v653
      %2650 = vmatprep.subr.mxu0 0.0
      %2651 = vmatpush1.msra.mxu0 %v654
      %2652 = vmatprep.subr.mxu0 0.0
      %2653 = vmatpush1.msra.mxu0 %v655
      %2654 = vmatprep.subr.mxu0 0.0
      %2655 = vmatpush1.msra.mxu0 %v656
      %2656 = vmatprep.subr.mxu0 0.0
      %2657 = vmatpush1.msra.mxu0 %v657
      %2658 = vmatprep.subr.mxu0 0.0
      %2659 = vmatpush1.msra.mxu0 %v658
      %2660 = vmatprep.subr.mxu0 0.0
      %2661 = vmatpush1.msra.mxu0 %v659
      %2662 = vmatprep.subr.mxu0 0.0
      %2663 = vmatpush1.msra.mxu0 %v660
      %2664 = vmatprep.subr.mxu0 0.0
      %2665 = vmatpush1.msra.mxu0 %v661
      %2666 = vmatprep.subr.mxu0 0.0
      %2667 = vmatpush1.msra.mxu0 %v662
      %2668 = vmatprep.subr.mxu0 0.0
      %2669 = vmatpush1.msra.mxu0 %v663
      %2670 = vmatprep.subr.mxu0 0.0
      %2671 = vmatpush1.msra.mxu0 %v664
      %2672 = vmatprep.subr.mxu0 0.0
      %2673 = vmatpush1.msra.mxu0 %v665
      %2674 = vmatprep.subr.mxu0 0.0
      %2675 = vmatpush1.msra.mxu0 %v666
      %2676 = vmatprep.subr.mxu0 0.0
      %2677 = vmatpush1.msra.mxu0 0.0
      %2678 = vmatprep.subr.mxu0 0.0
      %2679 = vmatpush1.msra.mxu0 0.0
      %2680 = vmatprep.subr.mxu0 0.0
      %2681 = vmatpush1.msra.mxu0 0.0
      %2682 = vmatprep.subr.mxu0 0.0
      %2683 = vmatpush1.msra.mxu0 0.0
      %2684 = vmatprep.subr.mxu0 0.0
      %2685 = vmatpush1.msra.mxu0 0.0
      %2686 = vmatprep.subr.mxu0 0.0
      %2687 = vmatpush1.msra.mxu0 0.0
      %2688 = vmatprep.subr.mxu0 0.0
      %2689 = vmatpush1.msra.mxu0 0.0
      %2690 = vmatprep.subr.mxu0 0.0
      %2691 = vmatpush1.msra.mxu0 0.0
      %2692 = vmatprep.subr.mxu0 0.0
      %2693 = vmatpush1.msra.mxu0 0.0
      %2694 = vmatprep.subr.mxu0 0.0
      %2695 = vmatpush1.msra.mxu0 0.0
      %2696 = vmatprep.subr.mxu0 0.0
      %2697 = vmatpush1.msra.mxu0 0.0
      %2698 = vmatprep.subr.mxu0 0.0
      %2699 = vmatpush1.msra.mxu0 0.0
      %2700 = vmatprep.subr.mxu0 0.0
      %2701 = vmatpush1.msra.mxu0 0.0
      %2702 = vmatprep.subr.mxu0 0.0
      %2703 = vmatpush1.msra.mxu0 0.0
      %2704 = vmatprep.subr.mxu0 0.0
      %2705 = vmatpush1.msra.mxu0 0.0
      %2706 = vmatprep.subr.mxu0 0.0
      %2707 = vmatpush1.msra.mxu0 0.0
      %2708 = vmatprep.mubr.f32.mxu0 0.0
      %2709 = vmatmul.mubr.f32.gmra.mrb[0].mxu0 %v2643
      %v2710 = vpop.f32.mrb[0].mxu0
      %v2711 = vadd.f32 %v1093, %v2710
      %v2712 = vpop.f32.mrb[0].mxu0
      %2713 = vdwg.mxu0
      %v2716 = vunpack.c.l.s4 1966171168
      %v2717 = vunpack.c.0.s8 %v2716
      %v2718 = vlaneseq
      %v2719 = vshrl.u32 %v2718, 7
      %v2720 = vsub.s32 %v2717, %v2719
      %v2721 = vrot.slane %v2711, %v2720
      %v2722 = vcombine.high %v2721, %v2721
      %v2724 = vunpack.c.l.s4 1966171168
      %v2725 = vunpack.c.0.s8 %v2724
      %v2726 = vlaneseq
      %v2727 = vshrl.u32 %v2726, 7
      %v2728 = vsub.s32 %v2725, %v2727
      %v2729 = vrot.slane %v2721, %v2728
      %v2731 = vunpack.c.l.s4 1966171168
      %v2732 = vunpack.c.0.s8 %v2731
      %v2733 = vlaneseq
      %v2734 = vshrl.u32 %v2733, 7
      %v2735 = vsub.s32 %v2732, %v2734
      %v2736 = vrot.slane %v2722, %v2735
      %2739 = vst [vmem:[%s486 + $0x3] sm:$0x1] %v2729
      %2740 = vst [vmem:[%s486 + $0xb] sm:$0x1] %v2736
      %v2741 = vsel %vm1192, %v2711, -inf
      %2742 = vmax.xlane.f32.xlu0 %v2741
      %v2743 = vpop.xlane.xlu0 %2742
      %vm2744 = vcmp.ge.f32.partialorder %v2711, %v2743
      %v2745 = vsel %vm2744, %v488, 128
      %v2746 = vsel %vm1192, %v2745, 2147483647
      %v2747 = vand.u32 %v2746, 65535
      %v2748 = vshra.s32 %v2746, 16
      %v2749 = vcvt.s32.f32 %v2747
      %v2750 = vcvt.s32.f32 %v2748
      %2751 = vmin.xlane.f32.xlu0 %v2750
      %v2752 = vpop.xlane.xlu0 %2751
      %vm2753 = vcmp.eq.f32.partialorder %v2750, %v2752
      %v2754 = vsel %vm2753, %v2749, inf
      %2755 = vmin.xlane.f32.xlu0 %v2754
      %v2756 = vpop.xlane.xlu0 %2755
      %v2757 = vcvt.f32.s32 %v2756
      %v2758 = vcvt.f32.s32 %v2752
      %v2759 = vshll.u32 %v2758, 16
      %v2760 = vadd.s32 %v2759, %v2757
      %vm2761 = vcmp.eq.s32.totalorder %v488, %v2760
      %v2762 = vsel %vm2761, 1, 0
      %v2763 = vcvt.s32.f32 %v2762
      %s2764 = sadd.s32 %s670, 8
      %s2765 = sld [smem:[#allocation4 + %s2764]]
      %v2766 = vstv %s2765
      %vm2767 = vcmp.eq.s32.totalorder %v488, %v2766
      %v2768 = vsel %vm2767, 1, 0
      %v2769 = vcvt.s32.f32 %v2768
      %s2770 = sadd.s32 %s670, 9
      %s2771 = sld [smem:[#allocation4 + %s2770]]
      %v2772 = vstv %s2771
      %vm2773 = vcmp.eq.s32.totalorder %v488, %v2772
      %v2774 = vsel %vm2773, 1, 0
      %v2775 = vcvt.s32.f32 %v2774
      %v2776 = vsel %vm682, %v2769, %v2775
      %s2777 = sld [smem:[#allocation3 + %s1222]]
      %p2778 = scmp.gt.s32.totalorder %s2777, 0
      %s2779 = scalar_select %p2778, 1, 0
      %s2780 = scvt.s32.f32 %s2779
      %v2781 = vstv %s2780
      %v2782 = vmul.f32 %v2781, %v2776
      %s2783 = ssub.f32 1.0, %s2780
      %v2784 = vstv %s2783
      %v2785 = vmul.f32 %v2784, %v2763
      %v2786 = vadd.f32 %v2782, %v2785
      %2787 = vmatprep.subr.mxu0 0.0
      %2788 = vmatpush1.msra.mxu0 %v489
      %2789 = vmatprep.subr.mxu0 0.0
      %2790 = vmatpush1.msra.mxu0 %v490
      %2791 = vmatprep.subr.mxu0 0.0
      %2792 = vmatpush1.msra.mxu0 %v491
      %2793 = vmatprep.subr.mxu0 0.0
      %2794 = vmatpush1.msra.mxu0 %v492
      %2795 = vmatprep.subr.mxu0 0.0
      %2796 = vmatpush1.msra.mxu0 %v493
      %2797 = vmatprep.subr.mxu0 0.0
      %2798 = vmatpush1.msra.mxu0 %v494
      %2799 = vmatprep.subr.mxu0 0.0
      %2800 = vmatpush1.msra.mxu0 %v495
      %2801 = vmatprep.subr.mxu0 0.0
      %2802 = vmatpush1.msra.mxu0 %v496
      %2803 = vmatprep.subr.mxu0 0.0
      %2804 = vmatpush1.msra.mxu0 %v497
      %2805 = vmatprep.subr.mxu0 0.0
      %2806 = vmatpush1.msra.mxu0 %v498
      %2807 = vmatprep.subr.mxu0 0.0
      %2808 = vmatpush1.msra.mxu0 %v499
      %2809 = vmatprep.subr.mxu0 0.0
      %2810 = vmatpush1.msra.mxu0 %v500
      %2811 = vmatprep.subr.mxu0 0.0
      %2812 = vmatpush1.msra.mxu0 %v501
      %2813 = vmatprep.subr.mxu0 0.0
      %2814 = vmatpush1.msra.mxu0 %v502
      %2815 = vmatprep.subr.mxu0 0.0
      %2816 = vmatpush1.msra.mxu0 %v503
      %2817 = vmatprep.subr.mxu0 0.0
      %2818 = vmatpush1.msra.mxu0 %v504
      %2819 = vmatprep.subr.mxu0 0.0
      %2820 = vmatpush1.msra.mxu0 0.0
      %2821 = vmatprep.subr.mxu0 0.0
      %2822 = vmatpush1.msra.mxu0 0.0
      %2823 = vmatprep.subr.mxu0 0.0
      %2824 = vmatpush1.msra.mxu0 0.0
      %2825 = vmatprep.subr.mxu0 0.0
      %2826 = vmatpush1.msra.mxu0 0.0
      %2827 = vmatprep.subr.mxu0 0.0
      %2828 = vmatpush1.msra.mxu0 0.0
      %2829 = vmatprep.subr.mxu0 0.0
      %2830 = vmatpush1.msra.mxu0 0.0
      %2831 = vmatprep.subr.mxu0 0.0
      %2832 = vmatpush1.msra.mxu0 0.0
      %2833 = vmatprep.subr.mxu0 0.0
      %2834 = vmatpush1.msra.mxu0 0.0
      %2835 = vmatprep.subr.mxu0 0.0
      %2836 = vmatpush1.msra.mxu0 0.0
      %2837 = vmatprep.subr.mxu0 0.0
      %2838 = vmatpush1.msra.mxu0 0.0
      %2839 = vmatprep.subr.mxu0 0.0
      %2840 = vmatpush1.msra.mxu0 0.0
      %2841 = vmatprep.subr.mxu0 0.0
      %2842 = vmatpush1.msra.mxu0 0.0
      %2843 = vmatprep.subr.mxu0 0.0
      %2844 = vmatpush1.msra.mxu0 0.0
      %2845 = vmatprep.subr.mxu0 0.0
      %2846 = vmatpush1.msra.mxu0 0.0
      %2847 = vmatprep.subr.mxu0 0.0
      %2848 = vmatpush1.msra.mxu0 0.0
      %2849 = vmatprep.subr.mxu0 0.0
      %2850 = vmatpush1.msra.mxu0 0.0
      %2851 = vmatprep.mubr.f32.mxu0 0.0
      %2852 = vmatmul.mubr.f32.gmra.mrb[0].mxu0 %v2786
      %v2853 = vpop.f32.mrb[0].mxu0
      %v2854 = vadd.f32 0.0, %v2853
      %v2855 = vpop.f32.mrb[0].mxu0
      %2856 = vdwg.mxu0
      %2857 = vmatprep.subr.mxu0 %v506
      %2858 = vmatpush1.msra.mxu0 %v505
      %2859 = vmatprep.subr.mxu0 %v509
      %2860 = vmatpush1.msra.mxu0 %v508
      %2861 = vmatprep.subr.mxu0 %v512
      %2862 = vmatpush1.msra.mxu0 %v511
      %2863 = vmatprep.subr.mxu0 %v515
      %2864 = vmatpush1.msra.mxu0 %v514
      %2865 = vmatprep.subr.mxu0 %v518
      %2866 = vmatpush1.msra.mxu0 %v517
      %2867 = vmatprep.subr.mxu0 %v521
      %2868 = vmatpush1.msra.mxu0 %v520
      %2869 = vmatprep.subr.mxu0 %v524
      %2870 = vmatpush1.msra.mxu0 %v523
      %2871 = vmatprep.subr.mxu0 %v527
      %2872 = vmatpush1.msra.mxu0 %v526
      %2873 = vmatprep.subr.mxu0 %v530
      %2874 = vmatpush1.msra.mxu0 %v529
      %2875 = vmatprep.subr.mxu0 %v533
      %2876 = vmatpush1.msra.mxu0 %v532
      %2877 = vmatprep.subr.mxu0 %v536
      %2878 = vmatpush1.msra.mxu0 %v535
      %2879 = vmatprep.subr.mxu0 %v539
      %2880 = vmatpush1.msra.mxu0 %v538
      %2881 = vmatprep.subr.mxu0 %v542
      %2882 = vmatpush1.msra.mxu0 %v541
      %2883 = vmatprep.subr.mxu0 %v545
      %2884 = vmatpush1.msra.mxu0 %v544
      %2885 = vmatprep.subr.mxu0 %v548
      %2886 = vmatpush1.msra.mxu0 %v547
      %2887 = vmatprep.subr.mxu0 %v551
      %2888 = vmatpush1.msra.mxu0 %v550
      %2889 = vmatprep.subr.mxu0 %v554
      %2890 = vmatpush1.msra.mxu0 %v553
      %2891 = vmatprep.subr.mxu0 %v557
      %2892 = vmatpush1.msra.mxu0 %v556
      %2893 = vmatprep.subr.mxu0 %v560
      %2894 = vmatpush1.msra.mxu0 %v559
      %2895 = vmatprep.subr.mxu0 %v563
      %2896 = vmatpush1.msra.mxu0 %v562
      %2897 = vmatprep.subr.mxu0 %v566
      %2898 = vmatpush1.msra.mxu0 %v565
      %2899 = vmatprep.subr.mxu0 %v569
      %2900 = vmatpush1.msra.mxu0 %v568
      %2901 = vmatprep.subr.mxu0 %v572
      %2902 = vmatpush1.msra.mxu0 %v571
      %2903 = vmatprep.subr.mxu0 %v575
      %2904 = vmatpush1.msra.mxu0 %v574
      %2905 = vmatprep.subr.mxu0 %v578
      %2906 = vmatpush1.msra.mxu0 %v577
      %2907 = vmatprep.subr.mxu0 %v581
      %2908 = vmatpush1.msra.mxu0 %v580
      %2909 = vmatprep.subr.mxu0 %v584
      %2910 = vmatpush1.msra.mxu0 %v583
      %2911 = vmatprep.subr.mxu0 %v587
      %2912 = vmatpush1.msra.mxu0 %v586
      %2913 = vmatprep.subr.mxu0 %v590
      %2914 = vmatpush1.msra.mxu0 %v589
      %2915 = vmatprep.subr.mxu0 %v593
      %2916 = vmatpush1.msra.mxu0 %v592
      %2917 = vmatprep.subr.mxu0 %v596
      %2918 = vmatpush1.msra.mxu0 %v595
      %2919 = vmatprep.subr.mxu0 %v599
      %2920 = vmatpush1.msra.mxu0 %v598
      %2921 = vmatprep.mubr.f32.mxu0 %v668
      %2922 = vmatmul.mubr.f32.gmra.mrb[0].mxu0 %v2854
      %v2923 = vpop.f32.mrb[0].mxu0
      %v2924 = vadd.f32 %v758, %v2923
      %v2925 = vpop.f32.mrb[0].mxu0
      %v2926 = vadd.f32 %v762, %v2925
      %2927 = vdwg.mxu0
      %2928 = vmatprep.subr.mxu0 0.0
      %2929 = vmatpush1.msra.mxu0 %v507
      %2930 = vmatprep.subr.mxu0 0.0
      %2931 = vmatpush1.msra.mxu0 %v510
      %2932 = vmatprep.subr.mxu0 0.0
      %2933 = vmatpush1.msra.mxu0 %v513
      %2934 = vmatprep.subr.mxu0 0.0
      %2935 = vmatpush1.msra.mxu0 %v516
      %2936 = vmatprep.subr.mxu0 0.0
      %2937 = vmatpush1.msra.mxu0 %v519
      %2938 = vmatprep.subr.mxu0 0.0
      %2939 = vmatpush1.msra.mxu0 %v522
      %2940 = vmatprep.subr.mxu0 0.0
      %2941 = vmatpush1.msra.mxu0 %v525
      %2942 = vmatprep.subr.mxu0 0.0
      %2943 = vmatpush1.msra.mxu0 %v528
      %2944 = vmatprep.subr.mxu0 0.0
      %2945 = vmatpush1.msra.mxu0 %v531
      %2946 = vmatprep.subr.mxu0 0.0
      %2947 = vmatpush1.msra.mxu0 %v534
      %2948 = vmatprep.subr.mxu0 0.0
      %2949 = vmatpush1.msra.mxu0 %v537
      %2950 = vmatprep.subr.mxu0 0.0
      %2951 = vmatpush1.msra.mxu0 %v540
      %2952 = vmatprep.subr.mxu0 0.0
      %2953 = vmatpush1.msra.mxu0 %v543
      %2954 = vmatprep.subr.mxu0 0.0
      %2955 = vmatpush1.msra.mxu0 %v546
      %2956 = vmatprep.subr.mxu0 0.0
      %2957 = vmatpush1.msra.mxu0 %v549
      %2958 = vmatprep.subr.mxu0 0.0
      %2959 = vmatpush1.msra.mxu0 %v552
      %2960 = vmatprep.subr.mxu0 0.0
      %2961 = vmatpush1.msra.mxu0 %v555
      %2962 = vmatprep.subr.mxu0 0.0
      %2963 = vmatpush1.msra.mxu0 %v558
      %2964 = vmatprep.subr.mxu0 0.0
      %2965 = vmatpush1.msra.mxu0 %v561
      %2966 = vmatprep.subr.mxu0 0.0
      %2967 = vmatpush1.msra.mxu0 %v564
      %2968 = vmatprep.subr.mxu0 0.0
      %2969 = vmatpush1.msra.mxu0 %v567
      %2970 = vmatprep.subr.mxu0 0.0
      %2971 = vmatpush1.msra.mxu0 %v570
      %2972 = vmatprep.subr.mxu0 0.0
      %2973 = vmatpush1.msra.mxu0 %v573
      %2974 = vmatprep.subr.mxu0 0.0
      %2975 = vmatpush1.msra.mxu0 %v576
      %2976 = vmatprep.subr.mxu0 0.0
      %2977 = vmatpush1.msra.mxu0 %v579
      %2978 = vmatprep.subr.mxu0 0.0
      %2979 = vmatpush1.msra.mxu0 %v582
      %2980 = vmatprep.subr.mxu0 0.0
      %2981 = vmatpush1.msra.mxu0 %v585
      %2982 = vmatprep.subr.mxu0 0.0
      %2983 = vmatpush1.msra.mxu0 %v588
      %2984 = vmatprep.subr.mxu0 0.0
      %2985 = vmatpush1.msra.mxu0 %v591
      %2986 = vmatprep.subr.mxu0 0.0
      %2987 = vmatpush1.msra.mxu0 %v594
      %2988 = vmatprep.subr.mxu0 0.0
      %2989 = vmatpush1.msra.mxu0 %v597
      %2990 = vmatprep.subr.mxu0 0.0
      %2991 = vmatpush1.msra.mxu0 %v600
      %2992 = vmatprep.mubr.f32.mxu0 %v668
      %2993 = vmatmul.mubr.f32.gmra.mrb[0].mxu0 %v2854
      %v2994 = vpop.f32.mrb[0].mxu0
      %v2995 = vadd.f32 %v766, %v2994
      %v2996 = vpop.f32.mrb[0].mxu0
      %2997 = vdwg.mxu0
      %2998 = vmatprep.subr.mxu0 %v603
      %2999 = vmatpush1.msra.mxu0 %v602
      %3000 = vmatprep.subr.mxu0 %v606
      %3001 = vmatpush1.msra.mxu0 %v605
      %3002 = vmatprep.subr.mxu0 %v609
      %3003 = vmatpush1.msra.mxu0 %v608
      %3004 = vmatprep.subr.mxu0 %v612
      %3005 = vmatpush1.msra.mxu0 %v611
      %3006 = vmatprep.subr.mxu0 %v615
      %3007 = vmatpush1.msra.mxu0 %v614
      %3008 = vmatprep.subr.mxu0 %v618
      %3009 = vmatpush1.msra.mxu0 %v617
      %3010 = vmatprep.subr.mxu0 %v621
      %3011 = vmatpush1.msra.mxu0 %v620
      %3012 = vmatprep.subr.mxu0 %v624
      %3013 = vmatpush1.msra.mxu0 %v623
      %3014 = vmatprep.subr.mxu0 %v627
      %3015 = vmatpush1.msra.mxu0 %v626
      %3016 = vmatprep.subr.mxu0 %v630
      %3017 = vmatpush1.msra.mxu0 %v629
      %3018 = vmatprep.subr.mxu0 %v633
      %3019 = vmatpush1.msra.mxu0 %v632
      %3020 = vmatprep.subr.mxu0 %v636
      %3021 = vmatpush1.msra.mxu0 %v635
      %3022 = vmatprep.subr.mxu0 %v639
      %3023 = vmatpush1.msra.mxu0 %v638
      %3024 = vmatprep.subr.mxu0 %v642
      %3025 = vmatpush1.msra.mxu0 %v641
      %3026 = vmatprep.subr.mxu0 %v645
      %3027 = vmatpush1.msra.mxu0 %v644
      %3028 = vmatprep.subr.mxu0 %v648
      %3029 = vmatpush1.msra.mxu0 %v647
      %3030 = vmatprep.subr.mxu0 0.0
      %3031 = vmatpush1.msra.mxu0 0.0
      %3032 = vmatprep.subr.mxu0 0.0
      %3033 = vmatpush1.msra.mxu0 0.0
      %3034 = vmatprep.subr.mxu0 0.0
      %3035 = vmatpush1.msra.mxu0 0.0
      %3036 = vmatprep.subr.mxu0 0.0
      %3037 = vmatpush1.msra.mxu0 0.0
      %3038 = vmatprep.subr.mxu0 0.0
      %3039 = vmatpush1.msra.mxu0 0.0
      %3040 = vmatprep.subr.mxu0 0.0
      %3041 = vmatpush1.msra.mxu0 0.0
      %3042 = vmatprep.subr.mxu0 0.0
      %3043 = vmatpush1.msra.mxu0 0.0
      %3044 = vmatprep.subr.mxu0 0.0
      %3045 = vmatpush1.msra.mxu0 0.0
      %3046 = vmatprep.subr.mxu0 0.0
      %3047 = vmatpush1.msra.mxu0 0.0
      %3048 = vmatprep.subr.mxu0 0.0
      %3049 = vmatpush1.msra.mxu0 0.0
      %3050 = vmatprep.subr.mxu0 0.0
      %3051 = vmatpush1.msra.mxu0 0.0
      %3052 = vmatprep.subr.mxu0 0.0
      %3053 = vmatpush1.msra.mxu0 0.0
      %3054 = vmatprep.subr.mxu0 0.0
      %3055 = vmatpush1.msra.mxu0 0.0
      %3056 = vmatprep.subr.mxu0 0.0
      %3057 = vmatpush1.msra.mxu0 0.0
      %3058 = vmatprep.subr.mxu0 0.0
      %3059 = vmatpush1.msra.mxu0 0.0
      %3060 = vmatprep.subr.mxu0 0.0
      %3061 = vmatpush1.msra.mxu0 0.0
      %3062 = vmatprep.mubr.f32.mxu0 0.0
      %3063 = vmatmul.mubr.f32.gmra.mrb[0].mxu0 %v2643
      %v3064 = vpop.f32.mrb[0].mxu0
      %v3065 = vadd.f32 %v915, %v3064
      %v3066 = vpop.f32.mrb[0].mxu0
      %v3067 = vadd.f32 %v919, %v3066
      %3068 = vdwg.mxu0
      %3069 = vmatprep.subr.mxu0 0.0
      %3070 = vmatpush1.msra.mxu0 %v604
      %3071 = vmatprep.subr.mxu0 0.0
      %3072 = vmatpush1.msra.mxu0 %v607
      %3073 = vmatprep.subr.mxu0 0.0
      %3074 = vmatpush1.msra.mxu0 %v610
      %3075 = vmatprep.subr.mxu0 0.0
      %3076 = vmatpush1.msra.mxu0 %v613
      %3077 = vmatprep.subr.mxu0 0.0
      %3078 = vmatpush1.msra.mxu0 %v616
      %3079 = vmatprep.subr.mxu0 0.0
      %3080 = vmatpush1.msra.mxu0 %v619
      %3081 = vmatprep.subr.mxu0 0.0
      %3082 = vmatpush1.msra.mxu0 %v622
      %3083 = vmatprep.subr.mxu0 0.0
      %3084 = vmatpush1.msra.mxu0 %v625
      %3085 = vmatprep.subr.mxu0 0.0
      %3086 = vmatpush1.msra.mxu0 %v628
      %3087 = vmatprep.subr.mxu0 0.0
      %3088 = vmatpush1.msra.mxu0 %v631
      %3089 = vmatprep.subr.mxu0 0.0
      %3090 = vmatpush1.msra.mxu0 %v634
      %3091 = vmatprep.subr.mxu0 0.0
      %3092 = vmatpush1.msra.mxu0 %v637
      %3093 = vmatprep.subr.mxu0 0.0
      %3094 = vmatpush1.msra.mxu0 %v640
      %3095 = vmatprep.subr.mxu0 0.0
      %3096 = vmatpush1.msra.mxu0 %v643
      %3097 = vmatprep.subr.mxu0 0.0
      %3098 = vmatpush1.msra.mxu0 %v646
      %3099 = vmatprep.subr.mxu0 0.0
      %3100 = vmatpush1.msra.mxu0 %v649
      %3101 = vmatprep.subr.mxu0 0.0
      %3102 = vmatpush1.msra.mxu0 0.0
      %3103 = vmatprep.subr.mxu0 0.0
      %3104 = vmatpush1.msra.mxu0 0.0
      %3105 = vmatprep.subr.mxu0 0.0
      %3106 = vmatpush1.msra.mxu0 0.0
      %3107 = vmatprep.subr.mxu0 0.0
      %3108 = vmatpush1.msra.mxu0 0.0
      %3109 = vmatprep.subr.mxu0 0.0
      %3110 = vmatpush1.msra.mxu0 0.0
      %3111 = vmatprep.subr.mxu0 0.0
      %3112 = vmatpush1.msra.mxu0 0.0
      %3113 = vmatprep.subr.mxu0 0.0
      %3114 = vmatpush1.msra.mxu0 0.0
      %3115 = vmatprep.subr.mxu0 0.0
      %3116 = vmatpush1.msra.mxu0 0.0
      %3117 = vmatprep.subr.mxu0 0.0
      %3118 = vmatpush1.msra.mxu0 0.0
      %3119 = vmatprep.subr.mxu0 0.0
      %3120 = vmatpush1.msra.mxu0 0.0
      %3121 = vmatprep.subr.mxu0 0.0
      %3122 = vmatpush1.msra.mxu0 0.0
      %3123 = vmatprep.subr.mxu0 0.0
      %3124 = vmatpush1.msra.mxu0 0.0
      %3125 = vmatprep.subr.mxu0 0.0
      %3126 = vmatpush1.msra.mxu0 0.0
      %3127 = vmatprep.subr.mxu0 0.0
      %3128 = vmatpush1.msra.mxu0 0.0
      %3129 = vmatprep.subr.mxu0 0.0
      %3130 = vmatpush1.msra.mxu0 0.0
      %3131 = vmatprep.subr.mxu0 0.0
      %3132 = vmatpush1.msra.mxu0 0.0
      %3133 = vmatprep.mubr.f32.mxu0 0.0
      %3134 = vmatmul.mubr.f32.gmra.mrb[0].mxu0 %v2643
      %v3135 = vpop.f32.mrb[0].mxu0
      %v3136 = vadd.f32 %v923, %v3135
      %v3137 = vpop.f32.mrb[0].mxu0
      %3138 = vdwg.mxu0
      %v3139 = vadd.f32 %v2924, %v3065
      %v3140 = vxor.u32 %v3139, 2147483648
      %v3141 = vmul.f32 %v3140, 1.442695
      %v3142 = vpow.pop %v3141
      %v3143 = vadd.f32 %v3142, 1.0
      %v3144 = vrcp.pop %v3143
      %v3145 = vmul.f32 1.0, %v3144
      %v3146 = vadd.f32 %v2926, %v3067
      %v3147 = vxor.u32 %v3146, 2147483648
      %v3148 = vmul.f32 %v3147, 1.442695
      %v3149 = vpow.pop %v3148
      %v3150 = vadd.f32 %v3149, 1.0
      %v3151 = vrcp.pop %v3150
      %v3152 = vmul.f32 1.0, %v3151
      %v3153 = vmul.f32 %v3145, %v3136
      %v3154 = vadd.f32 %v2995, %v3153
      %v3155 = vtanh.pop %v3154
      %v3156 = vsub.f32 1.0, %v3152
      %v3157 = vmul.f32 %v3156, %v3155
      %v3158 = vmul.f32 %v3152, %v2643
      %v3159 = vadd.f32 %v3157, %v3158
      %3160 = vmatprep.subr.mxu0 0.0
      %3161 = vmatpush1.msra.mxu0 %v651
      %3162 = vmatprep.subr.mxu0 0.0
      %3163 = vmatpush1.msra.mxu0 %v652
      %3164 = vmatprep.subr.mxu0 0.0
      %3165 = vmatpush1.msra.mxu0 %v653
      %3166 = vmatprep.subr.mxu0 0.0
      %3167 = vmatpush1.msra.mxu0 %v654
      %3168 = vmatprep.subr.mxu0 0.0
      %3169 = vmatpush1.msra.mxu0 %v655
      %3170 = vmatprep.subr.mxu0 0.0
      %3171 = vmatpush1.msra.mxu0 %v656
      %3172 = vmatprep.subr.mxu0 0.0
      %3173 = vmatpush1.msra.mxu0 %v657
      %3174 = vmatprep.subr.mxu0 0.0
      %3175 = vmatpush1.msra.mxu0 %v658
      %3176 = vmatprep.subr.mxu0 0.0
      %3177 = vmatpush1.msra.mxu0 %v659
      %3178 = vmatprep.subr.mxu0 0.0
      %3179 = vmatpush1.msra.mxu0 %v660
      %3180 = vmatprep.subr.mxu0 0.0
      %3181 = vmatpush1.msra.mxu0 %v661
      %3182 = vmatprep.subr.mxu0 0.0
      %3183 = vmatpush1.msra.mxu0 %v662
      %3184 = vmatprep.subr.mxu0 0.0
      %3185 = vmatpush1.msra.mxu0 %v663
      %3186 = vmatprep.subr.mxu0 0.0
      %3187 = vmatpush1.msra.mxu0 %v664
      %3188 = vmatprep.subr.mxu0 0.0
      %3189 = vmatpush1.msra.mxu0 %v665
      %3190 = vmatprep.subr.mxu0 0.0
      %3191 = vmatpush1.msra.mxu0 %v666
      %3192 = vmatprep.subr.mxu0 0.0
      %3193 = vmatpush1.msra.mxu0 0.0
      %3194 = vmatprep.subr.mxu0 0.0
      %3195 = vmatpush1.msra.mxu0 0.0
      %3196 = vmatprep.subr.mxu0 0.0
      %3197 = vmatpush1.msra.mxu0 0.0
      %3198 = vmatprep.subr.mxu0 0.0
      %3199 = vmatpush1.msra.mxu0 0.0
      %3200 = vmatprep.subr.mxu0 0.0
      %3201 = vmatpush1.msra.mxu0 0.0
      %3202 = vmatprep.subr.mxu0 0.0
      %3203 = vmatpush1.msra.mxu0 0.0
      %3204 = vmatprep.subr.mxu0 0.0
      %3205 = vmatpush1.msra.mxu0 0.0
      %3206 = vmatprep.subr.mxu0 0.0
      %3207 = vmatpush1.msra.mxu0 0.0
      %3208 = vmatprep.subr.mxu0 0.0
      %3209 = vmatpush1.msra.mxu0 0.0
      %3210 = vmatprep.subr.mxu0 0.0
      %3211 = vmatpush1.msra.mxu0 0.0
      %3212 = vmatprep.subr.mxu0 0.0
      %3213 = vmatpush1.msra.mxu0 0.0
      %3214 = vmatprep.subr.mxu0 0.0
      %3215 = vmatpush1.msra.mxu0 0.0
      %3216 = vmatprep.subr.mxu0 0.0
      %3217 = vmatpush1.msra.mxu0 0.0
      %3218 = vmatprep.subr.mxu0 0.0
      %3219 = vmatpush1.msra.mxu0 0.0
      %3220 = vmatprep.subr.mxu0 0.0
      %3221 = vmatpush1.msra.mxu0 0.0
      %3222 = vmatprep.subr.mxu0 0.0
      %3223 = vmatpush1.msra.mxu0 0.0
      %3224 = vmatprep.mubr.f32.mxu0 0.0
      %3225 = vmatmul.mubr.f32.gmra.mrb[0].mxu0 %v3159
      %v3226 = vpop.f32.mrb[0].mxu0
      %v3227 = vadd.f32 %v1093, %v3226
      %v3228 = vpop.f32.mrb[0].mxu0
      %3229 = vdwg.mxu0
      %v3232 = vunpack.c.l.s4 1966171168
      %v3233 = vunpack.c.0.s8 %v3232
      %v3234 = vlaneseq
      %v3235 = vshrl.u32 %v3234, 7
      %v3236 = vsub.s32 %v3233, %v3235
      %v3237 = vrot.slane %v3227, %v3236
      %v3238 = vcombine.high %v3237, %v3237
      %v3240 = vunpack.c.l.s4 1966171168
      %v3241 = vunpack.c.0.s8 %v3240
      %v3242 = vlaneseq
      %v3243 = vshrl.u32 %v3242, 7
      %v3244 = vsub.s32 %v3241, %v3243
      %v3245 = vrot.slane %v3237, %v3244
      %v3247 = vunpack.c.l.s4 1966171168
      %v3248 = vunpack.c.0.s8 %v3247
      %v3249 = vlaneseq
      %v3250 = vshrl.u32 %v3249, 7
      %v3251 = vsub.s32 %v3248, %v3250
      %v3252 = vrot.slane %v3238, %v3251
      %3255 = vst [vmem:[%s486 + $0x4] sm:$0x1] %v3245
      %3256 = vst [vmem:[%s486 + $0xc] sm:$0x1] %v3252
      %p3257 = scmp.lt.s32.totalorder %s32, 1
      %s3258 = scalar_select %p3257, %s32, 1
      %s3259 = smul.addr %s3258, 2
      %s3260 = smul.addr %s3259, 8
      %s3261 = scalar_lea.vmem %s11, %s3260
      // Predicated region
      $region57: #{dla_forward.5} parent=55 // pred_check
        %p3262 = pneg %p284
      $region58: #{dla_forward.5} parent=55 // pred_check_branch
        %3264 = sbr.rel (%p3262) target = $region60
      $region59: #{dla_forward.5} parent=55 // pred_region
        _
      $region60: #{dla_forward.5} parent=55 // pred_fallthru
        _
    $region56: #{dla_forward.5} parent=5 // pred_fallthru
      _
    %p3265 = scmp.le.s32.totalorder 2, %s27
    // Predicated region
    $region61: #{dla_forward.5} parent=5 // pred_check
      %p3266 = pneg %p3265
    $region62: #{dla_forward.5} parent=5 // pred_check_branch
      %3268 = sbr.rel (%p3266) target = $region64
    $region63: #{dla_forward.5} parent=5 // pred_region
      %s3269 = ssub.s32 %s27, 2
      // Predicated region
      $region65: #{dla_forward.5} parent=63 // pred_check
        %p3270 = pneg %p290
      $region66: #{dla_forward.5} parent=63 // pred_check_branch
        %3272 = sbr.rel (%p3270) target = $region68
      $region67: #{dla_forward.5} parent=63 // pred_region
        %p3273 = scmp.lt.s32.totalorder %s33, 1
        %s3274 = scalar_select %p3273, %s33, 1
        %s3275 = smul.addr %s3274, 2
        %s3276 = smul.addr %s3275, 8
        %s3277 = scalar_lea.vmem %s11, %s3276
      $region68: #{dla_forward.5} parent=63 // pred_fallthru
        _
    $region64: #{dla_forward.5} parent=5 // pred_fallthru
      _
  $region6: #{dla_forward.5} parent=0 // loop_footer
    %s31 = sadd.s32 1, %s27
  $region7: #{dla_forward.5} parent=0 // loop_footer_branch
    %26 = sbr.rel target = $region3
  $region8: #{dla_forward.5} parent=0 // loop_exit
    _

// kernel: dla_forward.3
$region0: #{dla_forward.3}
  #allocation0 [shape = 'u32[]', space=smem, size = 0x4, offset = 0x4, fixed_abs, tag = 'smem constant byte address 0x4 - core index']
  #allocation1 [shape = 'u32[144,128]{1,0:T(1,128)}', space=vmem, size = 0x12000, scoped, tag = 'internal scratch']
  %s0 = inlined_call_operand.vmem [shape: f32[2,2,18,18,8], index: 0, kind: input, shape index: {}]
  %s1 = inlined_call_operand.vmem [shape: f32[2,128,128], index: 1, kind: input, shape index: {}]
  %s2 = inlined_call_operand.vmem [shape: f32[2,1,128], index: 2, kind: input, shape index: {}]
  %s3 = inlined_call_operand.vmem [shape: f32[128,512], index: 3, kind: input, shape index: {}]
  %s4 = inlined_call_operand.vmem [shape: f32[2,2,64,128], index: 4, kind: output, shape index: {}]
  %s5 = sld [smem:[#allocation0]]
  $region49: #{dla_forward.3} parent=0
    _
  %s7 = ssub.s32 1, %s5
  %s8 = scalar_select 0, %s7, %s5
  loop: start=0, step=1, limit=4
  $region2: #{dla_forward.3} parent=0 // loop_pre_header
    _
  $region3: #{dla_forward.3} parent=0 // loop_header
    %s10 = sphi 0, %s14
    %p11 = scmp.ge.s32.totalorder %s10, 4
    %s20 = sphi 0, %s22
    %s23 = sphi 0, %s20
    %s24 = sphi 0, %s23
    %s40 = sphi 0, %s24
    %s46 = sphi 0, %s48
    %s49 = sphi 0, %s46
    %s50 = sphi 0, %s49
    %s66 = sphi 0, %s50
    %s72 = sphi 0, %s74
    %s75 = sphi 0, %s72
    %s76 = sphi 0, %s75
    %s92 = sphi 0, %s76
    %s96 = sphi 0, %s96
    %s98 = sphi 0, %s96
    %s99 = sphi 0, %s98
    %s113 = sphi 0, %s99
    %s119 = sphi 0, %s121
    %s122 = sphi 0, %s119
    %s123 = sphi 0, %s122
    %s139 = sphi 0, %s123
  $region4: #{dla_forward.3} parent=0 // loop_header_branch
    %13 = sbr.rel (%p11) target = $region8
  $region5: #{dla_forward.3} parent=0 // loop_body
    %s15 = ssub.s32 %s10, 1
    %s16 = ssub.s32 %s10, 2
    %s17 = sadd.s32 %s10, 1
    %s18 = ssub.s32 %s10, %s17
    %p19 = scmp.eq.s32.totalorder %s18, 0
    %s21 = sadd.s32 %s20, 1
    %s22 = scalar_select %p19, %s20, %s21
    %p25 = pneg %p19
    %p26 = scmp.eq.s32.totalorder %s10, 1
    %p27 = por %p25, %p26
    %p28 = scmp.ne.s32.totalorder %s20, %s23
    %p29 = scmp.eq.s32.totalorder %s10, 0
    %p30 = por %p28, %p29
    %p31 = scmp.ne.s32.totalorder %s20, %s23
    %p32 = scmp.eq.s32.totalorder %s15, 1
    %p33 = por %p31, %p32
    %p34 = scmp.ne.s32.totalorder %s23, %s24
    %p35 = scmp.eq.s32.totalorder %s15, 0
    %p36 = por %p34, %p35
    %p37 = scmp.ne.s32.totalorder %s23, %s24
    %p38 = scmp.eq.s32.totalorder %s16, 1
    %p39 = por %p37, %p38
    %p41 = scmp.ne.s32.totalorder %s24, %s40
    %p42 = scmp.eq.s32.totalorder %s16, 0
    %p43 = por %p41, %p42
    %s44 = ssub.s32 %s10, %s17
    %p45 = scmp.eq.s32.totalorder %s44, 0
    %s47 = sadd.s32 %s46, 1
    %s48 = scalar_select %p45, %s46, %s47
    %p51 = pneg %p45
    %p52 = scmp.eq.s32.totalorder %s10, 1
    %p53 = por %p51, %p52
    %p54 = scmp.ne.s32.totalorder %s46, %s49
    %p55 = scmp.eq.s32.totalorder %s10, 0
    %p56 = por %p54, %p55
    %p57 = scmp.ne.s32.totalorder %s46, %s49
    %p58 = scmp.eq.s32.totalorder %s15, 1
    %p59 = por %p57, %p58
    %p60 = scmp.ne.s32.totalorder %s49, %s50
    %p61 = scmp.eq.s32.totalorder %s15, 0
    %p62 = por %p60, %p61
    %p63 = scmp.ne.s32.totalorder %s49, %s50
    %p64 = scmp.eq.s32.totalorder %s16, 1
    %p65 = por %p63, %p64
    %p67 = scmp.ne.s32.totalorder %s50, %s66
    %p68 = scmp.eq.s32.totalorder %s16, 0
    %p69 = por %p67, %p68
    %s70 = ssub.s32 %s10, %s17
    %p71 = scmp.eq.s32.totalorder %s70, 0
    %s73 = sadd.s32 %s72, 1
    %s74 = scalar_select %p71, %s72, %s73
    %p77 = pneg %p71
    %p78 = scmp.eq.s32.totalorder %s10, 1
    %p79 = por %p77, %p78
    %p80 = scmp.ne.s32.totalorder %s72, %s75
    %p81 = scmp.eq.s32.totalorder %s10, 0
    %p82 = por %p80, %p81
    %p83 = scmp.ne.s32.totalorder %s72, %s75
    %p84 = scmp.eq.s32.totalorder %s15, 1
    %p85 = por %p83, %p84
    %p86 = scmp.ne.s32.totalorder %s75, %s76
    %p87 = scmp.eq.s32.totalorder %s15, 0
    %p88 = por %p86, %p87
    %p89 = scmp.ne.s32.totalorder %s75, %s76
    %p90 = scmp.eq.s32.totalorder %s16, 1
    %p91 = por %p89, %p90
    %p93 = scmp.ne.s32.totalorder %s76, %s92
    %p94 = scmp.eq.s32.totalorder %s16, 0
    %p95 = por %p93, %p94
    %s97 = sadd.s32 %s96, 1
    %p100 = scmp.eq.s32.totalorder %s10, 1
    %p101 = scmp.ne.s32.totalorder %s96, %s98
    %p102 = scmp.eq.s32.totalorder %s10, 0
    %p103 = por %p101, %p102
    %p104 = scmp.ne.s32.totalorder %s96, %s98
    %p105 = scmp.eq.s32.totalorder %s15, 1
    %p106 = por %p104, %p105
    %p107 = scmp.ne.s32.totalorder %s98, %s99
    %p108 = scmp.eq.s32.totalorder %s15, 0
    %p109 = por %p107, %p108
    %p110 = scmp.ne.s32.totalorder %s98, %s99
    %p111 = scmp.eq.s32.totalorder %s16, 1
    %p112 = por %p110, %p111
    %p114 = scmp.ne.s32.totalorder %s99, %s113
    %p115 = scmp.eq.s32.totalorder %s16, 0
    %p116 = por %p114, %p115
    %s117 = ssub.s32 %s10, %s17
    %p118 = scmp.eq.s32.totalorder %s117, 0
    %s120 = sadd.s32 %s119, 1
    %s121 = scalar_select %p118, %s119, %s120
    %p124 = pneg %p118
    %p125 = scmp.eq.s32.totalorder %s10, 1
    %p126 = por %p124, %p125
    %p127 = scmp.ne.s32.totalorder %s119, %s122
    %p128 = scmp.eq.s32.totalorder %s10, 0
    %p129 = por %p127, %p128
    %p130 = scmp.ne.s32.totalorder %s119, %s122
    %p131 = scmp.eq.s32.totalorder %s15, 1
    %p132 = por %p130, %p131
    %p133 = scmp.ne.s32.totalorder %s122, %s123
    %p134 = scmp.eq.s32.totalorder %s15, 0
    %p135 = por %p133, %p134
    %p136 = scmp.ne.s32.totalorder %s122, %s123
    %p137 = scmp.eq.s32.totalorder %s16, 1
    %p138 = por %p136, %p137
    %p140 = scmp.ne.s32.totalorder %s123, %s139
    %p141 = scmp.eq.s32.totalorder %s16, 0
    %p142 = por %p140, %p141
    %p143 = scmp.le.s32.totalorder 1, %s10
    %p144 = scmp.lt.s32.totalorder %s10, 3
    %p145 = pnand %p143, %p144
    %p146 = pneg %p145
    // Predicated region
    $region9: #{dla_forward.3} parent=5 // pred_check
      _
    $region10: #{dla_forward.3} parent=5 // pred_check_branch
      %148 = sbr.rel (%p145) target = $region12
    $region11: #{dla_forward.3} parent=5 // pred_region
      %s149 = ssub.s32 %s10, 1
      // Predicated region
      $region13: #{dla_forward.3} parent=11 // pred_check
        %p150 = pneg %p109
      $region14: #{dla_forward.3} parent=11 // pred_check_branch
        %152 = sbr.rel (%p150) target = $region16
      $region15: #{dla_forward.3} parent=11 // pred_region
        _
      $region16: #{dla_forward.3} parent=11 // pred_fallthru
        _
    $region12: #{dla_forward.3} parent=5 // pred_fallthru
      _
    %p153 = scmp.lt.s32.totalorder %s10, 2
    // Predicated region
    $region17: #{dla_forward.3} parent=5 // pred_check
      %p154 = pneg %p153
    $region18: #{dla_forward.3} parent=5 // pred_check_branch
      %156 = sbr.rel (%p154) target = $region20
    $region19: #{dla_forward.3} parent=5 // pred_region
      // Predicated region
      $region21: #{dla_forward.3} parent=19 // pred_check
        %p157 = pneg %p30
      $region22: #{dla_forward.3} parent=19 // pred_check_branch
        %159 = sbr.rel (%p157) target = $region24
      $region23: #{dla_forward.3} parent=19 // pred_region
        %p160 = scmp.lt.s32.totalorder %s10, 1
        %s161 = scalar_select %p160, %s10, 1
        %s162 = smul.addr %s161, 108
        %s163 = smul.addr %s162, 8
        %s164 = scalar_lea.vmem %s0, %s163
      $region24: #{dla_forward.3} parent=19 // pred_fallthru
        _
      // Predicated region
      $region25: #{dla_forward.3} parent=19 // pred_check
        %p165 = pneg %p56
      $region26: #{dla_forward.3} parent=19 // pred_check_branch
        %167 = sbr.rel (%p165) target = $region28
      $region27: #{dla_forward.3} parent=19 // pred_region
        %p168 = scmp.lt.s32.totalorder %s10, 1
        %s169 = scalar_select %p168, %s10, 1
        %s170 = smul.addr %s169, 16
        %s171 = smul.addr %s170, 8
        %s172 = scalar_lea.vmem %s1, %s171
      $region28: #{dla_forward.3} parent=19 // pred_fallthru
        _
      // Predicated region
      $region29: #{dla_forward.3} parent=19 // pred_check
        %p173 = pneg %p82
      $region30: #{dla_forward.3} parent=19 // pred_check_branch
        %175 = sbr.rel (%p173) target = $region32
      $region31: #{dla_forward.3} parent=19 // pred_region
        %p176 = scmp.lt.s32.totalorder %s10, 1
        %s177 = scalar_select %p176, %s10, 1
        %s178 = scalar_lea.vmem %s2, %s177
      $region32: #{dla_forward.3} parent=19 // pred_fallthru
        _
    $region20: #{dla_forward.3} parent=5 // pred_fallthru
      _
    %p179 = scmp.le.s32.totalorder 1, %s10
    %p180 = scmp.lt.s32.totalorder %s10, 3
    %p181 = pnand %p179, %p180
    %p182 = pneg %p181
    // Predicated region
    $region33: #{dla_forward.3} parent=5 // pred_check
      _
    $region34: #{dla_forward.3} parent=5 // pred_check_branch
      %184 = sbr.rel (%p181) target = $region36
    $region35: #{dla_forward.3} parent=5 // pred_region
      %s185 = ssub.s32 %s10, 1
      %p186 = scmp.lt.s32.totalorder %s15, 1
      %s187 = scalar_select %p186, %s15, 1
      %s188 = smul.addr %s187, 108
      %s189 = smul.addr %s188, 8
      %s190 = scalar_lea.vmem %s0, %s189
      %p191 = pneg %p36
      %p192 = pneg %p33
      %p193 = scmp.lt.s32.totalorder %s15, 1
      %s194 = scalar_select %p193, %s15, 1
      %s195 = smul.addr %s194, 16
      %s196 = smul.addr %s195, 8
      %s197 = scalar_lea.vmem %s1, %s196
      %p198 = pneg %p62
      %p199 = pneg %p59
      %p200 = scmp.lt.s32.totalorder %s15, 1
      %s201 = scalar_select %p200, %s15, 1
      %s202 = scalar_lea.vmem %s2, %s201
      %p203 = pneg %p88
      %p204 = pneg %p85
      %p205 = pneg %p109
      %p206 = pneg %p106
      %p207 = pneg %p135
      %p208 = pneg %p132
      %p209 = scmp.lt.s32.totalorder %s15, 1
      %s210 = scalar_select %p209, %s15, 1
      %s211 = smul.addr %s210, 16
      %s212 = smul.addr %s211, 8
      %s213 = scalar_lea.vmem %s4, %s212
      %p214 = scmp.lt.s32.totalorder %s15, 1
      %s215 = scalar_select %p214, %s15, 1
      %s216 = smul.addr %s215, 108
      %s217 = smul.addr %s216, 8
      %s218 = scalar_lea.vmem %s0, %s217
      %p219 = scmp.lt.s32.totalorder %s15, 1
      %s220 = scalar_select %p219, %s15, 1
      %s221 = smul.addr %s220, 16
      %s222 = smul.addr %s221, 8
      %s223 = scalar_lea.vmem %s1, %s222
      %p224 = scmp.lt.s32.totalorder %s15, 1
      %s225 = scalar_select %p224, %s15, 1
      %s226 = scalar_lea.vmem %s2, %s225
      %p227 = scmp.lt.s32.totalorder %s15, 1
      %s228 = scalar_select %p227, %s15, 1
      %s229 = smul.addr %s228, 16
      %s230 = smul.addr %s229, 8
      %s231 = scalar_lea.vmem %s4, %s230
      %v232 = vld [vmem:[%s218] sm:$0xff]
      %v233 = vld [vmem:[%s218 + $0x8] sm:$0xff]
      %v234 = vld [vmem:[%s218 + $0x10] sm:$0x3]
      %v235 = vld [vmem:[%s218 + $0x18] sm:$0xff]
      %v236 = vld [vmem:[%s218 + $0x20] sm:$0xff]
      %v237 = vld [vmem:[%s218 + $0x28] sm:$0x3]
      %v238 = vld [vmem:[%s218 + $0x30] sm:$0xff]
      %v239 = vld [vmem:[%s218 + $0x38] sm:$0xff]
      %v240 = vld [vmem:[%s218 + $0x40] sm:$0x3]
      %v241 = vld [vmem:[%s218 + $0x48] sm:$0xff]
      %v242 = vld [vmem:[%s218 + $0x50] sm:$0xff]
      %v243 = vld [vmem:[%s218 + $0x58] sm:$0x3]
      %v244 = vld [vmem:[%s218 + $0x60] sm:$0xff]
      %v245 = vld [vmem:[%s218 + $0x68] sm:$0xff]
      %v246 = vld [vmem:[%s218 + $0x70] sm:$0x3]
      %v247 = vld [vmem:[%s218 + $0x78] sm:$0xff]
      %v248 = vld [vmem:[%s218 + $0x80] sm:$0xff]
      %v249 = vld [vmem:[%s218 + $0x88] sm:$0x3]
      %v250 = vld [vmem:[%s218 + $0x90] sm:$0xff]
      %v251 = vld [vmem:[%s218 + $0x98] sm:$0xff]
      %v252 = vld [vmem:[%s218 + $0xa0] sm:$0x3]
      %v253 = vld [vmem:[%s218 + $0xa8] sm:$0xff]
      %v254 = vld [vmem:[%s218 + $0xb0] sm:$0xff]
      %v255 = vld [vmem:[%s218 + $0xb8] sm:$0x3]
      %v256 = vld [vmem:[%s218 + $0xc0] sm:$0xff]
      %v257 = vld [vmem:[%s218 + $0xc8] sm:$0xff]
      %v258 = vld [vmem:[%s218 + $0xd0] sm:$0x3]
      %v259 = vld [vmem:[%s218 + $0xd8] sm:$0xff]
      %v260 = vld [vmem:[%s218 + $0xe0] sm:$0xff]
      %v261 = vld [vmem:[%s218 + $0xe8] sm:$0x3]
      %v262 = vld [vmem:[%s218 + $0xf0] sm:$0xff]
      %v263 = vld [vmem:[%s218 + $0xf8] sm:$0xff]
      %v264 = vld [vmem:[%s218 + $0x100] sm:$0x3]
      %v265 = vld [vmem:[%s218 + $0x108] sm:$0xff]
      %v266 = vld [vmem:[%s218 + $0x110] sm:$0xff]
      %v267 = vld [vmem:[%s218 + $0x118] sm:$0x3]
      %v268 = vld [vmem:[%s218 + $0x120] sm:$0xff]
      %v269 = vld [vmem:[%s218 + $0x128] sm:$0xff]
      %v270 = vld [vmem:[%s218 + $0x130] sm:$0x3]
      %v271 = vld [vmem:[%s218 + $0x138] sm:$0xff]
      %v272 = vld [vmem:[%s218 + $0x140] sm:$0xff]
      %v273 = vld [vmem:[%s218 + $0x148] sm:$0x3]
      %v274 = vld [vmem:[%s218 + $0x150] sm:$0xff]
      %v275 = vld [vmem:[%s218 + $0x158] sm:$0xff]
      %v276 = vld [vmem:[%s218 + $0x160] sm:$0x3]
      %v277 = vld [vmem:[%s218 + $0x168] sm:$0xff]
      %v278 = vld [vmem:[%s218 + $0x170] sm:$0xff]
      %v279 = vld [vmem:[%s218 + $0x178] sm:$0x3]
      %v280 = vld [vmem:[%s218 + $0x180] sm:$0xff]
      %v281 = vld [vmem:[%s218 + $0x188] sm:$0xff]
      %v282 = vld [vmem:[%s218 + $0x190] sm:$0x3]
      %v283 = vld [vmem:[%s218 + $0x198] sm:$0xff]
      %v284 = vld [vmem:[%s218 + $0x1a0] sm:$0xff]
      %v285 = vld [vmem:[%s218 + $0x1a8] sm:$0x3]
      %v286 = vld [vmem:[%s218 + $0x1b0] sm:$0xff]
      %v287 = vld [vmem:[%s218 + $0x1b8] sm:$0xff]
      %v288 = vld [vmem:[%s218 + $0x1c0] sm:$0x3]
      %v289 = vld [vmem:[%s218 + $0x1c8] sm:$0xff]
      %v290 = vld [vmem:[%s218 + $0x1d0] sm:$0xff]
      %v291 = vld [vmem:[%s218 + $0x1d8] sm:$0x3]
      %v292 = vld [vmem:[%s218 + $0x1e0] sm:$0xff]
      %v293 = vld [vmem:[%s218 + $0x1e8] sm:$0xff]
      %v294 = vld [vmem:[%s218 + $0x1f0] sm:$0x3]
      %v295 = vld [vmem:[%s218 + $0x1f8] sm:$0xff]
      %v296 = vld [vmem:[%s218 + $0x200] sm:$0xff]
      %v297 = vld [vmem:[%s218 + $0x208] sm:$0x3]
      %v298 = vld [vmem:[%s218 + $0x210] sm:$0xff]
      %v299 = vld [vmem:[%s218 + $0x218] sm:$0xff]
      %v300 = vld [vmem:[%s218 + $0x220] sm:$0x3]
      %v301 = vld [vmem:[%s218 + $0x228] sm:$0xff]
      %v302 = vld [vmem:[%s218 + $0x230] sm:$0xff]
      %v303 = vld [vmem:[%s218 + $0x238] sm:$0x3]
      %v304 = vld [vmem:[%s218 + $0x240] sm:$0xff]
      %v305 = vld [vmem:[%s218 + $0x248] sm:$0xff]
      %v306 = vld [vmem:[%s218 + $0x250] sm:$0x3]
      %v307 = vld [vmem:[%s218 + $0x258] sm:$0xff]
      %v308 = vld [vmem:[%s218 + $0x260] sm:$0xff]
      %v309 = vld [vmem:[%s218 + $0x268] sm:$0x3]
      %v310 = vld [vmem:[%s218 + $0x270] sm:$0xff]
      %v311 = vld [vmem:[%s218 + $0x278] sm:$0xff]
      %v312 = vld [vmem:[%s218 + $0x280] sm:$0x3]
      %v313 = vld [vmem:[%s218 + $0x288] sm:$0xff]
      %v314 = vld [vmem:[%s218 + $0x290] sm:$0xff]
      %v315 = vld [vmem:[%s218 + $0x298] sm:$0x3]
      %v316 = vld [vmem:[%s218 + $0x2a0] sm:$0xff]
      %v317 = vld [vmem:[%s218 + $0x2a8] sm:$0xff]
      %v318 = vld [vmem:[%s218 + $0x2b0] sm:$0x3]
      %v319 = vld [vmem:[%s218 + $0x2b8] sm:$0xff]
      %v320 = vld [vmem:[%s218 + $0x2c0] sm:$0xff]
      %v321 = vld [vmem:[%s218 + $0x2c8] sm:$0x3]
      %v322 = vld [vmem:[%s218 + $0x2d0] sm:$0xff]
      %v323 = vld [vmem:[%s218 + $0x2d8] sm:$0xff]
      %v324 = vld [vmem:[%s218 + $0x2e0] sm:$0x3]
      %v325 = vld [vmem:[%s218 + $0x2e8] sm:$0xff]
      %v326 = vld [vmem:[%s218 + $0x2f0] sm:$0xff]
      %v327 = vld [vmem:[%s218 + $0x2f8] sm:$0x3]
      %v328 = vld [vmem:[%s218 + $0x300] sm:$0xff]
      %v329 = vld [vmem:[%s218 + $0x308] sm:$0xff]
      %v330 = vld [vmem:[%s218 + $0x310] sm:$0x3]
      %v331 = vld [vmem:[%s218 + $0x318] sm:$0xff]
      %v332 = vld [vmem:[%s218 + $0x320] sm:$0xff]
      %v333 = vld [vmem:[%s218 + $0x328] sm:$0x3]
      %v334 = vld [vmem:[%s218 + $0x330] sm:$0xff]
      %v335 = vld [vmem:[%s218 + $0x338] sm:$0xff]
      %v336 = vld [vmem:[%s218 + $0x340] sm:$0x3]
      %v337 = vld [vmem:[%s218 + $0x348] sm:$0xff]
      %v338 = vld [vmem:[%s218 + $0x350] sm:$0xff]
      %v339 = vld [vmem:[%s218 + $0x358] sm:$0x3]
      %vm436 = vcmask 1046528
      %v437 = vrot.slane %v232, 1
      %v438 = vrot.slane %v233, 1
      %v439 = vsel %vm436, %v437, %v438
      %v440 = vrot.slane %v234, 1
      %v441 = vsel %vm436, %v438, %v440
      %v442 = vrot.slane %v235, 1
      %v443 = vrot.slane %v236, 1
      %v444 = vsel %vm436, %v442, %v443
      %v445 = vrot.slane %v237, 1
      %v446 = vsel %vm436, %v443, %v445
      %v447 = vrot.slane %v238, 1
      %v448 = vrot.slane %v239, 1
      %v449 = vsel %vm436, %v447, %v448
      %v450 = vrot.slane %v240, 1
      %v451 = vsel %vm436, %v448, %v450
      %v452 = vrot.slane %v241, 1
      %v453 = vrot.slane %v242, 1
      %v454 = vsel %vm436, %v452, %v453
      %v455 = vrot.slane %v243, 1
      %v456 = vsel %vm436, %v453, %v455
      %v457 = vrot.slane %v244, 1
      %v458 = vrot.slane %v245, 1
      %v459 = vsel %vm436, %v457, %v458
      %v460 = vrot.slane %v246, 1
      %v461 = vsel %vm436, %v458, %v460
      %v462 = vrot.slane %v247, 1
      %v463 = vrot.slane %v248, 1
      %v464 = vsel %vm436, %v462, %v463
      %v465 = vrot.slane %v249, 1
      %v466 = vsel %vm436, %v463, %v465
      %v467 = vrot.slane %v250, 1
      %v468 = vrot.slane %v251, 1
      %v469 = vsel %vm436, %v467, %v468
      %v470 = vrot.slane %v252, 1
      %v471 = vsel %vm436, %v468, %v470
      %v472 = vrot.slane %v253, 1
      %v473 = vrot.slane %v254, 1
      %v474 = vsel %vm436, %v472, %v473
      %v475 = vrot.slane %v255, 1
      %v476 = vsel %vm436, %v473, %v475
      %v477 = vrot.slane %v256, 1
      %v478 = vrot.slane %v257, 1
      %v479 = vsel %vm436, %v477, %v478
      %v480 = vrot.slane %v258, 1
      %v481 = vsel %vm436, %v478, %v480
      %v482 = vrot.slane %v259, 1
      %v483 = vrot.slane %v260, 1
      %v484 = vsel %vm436, %v482, %v483
      %v485 = vrot.slane %v261, 1
      %v486 = vsel %vm436, %v483, %v485
      %v487 = vrot.slane %v262, 1
      %v488 = vrot.slane %v263, 1
      %v489 = vsel %vm436, %v487, %v488
      %v490 = vrot.slane %v264, 1
      %v491 = vsel %vm436, %v488, %v490
      %v492 = vrot.slane %v265, 1
      %v493 = vrot.slane %v266, 1
      %v494 = vsel %vm436, %v492, %v493
      %v495 = vrot.slane %v267, 1
      %v496 = vsel %vm436, %v493, %v495
      %v497 = vrot.slane %v268, 1
      %v498 = vrot.slane %v269, 1
      %v499 = vsel %vm436, %v497, %v498
      %v500 = vrot.slane %v270, 1
      %v501 = vsel %vm436, %v498, %v500
      %v502 = vrot.slane %v271, 1
      %v503 = vrot.slane %v272, 1
      %v504 = vsel %vm436, %v502, %v503
      %v505 = vrot.slane %v273, 1
      %v506 = vsel %vm436, %v503, %v505
      %v507 = vrot.slane %v274, 1
      %v508 = vrot.slane %v275, 1
      %v509 = vsel %vm436, %v507, %v508
      %v510 = vrot.slane %v276, 1
      %v511 = vsel %vm436, %v508, %v510
      %v512 = vrot.slane %v277, 1
      %v513 = vrot.slane %v278, 1
      %v514 = vsel %vm436, %v512, %v513
      %v515 = vrot.slane %v279, 1
      %v516 = vsel %vm436, %v513, %v515
      %v517 = vrot.slane %v286, 1
      %v518 = vrot.slane %v287, 1
      %v519 = vsel %vm436, %v517, %v518
      %v520 = vrot.slane %v288, 1
      %v521 = vsel %vm436, %v518, %v520
      %v522 = vrot.slane %v289, 1
      %v523 = vrot.slane %v290, 1
      %v524 = vsel %vm436, %v522, %v523
      %v525 = vrot.slane %v291, 1
      %v526 = vsel %vm436, %v523, %v525
      %v527 = vrot.slane %v292, 1
      %v528 = vrot.slane %v293, 1
      %v529 = vsel %vm436, %v527, %v528
      %v530 = vrot.slane %v294, 1
      %v531 = vsel %vm436, %v528, %v530
      %v532 = vrot.slane %v295, 1
      %v533 = vrot.slane %v296, 1
      %v534 = vsel %vm436, %v532, %v533
      %v535 = vrot.slane %v297, 1
      %v536 = vsel %vm436, %v533, %v535
      %v537 = vrot.slane %v298, 1
      %v538 = vrot.slane %v299, 1
      %v539 = vsel %vm436, %v537, %v538
      %v540 = vrot.slane %v300, 1
      %v541 = vsel %vm436, %v538, %v540
      %v542 = vrot.slane %v301, 1
      %v543 = vrot.slane %v302, 1
      %v544 = vsel %vm436, %v542, %v543
      %v545 = vrot.slane %v303, 1
      %v546 = vsel %vm436, %v543, %v545
      %v547 = vrot.slane %v304, 1
      %v548 = vrot.slane %v305, 1
      %v549 = vsel %vm436, %v547, %v548
      %v550 = vrot.slane %v306, 1
      %v551 = vsel %vm436, %v548, %v550
      %v552 = vrot.slane %v307, 1
      %v553 = vrot.slane %v308, 1
      %v554 = vsel %vm436, %v552, %v553
      %v555 = vrot.slane %v309, 1
      %v556 = vsel %vm436, %v553, %v555
      %v557 = vrot.slane %v310, 1
      %v558 = vrot.slane %v311, 1
      %v559 = vsel %vm436, %v557, %v558
      %v560 = vrot.slane %v312, 1
      %v561 = vsel %vm436, %v558, %v560
      %v562 = vrot.slane %v313, 1
      %v563 = vrot.slane %v314, 1
      %v564 = vsel %vm436, %v562, %v563
      %v565 = vrot.slane %v315, 1
      %v566 = vsel %vm436, %v563, %v565
      %v567 = vrot.slane %v316, 1
      %v568 = vrot.slane %v317, 1
      %v569 = vsel %vm436, %v567, %v568
      %v570 = vrot.slane %v318, 1
      %v571 = vsel %vm436, %v568, %v570
      %v572 = vrot.slane %v319, 1
      %v573 = vrot.slane %v320, 1
      %v574 = vsel %vm436, %v572, %v573
      %v575 = vrot.slane %v321, 1
      %v576 = vsel %vm436, %v573, %v575
      %v577 = vrot.slane %v322, 1
      %v578 = vrot.slane %v323, 1
      %v579 = vsel %vm436, %v577, %v578
      %v580 = vrot.slane %v324, 1
      %v581 = vsel %vm436, %v578, %v580
      %v582 = vrot.slane %v325, 1
      %v583 = vrot.slane %v326, 1
      %v584 = vsel %vm436, %v582, %v583
      %v585 = vrot.slane %v327, 1
      %v586 = vsel %vm436, %v583, %v585
      %v587 = vrot.slane %v328, 1
      %v588 = vrot.slane %v329, 1
      %v589 = vsel %vm436, %v587, %v588
      %v590 = vrot.slane %v330, 1
      %v591 = vsel %vm436, %v588, %v590
      %v592 = vrot.slane %v331, 1
      %v593 = vrot.slane %v332, 1
      %v594 = vsel %vm436, %v592, %v593
      %v595 = vrot.slane %v333, 1
      %v596 = vsel %vm436, %v593, %v595
      %vm597 = vcmask 1045504
      %v598 = vrot.slane %v232, 2
      %v599 = vrot.slane %v233, 2
      %v600 = vsel %vm597, %v598, %v599
      %v601 = vrot.slane %v234, 2
      %v602 = vsel %vm597, %v599, %v601
      %v603 = vrot.slane %v235, 2
      %v604 = vrot.slane %v236, 2
      %v605 = vsel %vm597, %v603, %v604
      %v606 = vrot.slane %v237, 2
      %v607 = vsel %vm597, %v604, %v606
      %v608 = vrot.slane %v238, 2
      %v609 = vrot.slane %v239, 2
      %v610 = vsel %vm597, %v608, %v609
      %v611 = vrot.slane %v240, 2
      %v612 = vsel %vm597, %v609, %v611
      %v613 = vrot.slane %v241, 2
      %v614 = vrot.slane %v242, 2
      %v615 = vsel %vm597, %v613, %v614
      %v616 = vrot.slane %v243, 2
      %v617 = vsel %vm597, %v614, %v616
      %v618 = vrot.slane %v244, 2
      %v619 = vrot.slane %v245, 2
      %v620 = vsel %vm597, %v618, %v619
      %v621 = vrot.slane %v246, 2
      %v622 = vsel %vm597, %v619, %v621
      %v623 = vrot.slane %v247, 2
      %v624 = vrot.slane %v248, 2
      %v625 = vsel %vm597, %v623, %v624
      %v626 = vrot.slane %v249, 2
      %v627 = vsel %vm597, %v624, %v626
      %v628 = vrot.slane %v250, 2
      %v629 = vrot.slane %v251, 2
      %v630 = vsel %vm597, %v628, %v629
      %v631 = vrot.slane %v252, 2
      %v632 = vsel %vm597, %v629, %v631
      %v633 = vrot.slane %v253, 2
      %v634 = vrot.slane %v254, 2
      %v635 = vsel %vm597, %v633, %v634
      %v636 = vrot.slane %v255, 2
      %v637 = vsel %vm597, %v634, %v636
      %v638 = vrot.slane %v256, 2
      %v639 = vrot.slane %v257, 2
      %v640 = vsel %vm597, %v638, %v639
      %v641 = vrot.slane %v258, 2
      %v642 = vsel %vm597, %v639, %v641
      %v643 = vrot.slane %v259, 2
      %v644 = vrot.slane %v260, 2
      %v645 = vsel %vm597, %v643, %v644
      %v646 = vrot.slane %v261, 2
      %v647 = vsel %vm597, %v644, %v646
      %v648 = vrot.slane %v262, 2
      %v649 = vrot.slane %v263, 2
      %v650 = vsel %vm597, %v648, %v649
      %v651 = vrot.slane %v264, 2
      %v652 = vsel %vm597, %v649, %v651
      %v653 = vrot.slane %v265, 2
      %v654 = vrot.slane %v266, 2
      %v655 = vsel %vm597, %v653, %v654
      %v656 = vrot.slane %v267, 2
      %v657 = vsel %vm597, %v654, %v656
      %v658 = vrot.slane %v268, 2
      %v659 = vrot.slane %v269, 2
      %v660 = vsel %vm597, %v658, %v659
      %v661 = vrot.slane %v270, 2
      %v662 = vsel %vm597, %v659, %v661
      %v663 = vrot.slane %v271, 2
      %v664 = vrot.slane %v272, 2
      %v665 = vsel %vm597, %v663, %v664
      %v666 = vrot.slane %v273, 2
      %v667 = vsel %vm597, %v664, %v666
      %v668 = vrot.slane %v274, 2
      %v669 = vrot.slane %v275, 2
      %v670 = vsel %vm597, %v668, %v669
      %v671 = vrot.slane %v276, 2
      %v672 = vsel %vm597, %v669, %v671
      %v673 = vrot.slane %v277, 2
      %v674 = vrot.slane %v278, 2
      %v675 = vsel %vm597, %v673, %v674
      %v676 = vrot.slane %v279, 2
      %v677 = vsel %vm597, %v674, %v676
      %v678 = vrot.slane %v286, 2
      %v679 = vrot.slane %v287, 2
      %v680 = vsel %vm597, %v678, %v679
      %v681 = vrot.slane %v288, 2
      %v682 = vsel %vm597, %v679, %v681
      %v683 = vrot.slane %v289, 2
      %v684 = vrot.slane %v290, 2
      %v685 = vsel %vm597, %v683, %v684
      %v686 = vrot.slane %v291, 2
      %v687 = vsel %vm597, %v684, %v686
      %v688 = vrot.slane %v292, 2
      %v689 = vrot.slane %v293, 2
      %v690 = vsel %vm597, %v688, %v689
      %v691 = vrot.slane %v294, 2
      %v692 = vsel %vm597, %v689, %v691
      %v693 = vrot.slane %v295, 2
      %v694 = vrot.slane %v296, 2
      %v695 = vsel %vm597, %v693, %v694
      %v696 = vrot.slane %v297, 2
      %v697 = vsel %vm597, %v694, %v696
      %v698 = vrot.slane %v298, 2
      %v699 = vrot.slane %v299, 2
      %v700 = vsel %vm597, %v698, %v699
      %v701 = vrot.slane %v300, 2
      %v702 = vsel %vm597, %v699, %v701
      %v703 = vrot.slane %v301, 2
      %v704 = vrot.slane %v302, 2
      %v705 = vsel %vm597, %v703, %v704
      %v706 = vrot.slane %v303, 2
      %v707 = vsel %vm597, %v704, %v706
      %v708 = vrot.slane %v304, 2
      %v709 = vrot.slane %v305, 2
      %v710 = vsel %vm597, %v708, %v709
      %v711 = vrot.slane %v306, 2
      %v712 = vsel %vm597, %v709, %v711
      %v713 = vrot.slane %v307, 2
      %v714 = vrot.slane %v308, 2
      %v715 = vsel %vm597, %v713, %v714
      %v716 = vrot.slane %v309, 2
      %v717 = vsel %vm597, %v714, %v716
      %v718 = vrot.slane %v310, 2
      %v719 = vrot.slane %v311, 2
      %v720 = vsel %vm597, %v718, %v719
      %v721 = vrot.slane %v312, 2
      %v722 = vsel %vm597, %v719, %v721
      %v723 = vrot.slane %v313, 2
      %v724 = vrot.slane %v314, 2
      %v725 = vsel %vm597, %v723, %v724
      %v726 = vrot.slane %v315, 2
      %v727 = vsel %vm597, %v724, %v726
      %v728 = vrot.slane %v316, 2
      %v729 = vrot.slane %v317, 2
      %v730 = vsel %vm597, %v728, %v729
      %v731 = vrot.slane %v318, 2
      %v732 = vsel %vm597, %v729, %v731
      %v733 = vrot.slane %v319, 2
      %v734 = vrot.slane %v320, 2
      %v735 = vsel %vm597, %v733, %v734
      %v736 = vrot.slane %v321, 2
      %v737 = vsel %vm597, %v734, %v736
      %v738 = vrot.slane %v322, 2
      %v739 = vrot.slane %v323, 2
      %v740 = vsel %vm597, %v738, %v739
      %v741 = vrot.slane %v324, 2
      %v742 = vsel %vm597, %v739, %v741
      %v743 = vrot.slane %v325, 2
      %v744 = vrot.slane %v326, 2
      %v745 = vsel %vm597, %v743, %v744
      %v746 = vrot.slane %v327, 2
      %v747 = vsel %vm597, %v744, %v746
      %v748 = vrot.slane %v328, 2
      %v749 = vrot.slane %v329, 2
      %v750 = vsel %vm597, %v748, %v749
      %v751 = vrot.slane %v330, 2
      %v752 = vsel %vm597, %v749, %v751
      %v753 = vrot.slane %v331, 2
      %v754 = vrot.slane %v332, 2
      %v755 = vsel %vm597, %v753, %v754
      %v756 = vrot.slane %v333, 2
      %v757 = vsel %vm597, %v754, %v756
      %v764 = vrot.slane %v280, 1
      %v765 = vrot.slane %v281, 1
      %v766 = vsel %vm436, %v764, %v765
      %v767 = vrot.slane %v282, 1
      %v768 = vsel %vm436, %v765, %v767
      %v769 = vrot.slane %v334, 1
      %v770 = vrot.slane %v335, 1
      %v771 = vsel %vm436, %v769, %v770
      %v772 = vrot.slane %v336, 1
      %v773 = vsel %vm436, %v770, %v772
      %v774 = vrot.slane %v280, 2
      %v775 = vrot.slane %v281, 2
      %v776 = vsel %vm597, %v774, %v775
      %v777 = vrot.slane %v282, 2
      %v778 = vsel %vm597, %v775, %v777
      %v779 = vrot.slane %v334, 2
      %v780 = vrot.slane %v335, 2
      %v781 = vsel %vm597, %v779, %v780
      %v782 = vrot.slane %v336, 2
      %v783 = vsel %vm597, %v780, %v782
      %v790 = vrot.slane %v283, 1
      %v791 = vrot.slane %v284, 1
      %v792 = vsel %vm436, %v790, %v791
      %v793 = vrot.slane %v285, 1
      %v794 = vsel %vm436, %v791, %v793
      %v795 = vrot.slane %v337, 1
      %v796 = vrot.slane %v338, 1
      %v797 = vsel %vm436, %v795, %v796
      %v798 = vrot.slane %v339, 1
      %v799 = vsel %vm436, %v796, %v798
      %v800 = vrot.slane %v283, 2
      %v801 = vrot.slane %v284, 2
      %v802 = vsel %vm597, %v800, %v801
      %v803 = vrot.slane %v285, 2
      %v804 = vsel %vm597, %v801, %v803
      %v805 = vrot.slane %v337, 2
      %v806 = vrot.slane %v338, 2
      %v807 = vsel %vm597, %v805, %v806
      %v808 = vrot.slane %v339, 2
      %v809 = vsel %vm597, %v806, %v808
      %810 = vrot.lane.b32.xlu0 %v439, 8
      %v811 = vpop.permute.xlu0 %810
      %812 = vrot.lane.b32.xlu0 %v441, 8
      %v813 = vpop.permute.xlu0 %812
      %814 = vrot.lane.b32.xlu0 %v444, 8
      %v815 = vpop.permute.xlu0 %814
      %816 = vrot.lane.b32.xlu0 %v446, 8
      %v817 = vpop.permute.xlu0 %816
      %818 = vrot.lane.b32.xlu0 %v449, 8
      %v819 = vpop.permute.xlu0 %818
      %820 = vrot.lane.b32.xlu0 %v451, 8
      %v821 = vpop.permute.xlu0 %820
      %822 = vrot.lane.b32.xlu0 %v454, 8
      %v823 = vpop.permute.xlu0 %822
      %824 = vrot.lane.b32.xlu0 %v456, 8
      %v825 = vpop.permute.xlu0 %824
      %826 = vrot.lane.b32.xlu0 %v459, 8
      %v827 = vpop.permute.xlu0 %826
      %828 = vrot.lane.b32.xlu0 %v461, 8
      %v829 = vpop.permute.xlu0 %828
      %830 = vrot.lane.b32.xlu0 %v464, 8
      %v831 = vpop.permute.xlu0 %830
      %832 = vrot.lane.b32.xlu0 %v466, 8
      %v833 = vpop.permute.xlu0 %832
      %834 = vrot.lane.b32.xlu0 %v469, 8
      %v835 = vpop.permute.xlu0 %834
      %836 = vrot.lane.b32.xlu0 %v471, 8
      %v837 = vpop.permute.xlu0 %836
      %838 = vrot.lane.b32.xlu0 %v474, 8
      %v839 = vpop.permute.xlu0 %838
      %840 = vrot.lane.b32.xlu0 %v476, 8
      %v841 = vpop.permute.xlu0 %840
      %842 = vrot.lane.b32.xlu0 %v479, 8
      %v843 = vpop.permute.xlu0 %842
      %844 = vrot.lane.b32.xlu0 %v481, 8
      %v845 = vpop.permute.xlu0 %844
      %846 = vrot.lane.b32.xlu0 %v484, 8
      %v847 = vpop.permute.xlu0 %846
      %848 = vrot.lane.b32.xlu0 %v486, 8
      %v849 = vpop.permute.xlu0 %848
      %850 = vrot.lane.b32.xlu0 %v489, 8
      %v851 = vpop.permute.xlu0 %850
      %852 = vrot.lane.b32.xlu0 %v491, 8
      %v853 = vpop.permute.xlu0 %852
      %854 = vrot.lane.b32.xlu0 %v494, 8
      %v855 = vpop.permute.xlu0 %854
      %856 = vrot.lane.b32.xlu0 %v496, 8
      %v857 = vpop.permute.xlu0 %856
      %858 = vrot.lane.b32.xlu0 %v499, 8
      %v859 = vpop.permute.xlu0 %858
      %860 = vrot.lane.b32.xlu0 %v501, 8
      %v861 = vpop.permute.xlu0 %860
      %862 = vrot.lane.b32.xlu0 %v504, 8
      %v863 = vpop.permute.xlu0 %862
      %864 = vrot.lane.b32.xlu0 %v506, 8
      %v865 = vpop.permute.xlu0 %864
      %866 = vrot.lane.b32.xlu0 %v509, 8
      %v867 = vpop.permute.xlu0 %866
      %868 = vrot.lane.b32.xlu0 %v511, 8
      %v869 = vpop.permute.xlu0 %868
      %870 = vrot.lane.b32.xlu0 %v514, 8
      %v871 = vpop.permute.xlu0 %870
      %872 = vrot.lane.b32.xlu0 %v516, 8
      %v873 = vpop.permute.xlu0 %872
      %874 = vrot.lane.b32.xlu0 %v519, 8
      %v875 = vpop.permute.xlu0 %874
      %876 = vrot.lane.b32.xlu0 %v521, 8
      %v877 = vpop.permute.xlu0 %876
      %878 = vrot.lane.b32.xlu0 %v524, 8
      %v879 = vpop.permute.xlu0 %878
      %880 = vrot.lane.b32.xlu0 %v526, 8
      %v881 = vpop.permute.xlu0 %880
      %882 = vrot.lane.b32.xlu0 %v529, 8
      %v883 = vpop.permute.xlu0 %882
      %884 = vrot.lane.b32.xlu0 %v531, 8
      %v885 = vpop.permute.xlu0 %884
      %886 = vrot.lane.b32.xlu0 %v534, 8
      %v887 = vpop.permute.xlu0 %886
      %888 = vrot.lane.b32.xlu0 %v536, 8
      %v889 = vpop.permute.xlu0 %888
      %890 = vrot.lane.b32.xlu0 %v539, 8
      %v891 = vpop.permute.xlu0 %890
      %892 = vrot.lane.b32.xlu0 %v541, 8
      %v893 = vpop.permute.xlu0 %892
      %894 = vrot.lane.b32.xlu0 %v544, 8
      %v895 = vpop.permute.xlu0 %894
      %896 = vrot.lane.b32.xlu0 %v546, 8
      %v897 = vpop.permute.xlu0 %896
      %898 = vrot.lane.b32.xlu0 %v549, 8
      %v899 = vpop.permute.xlu0 %898
      %900 = vrot.lane.b32.xlu0 %v551, 8
      %v901 = vpop.permute.xlu0 %900
      %902 = vrot.lane.b32.xlu0 %v554, 8
      %v903 = vpop.permute.xlu0 %902
      %904 = vrot.lane.b32.xlu0 %v556, 8
      %v905 = vpop.permute.xlu0 %904
      %906 = vrot.lane.b32.xlu0 %v559, 8
      %v907 = vpop.permute.xlu0 %906
      %908 = vrot.lane.b32.xlu0 %v561, 8
      %v909 = vpop.permute.xlu0 %908
      %910 = vrot.lane.b32.xlu0 %v564, 8
      %v911 = vpop.permute.xlu0 %910
      %912 = vrot.lane.b32.xlu0 %v566, 8
      %v913 = vpop.permute.xlu0 %912
      %914 = vrot.lane.b32.xlu0 %v569, 8
      %v915 = vpop.permute.xlu0 %914
      %916 = vrot.lane.b32.xlu0 %v571, 8
      %v917 = vpop.permute.xlu0 %916
      %918 = vrot.lane.b32.xlu0 %v574, 8
      %v919 = vpop.permute.xlu0 %918
      %920 = vrot.lane.b32.xlu0 %v576, 8
      %v921 = vpop.permute.xlu0 %920
      %922 = vrot.lane.b32.xlu0 %v579, 8
      %v923 = vpop.permute.xlu0 %922
      %924 = vrot.lane.b32.xlu0 %v581, 8
      %v925 = vpop.permute.xlu0 %924
      %926 = vrot.lane.b32.xlu0 %v584, 8
      %v927 = vpop.permute.xlu0 %926
      %928 = vrot.lane.b32.xlu0 %v586, 8
      %v929 = vpop.permute.xlu0 %928
      %930 = vrot.lane.b32.xlu0 %v589, 8
      %v931 = vpop.permute.xlu0 %930
      %932 = vrot.lane.b32.xlu0 %v591, 8
      %v933 = vpop.permute.xlu0 %932
      %934 = vrot.lane.b32.xlu0 %v594, 8
      %v935 = vpop.permute.xlu0 %934
      %936 = vrot.lane.b32.xlu0 %v596, 8
      %v937 = vpop.permute.xlu0 %936
      %1002 = vrot.lane.b32.xlu0 %v600, 16
      %v1003 = vpop.permute.xlu0 %1002
      %1004 = vrot.lane.b32.xlu0 %v602, 16
      %v1005 = vpop.permute.xlu0 %1004
      %1006 = vrot.lane.b32.xlu0 %v605, 16
      %v1007 = vpop.permute.xlu0 %1006
      %1008 = vrot.lane.b32.xlu0 %v607, 16
      %v1009 = vpop.permute.xlu0 %1008
      %1010 = vrot.lane.b32.xlu0 %v610, 16
      %v1011 = vpop.permute.xlu0 %1010
      %1012 = vrot.lane.b32.xlu0 %v612, 16
      %v1013 = vpop.permute.xlu0 %1012
      %1014 = vrot.lane.b32.xlu0 %v615, 16
      %v1015 = vpop.permute.xlu0 %1014
      %1016 = vrot.lane.b32.xlu0 %v617, 16
      %v1017 = vpop.permute.xlu0 %1016
      %1018 = vrot.lane.b32.xlu0 %v620, 16
      %v1019 = vpop.permute.xlu0 %1018
      %1020 = vrot.lane.b32.xlu0 %v622, 16
      %v1021 = vpop.permute.xlu0 %1020
      %1022 = vrot.lane.b32.xlu0 %v625, 16
      %v1023 = vpop.permute.xlu0 %1022
      %1024 = vrot.lane.b32.xlu0 %v627, 16
      %v1025 = vpop.permute.xlu0 %1024
      %1026 = vrot.lane.b32.xlu0 %v630, 16
      %v1027 = vpop.permute.xlu0 %1026
      %1028 = vrot.lane.b32.xlu0 %v632, 16
      %v1029 = vpop.permute.xlu0 %1028
      %1030 = vrot.lane.b32.xlu0 %v635, 16
      %v1031 = vpop.permute.xlu0 %1030
      %1032 = vrot.lane.b32.xlu0 %v637, 16
      %v1033 = vpop.permute.xlu0 %1032
      %1034 = vrot.lane.b32.xlu0 %v640, 16
      %v1035 = vpop.permute.xlu0 %1034
      %1036 = vrot.lane.b32.xlu0 %v642, 16
      %v1037 = vpop.permute.xlu0 %1036
      %1038 = vrot.lane.b32.xlu0 %v645, 16
      %v1039 = vpop.permute.xlu0 %1038
      %1040 = vrot.lane.b32.xlu0 %v647, 16
      %v1041 = vpop.permute.xlu0 %1040
      %1042 = vrot.lane.b32.xlu0 %v650, 16
      %v1043 = vpop.permute.xlu0 %1042
      %1044 = vrot.lane.b32.xlu0 %v652, 16
      %v1045 = vpop.permute.xlu0 %1044
      %1046 = vrot.lane.b32.xlu0 %v655, 16
      %v1047 = vpop.permute.xlu0 %1046
      %1048 = vrot.lane.b32.xlu0 %v657, 16
      %v1049 = vpop.permute.xlu0 %1048
      %1050 = vrot.lane.b32.xlu0 %v660, 16
      %v1051 = vpop.permute.xlu0 %1050
      %1052 = vrot.lane.b32.xlu0 %v662, 16
      %v1053 = vpop.permute.xlu0 %1052
      %1054 = vrot.lane.b32.xlu0 %v665, 16
      %v1055 = vpop.permute.xlu0 %1054
      %1056 = vrot.lane.b32.xlu0 %v667, 16
      %v1057 = vpop.permute.xlu0 %1056
      %1058 = vrot.lane.b32.xlu0 %v670, 16
      %v1059 = vpop.permute.xlu0 %1058
      %1060 = vrot.lane.b32.xlu0 %v672, 16
      %v1061 = vpop.permute.xlu0 %1060
      %1062 = vrot.lane.b32.xlu0 %v675, 16
      %v1063 = vpop.permute.xlu0 %1062
      %1064 = vrot.lane.b32.xlu0 %v677, 16
      %v1065 = vpop.permute.xlu0 %1064
      %1066 = vrot.lane.b32.xlu0 %v680, 16
      %v1067 = vpop.permute.xlu0 %1066
      %1068 = vrot.lane.b32.xlu0 %v682, 16
      %v1069 = vpop.permute.xlu0 %1068
      %1070 = vrot.lane.b32.xlu0 %v685, 16
      %v1071 = vpop.permute.xlu0 %1070
      %1072 = vrot.lane.b32.xlu0 %v687, 16
      %v1073 = vpop.permute.xlu0 %1072
      %1074 = vrot.lane.b32.xlu0 %v690, 16
      %v1075 = vpop.permute.xlu0 %1074
      %1076 = vrot.lane.b32.xlu0 %v692, 16
      %v1077 = vpop.permute.xlu0 %1076
      %1078 = vrot.lane.b32.xlu0 %v695, 16
      %v1079 = vpop.permute.xlu0 %1078
      %1080 = vrot.lane.b32.xlu0 %v697, 16
      %v1081 = vpop.permute.xlu0 %1080
      %1082 = vrot.lane.b32.xlu0 %v700, 16
      %v1083 = vpop.permute.xlu0 %1082
      %1084 = vrot.lane.b32.xlu0 %v702, 16
      %v1085 = vpop.permute.xlu0 %1084
      %1086 = vrot.lane.b32.xlu0 %v705, 16
      %v1087 = vpop.permute.xlu0 %1086
      %1088 = vrot.lane.b32.xlu0 %v707, 16
      %v1089 = vpop.permute.xlu0 %1088
      %1090 = vrot.lane.b32.xlu0 %v710, 16
      %v1091 = vpop.permute.xlu0 %1090
      %1092 = vrot.lane.b32.xlu0 %v712, 16
      %v1093 = vpop.permute.xlu0 %1092
      %1094 = vrot.lane.b32.xlu0 %v715, 16
      %v1095 = vpop.permute.xlu0 %1094
      %1096 = vrot.lane.b32.xlu0 %v717, 16
      %v1097 = vpop.permute.xlu0 %1096
      %1098 = vrot.lane.b32.xlu0 %v720, 16
      %v1099 = vpop.permute.xlu0 %1098
      %1100 = vrot.lane.b32.xlu0 %v722, 16
      %v1101 = vpop.permute.xlu0 %1100
      %1102 = vrot.lane.b32.xlu0 %v725, 16
      %v1103 = vpop.permute.xlu0 %1102
      %1104 = vrot.lane.b32.xlu0 %v727, 16
      %v1105 = vpop.permute.xlu0 %1104
      %1106 = vrot.lane.b32.xlu0 %v730, 16
      %v1107 = vpop.permute.xlu0 %1106
      %1108 = vrot.lane.b32.xlu0 %v732, 16
      %v1109 = vpop.permute.xlu0 %1108
      %1110 = vrot.lane.b32.xlu0 %v735, 16
      %v1111 = vpop.permute.xlu0 %1110
      %1112 = vrot.lane.b32.xlu0 %v737, 16
      %v1113 = vpop.permute.xlu0 %1112
      %1114 = vrot.lane.b32.xlu0 %v740, 16
      %v1115 = vpop.permute.xlu0 %1114
      %1116 = vrot.lane.b32.xlu0 %v742, 16
      %v1117 = vpop.permute.xlu0 %1116
      %1118 = vrot.lane.b32.xlu0 %v745, 16
      %v1119 = vpop.permute.xlu0 %1118
      %1120 = vrot.lane.b32.xlu0 %v747, 16
      %v1121 = vpop.permute.xlu0 %1120
      %1122 = vrot.lane.b32.xlu0 %v750, 16
      %v1123 = vpop.permute.xlu0 %1122
      %1124 = vrot.lane.b32.xlu0 %v752, 16
      %v1125 = vpop.permute.xlu0 %1124
      %1126 = vrot.lane.b32.xlu0 %v755, 16
      %v1127 = vpop.permute.xlu0 %1126
      %1128 = vrot.lane.b32.xlu0 %v757, 16
      %v1129 = vpop.permute.xlu0 %1128
      %1194 = vrot.lane.b32.xlu0 %v235, 24
      %v1195 = vpop.permute.xlu0 %1194
      %1196 = vrot.lane.b32.xlu0 %v236, 24
      %v1197 = vpop.permute.xlu0 %1196
      %1198 = vrot.lane.b32.xlu0 %v238, 24
      %v1199 = vpop.permute.xlu0 %1198
      %1200 = vrot.lane.b32.xlu0 %v239, 24
      %v1201 = vpop.permute.xlu0 %1200
      %1202 = vrot.lane.b32.xlu0 %v241, 24
      %v1203 = vpop.permute.xlu0 %1202
      %1204 = vrot.lane.b32.xlu0 %v242, 24
      %v1205 = vpop.permute.xlu0 %1204
      %1206 = vrot.lane.b32.xlu0 %v244, 24
      %v1207 = vpop.permute.xlu0 %1206
      %1208 = vrot.lane.b32.xlu0 %v245, 24
      %v1209 = vpop.permute.xlu0 %1208
      %1210 = vrot.lane.b32.xlu0 %v247, 24
      %v1211 = vpop.permute.xlu0 %1210
      %1212 = vrot.lane.b32.xlu0 %v248, 24
      %v1213 = vpop.permute.xlu0 %1212
      %1214 = vrot.lane.b32.xlu0 %v250, 24
      %v1215 = vpop.permute.xlu0 %1214
      %1216 = vrot.lane.b32.xlu0 %v251, 24
      %v1217 = vpop.permute.xlu0 %1216
      %1218 = vrot.lane.b32.xlu0 %v253, 24
      %v1219 = vpop.permute.xlu0 %1218
      %1220 = vrot.lane.b32.xlu0 %v254, 24
      %v1221 = vpop.permute.xlu0 %1220
      %1222 = vrot.lane.b32.xlu0 %v256, 24
      %v1223 = vpop.permute.xlu0 %1222
      %1224 = vrot.lane.b32.xlu0 %v257, 24
      %v1225 = vpop.permute.xlu0 %1224
      %1226 = vrot.lane.b32.xlu0 %v259, 24
      %v1227 = vpop.permute.xlu0 %1226
      %1228 = vrot.lane.b32.xlu0 %v260, 24
      %v1229 = vpop.permute.xlu0 %1228
      %1230 = vrot.lane.b32.xlu0 %v262, 24
      %v1231 = vpop.permute.xlu0 %1230
      %1232 = vrot.lane.b32.xlu0 %v263, 24
      %v1233 = vpop.permute.xlu0 %1232
      %1234 = vrot.lane.b32.xlu0 %v265, 24
      %v1235 = vpop.permute.xlu0 %1234
      %1236 = vrot.lane.b32.xlu0 %v266, 24
      %v1237 = vpop.permute.xlu0 %1236
      %1238 = vrot.lane.b32.xlu0 %v268, 24
      %v1239 = vpop.permute.xlu0 %1238
      %1240 = vrot.lane.b32.xlu0 %v269, 24
      %v1241 = vpop.permute.xlu0 %1240
      %1242 = vrot.lane.b32.xlu0 %v271, 24
      %v1243 = vpop.permute.xlu0 %1242
      %1244 = vrot.lane.b32.xlu0 %v272, 24
      %v1245 = vpop.permute.xlu0 %1244
      %1246 = vrot.lane.b32.xlu0 %v274, 24
      %v1247 = vpop.permute.xlu0 %1246
      %1248 = vrot.lane.b32.xlu0 %v275, 24
      %v1249 = vpop.permute.xlu0 %1248
      %1250 = vrot.lane.b32.xlu0 %v277, 24
      %v1251 = vpop.permute.xlu0 %1250
      %1252 = vrot.lane.b32.xlu0 %v278, 24
      %v1253 = vpop.permute.xlu0 %1252
      %1254 = vrot.lane.b32.xlu0 %v280, 24
      %v1255 = vpop.permute.xlu0 %1254
      %1256 = vrot.lane.b32.xlu0 %v281, 24
      %v1257 = vpop.permute.xlu0 %1256
      %1258 = vrot.lane.b32.xlu0 %v289, 24
      %v1259 = vpop.permute.xlu0 %1258
      %1260 = vrot.lane.b32.xlu0 %v290, 24
      %v1261 = vpop.permute.xlu0 %1260
      %1262 = vrot.lane.b32.xlu0 %v292, 24
      %v1263 = vpop.permute.xlu0 %1262
      %1264 = vrot.lane.b32.xlu0 %v293, 24
      %v1265 = vpop.permute.xlu0 %1264
      %1266 = vrot.lane.b32.xlu0 %v295, 24
      %v1267 = vpop.permute.xlu0 %1266
      %1268 = vrot.lane.b32.xlu0 %v296, 24
      %v1269 = vpop.permute.xlu0 %1268
      %1270 = vrot.lane.b32.xlu0 %v298, 24
      %v1271 = vpop.permute.xlu0 %1270
      %1272 = vrot.lane.b32.xlu0 %v299, 24
      %v1273 = vpop.permute.xlu0 %1272
      %1274 = vrot.lane.b32.xlu0 %v301, 24
      %v1275 = vpop.permute.xlu0 %1274
      %1276 = vrot.lane.b32.xlu0 %v302, 24
      %v1277 = vpop.permute.xlu0 %1276
      %1278 = vrot.lane.b32.xlu0 %v304, 24
      %v1279 = vpop.permute.xlu0 %1278
      %1280 = vrot.lane.b32.xlu0 %v305, 24
      %v1281 = vpop.permute.xlu0 %1280
      %1282 = vrot.lane.b32.xlu0 %v307, 24
      %v1283 = vpop.permute.xlu0 %1282
      %1284 = vrot.lane.b32.xlu0 %v308, 24
      %v1285 = vpop.permute.xlu0 %1284
      %1286 = vrot.lane.b32.xlu0 %v310, 24
      %v1287 = vpop.permute.xlu0 %1286
      %1288 = vrot.lane.b32.xlu0 %v311, 24
      %v1289 = vpop.permute.xlu0 %1288
      %1290 = vrot.lane.b32.xlu0 %v313, 24
      %v1291 = vpop.permute.xlu0 %1290
      %1292 = vrot.lane.b32.xlu0 %v314, 24
      %v1293 = vpop.permute.xlu0 %1292
      %1294 = vrot.lane.b32.xlu0 %v316, 24
      %v1295 = vpop.permute.xlu0 %1294
      %1296 = vrot.lane.b32.xlu0 %v317, 24
      %v1297 = vpop.permute.xlu0 %1296
      %1298 = vrot.lane.b32.xlu0 %v319, 24
      %v1299 = vpop.permute.xlu0 %1298
      %1300 = vrot.lane.b32.xlu0 %v320, 24
      %v1301 = vpop.permute.xlu0 %1300
      %1302 = vrot.lane.b32.xlu0 %v322, 24
      %v1303 = vpop.permute.xlu0 %1302
      %1304 = vrot.lane.b32.xlu0 %v323, 24
      %v1305 = vpop.permute.xlu0 %1304
      %1306 = vrot.lane.b32.xlu0 %v325, 24
      %v1307 = vpop.permute.xlu0 %1306
      %1308 = vrot.lane.b32.xlu0 %v326, 24
      %v1309 = vpop.permute.xlu0 %1308
      %1310 = vrot.lane.b32.xlu0 %v328, 24
      %v1311 = vpop.permute.xlu0 %1310
      %1312 = vrot.lane.b32.xlu0 %v329, 24
      %v1313 = vpop.permute.xlu0 %1312
      %1314 = vrot.lane.b32.xlu0 %v331, 24
      %v1315 = vpop.permute.xlu0 %1314
      %1316 = vrot.lane.b32.xlu0 %v332, 24
      %v1317 = vpop.permute.xlu0 %1316
      %1318 = vrot.lane.b32.xlu0 %v334, 24
      %v1319 = vpop.permute.xlu0 %1318
      %1320 = vrot.lane.b32.xlu0 %v335, 24
      %v1321 = vpop.permute.xlu0 %1320
      %1386 = vrot.lane.b32.xlu0 %v444, 32
      %v1387 = vpop.permute.xlu0 %1386
      %1388 = vrot.lane.b32.xlu0 %v446, 32
      %v1389 = vpop.permute.xlu0 %1388
      %1390 = vrot.lane.b32.xlu0 %v449, 32
      %v1391 = vpop.permute.xlu0 %1390
      %1392 = vrot.lane.b32.xlu0 %v451, 32
      %v1393 = vpop.permute.xlu0 %1392
      %1394 = vrot.lane.b32.xlu0 %v454, 32
      %v1395 = vpop.permute.xlu0 %1394
      %1396 = vrot.lane.b32.xlu0 %v456, 32
      %v1397 = vpop.permute.xlu0 %1396
      %1398 = vrot.lane.b32.xlu0 %v459, 32
      %v1399 = vpop.permute.xlu0 %1398
      %1400 = vrot.lane.b32.xlu0 %v461, 32
      %v1401 = vpop.permute.xlu0 %1400
      %1402 = vrot.lane.b32.xlu0 %v464, 32
      %v1403 = vpop.permute.xlu0 %1402
      %1404 = vrot.lane.b32.xlu0 %v466, 32
      %v1405 = vpop.permute.xlu0 %1404
      %1406 = vrot.lane.b32.xlu0 %v469, 32
      %v1407 = vpop.permute.xlu0 %1406
      %1408 = vrot.lane.b32.xlu0 %v471, 32
      %v1409 = vpop.permute.xlu0 %1408
      %1410 = vrot.lane.b32.xlu0 %v474, 32
      %v1411 = vpop.permute.xlu0 %1410
      %1412 = vrot.lane.b32.xlu0 %v476, 32
      %v1413 = vpop.permute.xlu0 %1412
      %1414 = vrot.lane.b32.xlu0 %v479, 32
      %v1415 = vpop.permute.xlu0 %1414
      %1416 = vrot.lane.b32.xlu0 %v481, 32
      %v1417 = vpop.permute.xlu0 %1416
      %1418 = vrot.lane.b32.xlu0 %v484, 32
      %v1419 = vpop.permute.xlu0 %1418
      %1420 = vrot.lane.b32.xlu0 %v486, 32
      %v1421 = vpop.permute.xlu0 %1420
      %1422 = vrot.lane.b32.xlu0 %v489, 32
      %v1423 = vpop.permute.xlu0 %1422
      %1424 = vrot.lane.b32.xlu0 %v491, 32
      %v1425 = vpop.permute.xlu0 %1424
      %1426 = vrot.lane.b32.xlu0 %v494, 32
      %v1427 = vpop.permute.xlu0 %1426
      %1428 = vrot.lane.b32.xlu0 %v496, 32
      %v1429 = vpop.permute.xlu0 %1428
      %1430 = vrot.lane.b32.xlu0 %v499, 32
      %v1431 = vpop.permute.xlu0 %1430
      %1432 = vrot.lane.b32.xlu0 %v501, 32
      %v1433 = vpop.permute.xlu0 %1432
      %1434 = vrot.lane.b32.xlu0 %v504, 32
      %v1435 = vpop.permute.xlu0 %1434
      %1436 = vrot.lane.b32.xlu0 %v506, 32
      %v1437 = vpop.permute.xlu0 %1436
      %1438 = vrot.lane.b32.xlu0 %v509, 32
      %v1439 = vpop.permute.xlu0 %1438
      %1440 = vrot.lane.b32.xlu0 %v511, 32
      %v1441 = vpop.permute.xlu0 %1440
      %1442 = vrot.lane.b32.xlu0 %v514, 32
      %v1443 = vpop.permute.xlu0 %1442
      %1444 = vrot.lane.b32.xlu0 %v516, 32
      %v1445 = vpop.permute.xlu0 %1444
      %1446 = vrot.lane.b32.xlu0 %v766, 32
      %v1447 = vpop.permute.xlu0 %1446
      %1448 = vrot.lane.b32.xlu0 %v768, 32
      %v1449 = vpop.permute.xlu0 %1448
      %1450 = vrot.lane.b32.xlu0 %v524, 32
      %v1451 = vpop.permute.xlu0 %1450
      %1452 = vrot.lane.b32.xlu0 %v526, 32
      %v1453 = vpop.permute.xlu0 %1452
      %1454 = vrot.lane.b32.xlu0 %v529, 32
      %v1455 = vpop.permute.xlu0 %1454
      %1456 = vrot.lane.b32.xlu0 %v531, 32
      %v1457 = vpop.permute.xlu0 %1456
      %1458 = vrot.lane.b32.xlu0 %v534, 32
      %v1459 = vpop.permute.xlu0 %1458
      %1460 = vrot.lane.b32.xlu0 %v536, 32
      %v1461 = vpop.permute.xlu0 %1460
      %1462 = vrot.lane.b32.xlu0 %v539, 32
      %v1463 = vpop.permute.xlu0 %1462
      %1464 = vrot.lane.b32.xlu0 %v541, 32
      %v1465 = vpop.permute.xlu0 %1464
      %1466 = vrot.lane.b32.xlu0 %v544, 32
      %v1467 = vpop.permute.xlu0 %1466
      %1468 = vrot.lane.b32.xlu0 %v546, 32
      %v1469 = vpop.permute.xlu0 %1468
      %1470 = vrot.lane.b32.xlu0 %v549, 32
      %v1471 = vpop.permute.xlu0 %1470
      %1472 = vrot.lane.b32.xlu0 %v551, 32
      %v1473 = vpop.permute.xlu0 %1472
      %1474 = vrot.lane.b32.xlu0 %v554, 32
      %v1475 = vpop.permute.xlu0 %1474
      %1476 = vrot.lane.b32.xlu0 %v556, 32
      %v1477 = vpop.permute.xlu0 %1476
      %1478 = vrot.lane.b32.xlu0 %v559, 32
      %v1479 = vpop.permute.xlu0 %1478
      %1480 = vrot.lane.b32.xlu0 %v561, 32
      %v1481 = vpop.permute.xlu0 %1480
      %1482 = vrot.lane.b32.xlu0 %v564, 32
      %v1483 = vpop.permute.xlu0 %1482
      %1484 = vrot.lane.b32.xlu0 %v566, 32
      %v1485 = vpop.permute.xlu0 %1484
      %1486 = vrot.lane.b32.xlu0 %v569, 32
      %v1487 = vpop.permute.xlu0 %1486
      %1488 = vrot.lane.b32.xlu0 %v571, 32
      %v1489 = vpop.permute.xlu0 %1488
      %1490 = vrot.lane.b32.xlu0 %v574, 32
      %v1491 = vpop.permute.xlu0 %1490
      %1492 = vrot.lane.b32.xlu0 %v576, 32
      %v1493 = vpop.permute.xlu0 %1492
      %1494 = vrot.lane.b32.xlu0 %v579, 32
      %v1495 = vpop.permute.xlu0 %1494
      %1496 = vrot.lane.b32.xlu0 %v581, 32
      %v1497 = vpop.permute.xlu0 %1496
      %1498 = vrot.lane.b32.xlu0 %v584, 32
      %v1499 = vpop.permute.xlu0 %1498
      %1500 = vrot.lane.b32.xlu0 %v586, 32
      %v1501 = vpop.permute.xlu0 %1500
      %1502 = vrot.lane.b32.xlu0 %v589, 32
      %v1503 = vpop.permute.xlu0 %1502
      %1504 = vrot.lane.b32.xlu0 %v591, 32
      %v1505 = vpop.permute.xlu0 %1504
      %1506 = vrot.lane.b32.xlu0 %v594, 32
      %v1507 = vpop.permute.xlu0 %1506
      %1508 = vrot.lane.b32.xlu0 %v596, 32
      %v1509 = vpop.permute.xlu0 %1508
      %1510 = vrot.lane.b32.xlu0 %v771, 32
      %v1511 = vpop.permute.xlu0 %1510
      %1512 = vrot.lane.b32.xlu0 %v773, 32
      %v1513 = vpop.permute.xlu0 %1512
      %1578 = vrot.lane.b32.xlu0 %v605, 40
      %v1579 = vpop.permute.xlu0 %1578
      %1580 = vrot.lane.b32.xlu0 %v607, 40
      %v1581 = vpop.permute.xlu0 %1580
      %1582 = vrot.lane.b32.xlu0 %v610, 40
      %v1583 = vpop.permute.xlu0 %1582
      %1584 = vrot.lane.b32.xlu0 %v612, 40
      %v1585 = vpop.permute.xlu0 %1584
      %1586 = vrot.lane.b32.xlu0 %v615, 40
      %v1587 = vpop.permute.xlu0 %1586
      %1588 = vrot.lane.b32.xlu0 %v617, 40
      %v1589 = vpop.permute.xlu0 %1588
      %1590 = vrot.lane.b32.xlu0 %v620, 40
      %v1591 = vpop.permute.xlu0 %1590
      %1592 = vrot.lane.b32.xlu0 %v622, 40
      %v1593 = vpop.permute.xlu0 %1592
      %1594 = vrot.lane.b32.xlu0 %v625, 40
      %v1595 = vpop.permute.xlu0 %1594
      %1596 = vrot.lane.b32.xlu0 %v627, 40
      %v1597 = vpop.permute.xlu0 %1596
      %1598 = vrot.lane.b32.xlu0 %v630, 40
      %v1599 = vpop.permute.xlu0 %1598
      %1600 = vrot.lane.b32.xlu0 %v632, 40
      %v1601 = vpop.permute.xlu0 %1600
      %1602 = vrot.lane.b32.xlu0 %v635, 40
      %v1603 = vpop.permute.xlu0 %1602
      %1604 = vrot.lane.b32.xlu0 %v637, 40
      %v1605 = vpop.permute.xlu0 %1604
      %1606 = vrot.lane.b32.xlu0 %v640, 40
      %v1607 = vpop.permute.xlu0 %1606
      %1608 = vrot.lane.b32.xlu0 %v642, 40
      %v1609 = vpop.permute.xlu0 %1608
      %1610 = vrot.lane.b32.xlu0 %v645, 40
      %v1611 = vpop.permute.xlu0 %1610
      %1612 = vrot.lane.b32.xlu0 %v647, 40
      %v1613 = vpop.permute.xlu0 %1612
      %1614 = vrot.lane.b32.xlu0 %v650, 40
      %v1615 = vpop.permute.xlu0 %1614
      %1616 = vrot.lane.b32.xlu0 %v652, 40
      %v1617 = vpop.permute.xlu0 %1616
      %1618 = vrot.lane.b32.xlu0 %v655, 40
      %v1619 = vpop.permute.xlu0 %1618
      %1620 = vrot.lane.b32.xlu0 %v657, 40
      %v1621 = vpop.permute.xlu0 %1620
      %1622 = vrot.lane.b32.xlu0 %v660, 40
      %v1623 = vpop.permute.xlu0 %1622
      %1624 = vrot.lane.b32.xlu0 %v662, 40
      %v1625 = vpop.permute.xlu0 %1624
      %1626 = vrot.lane.b32.xlu0 %v665, 40
      %v1627 = vpop.permute.xlu0 %1626
      %1628 = vrot.lane.b32.xlu0 %v667, 40
      %v1629 = vpop.permute.xlu0 %1628
      %1630 = vrot.lane.b32.xlu0 %v670, 40
      %v1631 = vpop.permute.xlu0 %1630
      %1632 = vrot.lane.b32.xlu0 %v672, 40
      %v1633 = vpop.permute.xlu0 %1632
      %1634 = vrot.lane.b32.xlu0 %v675, 40
      %v1635 = vpop.permute.xlu0 %1634
      %1636 = vrot.lane.b32.xlu0 %v677, 40
      %v1637 = vpop.permute.xlu0 %1636
      %1638 = vrot.lane.b32.xlu0 %v776, 40
      %v1639 = vpop.permute.xlu0 %1638
      %1640 = vrot.lane.b32.xlu0 %v778, 40
      %v1641 = vpop.permute.xlu0 %1640
      %1642 = vrot.lane.b32.xlu0 %v685, 40
      %v1643 = vpop.permute.xlu0 %1642
      %1644 = vrot.lane.b32.xlu0 %v687, 40
      %v1645 = vpop.permute.xlu0 %1644
      %1646 = vrot.lane.b32.xlu0 %v690, 40
      %v1647 = vpop.permute.xlu0 %1646
      %1648 = vrot.lane.b32.xlu0 %v692, 40
      %v1649 = vpop.permute.xlu0 %1648
      %1650 = vrot.lane.b32.xlu0 %v695, 40
      %v1651 = vpop.permute.xlu0 %1650
      %1652 = vrot.lane.b32.xlu0 %v697, 40
      %v1653 = vpop.permute.xlu0 %1652
      %1654 = vrot.lane.b32.xlu0 %v700, 40
      %v1655 = vpop.permute.xlu0 %1654
      %1656 = vrot.lane.b32.xlu0 %v702, 40
      %v1657 = vpop.permute.xlu0 %1656
      %1658 = vrot.lane.b32.xlu0 %v705, 40
      %v1659 = vpop.permute.xlu0 %1658
      %1660 = vrot.lane.b32.xlu0 %v707, 40
      %v1661 = vpop.permute.xlu0 %1660
      %1662 = vrot.lane.b32.xlu0 %v710, 40
      %v1663 = vpop.permute.xlu0 %1662
      %1664 = vrot.lane.b32.xlu0 %v712, 40
      %v1665 = vpop.permute.xlu0 %1664
      %1666 = vrot.lane.b32.xlu0 %v715, 40
      %v1667 = vpop.permute.xlu0 %1666
      %1668 = vrot.lane.b32.xlu0 %v717, 40
      %v1669 = vpop.permute.xlu0 %1668
      %1670 = vrot.lane.b32.xlu0 %v720, 40
      %v1671 = vpop.permute.xlu0 %1670
      %1672 = vrot.lane.b32.xlu0 %v722, 40
      %v1673 = vpop.permute.xlu0 %1672
      %1674 = vrot.lane.b32.xlu0 %v725, 40
      %v1675 = vpop.permute.xlu0 %1674
      %1676 = vrot.lane.b32.xlu0 %v727, 40
      %v1677 = vpop.permute.xlu0 %1676
      %1678 = vrot.lane.b32.xlu0 %v730, 40
      %v1679 = vpop.permute.xlu0 %1678
      %1680 = vrot.lane.b32.xlu0 %v732, 40
      %v1681 = vpop.permute.xlu0 %1680
      %1682 = vrot.lane.b32.xlu0 %v735, 40
      %v1683 = vpop.permute.xlu0 %1682
      %1684 = vrot.lane.b32.xlu0 %v737, 40
      %v1685 = vpop.permute.xlu0 %1684
      %1686 = vrot.lane.b32.xlu0 %v740, 40
      %v1687 = vpop.permute.xlu0 %1686
      %1688 = vrot.lane.b32.xlu0 %v742, 40
      %v1689 = vpop.permute.xlu0 %1688
      %1690 = vrot.lane.b32.xlu0 %v745, 40
      %v1691 = vpop.permute.xlu0 %1690
      %1692 = vrot.lane.b32.xlu0 %v747, 40
      %v1693 = vpop.permute.xlu0 %1692
      %1694 = vrot.lane.b32.xlu0 %v750, 40
      %v1695 = vpop.permute.xlu0 %1694
      %1696 = vrot.lane.b32.xlu0 %v752, 40
      %v1697 = vpop.permute.xlu0 %1696
      %1698 = vrot.lane.b32.xlu0 %v755, 40
      %v1699 = vpop.permute.xlu0 %1698
      %1700 = vrot.lane.b32.xlu0 %v757, 40
      %v1701 = vpop.permute.xlu0 %1700
      %1702 = vrot.lane.b32.xlu0 %v781, 40
      %v1703 = vpop.permute.xlu0 %1702
      %1704 = vrot.lane.b32.xlu0 %v783, 40
      %v1705 = vpop.permute.xlu0 %1704
      %1770 = vrot.lane.b32.xlu0 %v238, 48
      %v1771 = vpop.permute.xlu0 %1770
      %1772 = vrot.lane.b32.xlu0 %v239, 48
      %v1773 = vpop.permute.xlu0 %1772
      %1774 = vrot.lane.b32.xlu0 %v241, 48
      %v1775 = vpop.permute.xlu0 %1774
      %1776 = vrot.lane.b32.xlu0 %v242, 48
      %v1777 = vpop.permute.xlu0 %1776
      %1778 = vrot.lane.b32.xlu0 %v244, 48
      %v1779 = vpop.permute.xlu0 %1778
      %1780 = vrot.lane.b32.xlu0 %v245, 48
      %v1781 = vpop.permute.xlu0 %1780
      %1782 = vrot.lane.b32.xlu0 %v247, 48
      %v1783 = vpop.permute.xlu0 %1782
      %1784 = vrot.lane.b32.xlu0 %v248, 48
      %v1785 = vpop.permute.xlu0 %1784
      %1786 = vrot.lane.b32.xlu0 %v250, 48
      %v1787 = vpop.permute.xlu0 %1786
      %1788 = vrot.lane.b32.xlu0 %v251, 48
      %v1789 = vpop.permute.xlu0 %1788
      %1790 = vrot.lane.b32.xlu0 %v253, 48
      %v1791 = vpop.permute.xlu0 %1790
      %1792 = vrot.lane.b32.xlu0 %v254, 48
      %v1793 = vpop.permute.xlu0 %1792
      %1794 = vrot.lane.b32.xlu0 %v256, 48
      %v1795 = vpop.permute.xlu0 %1794
      %1796 = vrot.lane.b32.xlu0 %v257, 48
      %v1797 = vpop.permute.xlu0 %1796
      %1798 = vrot.lane.b32.xlu0 %v259, 48
      %v1799 = vpop.permute.xlu0 %1798
      %1800 = vrot.lane.b32.xlu0 %v260, 48
      %v1801 = vpop.permute.xlu0 %1800
      %1802 = vrot.lane.b32.xlu0 %v262, 48
      %v1803 = vpop.permute.xlu0 %1802
      %1804 = vrot.lane.b32.xlu0 %v263, 48
      %v1805 = vpop.permute.xlu0 %1804
      %1806 = vrot.lane.b32.xlu0 %v265, 48
      %v1807 = vpop.permute.xlu0 %1806
      %1808 = vrot.lane.b32.xlu0 %v266, 48
      %v1809 = vpop.permute.xlu0 %1808
      %1810 = vrot.lane.b32.xlu0 %v268, 48
      %v1811 = vpop.permute.xlu0 %1810
      %1812 = vrot.lane.b32.xlu0 %v269, 48
      %v1813 = vpop.permute.xlu0 %1812
      %1814 = vrot.lane.b32.xlu0 %v271, 48
      %v1815 = vpop.permute.xlu0 %1814
      %1816 = vrot.lane.b32.xlu0 %v272, 48
      %v1817 = vpop.permute.xlu0 %1816
      %1818 = vrot.lane.b32.xlu0 %v274, 48
      %v1819 = vpop.permute.xlu0 %1818
      %1820 = vrot.lane.b32.xlu0 %v275, 48
      %v1821 = vpop.permute.xlu0 %1820
      %1822 = vrot.lane.b32.xlu0 %v277, 48
      %v1823 = vpop.permute.xlu0 %1822
      %1824 = vrot.lane.b32.xlu0 %v278, 48
      %v1825 = vpop.permute.xlu0 %1824
      %1826 = vrot.lane.b32.xlu0 %v280, 48
      %v1827 = vpop.permute.xlu0 %1826
      %1828 = vrot.lane.b32.xlu0 %v281, 48
      %v1829 = vpop.permute.xlu0 %1828
      %1830 = vrot.lane.b32.xlu0 %v283, 48
      %v1831 = vpop.permute.xlu0 %1830
      %1832 = vrot.lane.b32.xlu0 %v284, 48
      %v1833 = vpop.permute.xlu0 %1832
      %1834 = vrot.lane.b32.xlu0 %v292, 48
      %v1835 = vpop.permute.xlu0 %1834
      %1836 = vrot.lane.b32.xlu0 %v293, 48
      %v1837 = vpop.permute.xlu0 %1836
      %1838 = vrot.lane.b32.xlu0 %v295, 48
      %v1839 = vpop.permute.xlu0 %1838
      %1840 = vrot.lane.b32.xlu0 %v296, 48
      %v1841 = vpop.permute.xlu0 %1840
      %1842 = vrot.lane.b32.xlu0 %v298, 48
      %v1843 = vpop.permute.xlu0 %1842
      %1844 = vrot.lane.b32.xlu0 %v299, 48
      %v1845 = vpop.permute.xlu0 %1844
      %1846 = vrot.lane.b32.xlu0 %v301, 48
      %v1847 = vpop.permute.xlu0 %1846
      %1848 = vrot.lane.b32.xlu0 %v302, 48
      %v1849 = vpop.permute.xlu0 %1848
      %1850 = vrot.lane.b32.xlu0 %v304, 48
      %v1851 = vpop.permute.xlu0 %1850
      %1852 = vrot.lane.b32.xlu0 %v305, 48
      %v1853 = vpop.permute.xlu0 %1852
      %1854 = vrot.lane.b32.xlu0 %v307, 48
      %v1855 = vpop.permute.xlu0 %1854
      %1856 = vrot.lane.b32.xlu0 %v308, 48
      %v1857 = vpop.permute.xlu0 %1856
      %1858 = vrot.lane.b32.xlu0 %v310, 48
      %v1859 = vpop.permute.xlu0 %1858
      %1860 = vrot.lane.b32.xlu0 %v311, 48
      %v1861 = vpop.permute.xlu0 %1860
      %1862 = vrot.lane.b32.xlu0 %v313, 48
      %v1863 = vpop.permute.xlu0 %1862
      %1864 = vrot.lane.b32.xlu0 %v314, 48
      %v1865 = vpop.permute.xlu0 %1864
      %1866 = vrot.lane.b32.xlu0 %v316, 48
      %v1867 = vpop.permute.xlu0 %1866
      %1868 = vrot.lane.b32.xlu0 %v317, 48
      %v1869 = vpop.permute.xlu0 %1868
      %1870 = vrot.lane.b32.xlu0 %v319, 48
      %v1871 = vpop.permute.xlu0 %1870
      %1872 = vrot.lane.b32.xlu0 %v320, 48
      %v1873 = vpop.permute.xlu0 %1872
      %1874 = vrot.lane.b32.xlu0 %v322, 48
      %v1875 = vpop.permute.xlu0 %1874
      %1876 = vrot.lane.b32.xlu0 %v323, 48
      %v1877 = vpop.permute.xlu0 %1876
      %1878 = vrot.lane.b32.xlu0 %v325, 48
      %v1879 = vpop.permute.xlu0 %1878
      %1880 = vrot.lane.b32.xlu0 %v326, 48
      %v1881 = vpop.permute.xlu0 %1880
      %1882 = vrot.lane.b32.xlu0 %v328, 48
      %v1883 = vpop.permute.xlu0 %1882
      %1884 = vrot.lane.b32.xlu0 %v329, 48
      %v1885 = vpop.permute.xlu0 %1884
      %1886 = vrot.lane.b32.xlu0 %v331, 48
      %v1887 = vpop.permute.xlu0 %1886
      %1888 = vrot.lane.b32.xlu0 %v332, 48
      %v1889 = vpop.permute.xlu0 %1888
      %1890 = vrot.lane.b32.xlu0 %v334, 48
      %v1891 = vpop.permute.xlu0 %1890
      %1892 = vrot.lane.b32.xlu0 %v335, 48
      %v1893 = vpop.permute.xlu0 %1892
      %1894 = vrot.lane.b32.xlu0 %v337, 48
      %v1895 = vpop.permute.xlu0 %1894
      %1896 = vrot.lane.b32.xlu0 %v338, 48
      %v1897 = vpop.permute.xlu0 %1896
      %1962 = vrot.lane.b32.xlu0 %v449, 56
      %v1963 = vpop.permute.xlu0 %1962
      %1964 = vrot.lane.b32.xlu0 %v451, 56
      %v1965 = vpop.permute.xlu0 %1964
      %1966 = vrot.lane.b32.xlu0 %v454, 56
      %v1967 = vpop.permute.xlu0 %1966
      %1968 = vrot.lane.b32.xlu0 %v456, 56
      %v1969 = vpop.permute.xlu0 %1968
      %1970 = vrot.lane.b32.xlu0 %v459, 56
      %v1971 = vpop.permute.xlu0 %1970
      %1972 = vrot.lane.b32.xlu0 %v461, 56
      %v1973 = vpop.permute.xlu0 %1972
      %1974 = vrot.lane.b32.xlu0 %v464, 56
      %v1975 = vpop.permute.xlu0 %1974
      %1976 = vrot.lane.b32.xlu0 %v466, 56
      %v1977 = vpop.permute.xlu0 %1976
      %1978 = vrot.lane.b32.xlu0 %v469, 56
      %v1979 = vpop.permute.xlu0 %1978
      %1980 = vrot.lane.b32.xlu0 %v471, 56
      %v1981 = vpop.permute.xlu0 %1980
      %1982 = vrot.lane.b32.xlu0 %v474, 56
      %v1983 = vpop.permute.xlu0 %1982
      %1984 = vrot.lane.b32.xlu0 %v476, 56
      %v1985 = vpop.permute.xlu0 %1984
      %1986 = vrot.lane.b32.xlu0 %v479, 56
      %v1987 = vpop.permute.xlu0 %1986
      %1988 = vrot.lane.b32.xlu0 %v481, 56
      %v1989 = vpop.permute.xlu0 %1988
      %1990 = vrot.lane.b32.xlu0 %v484, 56
      %v1991 = vpop.permute.xlu0 %1990
      %1992 = vrot.lane.b32.xlu0 %v486, 56
      %v1993 = vpop.permute.xlu0 %1992
      %1994 = vrot.lane.b32.xlu0 %v489, 56
      %v1995 = vpop.permute.xlu0 %1994
      %1996 = vrot.lane.b32.xlu0 %v491, 56
      %v1997 = vpop.permute.xlu0 %1996
      %1998 = vrot.lane.b32.xlu0 %v494, 56
      %v1999 = vpop.permute.xlu0 %1998
      %2000 = vrot.lane.b32.xlu0 %v496, 56
      %v2001 = vpop.permute.xlu0 %2000
      %2002 = vrot.lane.b32.xlu0 %v499, 56
      %v2003 = vpop.permute.xlu0 %2002
      %2004 = vrot.lane.b32.xlu0 %v501, 56
      %v2005 = vpop.permute.xlu0 %2004
      %2006 = vrot.lane.b32.xlu0 %v504, 56
      %v2007 = vpop.permute.xlu0 %2006
      %2008 = vrot.lane.b32.xlu0 %v506, 56
      %v2009 = vpop.permute.xlu0 %2008
      %2010 = vrot.lane.b32.xlu0 %v509, 56
      %v2011 = vpop.permute.xlu0 %2010
      %2012 = vrot.lane.b32.xlu0 %v511, 56
      %v2013 = vpop.permute.xlu0 %2012
      %2014 = vrot.lane.b32.xlu0 %v514, 56
      %v2015 = vpop.permute.xlu0 %2014
      %2016 = vrot.lane.b32.xlu0 %v516, 56
      %v2017 = vpop.permute.xlu0 %2016
      %2018 = vrot.lane.b32.xlu0 %v766, 56
      %v2019 = vpop.permute.xlu0 %2018
      %2020 = vrot.lane.b32.xlu0 %v768, 56
      %v2021 = vpop.permute.xlu0 %2020
      %2022 = vrot.lane.b32.xlu0 %v792, 56
      %v2023 = vpop.permute.xlu0 %2022
      %2024 = vrot.lane.b32.xlu0 %v794, 56
      %v2025 = vpop.permute.xlu0 %2024
      %2026 = vrot.lane.b32.xlu0 %v529, 56
      %v2027 = vpop.permute.xlu0 %2026
      %2028 = vrot.lane.b32.xlu0 %v531, 56
      %v2029 = vpop.permute.xlu0 %2028
      %2030 = vrot.lane.b32.xlu0 %v534, 56
      %v2031 = vpop.permute.xlu0 %2030
      %2032 = vrot.lane.b32.xlu0 %v536, 56
      %v2033 = vpop.permute.xlu0 %2032
      %2034 = vrot.lane.b32.xlu0 %v539, 56
      %v2035 = vpop.permute.xlu0 %2034
      %2036 = vrot.lane.b32.xlu0 %v541, 56
      %v2037 = vpop.permute.xlu0 %2036
      %2038 = vrot.lane.b32.xlu0 %v544, 56
      %v2039 = vpop.permute.xlu0 %2038
      %2040 = vrot.lane.b32.xlu0 %v546, 56
      %v2041 = vpop.permute.xlu0 %2040
      %2042 = vrot.lane.b32.xlu0 %v549, 56
      %v2043 = vpop.permute.xlu0 %2042
      %2044 = vrot.lane.b32.xlu0 %v551, 56
      %v2045 = vpop.permute.xlu0 %2044
      %2046 = vrot.lane.b32.xlu0 %v554, 56
      %v2047 = vpop.permute.xlu0 %2046
      %2048 = vrot.lane.b32.xlu0 %v556, 56
      %v2049 = vpop.permute.xlu0 %2048
      %2050 = vrot.lane.b32.xlu0 %v559, 56
      %v2051 = vpop.permute.xlu0 %2050
      %2052 = vrot.lane.b32.xlu0 %v561, 56
      %v2053 = vpop.permute.xlu0 %2052
      %2054 = vrot.lane.b32.xlu0 %v564, 56
      %v2055 = vpop.permute.xlu0 %2054
      %2056 = vrot.lane.b32.xlu0 %v566, 56
      %v2057 = vpop.permute.xlu0 %2056
      %2058 = vrot.lane.b32.xlu0 %v569, 56
      %v2059 = vpop.permute.xlu0 %2058
      %2060 = vrot.lane.b32.xlu0 %v571, 56
      %v2061 = vpop.permute.xlu0 %2060
      %2062 = vrot.lane.b32.xlu0 %v574, 56
      %v2063 = vpop.permute.xlu0 %2062
      %2064 = vrot.lane.b32.xlu0 %v576, 56
      %v2065 = vpop.permute.xlu0 %2064
      %2066 = vrot.lane.b32.xlu0 %v579, 56
      %v2067 = vpop.permute.xlu0 %2066
      %2068 = vrot.lane.b32.xlu0 %v581, 56
      %v2069 = vpop.permute.xlu0 %2068
      %2070 = vrot.lane.b32.xlu0 %v584, 56
      %v2071 = vpop.permute.xlu0 %2070
      %2072 = vrot.lane.b32.xlu0 %v586, 56
      %v2073 = vpop.permute.xlu0 %2072
      %2074 = vrot.lane.b32.xlu0 %v589, 56
      %v2075 = vpop.permute.xlu0 %2074
      %2076 = vrot.lane.b32.xlu0 %v591, 56
      %v2077 = vpop.permute.xlu0 %2076
      %2078 = vrot.lane.b32.xlu0 %v594, 56
      %v2079 = vpop.permute.xlu0 %2078
      %2080 = vrot.lane.b32.xlu0 %v596, 56
      %v2081 = vpop.permute.xlu0 %2080
      %2082 = vrot.lane.b32.xlu0 %v771, 56
      %v2083 = vpop.permute.xlu0 %2082
      %2084 = vrot.lane.b32.xlu0 %v773, 56
      %v2085 = vpop.permute.xlu0 %2084
      %2086 = vrot.lane.b32.xlu0 %v797, 56
      %v2087 = vpop.permute.xlu0 %2086
      %2088 = vrot.lane.b32.xlu0 %v799, 56
      %v2089 = vpop.permute.xlu0 %2088
      %2154 = vrot.lane.b32.xlu0 %v610, 64
      %v2155 = vpop.permute.xlu0 %2154
      %2156 = vrot.lane.b32.xlu0 %v612, 64
      %v2157 = vpop.permute.xlu0 %2156
      %2158 = vrot.lane.b32.xlu0 %v615, 64
      %v2159 = vpop.permute.xlu0 %2158
      %2160 = vrot.lane.b32.xlu0 %v617, 64
      %v2161 = vpop.permute.xlu0 %2160
      %2162 = vrot.lane.b32.xlu0 %v620, 64
      %v2163 = vpop.permute.xlu0 %2162
      %2164 = vrot.lane.b32.xlu0 %v622, 64
      %v2165 = vpop.permute.xlu0 %2164
      %2166 = vrot.lane.b32.xlu0 %v625, 64
      %v2167 = vpop.permute.xlu0 %2166
      %2168 = vrot.lane.b32.xlu0 %v627, 64
      %v2169 = vpop.permute.xlu0 %2168
      %2170 = vrot.lane.b32.xlu0 %v630, 64
      %v2171 = vpop.permute.xlu0 %2170
      %2172 = vrot.lane.b32.xlu0 %v632, 64
      %v2173 = vpop.permute.xlu0 %2172
      %2174 = vrot.lane.b32.xlu0 %v635, 64
      %v2175 = vpop.permute.xlu0 %2174
      %2176 = vrot.lane.b32.xlu0 %v637, 64
      %v2177 = vpop.permute.xlu0 %2176
      %2178 = vrot.lane.b32.xlu0 %v640, 64
      %v2179 = vpop.permute.xlu0 %2178
      %2180 = vrot.lane.b32.xlu0 %v642, 64
      %v2181 = vpop.permute.xlu0 %2180
      %2182 = vrot.lane.b32.xlu0 %v645, 64
      %v2183 = vpop.permute.xlu0 %2182
      %2184 = vrot.lane.b32.xlu0 %v647, 64
      %v2185 = vpop.permute.xlu0 %2184
      %2186 = vrot.lane.b32.xlu0 %v650, 64
      %v2187 = vpop.permute.xlu0 %2186
      %2188 = vrot.lane.b32.xlu0 %v652, 64
      %v2189 = vpop.permute.xlu0 %2188
      %2190 = vrot.lane.b32.xlu0 %v655, 64
      %v2191 = vpop.permute.xlu0 %2190
      %2192 = vrot.lane.b32.xlu0 %v657, 64
      %v2193 = vpop.permute.xlu0 %2192
      %2194 = vrot.lane.b32.xlu0 %v660, 64
      %v2195 = vpop.permute.xlu0 %2194
      %2196 = vrot.lane.b32.xlu0 %v662, 64
      %v2197 = vpop.permute.xlu0 %2196
      %2198 = vrot.lane.b32.xlu0 %v665, 64
      %v2199 = vpop.permute.xlu0 %2198
      %2200 = vrot.lane.b32.xlu0 %v667, 64
      %v2201 = vpop.permute.xlu0 %2200
      %2202 = vrot.lane.b32.xlu0 %v670, 64
      %v2203 = vpop.permute.xlu0 %2202
      %2204 = vrot.lane.b32.xlu0 %v672, 64
      %v2205 = vpop.permute.xlu0 %2204
      %2206 = vrot.lane.b32.xlu0 %v675, 64
      %v2207 = vpop.permute.xlu0 %2206
      %2208 = vrot.lane.b32.xlu0 %v677, 64
      %v2209 = vpop.permute.xlu0 %2208
      %2210 = vrot.lane.b32.xlu0 %v776, 64
      %v2211 = vpop.permute.xlu0 %2210
      %2212 = vrot.lane.b32.xlu0 %v778, 64
      %v2213 = vpop.permute.xlu0 %2212
      %2214 = vrot.lane.b32.xlu0 %v802, 64
      %v2215 = vpop.permute.xlu0 %2214
      %2216 = vrot.lane.b32.xlu0 %v804, 64
      %v2217 = vpop.permute.xlu0 %2216
      %2218 = vrot.lane.b32.xlu0 %v690, 64
      %v2219 = vpop.permute.xlu0 %2218
      %2220 = vrot.lane.b32.xlu0 %v692, 64
      %v2221 = vpop.permute.xlu0 %2220
      %2222 = vrot.lane.b32.xlu0 %v695, 64
      %v2223 = vpop.permute.xlu0 %2222
      %2224 = vrot.lane.b32.xlu0 %v697, 64
      %v2225 = vpop.permute.xlu0 %2224
      %2226 = vrot.lane.b32.xlu0 %v700, 64
      %v2227 = vpop.permute.xlu0 %2226
      %2228 = vrot.lane.b32.xlu0 %v702, 64
      %v2229 = vpop.permute.xlu0 %2228
      %2230 = vrot.lane.b32.xlu0 %v705, 64
      %v2231 = vpop.permute.xlu0 %2230
      %2232 = vrot.lane.b32.xlu0 %v707, 64
      %v2233 = vpop.permute.xlu0 %2232
      %2234 = vrot.lane.b32.xlu0 %v710, 64
      %v2235 = vpop.permute.xlu0 %2234
      %2236 = vrot.lane.b32.xlu0 %v712, 64
      %v2237 = vpop.permute.xlu0 %2236
      %2238 = vrot.lane.b32.xlu0 %v715, 64
      %v2239 = vpop.permute.xlu0 %2238
      %2240 = vrot.lane.b32.xlu0 %v717, 64
      %v2241 = vpop.permute.xlu0 %2240
      %2242 = vrot.lane.b32.xlu0 %v720, 64
      %v2243 = vpop.permute.xlu0 %2242
      %2244 = vrot.lane.b32.xlu0 %v722, 64
      %v2245 = vpop.permute.xlu0 %2244
      %2246 = vrot.lane.b32.xlu0 %v725, 64
      %v2247 = vpop.permute.xlu0 %2246
      %2248 = vrot.lane.b32.xlu0 %v727, 64
      %v2249 = vpop.permute.xlu0 %2248
      %2250 = vrot.lane.b32.xlu0 %v730, 64
      %v2251 = vpop.permute.xlu0 %2250
      %2252 = vrot.lane.b32.xlu0 %v732, 64
      %v2253 = vpop.permute.xlu0 %2252
      %2254 = vrot.lane.b32.xlu0 %v735, 64
      %v2255 = vpop.permute.xlu0 %2254
      %2256 = vrot.lane.b32.xlu0 %v737, 64
      %v2257 = vpop.permute.xlu0 %2256
      %2258 = vrot.lane.b32.xlu0 %v740, 64
      %v2259 = vpop.permute.xlu0 %2258
      %2260 = vrot.lane.b32.xlu0 %v742, 64
      %v2261 = vpop.permute.xlu0 %2260
      %2262 = vrot.lane.b32.xlu0 %v745, 64
      %v2263 = vpop.permute.xlu0 %2262
      %2264 = vrot.lane.b32.xlu0 %v747, 64
      %v2265 = vpop.permute.xlu0 %2264
      %2266 = vrot.lane.b32.xlu0 %v750, 64
      %v2267 = vpop.permute.xlu0 %2266
      %2268 = vrot.lane.b32.xlu0 %v752, 64
      %v2269 = vpop.permute.xlu0 %2268
      %2270 = vrot.lane.b32.xlu0 %v755, 64
      %v2271 = vpop.permute.xlu0 %2270
      %2272 = vrot.lane.b32.xlu0 %v757, 64
      %v2273 = vpop.permute.xlu0 %2272
      %2274 = vrot.lane.b32.xlu0 %v781, 64
      %v2275 = vpop.permute.xlu0 %2274
      %2276 = vrot.lane.b32.xlu0 %v783, 64
      %v2277 = vpop.permute.xlu0 %2276
      %2278 = vrot.lane.b32.xlu0 %v807, 64
      %v2279 = vpop.permute.xlu0 %2278
      %2280 = vrot.lane.b32.xlu0 %v809, 64
      %v2281 = vpop.permute.xlu0 %2280
      %vm2346 = vcmask 64512
      %v2347 = vsel %vm2346, %v232, %v811
      %v2348 = vsel %vm2346, %v233, %v813
      %v2349 = vsel %vm2346, %v235, %v815
      %v2350 = vsel %vm2346, %v236, %v817
      %v2351 = vsel %vm2346, %v238, %v819
      %v2352 = vsel %vm2346, %v239, %v821
      %v2353 = vsel %vm2346, %v241, %v823
      %v2354 = vsel %vm2346, %v242, %v825
      %v2355 = vsel %vm2346, %v244, %v827
      %v2356 = vsel %vm2346, %v245, %v829
      %v2357 = vsel %vm2346, %v247, %v831
      %v2358 = vsel %vm2346, %v248, %v833
      %v2359 = vsel %vm2346, %v250, %v835
      %v2360 = vsel %vm2346, %v251, %v837
      %v2361 = vsel %vm2346, %v253, %v839
      %v2362 = vsel %vm2346, %v254, %v841
      %v2363 = vsel %vm2346, %v256, %v843
      %v2364 = vsel %vm2346, %v257, %v845
      %v2365 = vsel %vm2346, %v259, %v847
      %v2366 = vsel %vm2346, %v260, %v849
      %v2367 = vsel %vm2346, %v262, %v851
      %v2368 = vsel %vm2346, %v263, %v853
      %v2369 = vsel %vm2346, %v265, %v855
      %v2370 = vsel %vm2346, %v266, %v857
      %v2371 = vsel %vm2346, %v268, %v859
      %v2372 = vsel %vm2346, %v269, %v861
      %v2373 = vsel %vm2346, %v271, %v863
      %v2374 = vsel %vm2346, %v272, %v865
      %v2375 = vsel %vm2346, %v274, %v867
      %v2376 = vsel %vm2346, %v275, %v869
      %v2377 = vsel %vm2346, %v277, %v871
      %v2378 = vsel %vm2346, %v278, %v873
      %v2379 = vsel %vm2346, %v286, %v875
      %v2380 = vsel %vm2346, %v287, %v877
      %v2381 = vsel %vm2346, %v289, %v879
      %v2382 = vsel %vm2346, %v290, %v881
      %v2383 = vsel %vm2346, %v292, %v883
      %v2384 = vsel %vm2346, %v293, %v885
      %v2385 = vsel %vm2346, %v295, %v887
      %v2386 = vsel %vm2346, %v296, %v889
      %v2387 = vsel %vm2346, %v298, %v891
      %v2388 = vsel %vm2346, %v299, %v893
      %v2389 = vsel %vm2346, %v301, %v895
      %v2390 = vsel %vm2346, %v302, %v897
      %v2391 = vsel %vm2346, %v304, %v899
      %v2392 = vsel %vm2346, %v305, %v901
      %v2393 = vsel %vm2346, %v307, %v903
      %v2394 = vsel %vm2346, %v308, %v905
      %v2395 = vsel %vm2346, %v310, %v907
      %v2396 = vsel %vm2346, %v311, %v909
      %v2397 = vsel %vm2346, %v313, %v911
      %v2398 = vsel %vm2346, %v314, %v913
      %v2399 = vsel %vm2346, %v316, %v915
      %v2400 = vsel %vm2346, %v317, %v917
      %v2401 = vsel %vm2346, %v319, %v919
      %v2402 = vsel %vm2346, %v320, %v921
      %v2403 = vsel %vm2346, %v322, %v923
      %v2404 = vsel %vm2346, %v323, %v925
      %v2405 = vsel %vm2346, %v325, %v927
      %v2406 = vsel %vm2346, %v326, %v929
      %v2407 = vsel %vm2346, %v328, %v931
      %v2408 = vsel %vm2346, %v329, %v933
      %v2409 = vsel %vm2346, %v331, %v935
      %v2410 = vsel %vm2346, %v332, %v937
      %vm2411 = vcmask 130048
      %v2412 = vsel %vm2411, %v2347, %v1003
      %v2413 = vsel %vm2411, %v2348, %v1005
      %v2414 = vsel %vm2411, %v2349, %v1007
      %v2415 = vsel %vm2411, %v2350, %v1009
      %v2416 = vsel %vm2411, %v2351, %v1011
      %v2417 = vsel %vm2411, %v2352, %v1013
      %v2418 = vsel %vm2411, %v2353, %v1015
      %v2419 = vsel %vm2411, %v2354, %v1017
      %v2420 = vsel %vm2411, %v2355, %v1019
      %v2421 = vsel %vm2411, %v2356, %v1021
      %v2422 = vsel %vm2411, %v2357, %v1023
      %v2423 = vsel %vm2411, %v2358, %v1025
      %v2424 = vsel %vm2411, %v2359, %v1027
      %v2425 = vsel %vm2411, %v2360, %v1029
      %v2426 = vsel %vm2411, %v2361, %v1031
      %v2427 = vsel %vm2411, %v2362, %v1033
      %v2428 = vsel %vm2411, %v2363, %v1035
      %v2429 = vsel %vm2411, %v2364, %v1037
      %v2430 = vsel %vm2411, %v2365, %v1039
      %v2431 = vsel %vm2411, %v2366, %v1041
      %v2432 = vsel %vm2411, %v2367, %v1043
      %v2433 = vsel %vm2411, %v2368, %v1045
      %v2434 = vsel %vm2411, %v2369, %v1047
      %v2435 = vsel %vm2411, %v2370, %v1049
      %v2436 = vsel %vm2411, %v2371, %v1051
      %v2437 = vsel %vm2411, %v2372, %v1053
      %v2438 = vsel %vm2411, %v2373, %v1055
      %v2439 = vsel %vm2411, %v2374, %v1057
      %v2440 = vsel %vm2411, %v2375, %v1059
      %v2441 = vsel %vm2411, %v2376, %v1061
      %v2442 = vsel %vm2411, %v2377, %v1063
      %v2443 = vsel %vm2411, %v2378, %v1065
      %v2444 = vsel %vm2411, %v2379, %v1067
      %v2445 = vsel %vm2411, %v2380, %v1069
      %v2446 = vsel %vm2411, %v2381, %v1071
      %v2447 = vsel %vm2411, %v2382, %v1073
      %v2448 = vsel %vm2411, %v2383, %v1075
      %v2449 = vsel %vm2411, %v2384, %v1077
      %v2450 = vsel %vm2411, %v2385, %v1079
      %v2451 = vsel %vm2411, %v2386, %v1081
      %v2452 = vsel %vm2411, %v2387, %v1083
      %v2453 = vsel %vm2411, %v2388, %v1085
      %v2454 = vsel %vm2411, %v2389, %v1087
      %v2455 = vsel %vm2411, %v2390, %v1089
      %v2456 = vsel %vm2411, %v2391, %v1091
      %v2457 = vsel %vm2411, %v2392, %v1093
      %v2458 = vsel %vm2411, %v2393, %v1095
      %v2459 = vsel %vm2411, %v2394, %v1097
      %v2460 = vsel %vm2411, %v2395, %v1099
      %v2461 = vsel %vm2411, %v2396, %v1101
      %v2462 = vsel %vm2411, %v2397, %v1103
      %v2463 = vsel %vm2411, %v2398, %v1105
      %v2464 = vsel %vm2411, %v2399, %v1107
      %v2465 = vsel %vm2411, %v2400, %v1109
      %v2466 = vsel %vm2411, %v2401, %v1111
      %v2467 = vsel %vm2411, %v2402, %v1113
      %v2468 = vsel %vm2411, %v2403, %v1115
      %v2469 = vsel %vm2411, %v2404, %v1117
      %v2470 = vsel %vm2411, %v2405, %v1119
      %v2471 = vsel %vm2411, %v2406, %v1121
      %v2472 = vsel %vm2411, %v2407, %v1123
      %v2473 = vsel %vm2411, %v2408, %v1125
      %v2474 = vsel %vm2411, %v2409, %v1127
      %v2475 = vsel %vm2411, %v2410, %v1129
      %vm2476 = vcmask 195584
      %v2477 = vsel %vm2476, %v2412, %v1195
      %v2478 = vsel %vm2476, %v2413, %v1197
      %v2479 = vsel %vm2476, %v2414, %v1199
      %v2480 = vsel %vm2476, %v2415, %v1201
      %v2481 = vsel %vm2476, %v2416, %v1203
      %v2482 = vsel %vm2476, %v2417, %v1205
      %v2483 = vsel %vm2476, %v2418, %v1207
      %v2484 = vsel %vm2476, %v2419, %v1209
      %v2485 = vsel %vm2476, %v2420, %v1211
      %v2486 = vsel %vm2476, %v2421, %v1213
      %v2487 = vsel %vm2476, %v2422, %v1215
      %v2488 = vsel %vm2476, %v2423, %v1217
      %v2489 = vsel %vm2476, %v2424, %v1219
      %v2490 = vsel %vm2476, %v2425, %v1221
      %v2491 = vsel %vm2476, %v2426, %v1223
      %v2492 = vsel %vm2476, %v2427, %v1225
      %v2493 = vsel %vm2476, %v2428, %v1227
      %v2494 = vsel %vm2476, %v2429, %v1229
      %v2495 = vsel %vm2476, %v2430, %v1231
      %v2496 = vsel %vm2476, %v2431, %v1233
      %v2497 = vsel %vm2476, %v2432, %v1235
      %v2498 = vsel %vm2476, %v2433, %v1237
      %v2499 = vsel %vm2476, %v2434, %v1239
      %v2500 = vsel %vm2476, %v2435, %v1241
      %v2501 = vsel %vm2476, %v2436, %v1243
      %v2502 = vsel %vm2476, %v2437, %v1245
      %v2503 = vsel %vm2476, %v2438, %v1247
      %v2504 = vsel %vm2476, %v2439, %v1249
      %v2505 = vsel %vm2476, %v2440, %v1251
      %v2506 = vsel %vm2476, %v2441, %v1253
      %v2507 = vsel %vm2476, %v2442, %v1255
      %v2508 = vsel %vm2476, %v2443, %v1257
      %v2509 = vsel %vm2476, %v2444, %v1259
      %v2510 = vsel %vm2476, %v2445, %v1261
      %v2511 = vsel %vm2476, %v2446, %v1263
      %v2512 = vsel %vm2476, %v2447, %v1265
      %v2513 = vsel %vm2476, %v2448, %v1267
      %v2514 = vsel %vm2476, %v2449, %v1269
      %v2515 = vsel %vm2476, %v2450, %v1271
      %v2516 = vsel %vm2476, %v2451, %v1273
      %v2517 = vsel %vm2476, %v2452, %v1275
      %v2518 = vsel %vm2476, %v2453, %v1277
      %v2519 = vsel %vm2476, %v2454, %v1279
      %v2520 = vsel %vm2476, %v2455, %v1281
      %v2521 = vsel %vm2476, %v2456, %v1283
      %v2522 = vsel %vm2476, %v2457, %v1285
      %v2523 = vsel %vm2476, %v2458, %v1287
      %v2524 = vsel %vm2476, %v2459, %v1289
      %v2525 = vsel %vm2476, %v2460, %v1291
      %v2526 = vsel %vm2476, %v2461, %v1293
      %v2527 = vsel %vm2476, %v2462, %v1295
      %v2528 = vsel %vm2476, %v2463, %v1297
      %v2529 = vsel %vm2476, %v2464, %v1299
      %v2530 = vsel %vm2476, %v2465, %v1301
      %v2531 = vsel %vm2476, %v2466, %v1303
      %v2532 = vsel %vm2476, %v2467, %v1305
      %v2533 = vsel %vm2476, %v2468, %v1307
      %v2534 = vsel %vm2476, %v2469, %v1309
      %v2535 = vsel %vm2476, %v2470, %v1311
      %v2536 = vsel %vm2476, %v2471, %v1313
      %v2537 = vsel %vm2476, %v2472, %v1315
      %v2538 = vsel %vm2476, %v2473, %v1317
      %v2539 = vsel %vm2476, %v2474, %v1319
      %v2540 = vsel %vm2476, %v2475, %v1321
      %vm2541 = vcmask 261120
      %v2542 = vsel %vm2541, %v2477, %v1387
      %v2543 = vsel %vm2541, %v2478, %v1389
      %v2544 = vsel %vm2541, %v2479, %v1391
      %v2545 = vsel %vm2541, %v2480, %v1393
      %v2546 = vsel %vm2541, %v2481, %v1395
      %v2547 = vsel %vm2541, %v2482, %v1397
      %v2548 = vsel %vm2541, %v2483, %v1399
      %v2549 = vsel %vm2541, %v2484, %v1401
      %v2550 = vsel %vm2541, %v2485, %v1403
      %v2551 = vsel %vm2541, %v2486, %v1405
      %v2552 = vsel %vm2541, %v2487, %v1407
      %v2553 = vsel %vm2541, %v2488, %v1409
      %v2554 = vsel %vm2541, %v2489, %v1411
      %v2555 = vsel %vm2541, %v2490, %v1413
      %v2556 = vsel %vm2541, %v2491, %v1415
      %v2557 = vsel %vm2541, %v2492, %v1417
      %v2558 = vsel %vm2541, %v2493, %v1419
      %v2559 = vsel %vm2541, %v2494, %v1421
      %v2560 = vsel %vm2541, %v2495, %v1423
      %v2561 = vsel %vm2541, %v2496, %v1425
      %v2562 = vsel %vm2541, %v2497, %v1427
      %v2563 = vsel %vm2541, %v2498, %v1429
      %v2564 = vsel %vm2541, %v2499, %v1431
      %v2565 = vsel %vm2541, %v2500, %v1433
      %v2566 = vsel %vm2541, %v2501, %v1435
      %v2567 = vsel %vm2541, %v2502, %v1437
      %v2568 = vsel %vm2541, %v2503, %v1439
      %v2569 = vsel %vm2541, %v2504, %v1441
      %v2570 = vsel %vm2541, %v2505, %v1443
      %v2571 = vsel %vm2541, %v2506, %v1445
      %v2572 = vsel %vm2541, %v2507, %v1447
      %v2573 = vsel %vm2541, %v2508, %v1449
      %v2574 = vsel %vm2541, %v2509, %v1451
      %v2575 = vsel %vm2541, %v2510, %v1453
      %v2576 = vsel %vm2541, %v2511, %v1455
      %v2577 = vsel %vm2541, %v2512, %v1457
      %v2578 = vsel %vm2541, %v2513, %v1459
      %v2579 = vsel %vm2541, %v2514, %v1461
      %v2580 = vsel %vm2541, %v2515, %v1463
      %v2581 = vsel %vm2541, %v2516, %v1465
      %v2582 = vsel %vm2541, %v2517, %v1467
      %v2583 = vsel %vm2541, %v2518, %v1469
      %v2584 = vsel %vm2541, %v2519, %v1471
      %v2585 = vsel %vm2541, %v2520, %v1473
      %v2586 = vsel %vm2541, %v2521, %v1475
      %v2587 = vsel %vm2541, %v2522, %v1477
      %v2588 = vsel %vm2541, %v2523, %v1479
      %v2589 = vsel %vm2541, %v2524, %v1481
      %v2590 = vsel %vm2541, %v2525, %v1483
      %v2591 = vsel %vm2541, %v2526, %v1485
      %v2592 = vsel %vm2541, %v2527, %v1487
      %v2593 = vsel %vm2541, %v2528, %v1489
      %v2594 = vsel %vm2541, %v2529, %v1491
      %v2595 = vsel %vm2541, %v2530, %v1493
      %v2596 = vsel %vm2541, %v2531, %v1495
      %v2597 = vsel %vm2541, %v2532, %v1497
      %v2598 = vsel %vm2541, %v2533, %v1499
      %v2599 = vsel %vm2541, %v2534, %v1501
      %v2600 = vsel %vm2541, %v2535, %v1503
      %v2601 = vsel %vm2541, %v2536, %v1505
      %v2602 = vsel %vm2541, %v2537, %v1507
      %v2603 = vsel %vm2541, %v2538, %v1509
      %v2604 = vsel %vm2541, %v2539, %v1511
      %v2605 = vsel %vm2541, %v2540, %v1513
      %vm2606 = vcmask 326656
      %v2607 = vsel %vm2606, %v2542, %v1579
      %v2608 = vsel %vm2606, %v2543, %v1581
      %v2609 = vsel %vm2606, %v2544, %v1583
      %v2610 = vsel %vm2606, %v2545, %v1585
      %v2611 = vsel %vm2606, %v2546, %v1587
      %v2612 = vsel %vm2606, %v2547, %v1589
      %v2613 = vsel %vm2606, %v2548, %v1591
      %v2614 = vsel %vm2606, %v2549, %v1593
      %v2615 = vsel %vm2606, %v2550, %v1595
      %v2616 = vsel %vm2606, %v2551, %v1597
      %v2617 = vsel %vm2606, %v2552, %v1599
      %v2618 = vsel %vm2606, %v2553, %v1601
      %v2619 = vsel %vm2606, %v2554, %v1603
      %v2620 = vsel %vm2606, %v2555, %v1605
      %v2621 = vsel %vm2606, %v2556, %v1607
      %v2622 = vsel %vm2606, %v2557, %v1609
      %v2623 = vsel %vm2606, %v2558, %v1611
      %v2624 = vsel %vm2606, %v2559, %v1613
      %v2625 = vsel %vm2606, %v2560, %v1615
      %v2626 = vsel %vm2606, %v2561, %v1617
      %v2627 = vsel %vm2606, %v2562, %v1619
      %v2628 = vsel %vm2606, %v2563, %v1621
      %v2629 = vsel %vm2606, %v2564, %v1623
      %v2630 = vsel %vm2606, %v2565, %v1625
      %v2631 = vsel %vm2606, %v2566, %v1627
      %v2632 = vsel %vm2606, %v2567, %v1629
      %v2633 = vsel %vm2606, %v2568, %v1631
      %v2634 = vsel %vm2606, %v2569, %v1633
      %v2635 = vsel %vm2606, %v2570, %v1635
      %v2636 = vsel %vm2606, %v2571, %v1637
      %v2637 = vsel %vm2606, %v2572, %v1639
      %v2638 = vsel %vm2606, %v2573, %v1641
      %v2639 = vsel %vm2606, %v2574, %v1643
      %v2640 = vsel %vm2606, %v2575, %v1645
      %v2641 = vsel %vm2606, %v2576, %v1647
      %v2642 = vsel %vm2606, %v2577, %v1649
      %v2643 = vsel %vm2606, %v2578, %v1651
      %v2644 = vsel %vm2606, %v2579, %v1653
      %v2645 = vsel %vm2606, %v2580, %v1655
      %v2646 = vsel %vm2606, %v2581, %v1657
      %v2647 = vsel %vm2606, %v2582, %v1659
      %v2648 = vsel %vm2606, %v2583, %v1661
      %v2649 = vsel %vm2606, %v2584, %v1663
      %v2650 = vsel %vm2606, %v2585, %v1665
      %v2651 = vsel %vm2606, %v2586, %v1667
      %v2652 = vsel %vm2606, %v2587, %v1669
      %v2653 = vsel %vm2606, %v2588, %v1671
      %v2654 = vsel %vm2606, %v2589, %v1673
      %v2655 = vsel %vm2606, %v2590, %v1675
      %v2656 = vsel %vm2606, %v2591, %v1677
      %v2657 = vsel %vm2606, %v2592, %v1679
      %v2658 = vsel %vm2606, %v2593, %v1681
      %v2659 = vsel %vm2606, %v2594, %v1683
      %v2660 = vsel %vm2606, %v2595, %v1685
      %v2661 = vsel %vm2606, %v2596, %v1687
      %v2662 = vsel %vm2606, %v2597, %v1689
      %v2663 = vsel %vm2606, %v2598, %v1691
      %v2664 = vsel %vm2606, %v2599, %v1693
      %v2665 = vsel %vm2606, %v2600, %v1695
      %v2666 = vsel %vm2606, %v2601, %v1697
      %v2667 = vsel %vm2606, %v2602, %v1699
      %v2668 = vsel %vm2606, %v2603, %v1701
      %v2669 = vsel %vm2606, %v2604, %v1703
      %v2670 = vsel %vm2606, %v2605, %v1705
      %vm2671 = vcmask 392192
      %v2672 = vsel %vm2671, %v2607, %v1771
      %v2673 = vsel %vm2671, %v2608, %v1773
      %v2674 = vsel %vm2671, %v2609, %v1775
      %v2675 = vsel %vm2671, %v2610, %v1777
      %v2676 = vsel %vm2671, %v2611, %v1779
      %v2677 = vsel %vm2671, %v2612, %v1781
      %v2678 = vsel %vm2671, %v2613, %v1783
      %v2679 = vsel %vm2671, %v2614, %v1785
      %v2680 = vsel %vm2671, %v2615, %v1787
      %v2681 = vsel %vm2671, %v2616, %v1789
      %v2682 = vsel %vm2671, %v2617, %v1791
      %v2683 = vsel %vm2671, %v2618, %v1793
      %v2684 = vsel %vm2671, %v2619, %v1795
      %v2685 = vsel %vm2671, %v2620, %v1797
      %v2686 = vsel %vm2671, %v2621, %v1799
      %v2687 = vsel %vm2671, %v2622, %v1801
      %v2688 = vsel %vm2671, %v2623, %v1803
      %v2689 = vsel %vm2671, %v2624, %v1805
      %v2690 = vsel %vm2671, %v2625, %v1807
      %v2691 = vsel %vm2671, %v2626, %v1809
      %v2692 = vsel %vm2671, %v2627, %v1811
      %v2693 = vsel %vm2671, %v2628, %v1813
      %v2694 = vsel %vm2671, %v2629, %v1815
      %v2695 = vsel %vm2671, %v2630, %v1817
      %v2696 = vsel %vm2671, %v2631, %v1819
      %v2697 = vsel %vm2671, %v2632, %v1821
      %v2698 = vsel %vm2671, %v2633, %v1823
      %v2699 = vsel %vm2671, %v2634, %v1825
      %v2700 = vsel %vm2671, %v2635, %v1827
      %v2701 = vsel %vm2671, %v2636, %v1829
      %v2702 = vsel %vm2671, %v2637, %v1831
      %v2703 = vsel %vm2671, %v2638, %v1833
      %v2704 = vsel %vm2671, %v2639, %v1835
      %v2705 = vsel %vm2671, %v2640, %v1837
      %v2706 = vsel %vm2671, %v2641, %v1839
      %v2707 = vsel %vm2671, %v2642, %v1841
      %v2708 = vsel %vm2671, %v2643, %v1843
      %v2709 = vsel %vm2671, %v2644, %v1845
      %v2710 = vsel %vm2671, %v2645, %v1847
      %v2711 = vsel %vm2671, %v2646, %v1849
      %v2712 = vsel %vm2671, %v2647, %v1851
      %v2713 = vsel %vm2671, %v2648, %v1853
      %v2714 = vsel %vm2671, %v2649, %v1855
      %v2715 = vsel %vm2671, %v2650, %v1857
      %v2716 = vsel %vm2671, %v2651, %v1859
      %v2717 = vsel %vm2671, %v2652, %v1861
      %v2718 = vsel %vm2671, %v2653, %v1863
      %v2719 = vsel %vm2671, %v2654, %v1865
      %v2720 = vsel %vm2671, %v2655, %v1867
      %v2721 = vsel %vm2671, %v2656, %v1869
      %v2722 = vsel %vm2671, %v2657, %v1871
      %v2723 = vsel %vm2671, %v2658, %v1873
      %v2724 = vsel %vm2671, %v2659, %v1875
      %v2725 = vsel %vm2671, %v2660, %v1877
      %v2726 = vsel %vm2671, %v2661, %v1879
      %v2727 = vsel %vm2671, %v2662, %v1881
      %v2728 = vsel %vm2671, %v2663, %v1883
      %v2729 = vsel %vm2671, %v2664, %v1885
      %v2730 = vsel %vm2671, %v2665, %v1887
      %v2731 = vsel %vm2671, %v2666, %v1889
      %v2732 = vsel %vm2671, %v2667, %v1891
      %v2733 = vsel %vm2671, %v2668, %v1893
      %v2734 = vsel %vm2671, %v2669, %v1895
      %v2735 = vsel %vm2671, %v2670, %v1897
      %vm2736 = vcmask 457728
      %v2737 = vsel %vm2736, %v2672, %v1963
      %v2738 = vsel %vm2736, %v2673, %v1965
      %v2739 = vsel %vm2736, %v2674, %v1967
      %v2740 = vsel %vm2736, %v2675, %v1969
      %v2741 = vsel %vm2736, %v2676, %v1971
      %v2742 = vsel %vm2736, %v2677, %v1973
      %v2743 = vsel %vm2736, %v2678, %v1975
      %v2744 = vsel %vm2736, %v2679, %v1977
      %v2745 = vsel %vm2736, %v2680, %v1979
      %v2746 = vsel %vm2736, %v2681, %v1981
      %v2747 = vsel %vm2736, %v2682, %v1983
      %v2748 = vsel %vm2736, %v2683, %v1985
      %v2749 = vsel %vm2736, %v2684, %v1987
      %v2750 = vsel %vm2736, %v2685, %v1989
      %v2751 = vsel %vm2736, %v2686, %v1991
      %v2752 = vsel %vm2736, %v2687, %v1993
      %v2753 = vsel %vm2736, %v2688, %v1995
      %v2754 = vsel %vm2736, %v2689, %v1997
      %v2755 = vsel %vm2736, %v2690, %v1999
      %v2756 = vsel %vm2736, %v2691, %v2001
      %v2757 = vsel %vm2736, %v2692, %v2003
      %v2758 = vsel %vm2736, %v2693, %v2005
      %v2759 = vsel %vm2736, %v2694, %v2007
      %v2760 = vsel %vm2736, %v2695, %v2009
      %v2761 = vsel %vm2736, %v2696, %v2011
      %v2762 = vsel %vm2736, %v2697, %v2013
      %v2763 = vsel %vm2736, %v2698, %v2015
      %v2764 = vsel %vm2736, %v2699, %v2017
      %v2765 = vsel %vm2736, %v2700, %v2019
      %v2766 = vsel %vm2736, %v2701, %v2021
      %v2767 = vsel %vm2736, %v2702, %v2023
      %v2768 = vsel %vm2736, %v2703, %v2025
      %v2769 = vsel %vm2736, %v2704, %v2027
      %v2770 = vsel %vm2736, %v2705, %v2029
      %v2771 = vsel %vm2736, %v2706, %v2031
      %v2772 = vsel %vm2736, %v2707, %v2033
      %v2773 = vsel %vm2736, %v2708, %v2035
      %v2774 = vsel %vm2736, %v2709, %v2037
      %v2775 = vsel %vm2736, %v2710, %v2039
      %v2776 = vsel %vm2736, %v2711, %v2041
      %v2777 = vsel %vm2736, %v2712, %v2043
      %v2778 = vsel %vm2736, %v2713, %v2045
      %v2779 = vsel %vm2736, %v2714, %v2047
      %v2780 = vsel %vm2736, %v2715, %v2049
      %v2781 = vsel %vm2736, %v2716, %v2051
      %v2782 = vsel %vm2736, %v2717, %v2053
      %v2783 = vsel %vm2736, %v2718, %v2055
      %v2784 = vsel %vm2736, %v2719, %v2057
      %v2785 = vsel %vm2736, %v2720, %v2059
      %v2786 = vsel %vm2736, %v2721, %v2061
      %v2787 = vsel %vm2736, %v2722, %v2063
      %v2788 = vsel %vm2736, %v2723, %v2065
      %v2789 = vsel %vm2736, %v2724, %v2067
      %v2790 = vsel %vm2736, %v2725, %v2069
      %v2791 = vsel %vm2736, %v2726, %v2071
      %v2792 = vsel %vm2736, %v2727, %v2073
      %v2793 = vsel %vm2736, %v2728, %v2075
      %v2794 = vsel %vm2736, %v2729, %v2077
      %v2795 = vsel %vm2736, %v2730, %v2079
      %v2796 = vsel %vm2736, %v2731, %v2081
      %v2797 = vsel %vm2736, %v2732, %v2083
      %v2798 = vsel %vm2736, %v2733, %v2085
      %v2799 = vsel %vm2736, %v2734, %v2087
      %v2800 = vsel %vm2736, %v2735, %v2089
      %vm2801 = vcmask 523264
      %v2802 = vsel %vm2801, %v2737, %v2155
      %v2803 = vsel %vm2801, %v2738, %v2157
      %v2804 = vsel %vm2801, %v2739, %v2159
      %v2805 = vsel %vm2801, %v2740, %v2161
      %v2806 = vsel %vm2801, %v2741, %v2163
      %v2807 = vsel %vm2801, %v2742, %v2165
      %v2808 = vsel %vm2801, %v2743, %v2167
      %v2809 = vsel %vm2801, %v2744, %v2169
      %v2810 = vsel %vm2801, %v2745, %v2171
      %v2811 = vsel %vm2801, %v2746, %v2173
      %v2812 = vsel %vm2801, %v2747, %v2175
      %v2813 = vsel %vm2801, %v2748, %v2177
      %v2814 = vsel %vm2801, %v2749, %v2179
      %v2815 = vsel %vm2801, %v2750, %v2181
      %v2816 = vsel %vm2801, %v2751, %v2183
      %v2817 = vsel %vm2801, %v2752, %v2185
      %v2818 = vsel %vm2801, %v2753, %v2187
      %v2819 = vsel %vm2801, %v2754, %v2189
      %v2820 = vsel %vm2801, %v2755, %v2191
      %v2821 = vsel %vm2801, %v2756, %v2193
      %v2822 = vsel %vm2801, %v2757, %v2195
      %v2823 = vsel %vm2801, %v2758, %v2197
      %v2824 = vsel %vm2801, %v2759, %v2199
      %v2825 = vsel %vm2801, %v2760, %v2201
      %v2826 = vsel %vm2801, %v2761, %v2203
      %v2827 = vsel %vm2801, %v2762, %v2205
      %v2828 = vsel %vm2801, %v2763, %v2207
      %v2829 = vsel %vm2801, %v2764, %v2209
      %v2830 = vsel %vm2801, %v2765, %v2211
      %v2831 = vsel %vm2801, %v2766, %v2213
      %v2832 = vsel %vm2801, %v2767, %v2215
      %v2833 = vsel %vm2801, %v2768, %v2217
      %v2834 = vsel %vm2801, %v2769, %v2219
      %v2835 = vsel %vm2801, %v2770, %v2221
      %v2836 = vsel %vm2801, %v2771, %v2223
      %v2837 = vsel %vm2801, %v2772, %v2225
      %v2838 = vsel %vm2801, %v2773, %v2227
      %v2839 = vsel %vm2801, %v2774, %v2229
      %v2840 = vsel %vm2801, %v2775, %v2231
      %v2841 = vsel %vm2801, %v2776, %v2233
      %v2842 = vsel %vm2801, %v2777, %v2235
      %v2843 = vsel %vm2801, %v2778, %v2237
      %v2844 = vsel %vm2801, %v2779, %v2239
      %v2845 = vsel %vm2801, %v2780, %v2241
      %v2846 = vsel %vm2801, %v2781, %v2243
      %v2847 = vsel %vm2801, %v2782, %v2245
      %v2848 = vsel %vm2801, %v2783, %v2247
      %v2849 = vsel %vm2801, %v2784, %v2249
      %v2850 = vsel %vm2801, %v2785, %v2251
      %v2851 = vsel %vm2801, %v2786, %v2253
      %v2852 = vsel %vm2801, %v2787, %v2255
      %v2853 = vsel %vm2801, %v2788, %v2257
      %v2854 = vsel %vm2801, %v2789, %v2259
      %v2855 = vsel %vm2801, %v2790, %v2261
      %v2856 = vsel %vm2801, %v2791, %v2263
      %v2857 = vsel %vm2801, %v2792, %v2265
      %v2858 = vsel %vm2801, %v2793, %v2267
      %v2859 = vsel %vm2801, %v2794, %v2269
      %v2860 = vsel %vm2801, %v2795, %v2271
      %v2861 = vsel %vm2801, %v2796, %v2273
      %v2862 = vsel %vm2801, %v2797, %v2275
      %v2863 = vsel %vm2801, %v2798, %v2277
      %v2864 = vsel %vm2801, %v2799, %v2279
      %v2865 = vsel %vm2801, %v2800, %v2281
      %vm2866 = vcmask 588800
      %v2867 = vsel %vm2866, %v2802, 0.0
      %v2868 = vsel %vm2866, %v2803, 0.0
      %v2869 = vsel %vm2866, %v2804, 0.0
      %v2870 = vsel %vm2866, %v2805, 0.0
      %v2871 = vsel %vm2866, %v2806, 0.0
      %v2872 = vsel %vm2866, %v2807, 0.0
      %v2873 = vsel %vm2866, %v2808, 0.0
      %v2874 = vsel %vm2866, %v2809, 0.0
      %v2875 = vsel %vm2866, %v2810, 0.0
      %v2876 = vsel %vm2866, %v2811, 0.0
      %v2877 = vsel %vm2866, %v2812, 0.0
      %v2878 = vsel %vm2866, %v2813, 0.0
      %v2879 = vsel %vm2866, %v2814, 0.0
      %v2880 = vsel %vm2866, %v2815, 0.0
      %v2881 = vsel %vm2866, %v2816, 0.0
      %v2882 = vsel %vm2866, %v2817, 0.0
      %v2883 = vsel %vm2866, %v2818, 0.0
      %v2884 = vsel %vm2866, %v2819, 0.0
      %v2885 = vsel %vm2866, %v2820, 0.0
      %v2886 = vsel %vm2866, %v2821, 0.0
      %v2887 = vsel %vm2866, %v2822, 0.0
      %v2888 = vsel %vm2866, %v2823, 0.0
      %v2889 = vsel %vm2866, %v2824, 0.0
      %v2890 = vsel %vm2866, %v2825, 0.0
      %v2891 = vsel %vm2866, %v2826, 0.0
      %v2892 = vsel %vm2866, %v2827, 0.0
      %v2893 = vsel %vm2866, %v2828, 0.0
      %v2894 = vsel %vm2866, %v2829, 0.0
      %v2895 = vsel %vm2866, %v2830, 0.0
      %v2896 = vsel %vm2866, %v2831, 0.0
      %v2897 = vsel %vm2866, %v2832, 0.0
      %v2898 = vsel %vm2866, %v2833, 0.0
      %v2899 = vsel %vm2866, %v2834, 0.0
      %v2900 = vsel %vm2866, %v2835, 0.0
      %v2901 = vsel %vm2866, %v2836, 0.0
      %v2902 = vsel %vm2866, %v2837, 0.0
      %v2903 = vsel %vm2866, %v2838, 0.0
      %v2904 = vsel %vm2866, %v2839, 0.0
      %v2905 = vsel %vm2866, %v2840, 0.0
      %v2906 = vsel %vm2866, %v2841, 0.0
      %v2907 = vsel %vm2866, %v2842, 0.0
      %v2908 = vsel %vm2866, %v2843, 0.0
      %v2909 = vsel %vm2866, %v2844, 0.0
      %v2910 = vsel %vm2866, %v2845, 0.0
      %v2911 = vsel %vm2866, %v2846, 0.0
      %v2912 = vsel %vm2866, %v2847, 0.0
      %v2913 = vsel %vm2866, %v2848, 0.0
      %v2914 = vsel %vm2866, %v2849, 0.0
      %v2915 = vsel %vm2866, %v2850, 0.0
      %v2916 = vsel %vm2866, %v2851, 0.0
      %v2917 = vsel %vm2866, %v2852, 0.0
      %v2918 = vsel %vm2866, %v2853, 0.0
      %v2919 = vsel %vm2866, %v2854, 0.0
      %v2920 = vsel %vm2866, %v2855, 0.0
      %v2921 = vsel %vm2866, %v2856, 0.0
      %v2922 = vsel %vm2866, %v2857, 0.0
      %v2923 = vsel %vm2866, %v2858, 0.0
      %v2924 = vsel %vm2866, %v2859, 0.0
      %v2925 = vsel %vm2866, %v2860, 0.0
      %v2926 = vsel %vm2866, %v2861, 0.0
      %v2927 = vsel %vm2866, %v2862, 0.0
      %v2928 = vsel %vm2866, %v2863, 0.0
      %v2929 = vsel %vm2866, %v2864, 0.0
      %v2930 = vsel %vm2866, %v2865, 0.0
      %v2931 = vld [vmem:[%s223] sm:$0xff]
      %v2932 = vld [vmem:[%s223 + $0x8] sm:$0xff]
      %v2933 = vld [vmem:[%s223 + $0x10] sm:$0xff]
      %v2934 = vld [vmem:[%s223 + $0x18] sm:$0xff]
      %v2935 = vld [vmem:[%s223 + $0x20] sm:$0xff]
      %v2936 = vld [vmem:[%s223 + $0x28] sm:$0xff]
      %v2937 = vld [vmem:[%s223 + $0x30] sm:$0xff]
      %v2938 = vld [vmem:[%s223 + $0x38] sm:$0xff]
      %v2939 = vld [vmem:[%s223 + $0x40] sm:$0xff]
      %v2940 = vld [vmem:[%s223 + $0x48] sm:$0xff]
      %v2941 = vld [vmem:[%s223 + $0x50] sm:$0xff]
      %v2942 = vld [vmem:[%s223 + $0x58] sm:$0xff]
      %v2943 = vld [vmem:[%s223 + $0x60] sm:$0xff]
      %v2944 = vld [vmem:[%s223 + $0x68] sm:$0xff]
      %v2945 = vld [vmem:[%s223 + $0x70] sm:$0xff]
      %v2946 = vld [vmem:[%s223 + $0x78] sm:$0xff]
      %v2947 = vld [vmem:[%s226] sm:$0x1]
      %v2949 = vlaneseq
      %v2950 = vshrl.u32 %v2949, 7
      %v2951 = vsub.s32 0, %v2950
      %v2952 = vrot.slane %v2947, %v2951
      %2954 = vmatprep.subr.mxu0 0.0
      %2955 = vmatpush1.msra.mxu0 %v2931
      %2956 = vmatprep.subr.mxu0 0.0
      %2957 = vmatpush1.msra.mxu0 %v2932
      %2958 = vmatprep.subr.mxu0 0.0
      %2959 = vmatpush1.msra.mxu0 %v2933
      %2960 = vmatprep.subr.mxu0 0.0
      %2961 = vmatpush1.msra.mxu0 %v2934
      %2962 = vmatprep.subr.mxu0 0.0
      %2963 = vmatpush1.msra.mxu0 %v2935
      %2964 = vmatprep.subr.mxu0 0.0
      %2965 = vmatpush1.msra.mxu0 %v2936
      %2966 = vmatprep.subr.mxu0 0.0
      %2967 = vmatpush1.msra.mxu0 %v2937
      %2968 = vmatprep.subr.mxu0 0.0
      %2969 = vmatpush1.msra.mxu0 %v2938
      %2970 = vmatprep.subr.mxu0 0.0
      %2971 = vmatpush1.msra.mxu0 %v2939
      %2972 = vmatprep.subr.mxu0 0.0
      %2973 = vmatpush1.msra.mxu0 %v2940
      %2974 = vmatprep.subr.mxu0 0.0
      %2975 = vmatpush1.msra.mxu0 %v2941
      %2976 = vmatprep.subr.mxu0 0.0
      %2977 = vmatpush1.msra.mxu0 %v2942
      %2978 = vmatprep.subr.mxu0 0.0
      %2979 = vmatpush1.msra.mxu0 %v2943
      %2980 = vmatprep.subr.mxu0 0.0
      %2981 = vmatpush1.msra.mxu0 %v2944
      %2982 = vmatprep.subr.mxu0 0.0
      %2983 = vmatpush1.msra.mxu0 %v2945
      %2984 = vmatprep.subr.mxu0 0.0
      %2985 = vmatpush1.msra.mxu0 %v2946
      %2986 = vmatprep.subr.mxu0 0.0
      %2987 = vmatpush1.msra.mxu0 0.0
      %2988 = vmatprep.subr.mxu0 0.0
      %2989 = vmatpush1.msra.mxu0 0.0
      %2990 = vmatprep.subr.mxu0 0.0
      %2991 = vmatpush1.msra.mxu0 0.0
      %2992 = vmatprep.subr.mxu0 0.0
      %2993 = vmatpush1.msra.mxu0 0.0
      %2994 = vmatprep.subr.mxu0 0.0
      %2995 = vmatpush1.msra.mxu0 0.0
      %2996 = vmatprep.subr.mxu0 0.0
      %2997 = vmatpush1.msra.mxu0 0.0
      %2998 = vmatprep.subr.mxu0 0.0
      %2999 = vmatpush1.msra.mxu0 0.0
      %3000 = vmatprep.subr.mxu0 0.0
      %3001 = vmatpush1.msra.mxu0 0.0
      %3002 = vmatprep.subr.mxu0 0.0
      %3003 = vmatpush1.msra.mxu0 0.0
      %3004 = vmatprep.subr.mxu0 0.0
      %3005 = vmatpush1.msra.mxu0 0.0
      %3006 = vmatprep.subr.mxu0 0.0
      %3007 = vmatpush1.msra.mxu0 0.0
      %3008 = vmatprep.subr.mxu0 0.0
      %3009 = vmatpush1.msra.mxu0 0.0
      %3010 = vmatprep.subr.mxu0 0.0
      %3011 = vmatpush1.msra.mxu0 0.0
      %3012 = vmatprep.subr.mxu0 0.0
      %3013 = vmatpush1.msra.mxu0 0.0
      %3014 = vmatprep.subr.mxu0 0.0
      %3015 = vmatpush1.msra.mxu0 0.0
      %3016 = vmatprep.subr.mxu0 0.0
      %3017 = vmatpush1.msra.mxu0 0.0
      %3018 = vmatprep.mubr.f32.mxu0 0.0
      %3019 = vmatmul.mubr.f32.gmra.mrb[0].mxu0 %v2867
      %v3020 = vpop.f32.mrb[0].mxu0
      %v3021 = vadd.f32 %v2952, %v3020
      %v3022 = vpop.f32.mrb[0].mxu0
      %3023 = vmatprep.mubr.f32.mxu0 0.0
      %3024 = vmatmul.mubr.f32.gmra.mrb[0].mxu0 %v2868
      %v3025 = vpop.f32.mrb[0].mxu0
      %v3026 = vadd.f32 %v2952, %v3025
      %v3027 = vpop.f32.mrb[0].mxu0
      %3028 = vmatprep.mubr.f32.mxu0 0.0
      %3029 = vmatmul.mubr.f32.gmra.mrb[0].mxu0 %v2869
      %v3030 = vpop.f32.mrb[0].mxu0
      %v3031 = vadd.f32 %v2952, %v3030
      %v3032 = vpop.f32.mrb[0].mxu0
      %3033 = vmatprep.mubr.f32.mxu0 0.0
      %3034 = vmatmul.mubr.f32.gmra.mrb[0].mxu0 %v2870
      %v3035 = vpop.f32.mrb[0].mxu0
      %v3036 = vadd.f32 %v2952, %v3035
      %v3037 = vpop.f32.mrb[0].mxu0
      %3038 = vmatprep.mubr.f32.mxu0 0.0
      %3039 = vmatmul.mubr.f32.gmra.mrb[0].mxu0 %v2871
      %v3040 = vpop.f32.mrb[0].mxu0
      %v3041 = vadd.f32 %v2952, %v3040
      %v3042 = vpop.f32.mrb[0].mxu0
      %3043 = vmatprep.mubr.f32.mxu0 0.0
      %3044 = vmatmul.mubr.f32.gmra.mrb[0].mxu0 %v2872
      %v3045 = vpop.f32.mrb[0].mxu0
      %v3046 = vadd.f32 %v2952, %v3045
      %v3047 = vpop.f32.mrb[0].mxu0
      %3048 = vmatprep.mubr.f32.mxu0 0.0
      %3049 = vmatmul.mubr.f32.gmra.mrb[0].mxu0 %v2873
      %v3050 = vpop.f32.mrb[0].mxu0
      %v3051 = vadd.f32 %v2952, %v3050
      %v3052 = vpop.f32.mrb[0].mxu0
      %3053 = vmatprep.mubr.f32.mxu0 0.0
      %3054 = vmatmul.mubr.f32.gmra.mrb[0].mxu0 %v2874
      %v3055 = vpop.f32.mrb[0].mxu0
      %v3056 = vadd.f32 %v2952, %v3055
      %v3057 = vpop.f32.mrb[0].mxu0
      %3058 = vmatprep.mubr.f32.mxu0 0.0
      %3059 = vmatmul.mubr.f32.gmra.mrb[0].mxu0 %v2875
      %v3060 = vpop.f32.mrb[0].mxu0
      %v3061 = vadd.f32 %v2952, %v3060
      %v3062 = vpop.f32.mrb[0].mxu0
      %3063 = vmatprep.mubr.f32.mxu0 0.0
      %3064 = vmatmul.mubr.f32.gmra.mrb[0].mxu0 %v2876
      %v3065 = vpop.f32.mrb[0].mxu0
      %v3066 = vadd.f32 %v2952, %v3065
      %v3067 = vpop.f32.mrb[0].mxu0
      %3068 = vmatprep.mubr.f32.mxu0 0.0
      %3069 = vmatmul.mubr.f32.gmra.mrb[0].mxu0 %v2877
      %v3070 = vpop.f32.mrb[0].mxu0
      %v3071 = vadd.f32 %v2952, %v3070
      %v3072 = vpop.f32.mrb[0].mxu0
      %3073 = vmatprep.mubr.f32.mxu0 0.0
      %3074 = vmatmul.mubr.f32.gmra.mrb[0].mxu0 %v2878
      %v3075 = vpop.f32.mrb[0].mxu0
      %v3076 = vadd.f32 %v2952, %v3075
      %v3077 = vpop.f32.mrb[0].mxu0
      %3078 = vmatprep.mubr.f32.mxu0 0.0
      %3079 = vmatmul.mubr.f32.gmra.mrb[0].mxu0 %v2879
      %v3080 = vpop.f32.mrb[0].mxu0
      %v3081 = vadd.f32 %v2952, %v3080
      %v3082 = vpop.f32.mrb[0].mxu0
      %3083 = vmatprep.mubr.f32.mxu0 0.0
      %3084 = vmatmul.mubr.f32.gmra.mrb[0].mxu0 %v2880
      %v3085 = vpop.f32.mrb[0].mxu0
      %v3086 = vadd.f32 %v2952, %v3085
      %v3087 = vpop.f32.mrb[0].mxu0
      %3088 = vmatprep.mubr.f32.mxu0 0.0
      %3089 = vmatmul.mubr.f32.gmra.mrb[0].mxu0 %v2881
      %v3090 = vpop.f32.mrb[0].mxu0
      %v3091 = vadd.f32 %v2952, %v3090
      %v3092 = vpop.f32.mrb[0].mxu0
      %3093 = vmatprep.mubr.f32.mxu0 0.0
      %3094 = vmatmul.mubr.f32.gmra.mrb[0].mxu0 %v2882
      %v3095 = vpop.f32.mrb[0].mxu0
      %v3096 = vadd.f32 %v2952, %v3095
      %v3097 = vpop.f32.mrb[0].mxu0
      %3098 = vmatprep.mubr.f32.mxu0 0.0
      %3099 = vmatmul.mubr.f32.gmra.mrb[0].mxu0 %v2883
      %v3100 = vpop.f32.mrb[0].mxu0
      %v3101 = vadd.f32 %v2952, %v3100
      %v3102 = vpop.f32.mrb[0].mxu0
      %3103 = vmatprep.mubr.f32.mxu0 0.0
      %3104 = vmatmul.mubr.f32.gmra.mrb[0].mxu0 %v2884
      %v3105 = vpop.f32.mrb[0].mxu0
      %v3106 = vadd.f32 %v2952, %v3105
      %v3107 = vpop.f32.mrb[0].mxu0
      %3108 = vmatprep.mubr.f32.mxu0 0.0
      %3109 = vmatmul.mubr.f32.gmra.mrb[0].mxu0 %v2885
      %v3110 = vpop.f32.mrb[0].mxu0
      %v3111 = vadd.f32 %v2952, %v3110
      %v3112 = vpop.f32.mrb[0].mxu0
      %3113 = vmatprep.mubr.f32.mxu0 0.0
      %3114 = vmatmul.mubr.f32.gmra.mrb[0].mxu0 %v2886
      %v3115 = vpop.f32.mrb[0].mxu0
      %v3116 = vadd.f32 %v2952, %v3115
      %v3117 = vpop.f32.mrb[0].mxu0
      %3118 = vmatprep.mubr.f32.mxu0 0.0
      %3119 = vmatmul.mubr.f32.gmra.mrb[0].mxu0 %v2887
      %v3120 = vpop.f32.mrb[0].mxu0
      %v3121 = vadd.f32 %v2952, %v3120
      %v3122 = vpop.f32.mrb[0].mxu0
      %3123 = vmatprep.mubr.f32.mxu0 0.0
      %3124 = vmatmul.mubr.f32.gmra.mrb[0].mxu0 %v2888
      %v3125 = vpop.f32.mrb[0].mxu0
      %v3126 = vadd.f32 %v2952, %v3125
      %v3127 = vpop.f32.mrb[0].mxu0
      %3128 = vmatprep.mubr.f32.mxu0 0.0
      %3129 = vmatmul.mubr.f32.gmra.mrb[0].mxu0 %v2889
      %v3130 = vpop.f32.mrb[0].mxu0
      %v3131 = vadd.f32 %v2952, %v3130
      %v3132 = vpop.f32.mrb[0].mxu0
      %3133 = vmatprep.mubr.f32.mxu0 0.0
      %3134 = vmatmul.mubr.f32.gmra.mrb[0].mxu0 %v2890
      %v3135 = vpop.f32.mrb[0].mxu0
      %v3136 = vadd.f32 %v2952, %v3135
      %v3137 = vpop.f32.mrb[0].mxu0
      %3138 = vmatprep.mubr.f32.mxu0 0.0
      %3139 = vmatmul.mubr.f32.gmra.mrb[0].mxu0 %v2891
      %v3140 = vpop.f32.mrb[0].mxu0
      %v3141 = vadd.f32 %v2952, %v3140
      %v3142 = vpop.f32.mrb[0].mxu0
      %3143 = vmatprep.mubr.f32.mxu0 0.0
      %3144 = vmatmul.mubr.f32.gmra.mrb[0].mxu0 %v2892
      %v3145 = vpop.f32.mrb[0].mxu0
      %v3146 = vadd.f32 %v2952, %v3145
      %v3147 = vpop.f32.mrb[0].mxu0
      %3148 = vmatprep.mubr.f32.mxu0 0.0
      %3149 = vmatmul.mubr.f32.gmra.mrb[0].mxu0 %v2893
      %v3150 = vpop.f32.mrb[0].mxu0
      %v3151 = vadd.f32 %v2952, %v3150
      %v3152 = vpop.f32.mrb[0].mxu0
      %3153 = vmatprep.mubr.f32.mxu0 0.0
      %3154 = vmatmul.mubr.f32.gmra.mrb[0].mxu0 %v2894
      %v3155 = vpop.f32.mrb[0].mxu0
      %v3156 = vadd.f32 %v2952, %v3155
      %v3157 = vpop.f32.mrb[0].mxu0
      %3158 = vmatprep.mubr.f32.mxu0 0.0
      %3159 = vmatmul.mubr.f32.gmra.mrb[0].mxu0 %v2895
      %v3160 = vpop.f32.mrb[0].mxu0
      %v3161 = vadd.f32 %v2952, %v3160
      %v3162 = vpop.f32.mrb[0].mxu0
      %3163 = vmatprep.mubr.f32.mxu0 0.0
      %3164 = vmatmul.mubr.f32.gmra.mrb[0].mxu0 %v2896
      %v3165 = vpop.f32.mrb[0].mxu0
      %v3166 = vadd.f32 %v2952, %v3165
      %v3167 = vpop.f32.mrb[0].mxu0
      %3168 = vmatprep.mubr.f32.mxu0 0.0
      %3169 = vmatmul.mubr.f32.gmra.mrb[0].mxu0 %v2897
      %v3170 = vpop.f32.mrb[0].mxu0
      %v3171 = vadd.f32 %v2952, %v3170
      %v3172 = vpop.f32.mrb[0].mxu0
      %3173 = vmatprep.mubr.f32.mxu0 0.0
      %3174 = vmatmul.mubr.f32.gmra.mrb[0].mxu0 %v2898
      %v3175 = vpop.f32.mrb[0].mxu0
      %v3176 = vadd.f32 %v2952, %v3175
      %v3177 = vpop.f32.mrb[0].mxu0
      %3178 = vmatprep.mubr.f32.mxu0 0.0
      %3179 = vmatmul.mubr.f32.gmra.mrb[0].mxu0 %v2899
      %v3180 = vpop.f32.mrb[0].mxu0
      %v3181 = vadd.f32 %v2952, %v3180
      %v3182 = vpop.f32.mrb[0].mxu0
      %3183 = vmatprep.mubr.f32.mxu0 0.0
      %3184 = vmatmul.mubr.f32.gmra.mrb[0].mxu0 %v2900
      %v3185 = vpop.f32.mrb[0].mxu0
      %v3186 = vadd.f32 %v2952, %v3185
      %v3187 = vpop.f32.mrb[0].mxu0
      %3188 = vmatprep.mubr.f32.mxu0 0.0
      %3189 = vmatmul.mubr.f32.gmra.mrb[0].mxu0 %v2901
      %v3190 = vpop.f32.mrb[0].mxu0
      %v3191 = vadd.f32 %v2952, %v3190
      %v3192 = vpop.f32.mrb[0].mxu0
      %3193 = vmatprep.mubr.f32.mxu0 0.0
      %3194 = vmatmul.mubr.f32.gmra.mrb[0].mxu0 %v2902
      %v3195 = vpop.f32.mrb[0].mxu0
      %v3196 = vadd.f32 %v2952, %v3195
      %v3197 = vpop.f32.mrb[0].mxu0
      %3198 = vmatprep.mubr.f32.mxu0 0.0
      %3199 = vmatmul.mubr.f32.gmra.mrb[0].mxu0 %v2903
      %v3200 = vpop.f32.mrb[0].mxu0
      %v3201 = vadd.f32 %v2952, %v3200
      %v3202 = vpop.f32.mrb[0].mxu0
      %3203 = vmatprep.mubr.f32.mxu0 0.0
      %3204 = vmatmul.mubr.f32.gmra.mrb[0].mxu0 %v2904
      %v3205 = vpop.f32.mrb[0].mxu0
      %v3206 = vadd.f32 %v2952, %v3205
      %v3207 = vpop.f32.mrb[0].mxu0
      %3208 = vmatprep.mubr.f32.mxu0 0.0
      %3209 = vmatmul.mubr.f32.gmra.mrb[0].mxu0 %v2905
      %v3210 = vpop.f32.mrb[0].mxu0
      %v3211 = vadd.f32 %v2952, %v3210
      %v3212 = vpop.f32.mrb[0].mxu0
      %3213 = vmatprep.mubr.f32.mxu0 0.0
      %3214 = vmatmul.mubr.f32.gmra.mrb[0].mxu0 %v2906
      %v3215 = vpop.f32.mrb[0].mxu0
      %v3216 = vadd.f32 %v2952, %v3215
      %v3217 = vpop.f32.mrb[0].mxu0
      %3218 = vmatprep.mubr.f32.mxu0 0.0
      %3219 = vmatmul.mubr.f32.gmra.mrb[0].mxu0 %v2907
      %v3220 = vpop.f32.mrb[0].mxu0
      %v3221 = vadd.f32 %v2952, %v3220
      %v3222 = vpop.f32.mrb[0].mxu0
      %3223 = vmatprep.mubr.f32.mxu0 0.0
      %3224 = vmatmul.mubr.f32.gmra.mrb[0].mxu0 %v2908
      %v3225 = vpop.f32.mrb[0].mxu0
      %v3226 = vadd.f32 %v2952, %v3225
      %v3227 = vpop.f32.mrb[0].mxu0
      %3228 = vmatprep.mubr.f32.mxu0 0.0
      %3229 = vmatmul.mubr.f32.gmra.mrb[0].mxu0 %v2909
      %v3230 = vpop.f32.mrb[0].mxu0
      %v3231 = vadd.f32 %v2952, %v3230
      %v3232 = vpop.f32.mrb[0].mxu0
      %3233 = vmatprep.mubr.f32.mxu0 0.0
      %3234 = vmatmul.mubr.f32.gmra.mrb[0].mxu0 %v2910
      %v3235 = vpop.f32.mrb[0].mxu0
      %v3236 = vadd.f32 %v2952, %v3235
      %v3237 = vpop.f32.mrb[0].mxu0
      %3238 = vmatprep.mubr.f32.mxu0 0.0
      %3239 = vmatmul.mubr.f32.gmra.mrb[0].mxu0 %v2911
      %v3240 = vpop.f32.mrb[0].mxu0
      %v3241 = vadd.f32 %v2952, %v3240
      %v3242 = vpop.f32.mrb[0].mxu0
      %3243 = vmatprep.mubr.f32.mxu0 0.0
      %3244 = vmatmul.mubr.f32.gmra.mrb[0].mxu0 %v2912
      %v3245 = vpop.f32.mrb[0].mxu0
      %v3246 = vadd.f32 %v2952, %v3245
      %v3247 = vpop.f32.mrb[0].mxu0
      %3248 = vmatprep.mubr.f32.mxu0 0.0
      %3249 = vmatmul.mubr.f32.gmra.mrb[0].mxu0 %v2913
      %v3250 = vpop.f32.mrb[0].mxu0
      %v3251 = vadd.f32 %v2952, %v3250
      %v3252 = vpop.f32.mrb[0].mxu0
      %3253 = vmatprep.mubr.f32.mxu0 0.0
      %3254 = vmatmul.mubr.f32.gmra.mrb[0].mxu0 %v2914
      %v3255 = vpop.f32.mrb[0].mxu0
      %v3256 = vadd.f32 %v2952, %v3255
      %v3257 = vpop.f32.mrb[0].mxu0
      %3258 = vmatprep.mubr.f32.mxu0 0.0
      %3259 = vmatmul.mubr.f32.gmra.mrb[0].mxu0 %v2915
      %v3260 = vpop.f32.mrb[0].mxu0
      %v3261 = vadd.f32 %v2952, %v3260
      %v3262 = vpop.f32.mrb[0].mxu0
      %3263 = vmatprep.mubr.f32.mxu0 0.0
      %3264 = vmatmul.mubr.f32.gmra.mrb[0].mxu0 %v2916
      %v3265 = vpop.f32.mrb[0].mxu0
      %v3266 = vadd.f32 %v2952, %v3265
      %v3267 = vpop.f32.mrb[0].mxu0
      %3268 = vmatprep.mubr.f32.mxu0 0.0
      %3269 = vmatmul.mubr.f32.gmra.mrb[0].mxu0 %v2917
      %v3270 = vpop.f32.mrb[0].mxu0
      %v3271 = vadd.f32 %v2952, %v3270
      %v3272 = vpop.f32.mrb[0].mxu0
      %3273 = vmatprep.mubr.f32.mxu0 0.0
      %3274 = vmatmul.mubr.f32.gmra.mrb[0].mxu0 %v2918
      %v3275 = vpop.f32.mrb[0].mxu0
      %v3276 = vadd.f32 %v2952, %v3275
      %v3277 = vpop.f32.mrb[0].mxu0
      %3278 = vmatprep.mubr.f32.mxu0 0.0
      %3279 = vmatmul.mubr.f32.gmra.mrb[0].mxu0 %v2919
      %v3280 = vpop.f32.mrb[0].mxu0
      %v3281 = vadd.f32 %v2952, %v3280
      %v3282 = vpop.f32.mrb[0].mxu0
      %3283 = vmatprep.mubr.f32.mxu0 0.0
      %3284 = vmatmul.mubr.f32.gmra.mrb[0].mxu0 %v2920
      %v3285 = vpop.f32.mrb[0].mxu0
      %v3286 = vadd.f32 %v2952, %v3285
      %v3287 = vpop.f32.mrb[0].mxu0
      %3288 = vmatprep.mubr.f32.mxu0 0.0
      %3289 = vmatmul.mubr.f32.gmra.mrb[0].mxu0 %v2921
      %v3290 = vpop.f32.mrb[0].mxu0
      %v3291 = vadd.f32 %v2952, %v3290
      %v3292 = vpop.f32.mrb[0].mxu0
      %3293 = vmatprep.mubr.f32.mxu0 0.0
      %3294 = vmatmul.mubr.f32.gmra.mrb[0].mxu0 %v2922
      %v3295 = vpop.f32.mrb[0].mxu0
      %v3296 = vadd.f32 %v2952, %v3295
      %v3297 = vpop.f32.mrb[0].mxu0
      %3298 = vmatprep.mubr.f32.mxu0 0.0
      %3299 = vmatmul.mubr.f32.gmra.mrb[0].mxu0 %v2923
      %v3300 = vpop.f32.mrb[0].mxu0
      %v3301 = vadd.f32 %v2952, %v3300
      %v3302 = vpop.f32.mrb[0].mxu0
      %3303 = vmatprep.mubr.f32.mxu0 0.0
      %3304 = vmatmul.mubr.f32.gmra.mrb[0].mxu0 %v2924
      %v3305 = vpop.f32.mrb[0].mxu0
      %v3306 = vadd.f32 %v2952, %v3305
      %v3307 = vpop.f32.mrb[0].mxu0
      %3308 = vmatprep.mubr.f32.mxu0 0.0
      %3309 = vmatmul.mubr.f32.gmra.mrb[0].mxu0 %v2925
      %v3310 = vpop.f32.mrb[0].mxu0
      %v3311 = vadd.f32 %v2952, %v3310
      %v3312 = vpop.f32.mrb[0].mxu0
      %3313 = vmatprep.mubr.f32.mxu0 0.0
      %3314 = vmatmul.mubr.f32.gmra.mrb[0].mxu0 %v2926
      %v3315 = vpop.f32.mrb[0].mxu0
      %v3316 = vadd.f32 %v2952, %v3315
      %v3317 = vpop.f32.mrb[0].mxu0
      %3318 = vmatprep.mubr.f32.mxu0 0.0
      %3319 = vmatmul.mubr.f32.gmra.mrb[0].mxu0 %v2927
      %v3320 = vpop.f32.mrb[0].mxu0
      %v3321 = vadd.f32 %v2952, %v3320
      %v3322 = vpop.f32.mrb[0].mxu0
      %3323 = vmatprep.mubr.f32.mxu0 0.0
      %3324 = vmatmul.mubr.f32.gmra.mrb[0].mxu0 %v2928
      %v3325 = vpop.f32.mrb[0].mxu0
      %v3326 = vadd.f32 %v2952, %v3325
      %v3327 = vpop.f32.mrb[0].mxu0
      %3328 = vmatprep.mubr.f32.mxu0 0.0
      %3329 = vmatmul.mubr.f32.gmra.mrb[0].mxu0 %v2929
      %v3330 = vpop.f32.mrb[0].mxu0
      %v3331 = vadd.f32 %v2952, %v3330
      %v3332 = vpop.f32.mrb[0].mxu0
      %3333 = vmatprep.mubr.f32.mxu0 0.0
      %3334 = vmatmul.mubr.f32.gmra.mrb[0].mxu0 %v2930
      %v3335 = vpop.f32.mrb[0].mxu0
      %v3336 = vadd.f32 %v2952, %v3335
      %v3337 = vpop.f32.mrb[0].mxu0
      %3338 = vdwg.mxu0
      %v3339 = vmax.f32 %v3021, 0.0
      %v3340 = vmax.f32 %v3026, 0.0
      %v3341 = vmax.f32 %v3031, 0.0
      %v3342 = vmax.f32 %v3036, 0.0
      %v3343 = vmax.f32 %v3041, 0.0
      %v3344 = vmax.f32 %v3046, 0.0
      %v3345 = vmax.f32 %v3051, 0.0
      %v3346 = vmax.f32 %v3056, 0.0
      %v3347 = vmax.f32 %v3061, 0.0
      %v3348 = vmax.f32 %v3066, 0.0
      %v3349 = vmax.f32 %v3071, 0.0
      %v3350 = vmax.f32 %v3076, 0.0
      %v3351 = vmax.f32 %v3081, 0.0
      %v3352 = vmax.f32 %v3086, 0.0
      %v3353 = vmax.f32 %v3091, 0.0
      %v3354 = vmax.f32 %v3096, 0.0
      %v3355 = vmax.f32 %v3101, 0.0
      %v3356 = vmax.f32 %v3106, 0.0
      %v3357 = vmax.f32 %v3111, 0.0
      %v3358 = vmax.f32 %v3116, 0.0
      %v3359 = vmax.f32 %v3121, 0.0
      %v3360 = vmax.f32 %v3126, 0.0
      %v3361 = vmax.f32 %v3131, 0.0
      %v3362 = vmax.f32 %v3136, 0.0
      %v3363 = vmax.f32 %v3141, 0.0
      %v3364 = vmax.f32 %v3146, 0.0
      %v3365 = vmax.f32 %v3151, 0.0
      %v3366 = vmax.f32 %v3156, 0.0
      %v3367 = vmax.f32 %v3161, 0.0
      %v3368 = vmax.f32 %v3166, 0.0
      %v3369 = vmax.f32 %v3171, 0.0
      %v3370 = vmax.f32 %v3176, 0.0
      %v3371 = vmax.f32 %v3181, 0.0
      %v3372 = vmax.f32 %v3186, 0.0
      %v3373 = vmax.f32 %v3191, 0.0
      %v3374 = vmax.f32 %v3196, 0.0
      %v3375 = vmax.f32 %v3201, 0.0
      %v3376 = vmax.f32 %v3206, 0.0
      %v3377 = vmax.f32 %v3211, 0.0
      %v3378 = vmax.f32 %v3216, 0.0
      %v3379 = vmax.f32 %v3221, 0.0
      %v3380 = vmax.f32 %v3226, 0.0
      %v3381 = vmax.f32 %v3231, 0.0
      %v3382 = vmax.f32 %v3236, 0.0
      %v3383 = vmax.f32 %v3241, 0.0
      %v3384 = vmax.f32 %v3246, 0.0
      %v3385 = vmax.f32 %v3251, 0.0
      %v3386 = vmax.f32 %v3256, 0.0
      %v3387 = vmax.f32 %v3261, 0.0
      %v3388 = vmax.f32 %v3266, 0.0
      %v3389 = vmax.f32 %v3271, 0.0
      %v3390 = vmax.f32 %v3276, 0.0
      %v3391 = vmax.f32 %v3281, 0.0
      %v3392 = vmax.f32 %v3286, 0.0
      %v3393 = vmax.f32 %v3291, 0.0
      %v3394 = vmax.f32 %v3296, 0.0
      %v3395 = vmax.f32 %v3301, 0.0
      %v3396 = vmax.f32 %v3306, 0.0
      %v3397 = vmax.f32 %v3311, 0.0
      %v3398 = vmax.f32 %v3316, 0.0
      %v3399 = vmax.f32 %v3321, 0.0
      %v3400 = vmax.f32 %v3326, 0.0
      %v3401 = vmax.f32 %v3331, 0.0
      %v3402 = vmax.f32 %v3336, 0.0
      %v3403 = vld [vmem:[%s3] sm:$0xff]
      %v3404 = vld [vmem:[%s3 + $0x8] sm:$0xff]
      %v3405 = vld [vmem:[%s3 + $0x10] sm:$0xff]
      %v3406 = vld [vmem:[%s3 + $0x18] sm:$0xff]
      %v3407 = vld [vmem:[%s3 + $0x20] sm:$0xff]
      %v3408 = vld [vmem:[%s3 + $0x28] sm:$0xff]
      %v3409 = vld [vmem:[%s3 + $0x30] sm:$0xff]
      %v3410 = vld [vmem:[%s3 + $0x38] sm:$0xff]
      %v3411 = vld [vmem:[%s3 + $0x40] sm:$0xff]
      %v3412 = vld [vmem:[%s3 + $0x48] sm:$0xff]
      %v3413 = vld [vmem:[%s3 + $0x50] sm:$0xff]
      %v3414 = vld [vmem:[%s3 + $0x58] sm:$0xff]
      %v3415 = vld [vmem:[%s3 + $0x60] sm:$0xff]
      %v3416 = vld [vmem:[%s3 + $0x68] sm:$0xff]
      %v3417 = vld [vmem:[%s3 + $0x70] sm:$0xff]
      %v3418 = vld [vmem:[%s3 + $0x78] sm:$0xff]
      %v3419 = vld [vmem:[%s3 + $0x80] sm:$0xff]
      %v3420 = vld [vmem:[%s3 + $0x88] sm:$0xff]
      %v3421 = vld [vmem:[%s3 + $0x90] sm:$0xff]
      %v3422 = vld [vmem:[%s3 + $0x98] sm:$0xff]
      %v3423 = vld [vmem:[%s3 + $0xa0] sm:$0xff]
      %v3424 = vld [vmem:[%s3 + $0xa8] sm:$0xff]
      %v3425 = vld [vmem:[%s3 + $0xb0] sm:$0xff]
      %v3426 = vld [vmem:[%s3 + $0xb8] sm:$0xff]
      %v3427 = vld [vmem:[%s3 + $0xc0] sm:$0xff]
      %v3428 = vld [vmem:[%s3 + $0xc8] sm:$0xff]
      %v3429 = vld [vmem:[%s3 + $0xd0] sm:$0xff]
      %v3430 = vld [vmem:[%s3 + $0xd8] sm:$0xff]
      %v3431 = vld [vmem:[%s3 + $0xe0] sm:$0xff]
      %v3432 = vld [vmem:[%s3 + $0xe8] sm:$0xff]
      %v3433 = vld [vmem:[%s3 + $0xf0] sm:$0xff]
      %v3434 = vld [vmem:[%s3 + $0xf8] sm:$0xff]
      %v3435 = vld [vmem:[%s3 + $0x100] sm:$0xff]
      %v3436 = vld [vmem:[%s3 + $0x108] sm:$0xff]
      %v3437 = vld [vmem:[%s3 + $0x110] sm:$0xff]
      %v3438 = vld [vmem:[%s3 + $0x118] sm:$0xff]
      %v3439 = vld [vmem:[%s3 + $0x120] sm:$0xff]
      %v3440 = vld [vmem:[%s3 + $0x128] sm:$0xff]
      %v3441 = vld [vmem:[%s3 + $0x130] sm:$0xff]
      %v3442 = vld [vmem:[%s3 + $0x138] sm:$0xff]
      %v3443 = vld [vmem:[%s3 + $0x140] sm:$0xff]
      %v3444 = vld [vmem:[%s3 + $0x148] sm:$0xff]
      %v3445 = vld [vmem:[%s3 + $0x150] sm:$0xff]
      %v3446 = vld [vmem:[%s3 + $0x158] sm:$0xff]
      %v3447 = vld [vmem:[%s3 + $0x160] sm:$0xff]
      %v3448 = vld [vmem:[%s3 + $0x168] sm:$0xff]
      %v3449 = vld [vmem:[%s3 + $0x170] sm:$0xff]
      %v3450 = vld [vmem:[%s3 + $0x178] sm:$0xff]
      %v3451 = vld [vmem:[%s3 + $0x180] sm:$0xff]
      %v3452 = vld [vmem:[%s3 + $0x188] sm:$0xff]
      %v3453 = vld [vmem:[%s3 + $0x190] sm:$0xff]
      %v3454 = vld [vmem:[%s3 + $0x198] sm:$0xff]
      %v3455 = vld [vmem:[%s3 + $0x1a0] sm:$0xff]
      %v3456 = vld [vmem:[%s3 + $0x1a8] sm:$0xff]
      %v3457 = vld [vmem:[%s3 + $0x1b0] sm:$0xff]
      %v3458 = vld [vmem:[%s3 + $0x1b8] sm:$0xff]
      %v3459 = vld [vmem:[%s3 + $0x1c0] sm:$0xff]
      %v3460 = vld [vmem:[%s3 + $0x1c8] sm:$0xff]
      %v3461 = vld [vmem:[%s3 + $0x1d0] sm:$0xff]
      %v3462 = vld [vmem:[%s3 + $0x1d8] sm:$0xff]
      %v3463 = vld [vmem:[%s3 + $0x1e0] sm:$0xff]
      %v3464 = vld [vmem:[%s3 + $0x1e8] sm:$0xff]
      %v3465 = vld [vmem:[%s3 + $0x1f0] sm:$0xff]
      %v3466 = vld [vmem:[%s3 + $0x1f8] sm:$0xff]
      %3467 = vmatprep.subr.mxu0 0.0
      %3468 = vmatpush1.msra.mxu0 %v3339
      %3469 = vmatprep.subr.mxu0 0.0
      %3470 = vmatpush1.msra.mxu0 %v3340
      %3471 = vmatprep.subr.mxu0 0.0
      %3472 = vmatpush1.msra.mxu0 %v3341
      %3473 = vmatprep.subr.mxu0 0.0
      %3474 = vmatpush1.msra.mxu0 %v3342
      %3475 = vmatprep.subr.mxu0 0.0
      %3476 = vmatpush1.msra.mxu0 %v3343
      %3477 = vmatprep.subr.mxu0 0.0
      %3478 = vmatpush1.msra.mxu0 %v3344
      %3479 = vmatprep.subr.mxu0 0.0
      %3480 = vmatpush1.msra.mxu0 %v3345
      %3481 = vmatprep.subr.mxu0 0.0
      %3482 = vmatpush1.msra.mxu0 %v3346
      %3483 = vmatprep.subr.mxu0 0.0
      %3484 = vmatpush1.msra.mxu0 %v3347
      %3485 = vmatprep.subr.mxu0 0.0
      %3486 = vmatpush1.msra.mxu0 %v3348
      %3487 = vmatprep.subr.mxu0 0.0
      %3488 = vmatpush1.msra.mxu0 %v3349
      %3489 = vmatprep.subr.mxu0 0.0
      %3490 = vmatpush1.msra.mxu0 %v3350
      %3491 = vmatprep.subr.mxu0 0.0
      %3492 = vmatpush1.msra.mxu0 %v3351
      %3493 = vmatprep.subr.mxu0 0.0
      %3494 = vmatpush1.msra.mxu0 %v3352
      %3495 = vmatprep.subr.mxu0 0.0
      %3496 = vmatpush1.msra.mxu0 %v3353
      %3497 = vmatprep.subr.mxu0 0.0
      %3498 = vmatpush1.msra.mxu0 %v3354
      %3499 = vmatprep.subr.mxu0 0.0
      %3500 = vmatpush1.msra.mxu0 %v3355
      %3501 = vmatprep.subr.mxu0 0.0
      %3502 = vmatpush1.msra.mxu0 %v3356
      %3503 = vmatprep.subr.mxu0 0.0
      %3504 = vmatpush1.msra.mxu0 %v3357
      %3505 = vmatprep.subr.mxu0 0.0
      %3506 = vmatpush1.msra.mxu0 %v3358
      %3507 = vmatprep.subr.mxu0 0.0
      %3508 = vmatpush1.msra.mxu0 %v3359
      %3509 = vmatprep.subr.mxu0 0.0
      %3510 = vmatpush1.msra.mxu0 %v3360
      %3511 = vmatprep.subr.mxu0 0.0
      %3512 = vmatpush1.msra.mxu0 %v3361
      %3513 = vmatprep.subr.mxu0 0.0
      %3514 = vmatpush1.msra.mxu0 %v3362
      %3515 = vmatprep.subr.mxu0 0.0
      %3516 = vmatpush1.msra.mxu0 %v3363
      %3517 = vmatprep.subr.mxu0 0.0
      %3518 = vmatpush1.msra.mxu0 %v3364
      %3519 = vmatprep.subr.mxu0 0.0
      %3520 = vmatpush1.msra.mxu0 %v3365
      %3521 = vmatprep.subr.mxu0 0.0
      %3522 = vmatpush1.msra.mxu0 %v3366
      %3523 = vmatprep.subr.mxu0 0.0
      %3524 = vmatpush1.msra.mxu0 %v3367
      %3525 = vmatprep.subr.mxu0 0.0
      %3526 = vmatpush1.msra.mxu0 %v3368
      %3527 = vmatprep.subr.mxu0 0.0
      %3528 = vmatpush1.msra.mxu0 %v3369
      %3529 = vmatprep.subr.mxu0 0.0
      %3530 = vmatpush1.msra.mxu0 %v3370
      %3531 = vmatprep.mubr.f32.mxu0 %v3404
      %3532 = vmatmul.mubr.f32.gmra.mrb[0].mxu0 %v3403
      %v3533 = vpop.f32.mrb[0].mxu0
      %v3534 = vadd.f32 0.0, %v3533
      %v3535 = vpop.f32.mrb[0].mxu0
      %3536 = vmatprep.mubr.f32.mxu0 %v3408
      %3537 = vmatmul.mubr.f32.gmra.mrb[0].mxu0 %v3407
      %v3538 = vpop.f32.mrb[0].mxu0
      %v3539 = vadd.f32 0.0, %v3538
      %v3540 = vpop.f32.mrb[0].mxu0
      %3541 = vmatprep.mubr.f32.mxu0 %v3412
      %3542 = vmatmul.mubr.f32.gmra.mrb[0].mxu0 %v3411
      %v3543 = vpop.f32.mrb[0].mxu0
      %v3544 = vadd.f32 0.0, %v3543
      %v3545 = vpop.f32.mrb[0].mxu0
      %3546 = vmatprep.mubr.f32.mxu0 %v3416
      %3547 = vmatmul.mubr.f32.gmra.mrb[0].mxu0 %v3415
      %v3548 = vpop.f32.mrb[0].mxu0
      %v3549 = vadd.f32 0.0, %v3548
      %v3550 = vpop.f32.mrb[0].mxu0
      %3551 = vmatprep.mubr.f32.mxu0 %v3420
      %3552 = vmatmul.mubr.f32.gmra.mrb[0].mxu0 %v3419
      %v3553 = vpop.f32.mrb[0].mxu0
      %v3554 = vadd.f32 0.0, %v3553
      %v3555 = vpop.f32.mrb[0].mxu0
      %3556 = vmatprep.mubr.f32.mxu0 %v3424
      %3557 = vmatmul.mubr.f32.gmra.mrb[0].mxu0 %v3423
      %v3558 = vpop.f32.mrb[0].mxu0
      %v3559 = vadd.f32 0.0, %v3558
      %v3560 = vpop.f32.mrb[0].mxu0
      %3561 = vmatprep.mubr.f32.mxu0 %v3428
      %3562 = vmatmul.mubr.f32.gmra.mrb[0].mxu0 %v3427
      %v3563 = vpop.f32.mrb[0].mxu0
      %v3564 = vadd.f32 0.0, %v3563
      %v3565 = vpop.f32.mrb[0].mxu0
      %3566 = vmatprep.mubr.f32.mxu0 %v3432
      %3567 = vmatmul.mubr.f32.gmra.mrb[0].mxu0 %v3431
      %v3568 = vpop.f32.mrb[0].mxu0
      %v3569 = vadd.f32 0.0, %v3568
      %v3570 = vpop.f32.mrb[0].mxu0
      %3571 = vmatprep.mubr.f32.mxu0 %v3436
      %3572 = vmatmul.mubr.f32.gmra.mrb[0].mxu0 %v3435
      %v3573 = vpop.f32.mrb[0].mxu0
      %v3574 = vadd.f32 0.0, %v3573
      %v3575 = vpop.f32.mrb[0].mxu0
      %3576 = vmatprep.mubr.f32.mxu0 %v3440
      %3577 = vmatmul.mubr.f32.gmra.mrb[0].mxu0 %v3439
      %v3578 = vpop.f32.mrb[0].mxu0
      %v3579 = vadd.f32 0.0, %v3578
      %v3580 = vpop.f32.mrb[0].mxu0
      %3581 = vmatprep.mubr.f32.mxu0 %v3444
      %3582 = vmatmul.mubr.f32.gmra.mrb[0].mxu0 %v3443
      %v3583 = vpop.f32.mrb[0].mxu0
      %v3584 = vadd.f32 0.0, %v3583
      %v3585 = vpop.f32.mrb[0].mxu0
      %3586 = vmatprep.mubr.f32.mxu0 %v3448
      %3587 = vmatmul.mubr.f32.gmra.mrb[0].mxu0 %v3447
      %v3588 = vpop.f32.mrb[0].mxu0
      %v3589 = vadd.f32 0.0, %v3588
      %v3590 = vpop.f32.mrb[0].mxu0
      %3591 = vmatprep.mubr.f32.mxu0 %v3452
      %3592 = vmatmul.mubr.f32.gmra.mrb[0].mxu0 %v3451
      %v3593 = vpop.f32.mrb[0].mxu0
      %v3594 = vadd.f32 0.0, %v3593
      %v3595 = vpop.f32.mrb[0].mxu0
      %3596 = vmatprep.mubr.f32.mxu0 %v3456
      %3597 = vmatmul.mubr.f32.gmra.mrb[0].mxu0 %v3455
      %v3598 = vpop.f32.mrb[0].mxu0
      %v3599 = vadd.f32 0.0, %v3598
      %v3600 = vpop.f32.mrb[0].mxu0
      %3601 = vmatprep.mubr.f32.mxu0 %v3460
      %3602 = vmatmul.mubr.f32.gmra.mrb[0].mxu0 %v3459
      %v3603 = vpop.f32.mrb[0].mxu0
      %v3604 = vadd.f32 0.0, %v3603
      %v3605 = vpop.f32.mrb[0].mxu0
      %3606 = vmatprep.mubr.f32.mxu0 %v3464
      %3607 = vmatmul.mubr.f32.gmra.mrb[0].mxu0 %v3463
      %v3608 = vpop.f32.mrb[0].mxu0
      %v3609 = vadd.f32 0.0, %v3608
      %v3610 = vpop.f32.mrb[0].mxu0
      %3611 = vdwg.mxu0
      %3612 = vmatprep.subr.mxu0 0.0
      %3613 = vmatpush1.msra.mxu0 %v3371
      %3614 = vmatprep.subr.mxu0 0.0
      %3615 = vmatpush1.msra.mxu0 %v3372
      %3616 = vmatprep.subr.mxu0 0.0
      %3617 = vmatpush1.msra.mxu0 %v3373
      %3618 = vmatprep.subr.mxu0 0.0
      %3619 = vmatpush1.msra.mxu0 %v3374
      %3620 = vmatprep.subr.mxu0 0.0
      %3621 = vmatpush1.msra.mxu0 %v3375
      %3622 = vmatprep.subr.mxu0 0.0
      %3623 = vmatpush1.msra.mxu0 %v3376
      %3624 = vmatprep.subr.mxu0 0.0
      %3625 = vmatpush1.msra.mxu0 %v3377
      %3626 = vmatprep.subr.mxu0 0.0
      %3627 = vmatpush1.msra.mxu0 %v3378
      %3628 = vmatprep.subr.mxu0 0.0
      %3629 = vmatpush1.msra.mxu0 %v3379
      %3630 = vmatprep.subr.mxu0 0.0
      %3631 = vmatpush1.msra.mxu0 %v3380
      %3632 = vmatprep.subr.mxu0 0.0
      %3633 = vmatpush1.msra.mxu0 %v3381
      %3634 = vmatprep.subr.mxu0 0.0
      %3635 = vmatpush1.msra.mxu0 %v3382
      %3636 = vmatprep.subr.mxu0 0.0
      %3637 = vmatpush1.msra.mxu0 %v3383
      %3638 = vmatprep.subr.mxu0 0.0
      %3639 = vmatpush1.msra.mxu0 %v3384
      %3640 = vmatprep.subr.mxu0 0.0
      %3641 = vmatpush1.msra.mxu0 %v3385
      %3642 = vmatprep.subr.mxu0 0.0
      %3643 = vmatpush1.msra.mxu0 %v3386
      %3644 = vmatprep.subr.mxu0 0.0
      %3645 = vmatpush1.msra.mxu0 %v3387
      %3646 = vmatprep.subr.mxu0 0.0
      %3647 = vmatpush1.msra.mxu0 %v3388
      %3648 = vmatprep.subr.mxu0 0.0
      %3649 = vmatpush1.msra.mxu0 %v3389
      %3650 = vmatprep.subr.mxu0 0.0
      %3651 = vmatpush1.msra.mxu0 %v3390
      %3652 = vmatprep.subr.mxu0 0.0
      %3653 = vmatpush1.msra.mxu0 %v3391
      %3654 = vmatprep.subr.mxu0 0.0
      %3655 = vmatpush1.msra.mxu0 %v3392
      %3656 = vmatprep.subr.mxu0 0.0
      %3657 = vmatpush1.msra.mxu0 %v3393
      %3658 = vmatprep.subr.mxu0 0.0
      %3659 = vmatpush1.msra.mxu0 %v3394
      %3660 = vmatprep.subr.mxu0 0.0
      %3661 = vmatpush1.msra.mxu0 %v3395
      %3662 = vmatprep.subr.mxu0 0.0
      %3663 = vmatpush1.msra.mxu0 %v3396
      %3664 = vmatprep.subr.mxu0 0.0
      %3665 = vmatpush1.msra.mxu0 %v3397
      %3666 = vmatprep.subr.mxu0 0.0
      %3667 = vmatpush1.msra.mxu0 %v3398
      %3668 = vmatprep.subr.mxu0 0.0
      %3669 = vmatpush1.msra.mxu0 %v3399
      %3670 = vmatprep.subr.mxu0 0.0
      %3671 = vmatpush1.msra.mxu0 %v3400
      %3672 = vmatprep.subr.mxu0 0.0
      %3673 = vmatpush1.msra.mxu0 %v3401
      %3674 = vmatprep.subr.mxu0 0.0
      %3675 = vmatpush1.msra.mxu0 %v3402
      %3676 = vmatprep.mubr.f32.mxu0 %v3406
      %3677 = vmatmul.mubr.f32.gmra.mrb[0].mxu0 %v3405
      %v3678 = vpop.f32.mrb[0].mxu0
      %v3679 = vadd.f32 %v3534, %v3678
      %v3680 = vpop.f32.mrb[0].mxu0
      %3681 = vmatprep.mubr.f32.mxu0 %v3410
      %3682 = vmatmul.mubr.f32.gmra.mrb[0].mxu0 %v3409
      %v3683 = vpop.f32.mrb[0].mxu0
      %v3684 = vadd.f32 %v3539, %v3683
      %v3685 = vpop.f32.mrb[0].mxu0
      %3686 = vmatprep.mubr.f32.mxu0 %v3414
      %3687 = vmatmul.mubr.f32.gmra.mrb[0].mxu0 %v3413
      %v3688 = vpop.f32.mrb[0].mxu0
      %v3689 = vadd.f32 %v3544, %v3688
      %v3690 = vpop.f32.mrb[0].mxu0
      %3691 = vmatprep.mubr.f32.mxu0 %v3418
      %3692 = vmatmul.mubr.f32.gmra.mrb[0].mxu0 %v3417
      %v3693 = vpop.f32.mrb[0].mxu0
      %v3694 = vadd.f32 %v3549, %v3693
      %v3695 = vpop.f32.mrb[0].mxu0
      %3696 = vmatprep.mubr.f32.mxu0 %v3422
      %3697 = vmatmul.mubr.f32.gmra.mrb[0].mxu0 %v3421
      %v3698 = vpop.f32.mrb[0].mxu0
      %v3699 = vadd.f32 %v3554, %v3698
      %v3700 = vpop.f32.mrb[0].mxu0
      %3701 = vmatprep.mubr.f32.mxu0 %v3426
      %3702 = vmatmul.mubr.f32.gmra.mrb[0].mxu0 %v3425
      %v3703 = vpop.f32.mrb[0].mxu0
      %v3704 = vadd.f32 %v3559, %v3703
      %v3705 = vpop.f32.mrb[0].mxu0
      %3706 = vmatprep.mubr.f32.mxu0 %v3430
      %3707 = vmatmul.mubr.f32.gmra.mrb[0].mxu0 %v3429
      %v3708 = vpop.f32.mrb[0].mxu0
      %v3709 = vadd.f32 %v3564, %v3708
      %v3710 = vpop.f32.mrb[0].mxu0
      %3711 = vmatprep.mubr.f32.mxu0 %v3434
      %3712 = vmatmul.mubr.f32.gmra.mrb[0].mxu0 %v3433
      %v3713 = vpop.f32.mrb[0].mxu0
      %v3714 = vadd.f32 %v3569, %v3713
      %v3715 = vpop.f32.mrb[0].mxu0
      %3716 = vmatprep.mubr.f32.mxu0 %v3438
      %3717 = vmatmul.mubr.f32.gmra.mrb[0].mxu0 %v3437
      %v3718 = vpop.f32.mrb[0].mxu0
      %v3719 = vadd.f32 %v3574, %v3718
      %v3720 = vpop.f32.mrb[0].mxu0
      %3721 = vmatprep.mubr.f32.mxu0 %v3442
      %3722 = vmatmul.mubr.f32.gmra.mrb[0].mxu0 %v3441
      %v3723 = vpop.f32.mrb[0].mxu0
      %v3724 = vadd.f32 %v3579, %v3723
      %v3725 = vpop.f32.mrb[0].mxu0
      %3726 = vmatprep.mubr.f32.mxu0 %v3446
      %3727 = vmatmul.mubr.f32.gmra.mrb[0].mxu0 %v3445
      %v3728 = vpop.f32.mrb[0].mxu0
      %v3729 = vadd.f32 %v3584, %v3728
      %v3730 = vpop.f32.mrb[0].mxu0
      %3731 = vmatprep.mubr.f32.mxu0 %v3450
      %3732 = vmatmul.mubr.f32.gmra.mrb[0].mxu0 %v3449
      %v3733 = vpop.f32.mrb[0].mxu0
      %v3734 = vadd.f32 %v3589, %v3733
      %v3735 = vpop.f32.mrb[0].mxu0
      %3736 = vmatprep.mubr.f32.mxu0 %v3454
      %3737 = vmatmul.mubr.f32.gmra.mrb[0].mxu0 %v3453
      %v3738 = vpop.f32.mrb[0].mxu0
      %v3739 = vadd.f32 %v3594, %v3738
      %v3740 = vpop.f32.mrb[0].mxu0
      %3741 = vmatprep.mubr.f32.mxu0 %v3458
      %3742 = vmatmul.mubr.f32.gmra.mrb[0].mxu0 %v3457
      %v3743 = vpop.f32.mrb[0].mxu0
      %v3744 = vadd.f32 %v3599, %v3743
      %v3745 = vpop.f32.mrb[0].mxu0
      %3746 = vmatprep.mubr.f32.mxu0 %v3462
      %3747 = vmatmul.mubr.f32.gmra.mrb[0].mxu0 %v3461
      %v3748 = vpop.f32.mrb[0].mxu0
      %v3749 = vadd.f32 %v3604, %v3748
      %v3750 = vpop.f32.mrb[0].mxu0
      %3751 = vmatprep.mubr.f32.mxu0 %v3466
      %3752 = vmatmul.mubr.f32.gmra.mrb[0].mxu0 %v3465
      %v3753 = vpop.f32.mrb[0].mxu0
      %v3754 = vadd.f32 %v3609, %v3753
      %v3755 = vpop.f32.mrb[0].mxu0
      %3756 = vdwg.mxu0
      %3757 = vst [vmem:[%s231] sm:$0xff] %v3679
      %3758 = vst [vmem:[%s231 + $0x8] sm:$0xff] %v3684
      %3759 = vst [vmem:[%s231 + $0x10] sm:$0xff] %v3689
      %3760 = vst [vmem:[%s231 + $0x18] sm:$0xff] %v3694
      %3761 = vst [vmem:[%s231 + $0x20] sm:$0xff] %v3699
      %3762 = vst [vmem:[%s231 + $0x28] sm:$0xff] %v3704
      %3763 = vst [vmem:[%s231 + $0x30] sm:$0xff] %v3709
      %3764 = vst [vmem:[%s231 + $0x38] sm:$0xff] %v3714
      %3765 = vst [vmem:[%s231 + $0x40] sm:$0xff] %v3719
      %3766 = vst [vmem:[%s231 + $0x48] sm:$0xff] %v3724
      %3767 = vst [vmem:[%s231 + $0x50] sm:$0xff] %v3729
      %3768 = vst [vmem:[%s231 + $0x58] sm:$0xff] %v3734
      %3769 = vst [vmem:[%s231 + $0x60] sm:$0xff] %v3739
      %3770 = vst [vmem:[%s231 + $0x68] sm:$0xff] %v3744
      %3771 = vst [vmem:[%s231 + $0x70] sm:$0xff] %v3749
      %3772 = vst [vmem:[%s231 + $0x78] sm:$0xff] %v3754
      %p3773 = scmp.lt.s32.totalorder %s15, 1
      %s3774 = scalar_select %p3773, %s15, 1
      %s3775 = smul.addr %s3774, 16
      %s3776 = smul.addr %s3775, 8
      %s3777 = scalar_lea.vmem %s4, %s3776
      // Predicated region
      $region37: #{dla_forward.3} parent=35 // pred_check
        %p3778 = pneg %p132
      $region38: #{dla_forward.3} parent=35 // pred_check_branch
        %3780 = sbr.rel (%p3778) target = $region40
      $region39: #{dla_forward.3} parent=35 // pred_region
        _
      $region40: #{dla_forward.3} parent=35 // pred_fallthru
        _
    $region36: #{dla_forward.3} parent=5 // pred_fallthru
      _
    %p3781 = scmp.le.s32.totalorder 2, %s10
    // Predicated region
    $region41: #{dla_forward.3} parent=5 // pred_check
      %p3782 = pneg %p3781
    $region42: #{dla_forward.3} parent=5 // pred_check_branch
      %3784 = sbr.rel (%p3782) target = $region44
    $region43: #{dla_forward.3} parent=5 // pred_region
      %s3785 = ssub.s32 %s10, 2
      // Predicated region
      $region45: #{dla_forward.3} parent=43 // pred_check
        %p3786 = pneg %p138
      $region46: #{dla_forward.3} parent=43 // pred_check_branch
        %3788 = sbr.rel (%p3786) target = $region48
      $region47: #{dla_forward.3} parent=43 // pred_region
        %p3789 = scmp.lt.s32.totalorder %s16, 1
        %s3790 = scalar_select %p3789, %s16, 1
        %s3791 = smul.addr %s3790, 16
        %s3792 = smul.addr %s3791, 8
        %s3793 = scalar_lea.vmem %s4, %s3792
      $region48: #{dla_forward.3} parent=43 // pred_fallthru
        _
    $region44: #{dla_forward.3} parent=5 // pred_fallthru
      _
  $region6: #{dla_forward.3} parent=0 // loop_footer
    %s14 = sadd.s32 1, %s10
  $region7: #{dla_forward.3} parent=0 // loop_footer_branch
    %9 = sbr.rel target = $region3
  $region8: #{dla_forward.3} parent=0 // loop_exit
    _

</llo_original>
